<compile_context>
chip_gen: v5e
topology: v5e:2x2
jax: 0.10.0
libtpu: 0.0.40
codegen_flags: <defaults>
</compile_context>

<pallas_src>
import functools

import jax
import jax.numpy as jnp
from jax.experimental import pallas as pl
from jax.experimental.pallas import tpu as pltpu

# ---------------- small BART-like config ----------------
VOCAB = 128
D_MODEL = 32
N_HEADS = 2
HEAD_DIM = D_MODEL // N_HEADS
FFN_DIM = 64
ENC_LAYERS = 2
DEC_LAYERS = 2
MAX_POS = 64
POS_OFFSET = 2          # BartLearnedPositionalEmbedding offset
LN_EPS = 1e-5
NEG_INF = -1e9
IGNORE_INDEX = -100     # torch.nn.CrossEntropyLoss default
# facebook/bart-base: scale_embedding=False -> embed_scale == 1.0 both inside the
# BART model and in BART_Embedder_PT.get_fact_embeds.
EMBED_SCALE = 1.0


# ---------------- in-kernel math helpers (operate on values, not refs) ----------------
def _layernorm(x, g, b):
    mean = jnp.mean(x, axis=-1, keepdims=True)
    cen = x - mean
    var = jnp.mean(cen * cen, axis=-1, keepdims=True)
    return cen * jax.lax.rsqrt(var + LN_EPS) * g + b


def _erf(x):
    # TODO(synk): lax.erf has no guaranteed Mosaic lowering; use Abramowitz & Stegun
    # 7.1.26 (|err| <= 1.5e-7 ~= f32 eps), numerically equivalent to exact erf in f32.
    a = jnp.abs(x)
    t = 1.0 / (1.0 + 0.3275911 * a)
    poly = ((((1.061405429 * t - 1.453152027) * t + 1.421413741) * t
             - 0.284496736) * t + 0.254829592) * t
    y = 1.0 - poly * jnp.exp(-(a * a))
    return jnp.where(x >= 0, y, -y)


def _gelu(x):
    # exact (erf-based) GELU, matching torch.nn.functional.gelu default
    return 0.5 * x * (1.0 + _erf(x * 0.7071067811865476))


def _attention(q2d, k2d, v2d, biases, B, Sq, Sk):
    """q2d:(B*Sq, H*Dh) k2d,v2d:(B*Sk, H*Dh); biases[b] broadcastable to (Sq,Sk).

    Heads are sliced on the lane axis; batches/heads are tiny static loops that
    unroll at trace time inside the fused kernel (no extra launches)."""
    scale = HEAD_DIM ** -0.5
    rows = []
    for b in range(B):
        qb = q2d[b * Sq:(b + 1) * Sq, :]
        kb = k2d[b * Sk:(b + 1) * Sk, :]
        vb = v2d[b * Sk:(b + 1) * Sk, :]
        heads = []
        for h in range(N_HEADS):
            lo, hi = h * HEAD_DIM, (h + 1) * HEAD_DIM
            s = jax.lax.dot_general(qb[:, lo:hi], kb[:, lo:hi],
                                    (((1,), (1,)), ((), ())),
                                    preferred_element_type=jnp.float32)
            s = s * scale + biases[b]
            m = jnp.max(s, axis=-1, keepdims=True)
            p = jnp.exp(s - m)
            p = p / jnp.sum(p, axis=-1, keepdims=True)
            heads.append(jnp.dot(p, vb[:, lo:hi], preferred_element_type=jnp.float32))
        rows.append(jnp.concatenate(heads, axis=-1))
    return jnp.concatenate(rows, axis=0)


def _embed_tokens(ids, shared, pos, B):
    """Token gather via one-hot matmul (keeps the gather in-kernel) + pos add."""
    BS = ids.shape[0]
    V = shared.shape[0]
    iota_v = jax.lax.broadcasted_iota(jnp.int32, (BS, V), 1)
    onehot = (iota_v == ids).astype(jnp.float32)
    emb = jnp.dot(onehot, shared, preferred_element_type=jnp.float32) * EMBED_SCALE
    return emb + jnp.tile(pos, (B, 1)), iota_v


# ---------------- single fused encoder + decoder + lm_head + loss kernel ----------------
def _bart_fused_kernel(enc_ids_ref, enc_mask_ref, dec_ids_ref, labels_ref, cross_mask_ref,
                       shared_ref, enc_pos_ref, dec_pos_ref,
                       e_lng_ref, e_lnb_ref,
                       e_qkv_w_ref, e_qkv_b_ref, e_o_w_ref, e_o_b_ref,
                       e_ln1g_ref, e_ln1b_ref,
                       e_fc1w_ref, e_fc1b_ref, e_fc2w_ref, e_fc2b_ref,
                       e_ln2g_ref, e_ln2b_ref,
                       d_lng_ref, d_lnb_ref,
                       d_sqkv_w_ref, d_sqkv_b_ref, d_so_w_ref, d_so_b_ref,
                       d_ln1g_ref, d_ln1b_ref,
                       d_cq_w_ref, d_cq_b_ref, d_ckv_w_ref, d_ckv_b_ref,
                       d_co_w_ref, d_co_b_ref, d_ln2g_ref, d_ln2b_ref,
                       d_fc1w_ref, d_fc1b_ref, d_fc2w_ref, d_fc2b_ref,
                       d_ln3g_ref, d_ln3b_ref,
                       flb_ref,
                       logits_ref, loss_ref):
    B, S_enc = enc_mask_ref.shape
    V, D = shared_ref.shape
    BS_dec = dec_ids_ref.shape[0]
    S_dec = BS_dec // B
    LE = e_qkv_w_ref.shape[0]
    LD = d_sqkv_w_ref.shape[0]

    # ===================== encoder (get_fact_embeds) =====================
    x, _ = _embed_tokens(enc_ids_ref[...], shared_ref[...], enc_pos_ref[...], B)
    x = _layernorm(x, e_lng_ref[...], e_lnb_ref[...])

    enc_mask = enc_mask_ref[...]                                   # (B, S_enc) f32
    enc_biases = [(1.0 - enc_mask[b:b + 1, :]) * NEG_INF for b in range(B)]

    for l in range(LE):
        qkv = jnp.dot(x, e_qkv_w_ref[l], preferred_element_type=jnp.float32) + e_qkv_b_ref[l]
        q, k, v = qkv[:, 0:D], qkv[:, D:2 * D], qkv[:, 2 * D:3 * D]
        a = _attention(q, k, v, enc_biases, B, S_enc, S_enc)
        a = jnp.dot(a, e_o_w_ref[l], preferred_element_type=jnp.float32) + e_o_b_ref[l]
        x = _layernorm(x + a, e_ln1g_ref[l], e_ln1b_ref[l])
        h = jnp.dot(x, e_fc1w_ref[l], preferred_element_type=jnp.float32) + e_fc1b_ref[l]
        h = _gelu(h)
        h = jnp.dot(h, e_fc2w_ref[l], preferred_element_type=jnp.float32) + e_fc2b_ref[l]
        x = _layernorm(x + h, e_ln2g_ref[l], e_ln2b_ref[l])

    # encoder_outputs used as cross-attention memory (embed_scale == 1.0).
    # dae=False ("take token 0") is expressed purely through cross_mask (one-hot
    # at key 0) -- numerically identical to slicing embeddings[:, 0:1, :] since
    # softmax over a single valid key puts all mass on it.
    enc_mem = x * EMBED_SCALE                                      # (B*S_enc, D)

    # ===================== decoder =====================
    xd, iota_v = _embed_tokens(dec_ids_ref[...], shared_ref[...], dec_pos_ref[...], B)
    xd = _layernorm(xd, d_lng_ref[...], d_lnb_ref[...])

    # causal self-attention bias (shared across batches), built in-kernel
    r = jax.lax.broadcasted_iota(jnp.int32, (S_dec, S_dec), 0)
    c = jax.lax.broadcasted_iota(jnp.int32, (S_dec, S_dec), 1)
    causal = jnp.where(r >= c, 0.0, NEG_INF)
    self_biases = [causal for _ in range(B)]

    cross_mask = cross_mask_ref[...]                               # (B, S_enc) f32
    cross_biases = [(1.0 - cross_mask[b:b + 1, :]) * NEG_INF for b in range(B)]

    for l in range(LD):
        # --- causal self-attention (fused QKV) ---
        qkv = jnp.dot(xd, d_sqkv_w_ref[l], preferred_element_type=jnp.float32) + d_sqkv_b_ref[l]
        q, k, v = qkv[:, 0:D], qkv[:, D:2 * D], qkv[:, 2 * D:3 * D]
        a = _attention(q, k, v, self_biases, B, S_dec, S_dec)
        a = jnp.dot(a, d_so_w_ref[l], preferred_element_type=jnp.float32) + d_so_b_ref[l]
        xd = _layernorm(xd + a, d_ln1g_ref[l], d_ln1b_ref[l])
        # --- cross-attention (fused KV projection of encoder memory) ---
        q = jnp.dot(xd, d_cq_w_ref[l], preferred_element_type=jnp.float32) + d_cq_b_ref[l]
        kv = jnp.dot(enc_mem, d_ckv_w_ref[l], preferred_element_type=jnp.float32) + d_ckv_b_ref[l]
        k, v = kv[:, 0:D], kv[:, D:2 * D]
        a = _attention(q, k, v, cross_biases, B, S_dec, S_enc)
        a = jnp.dot(a, d_co_w_ref[l], preferred_element_type=jnp.float32) + d_co_b_ref[l]
        xd = _layernorm(xd + a, d_ln2g_ref[l], d_ln2b_ref[l])
        # --- FFN ---
        h = jnp.dot(xd, d_fc1w_ref[l], preferred_element_type=jnp.float32) + d_fc1b_ref[l]
        h = _gelu(h)
        h = jnp.dot(h, d_fc2w_ref[l], preferred_element_type=jnp.float32) + d_fc2b_ref[l]
        xd = _layernorm(xd + h, d_ln3g_ref[l], d_ln3b_ref[l])

    # --- lm_head tied to shared embedding: x @ shared.T (contract feature axis,
    #     no transposed copy materialized) + final_logits_bias ---
    logits = jax.lax.dot_general(xd, shared_ref[...], (((1,), (1,)), ((), ())),
                                 preferred_element_type=jnp.float32) + flb_ref[...]
    logits_ref[...] = logits.astype(logits_ref.dtype)

    # --- cross-entropy, mean over tokens with label != -100 ---
    labels = labels_ref[...]                                       # (B*S_dec, 1) int32
    m = jnp.max(logits, axis=-1, keepdims=True)
    lse = jnp.log(jnp.sum(jnp.exp(logits - m), axis=-1, keepdims=True)) + m
    onehot_l = (iota_v == labels).astype(jnp.float32)
    tgt = jnp.sum(logits * onehot_l, axis=-1, keepdims=True)
    valid_tok = (labels != IGNORE_INDEX).astype(jnp.float32)
    num = jnp.sum((lse - tgt) * valid_tok, keepdims=True)          # (1, 1)
    den = jnp.sum(valid_tok, keepdims=True)                        # (1, 1)
    loss_ref[...] = num / den


# ---------------- pallas_call wrapper ----------------
def _full_specs(arrays):
    # full-array blocks with grid=(1,): block_shape == array shape is always legal
    return [pl.BlockSpec(a.shape, lambda i, n=a.ndim: (0,) * n) for a in arrays]


def bart_embedder_forward(params, input_ids, attention_mask, decoder_input_ids, labels,
                          cross_attention_mask=None, dae=False):
    B, S_enc = input_ids.shape
    Bd, S_dec = decoder_input_ids.shape

    enc_ids2d = input_ids.reshape(B * S_enc, 1).astype(jnp.int32)
    enc_mask2d = attention_mask.astype(jnp.float32)
    dec_ids2d = decoder_input_ids.reshape(Bd * S_dec, 1).astype(jnp.int32)
    labels2d = labels.reshape(Bd * S_dec, 1).astype(jnp.int32)

    if dae:
        # full encoder memory; cross mask defaults to the encoder attention mask
        cm = attention_mask if cross_attention_mask is None else cross_attention_mask
        cross_mask = cm.astype(jnp.float32)
    else:
        # encoder_outputs = embeddings[:, 0, :].unsqueeze(1): attend only to key 0.
        # (Any user-supplied cross mask is irrelevant for a length-1 memory: softmax
        #  over a single key is always 1, matching the HF behaviour.)
        cross_mask = jnp.broadcast_to(
            (jnp.arange(S_enc) == 0).astype(jnp.float32)[None, :], (B, S_enc))

    p = params
    enc_pos = p['enc_pos'][POS_OFFSET:POS_OFFSET + S_enc]
    dec_pos = p['dec_pos'][POS_OFFSET:POS_OFFSET + S_dec]

    inputs = [enc_ids2d, enc_mask2d, dec_ids2d, labels2d, cross_mask,
              p['shared'], enc_pos, dec_pos,
              p['enc_ln_emb_g'], p['enc_ln_emb_b'],
              p['enc_qkv_w'], p['enc_qkv_b'],
              p['enc_o_w'], p['enc_o_b'],
              p['enc_ln1_g'], p['enc_ln1_b'],
              p['enc_fc1_w'], p['enc_fc1_b'],
              p['enc_fc2_w'], p['enc_fc2_b'],
              p['enc_ln2_g'], p['enc_ln2_b'],
              p['dec_ln_emb_g'], p['dec_ln_emb_b'],
              p['dec_self_qkv_w'], p['dec_self_qkv_b'],
              p['dec_self_o_w'], p['dec_self_o_b'],
              p['dec_ln1_g'], p['dec_ln1_b'],
              p['dec_cross_q_w'], p['dec_cross_q_b'],
              p['dec_cross_kv_w'], p['dec_cross_kv_b'],
              p['dec_cross_o_w'], p['dec_cross_o_b'],
              p['dec_ln2_g'], p['dec_ln2_b'],
              p['dec_fc1_w'], p['dec_fc1_b'],
              p['dec_fc2_w'], p['dec_fc2_b'],
              p['dec_ln3_g'], p['dec_ln3_b'],
              p['final_logits_bias']]

    logits2d, loss2d = pl.pallas_call(
        _bart_fused_kernel,
        out_shape=(jax.ShapeDtypeStruct((Bd * S_dec, VOCAB), jnp.float32),  # lane-dense (V=128)
                   jax.ShapeDtypeStruct((1, 1), jnp.float32)),
        grid=(1,),
        in_specs=_full_specs(inputs),
        out_specs=[pl.BlockSpec((Bd * S_dec, VOCAB), lambda i: (0, 0)),
                   pl.BlockSpec((1, 1), lambda i: (0, 0))],
        compiler_params=pltpu.CompilerParams(dimension_semantics=("arbitrary",)),
    )(*inputs)

    return loss2d[0, 0], logits2d.reshape(Bd, S_dec, VOCAB)


# ---------------- deterministic parameter init (per-layer weights pre-stacked) ----------------
def init_params(key):
    keys = iter(jax.random.split(key, 64))

    def dense(shape):
        return jax.random.normal(next(keys), shape, jnp.float32) * 0.02

    ones = lambda shape: jnp.ones(shape, jnp.float32)
    zeros = lambda shape: jnp.zeros(shape, jnp.float32)
    D, F, LE, LD = D_MODEL, FFN_DIM, ENC_LAYERS, DEC_LAYERS

    return dict(
        shared=dense((VOCAB, D)),
        enc_pos=dense((MAX_POS + POS_OFFSET, D)),
        dec_pos=dense((MAX_POS + POS_OFFSET, D)),
        enc_ln_emb_g=ones((1, D)), enc_ln_emb_b=zeros((1, D)),
        dec_ln_emb_g=ones((1, D)), dec_ln_emb_b=zeros((1, D)),
        final_logits_bias=zeros((1, VOCAB)),
        # encoder layers (stacked along a leading layer axis, indexed statically in-kernel)
        enc_qkv_w=dense((LE, D, 3 * D)), enc_qkv_b=zeros((LE, 1, 3 * D)),
        enc_o_w=dense((LE, D, D)), enc_o_b=zeros((LE, 1, D)),
        enc_ln1_g=ones((LE, 1, D)), enc_ln1_b=zeros((LE, 1, D)),
        enc_fc1_w=dense((LE, D, F)), enc_fc1_b=zeros((LE, 1, F)),
        enc_fc2_w=dense((LE, F, D)), enc_fc2_b=zeros((LE, 1, D)),
        enc_ln2_g=ones((LE, 1, D)), enc_ln2_b=zeros((LE, 1, D)),
        # decoder layers
        dec_self_qkv_w=dense((LD, D, 3 * D)), dec_self_qkv_b=zeros((LD, 1, 3 * D)),
        dec_self_o_w=dense((LD, D, D)), dec_self_o_b=zeros((LD, 1, D)),
        dec_ln1_g=ones((LD, 1, D)), dec_ln1_b=zeros((LD, 1, D)),
        dec_cross_q_w=dense((LD, D, D)), dec_cross_q_b=zeros((LD, 1, D)),
        dec_cross_kv_w=dense((LD, D, 2 * D)), dec_cross_kv_b=zeros((LD, 1, 2 * D)),
        dec_cross_o_w=dense((LD, D, D)), dec_cross_o_b=zeros((LD, 1, D)),
        dec_ln2_g=ones((LD, 1, D)), dec_ln2_b=zeros((LD, 1, D)),
        dec_fc1_w=dense((LD, D, F)), dec_fc1_b=zeros((LD, 1, F)),
        dec_fc2_w=dense((LD, F, D)), dec_fc2_b=zeros((LD, 1, D)),
        dec_ln3_g=ones((LD, 1, D)), dec_ln3_b=zeros((LD, 1, D)),
    )


if __name__ == "__main__":
    key = jax.random.PRNGKey(0)
    pkey, k1, k2, k3 = jax.random.split(key, 4)
    params = init_params(pkey)

    B, S_ENC, S_DEC = 2, 8, 8
    input_ids = jax.random.randint(k1, (B, S_ENC), 0, VOCAB, dtype=jnp.int32)
    attention_mask = jnp.ones((B, S_ENC), jnp.int32)
    decoder_input_ids = jax.random.randint(k2, (B, S_DEC), 0, VOCAB, dtype=jnp.int32)
    labels = jax.random.randint(k3, (B, S_DEC), 0, VOCAB, dtype=jnp.int32)

    fwd = jax.jit(functools.partial(bart_embedder_forward, dae=False))
    loss, logits = fwd(params, input_ids, attention_mask, decoder_input_ids, labels)
    jax.block_until_ready((loss, logits))
    assert logits.shape == (B, S_DEC, VOCAB)
    assert bool(jnp.isfinite(loss))
    print("KERNEL_OK")
</pallas_src>

<mosaic_0001>
module attributes {stable_mosaic.version = 11 : i64} {
  func.func @_bart_fused_kernel(%arg0: i32, %arg1: memref<16x1xi32, #tpu.memory_space<vmem>>, %arg2: memref<2x8xf32, #tpu.memory_space<vmem>>, %arg3: memref<16x1xi32, #tpu.memory_space<vmem>>, %arg4: memref<16x1xi32, #tpu.memory_space<vmem>>, %arg5: memref<2x8xf32, #tpu.memory_space<vmem>>, %arg6: memref<128x32xf32, #tpu.memory_space<vmem>>, %arg7: memref<8x32xf32, #tpu.memory_space<vmem>>, %arg8: memref<8x32xf32, #tpu.memory_space<vmem>>, %arg9: memref<1x32xf32, #tpu.memory_space<vmem>>, %arg10: memref<1x32xf32, #tpu.memory_space<vmem>>, %arg11: memref<2x32x96xf32, #tpu.memory_space<vmem>>, %arg12: memref<2x1x96xf32, #tpu.memory_space<vmem>>, %arg13: memref<2x32x32xf32, #tpu.memory_space<vmem>>, %arg14: memref<2x1x32xf32, #tpu.memory_space<vmem>>, %arg15: memref<2x1x32xf32, #tpu.memory_space<vmem>>, %arg16: memref<2x1x32xf32, #tpu.memory_space<vmem>>, %arg17: memref<2x32x64xf32, #tpu.memory_space<vmem>>, %arg18: memref<2x1x64xf32, #tpu.memory_space<vmem>>, %arg19: memref<2x64x32xf32, #tpu.memory_space<vmem>>, %arg20: memref<2x1x32xf32, #tpu.memory_space<vmem>>, %arg21: memref<2x1x32xf32, #tpu.memory_space<vmem>>, %arg22: memref<2x1x32xf32, #tpu.memory_space<vmem>>, %arg23: memref<1x32xf32, #tpu.memory_space<vmem>>, %arg24: memref<1x32xf32, #tpu.memory_space<vmem>>, %arg25: memref<2x32x96xf32, #tpu.memory_space<vmem>>, %arg26: memref<2x1x96xf32, #tpu.memory_space<vmem>>, %arg27: memref<2x32x32xf32, #tpu.memory_space<vmem>>, %arg28: memref<2x1x32xf32, #tpu.memory_space<vmem>>, %arg29: memref<2x1x32xf32, #tpu.memory_space<vmem>>, %arg30: memref<2x1x32xf32, #tpu.memory_space<vmem>>, %arg31: memref<2x32x32xf32, #tpu.memory_space<vmem>>, %arg32: memref<2x1x32xf32, #tpu.memory_space<vmem>>, %arg33: memref<2x32x64xf32, #tpu.memory_space<vmem>>, %arg34: memref<2x1x64xf32, #tpu.memory_space<vmem>>, %arg35: memref<2x32x32xf32, #tpu.memory_space<vmem>>, %arg36: memref<2x1x32xf32, #tpu.memory_space<vmem>>, %arg37: memref<2x1x32xf32, #tpu.memory_space<vmem>>, %arg38: memref<2x1x32xf32, #tpu.memory_space<vmem>>, %arg39: memref<2x32x64xf32, #tpu.memory_space<vmem>>, %arg40: memref<2x1x64xf32, #tpu.memory_space<vmem>>, %arg41: memref<2x64x32xf32, #tpu.memory_space<vmem>>, %arg42: memref<2x1x32xf32, #tpu.memory_space<vmem>>, %arg43: memref<2x1x32xf32, #tpu.memory_space<vmem>>, %arg44: memref<2x1x32xf32, #tpu.memory_space<vmem>>, %arg45: memref<1x128xf32, #tpu.memory_space<vmem>>, %arg46: memref<16x128xf32, #tpu.memory_space<vmem>>, %arg47: memref<1x1xf32, #tpu.memory_space<vmem>>) attributes {dimension_semantics = [#tpu.dimension_semantics<arbitrary>], iteration_bounds = array<i64: 1>, scalar_prefetch = 0 : i64, scratch_operands = 0 : i64, tpu.core_type = #tpu.core_type<tc>, window_params = [{pipeline_mode = #tpu.pipeline_mode<synchronous>, transform_indices = @transform_0, window_bounds = array<i64: 16, 1>}, {pipeline_mode = #tpu.pipeline_mode<synchronous>, transform_indices = @transform_1, window_bounds = array<i64: 2, 8>}, {pipeline_mode = #tpu.pipeline_mode<synchronous>, transform_indices = @transform_2, window_bounds = array<i64: 16, 1>}, {pipeline_mode = #tpu.pipeline_mode<synchronous>, transform_indices = @transform_3, window_bounds = array<i64: 16, 1>}, {pipeline_mode = #tpu.pipeline_mode<synchronous>, transform_indices = @transform_4, window_bounds = array<i64: 2, 8>}, {pipeline_mode = #tpu.pipeline_mode<synchronous>, transform_indices = @transform_5, window_bounds = array<i64: 128, 32>}, {pipeline_mode = #tpu.pipeline_mode<synchronous>, transform_indices = @transform_6, window_bounds = array<i64: 8, 32>}, {pipeline_mode = #tpu.pipeline_mode<synchronous>, transform_indices = @transform_7, window_bounds = array<i64: 8, 32>}, {pipeline_mode = #tpu.pipeline_mode<synchronous>, transform_indices = @transform_8, window_bounds = array<i64: 1, 32>}, {pipeline_mode = #tpu.pipeline_mode<synchronous>, transform_indices = @transform_9, window_bounds = array<i64: 1, 32>}, {pipeline_mode = #tpu.pipeline_mode<synchronous>, transform_indices = @transform_10, window_bounds = array<i64: 2, 32, 96>}, {pipeline_mode = #tpu.pipeline_mode<synchronous>, transform_indices = @transform_11, window_bounds = array<i64: 2, 1, 96>}, {pipeline_mode = #tpu.pipeline_mode<synchronous>, transform_indices = @transform_12, window_bounds = array<i64: 2, 32, 32>}, {pipeline_mode = #tpu.pipeline_mode<synchronous>, transform_indices = @transform_13, window_bounds = array<i64: 2, 1, 32>}, {pipeline_mode = #tpu.pipeline_mode<synchronous>, transform_indices = @transform_14, window_bounds = array<i64: 2, 1, 32>}, {pipeline_mode = #tpu.pipeline_mode<synchronous>, transform_indices = @transform_15, window_bounds = array<i64: 2, 1, 32>}, {pipeline_mode = #tpu.pipeline_mode<synchronous>, transform_indices = @transform_16, window_bounds = array<i64: 2, 32, 64>}, {pipeline_mode = #tpu.pipeline_mode<synchronous>, transform_indices = @transform_17, window_bounds = array<i64: 2, 1, 64>}, {pipeline_mode = #tpu.pipeline_mode<synchronous>, transform_indices = @transform_18, window_bounds = array<i64: 2, 64, 32>}, {pipeline_mode = #tpu.pipeline_mode<synchronous>, transform_indices = @transform_19, window_bounds = array<i64: 2, 1, 32>}, {pipeline_mode = #tpu.pipeline_mode<synchronous>, transform_indices = @transform_20, window_bounds = array<i64: 2, 1, 32>}, {pipeline_mode = #tpu.pipeline_mode<synchronous>, transform_indices = @transform_21, window_bounds = array<i64: 2, 1, 32>}, {pipeline_mode = #tpu.pipeline_mode<synchronous>, transform_indices = @transform_22, window_bounds = array<i64: 1, 32>}, {pipeline_mode = #tpu.pipeline_mode<synchronous>, transform_indices = @transform_23, window_bounds = array<i64: 1, 32>}, {pipeline_mode = #tpu.pipeline_mode<synchronous>, transform_indices = @transform_24, window_bounds = array<i64: 2, 32, 96>}, {pipeline_mode = #tpu.pipeline_mode<synchronous>, transform_indices = @transform_25, window_bounds = array<i64: 2, 1, 96>}, {pipeline_mode = #tpu.pipeline_mode<synchronous>, transform_indices = @transform_26, window_bounds = array<i64: 2, 32, 32>}, {pipeline_mode = #tpu.pipeline_mode<synchronous>, transform_indices = @transform_27, window_bounds = array<i64: 2, 1, 32>}, {pipeline_mode = #tpu.pipeline_mode<synchronous>, transform_indices = @transform_28, window_bounds = array<i64: 2, 1, 32>}, {pipeline_mode = #tpu.pipeline_mode<synchronous>, transform_indices = @transform_29, window_bounds = array<i64: 2, 1, 32>}, {pipeline_mode = #tpu.pipeline_mode<synchronous>, transform_indices = @transform_30, window_bounds = array<i64: 2, 32, 32>}, {pipeline_mode = #tpu.pipeline_mode<synchronous>, transform_indices = @transform_31, window_bounds = array<i64: 2, 1, 32>}, {pipeline_mode = #tpu.pipeline_mode<synchronous>, transform_indices = @transform_32, window_bounds = array<i64: 2, 32, 64>}, {pipeline_mode = #tpu.pipeline_mode<synchronous>, transform_indices = @transform_33, window_bounds = array<i64: 2, 1, 64>}, {pipeline_mode = #tpu.pipeline_mode<synchronous>, transform_indices = @transform_34, window_bounds = array<i64: 2, 32, 32>}, {pipeline_mode = #tpu.pipeline_mode<synchronous>, transform_indices = @transform_35, window_bounds = array<i64: 2, 1, 32>}, {pipeline_mode = #tpu.pipeline_mode<synchronous>, transform_indices = @transform_36, window_bounds = array<i64: 2, 1, 32>}, {pipeline_mode = #tpu.pipeline_mode<synchronous>, transform_indices = @transform_37, window_bounds = array<i64: 2, 1, 32>}, {pipeline_mode = #tpu.pipeline_mode<synchronous>, transform_indices = @transform_38, window_bounds = array<i64: 2, 32, 64>}, {pipeline_mode = #tpu.pipeline_mode<synchronous>, transform_indices = @transform_39, window_bounds = array<i64: 2, 1, 64>}, {pipeline_mode = #tpu.pipeline_mode<synchronous>, transform_indices = @transform_40, window_bounds = array<i64: 2, 64, 32>}, {pipeline_mode = #tpu.pipeline_mode<synchronous>, transform_indices = @transform_41, window_bounds = array<i64: 2, 1, 32>}, {pipeline_mode = #tpu.pipeline_mode<synchronous>, transform_indices = @transform_42, window_bounds = array<i64: 2, 1, 32>}, {pipeline_mode = #tpu.pipeline_mode<synchronous>, transform_indices = @transform_43, window_bounds = array<i64: 2, 1, 32>}, {pipeline_mode = #tpu.pipeline_mode<synchronous>, transform_indices = @transform_44, window_bounds = array<i64: 1, 128>}, {pipeline_mode = #tpu.pipeline_mode<synchronous>, transform_indices = @transform_45, window_bounds = array<i64: 16, 128>}, {pipeline_mode = #tpu.pipeline_mode<synchronous>, transform_indices = @transform_46, window_bounds = array<i64: 1, 1>}]} {
    %c0 = arith.constant 0 : index
    %c0_0 = arith.constant 0 : index
    %0 = vector.load %arg1[%c0, %c0_0] : memref<16x1xi32, #tpu.memory_space<vmem>>, vector<16x1xi32>
    %c0_1 = arith.constant 0 : index
    %c0_2 = arith.constant 0 : index
    %1 = vector.load %arg6[%c0_1, %c0_2] : memref<128x32xf32, #tpu.memory_space<vmem>>, vector<128x32xf32>
    %c0_3 = arith.constant 0 : index
    %c0_4 = arith.constant 0 : index
    %2 = vector.load %arg7[%c0_3, %c0_4] : memref<8x32xf32, #tpu.memory_space<vmem>>, vector<8x32xf32>
    %3 = tpu.iota {dimensions = array<i32: 1>} : vector<16x128xi32>
    %4 = vector.broadcast %0 : vector<16x1xi32> to vector<16x128xi32>
    %5 = arith.cmpi eq, %3, %4 : vector<16x128xi32>
    %6 = arith.extui %5 : vector<16x128xi1> to vector<16x128xi32>
    %7 = arith.sitofp %6 : vector<16x128xi32> to vector<16x128xf32>
    %cst = arith.constant dense<0.000000e+00> : vector<16x32xf32>
    %8 = tpu.matmul %7, %1, %cst {dimension_numbers = #tpu.dot_dimension_numbers<[1], [0], [0], [1], [0, 0, 1, 1], [], []>} : vector<16x128xf32>, vector<128x32xf32>, vector<16x32xf32> -> vector<16x32xf32>
    %cst_5 = arith.constant 1.000000e+00 : f32
    %9 = vector.broadcast %cst_5 : f32 to vector<16x32xf32>
    %10 = arith.mulf %8, %9 : vector<16x32xf32>
    %11 = tpu.concatenate %2, %2 in 0 : vector<8x32xf32>, vector<8x32xf32> -> vector<16x32xf32>
    %12 = arith.addf %10, %11 : vector<16x32xf32>
    %c0_6 = arith.constant 0 : index
    %c0_7 = arith.constant 0 : index
    %13 = vector.load %arg9[%c0_6, %c0_7] : memref<1x32xf32, #tpu.memory_space<vmem>>, vector<1x32xf32>
    %c0_8 = arith.constant 0 : index
    %c0_9 = arith.constant 0 : index
    %14 = vector.load %arg10[%c0_8, %c0_9] : memref<1x32xf32, #tpu.memory_space<vmem>>, vector<1x32xf32>
    %cst_10 = arith.constant dense<0.000000e+00> : vector<16xf32>
    %15 = vector.multi_reduction <add>, %12, %cst_10 [1] : vector<16x32xf32> to vector<16xf32>
    %16 = vector.shape_cast %15 : vector<16xf32> to vector<16x1xf32>
    %cst_11 = arith.constant 3.200000e+01 : f32
    %17 = vector.broadcast %cst_11 : f32 to vector<16x1xf32>
    %18 = arith.divf %16, %17 : vector<16x1xf32>
    %19 = vector.broadcast %18 : vector<16x1xf32> to vector<16x32xf32>
    %20 = arith.subf %12, %19 : vector<16x32xf32>
    %21 = arith.mulf %20, %20 : vector<16x32xf32>
    %cst_12 = arith.constant dense<0.000000e+00> : vector<16xf32>
    %22 = vector.multi_reduction <add>, %21, %cst_12 [1] : vector<16x32xf32> to vector<16xf32>
    %23 = vector.shape_cast %22 : vector<16xf32> to vector<16x1xf32>
    %cst_13 = arith.constant 3.200000e+01 : f32
    %24 = vector.broadcast %cst_13 : f32 to vector<16x1xf32>
    %25 = arith.divf %23, %24 : vector<16x1xf32>
    %cst_14 = arith.constant 9.99999974E-6 : f32
    %26 = vector.broadcast %cst_14 : f32 to vector<16x1xf32>
    %27 = arith.addf %25, %26 : vector<16x1xf32>
    %28 = math.rsqrt %27 : vector<16x1xf32>
    %29 = vector.broadcast %28 : vector<16x1xf32> to vector<16x32xf32>
    %30 = arith.mulf %20, %29 : vector<16x32xf32>
    %31 = vector.broadcast %13 : vector<1x32xf32> to vector<16x32xf32>
    %32 = arith.mulf %30, %31 : vector<16x32xf32>
    %33 = vector.broadcast %14 : vector<1x32xf32> to vector<16x32xf32>
    %34 = arith.addf %32, %33 : vector<16x32xf32>
    %c0_15 = arith.constant 0 : index
    %c0_16 = arith.constant 0 : index
    %35 = vector.load %arg2[%c0_15, %c0_16] : memref<2x8xf32, #tpu.memory_space<vmem>>, vector<2x8xf32>
    %36 = vector.extract_strided_slice %35 {offsets = [0, 0], sizes = [1, 8], strides = [1, 1]} : vector<2x8xf32> to vector<1x8xf32>
    %cst_17 = arith.constant 1.000000e+00 : f32
    %37 = vector.broadcast %cst_17 : f32 to vector<1x8xf32>
    %38 = arith.subf %37, %36 : vector<1x8xf32>
    %cst_18 = arith.constant -1.000000e+09 : f32
    %39 = vector.broadcast %cst_18 : f32 to vector<1x8xf32>
    %40 = arith.mulf %38, %39 : vector<1x8xf32>
    %41 = vector.extract_strided_slice %35 {offsets = [1, 0], sizes = [1, 8], strides = [1, 1]} : vector<2x8xf32> to vector<1x8xf32>
    %cst_19 = arith.constant 1.000000e+00 : f32
    %42 = vector.broadcast %cst_19 : f32 to vector<1x8xf32>
    %43 = arith.subf %42, %41 : vector<1x8xf32>
    %cst_20 = arith.constant -1.000000e+09 : f32
    %44 = vector.broadcast %cst_20 : f32 to vector<1x8xf32>
    %45 = arith.mulf %43, %44 : vector<1x8xf32>
    %c0_21 = arith.constant 0 : index
    %c0_22 = arith.constant 0 : index
    %c0_23 = arith.constant 0 : index
    %46 = vector.load %arg11[%c0_21, %c0_22, %c0_23] : memref<2x32x96xf32, #tpu.memory_space<vmem>>, vector<1x32x96xf32>
    %47 = vector.shape_cast %46 : vector<1x32x96xf32> to vector<32x96xf32>
    %cst_24 = arith.constant dense<0.000000e+00> : vector<16x96xf32>
    %48 = tpu.matmul %34, %47, %cst_24 {dimension_numbers = #tpu.dot_dimension_numbers<[1], [0], [0], [1], [0, 0, 1, 1], [], []>} : vector<16x32xf32>, vector<32x96xf32>, vector<16x96xf32> -> vector<16x96xf32>
    %c0_25 = arith.constant 0 : index
    %c0_26 = arith.constant 0 : index
    %c0_27 = arith.constant 0 : index
    %49 = vector.load %arg12[%c0_25, %c0_26, %c0_27] : memref<2x1x96xf32, #tpu.memory_space<vmem>>, vector<1x1x96xf32>
    %50 = vector.shape_cast %49 : vector<1x1x96xf32> to vector<1x96xf32>
    %51 = vector.broadcast %50 : vector<1x96xf32> to vector<16x96xf32>
    %52 = arith.addf %48, %51 : vector<16x96xf32>
    %53 = vector.extract_strided_slice %52 {offsets = [0, 0], sizes = [16, 32], strides = [1, 1]} : vector<16x96xf32> to vector<16x32xf32>
    %54 = vector.extract_strided_slice %52 {offsets = [0, 32], sizes = [16, 32], strides = [1, 1]} : vector<16x96xf32> to vector<16x32xf32>
    %55 = vector.extract_strided_slice %52 {offsets = [0, 64], sizes = [16, 32], strides = [1, 1]} : vector<16x96xf32> to vector<16x32xf32>
    %56 = vector.extract_strided_slice %53 {offsets = [0, 0], sizes = [8, 32], strides = [1, 1]} : vector<16x32xf32> to vector<8x32xf32>
    %57 = vector.extract_strided_slice %54 {offsets = [0, 0], sizes = [8, 32], strides = [1, 1]} : vector<16x32xf32> to vector<8x32xf32>
    %58 = vector.extract_strided_slice %55 {offsets = [0, 0], sizes = [8, 32], strides = [1, 1]} : vector<16x32xf32> to vector<8x32xf32>
    %59 = vector.extract_strided_slice %56 {offsets = [0, 0], sizes = [8, 16], strides = [1, 1]} : vector<8x32xf32> to vector<8x16xf32>
    %60 = vector.extract_strided_slice %57 {offsets = [0, 0], sizes = [8, 16], strides = [1, 1]} : vector<8x32xf32> to vector<8x16xf32>
    %cst_28 = arith.constant dense<0.000000e+00> : vector<8x8xf32>
    %61 = tpu.matmul %59, %60, %cst_28 {dimension_numbers = #tpu.dot_dimension_numbers<[1], [1], [0], [0], [0, 0, 1, 0], [], []>} : vector<8x16xf32>, vector<8x16xf32>, vector<8x8xf32> -> vector<8x8xf32>
    %cst_29 = arith.constant 2.500000e-01 : f32
    %62 = vector.broadcast %cst_29 : f32 to vector<8x8xf32>
    %63 = arith.mulf %61, %62 : vector<8x8xf32>
    %64 = vector.broadcast %40 : vector<1x8xf32> to vector<8x8xf32>
    %65 = arith.addf %63, %64 : vector<8x8xf32>
    %cst_30 = arith.constant dense<0xFF800000> : vector<8xf32>
    %66 = vector.multi_reduction <maximumf>, %65, %cst_30 [1] : vector<8x8xf32> to vector<8xf32>
    %67 = vector.shape_cast %66 : vector<8xf32> to vector<8x1xf32>
    %68 = vector.broadcast %67 : vector<8x1xf32> to vector<8x8xf32>
    %69 = arith.subf %65, %68 : vector<8x8xf32>
    %70 = math.exp %69 : vector<8x8xf32>
    %cst_31 = arith.constant dense<0.000000e+00> : vector<8xf32>
    %71 = vector.multi_reduction <add>, %70, %cst_31 [1] : vector<8x8xf32> to vector<8xf32>
    %72 = vector.shape_cast %71 : vector<8xf32> to vector<8x1xf32>
    %73 = vector.broadcast %72 : vector<8x1xf32> to vector<8x8xf32>
    %74 = arith.divf %70, %73 : vector<8x8xf32>
    %75 = vector.extract_strided_slice %58 {offsets = [0, 0], sizes = [8, 16], strides = [1, 1]} : vector<8x32xf32> to vector<8x16xf32>
    %cst_32 = arith.constant dense<0.000000e+00> : vector<8x16xf32>
    %76 = tpu.matmul %74, %75, %cst_32 {dimension_numbers = #tpu.dot_dimension_numbers<[1], [0], [0], [1], [0, 0, 1, 1], [], []>} : vector<8x8xf32>, vector<8x16xf32>, vector<8x16xf32> -> vector<8x16xf32>
    %77 = vector.extract_strided_slice %56 {offsets = [0, 16], sizes = [8, 16], strides = [1, 1]} : vector<8x32xf32> to vector<8x16xf32>
    %78 = vector.extract_strided_slice %57 {offsets = [0, 16], sizes = [8, 16], strides = [1, 1]} : vector<8x32xf32> to vector<8x16xf32>
    %cst_33 = arith.constant dense<0.000000e+00> : vector<8x8xf32>
    %79 = tpu.matmul %77, %78, %cst_33 {dimension_numbers = #tpu.dot_dimension_numbers<[1], [1], [0], [0], [0, 0, 1, 0], [], []>} : vector<8x16xf32>, vector<8x16xf32>, vector<8x8xf32> -> vector<8x8xf32>
    %cst_34 = arith.constant 2.500000e-01 : f32
    %80 = vector.broadcast %cst_34 : f32 to vector<8x8xf32>
    %81 = arith.mulf %79, %80 : vector<8x8xf32>
    %82 = vector.broadcast %40 : vector<1x8xf32> to vector<8x8xf32>
    %83 = arith.addf %81, %82 : vector<8x8xf32>
    %cst_35 = arith.constant dense<0xFF800000> : vector<8xf32>
    %84 = vector.multi_reduction <maximumf>, %83, %cst_35 [1] : vector<8x8xf32> to vector<8xf32>
    %85 = vector.shape_cast %84 : vector<8xf32> to vector<8x1xf32>
    %86 = vector.broadcast %85 : vector<8x1xf32> to vector<8x8xf32>
    %87 = arith.subf %83, %86 : vector<8x8xf32>
    %88 = math.exp %87 : vector<8x8xf32>
    %cst_36 = arith.constant dense<0.000000e+00> : vector<8xf32>
    %89 = vector.multi_reduction <add>, %88, %cst_36 [1] : vector<8x8xf32> to vector<8xf32>
    %90 = vector.shape_cast %89 : vector<8xf32> to vector<8x1xf32>
    %91 = vector.broadcast %90 : vector<8x1xf32> to vector<8x8xf32>
    %92 = arith.divf %88, %91 : vector<8x8xf32>
    %93 = vector.extract_strided_slice %58 {offsets = [0, 16], sizes = [8, 16], strides = [1, 1]} : vector<8x32xf32> to vector<8x16xf32>
    %cst_37 = arith.constant dense<0.000000e+00> : vector<8x16xf32>
    %94 = tpu.matmul %92, %93, %cst_37 {dimension_numbers = #tpu.dot_dimension_numbers<[1], [0], [0], [1], [0, 0, 1, 1], [], []>} : vector<8x8xf32>, vector<8x16xf32>, vector<8x16xf32> -> vector<8x16xf32>
    %95 = tpu.concatenate %76, %94 in 1 : vector<8x16xf32>, vector<8x16xf32> -> vector<8x32xf32>
    %96 = vector.extract_strided_slice %53 {offsets = [8, 0], sizes = [8, 32], strides = [1, 1]} : vector<16x32xf32> to vector<8x32xf32>
    %97 = vector.extract_strided_slice %54 {offsets = [8, 0], sizes = [8, 32], strides = [1, 1]} : vector<16x32xf32> to vector<8x32xf32>
    %98 = vector.extract_strided_slice %55 {offsets = [8, 0], sizes = [8, 32], strides = [1, 1]} : vector<16x32xf32> to vector<8x32xf32>
    %99 = vector.extract_strided_slice %96 {offsets = [0, 0], sizes = [8, 16], strides = [1, 1]} : vector<8x32xf32> to vector<8x16xf32>
    %100 = vector.extract_strided_slice %97 {offsets = [0, 0], sizes = [8, 16], strides = [1, 1]} : vector<8x32xf32> to vector<8x16xf32>
    %cst_38 = arith.constant dense<0.000000e+00> : vector<8x8xf32>
    %101 = tpu.matmul %99, %100, %cst_38 {dimension_numbers = #tpu.dot_dimension_numbers<[1], [1], [0], [0], [0, 0, 1, 0], [], []>} : vector<8x16xf32>, vector<8x16xf32>, vector<8x8xf32> -> vector<8x8xf32>
    %cst_39 = arith.constant 2.500000e-01 : f32
    %102 = vector.broadcast %cst_39 : f32 to vector<8x8xf32>
    %103 = arith.mulf %101, %102 : vector<8x8xf32>
    %104 = vector.broadcast %45 : vector<1x8xf32> to vector<8x8xf32>
    %105 = arith.addf %103, %104 : vector<8x8xf32>
    %cst_40 = arith.constant dense<0xFF800000> : vector<8xf32>
    %106 = vector.multi_reduction <maximumf>, %105, %cst_40 [1] : vector<8x8xf32> to vector<8xf32>
    %107 = vector.shape_cast %106 : vector<8xf32> to vector<8x1xf32>
    %108 = vector.broadcast %107 : vector<8x1xf32> to vector<8x8xf32>
    %109 = arith.subf %105, %108 : vector<8x8xf32>
    %110 = math.exp %109 : vector<8x8xf32>
    %cst_41 = arith.constant dense<0.000000e+00> : vector<8xf32>
    %111 = vector.multi_reduction <add>, %110, %cst_41 [1] : vector<8x8xf32> to vector<8xf32>
    %112 = vector.shape_cast %111 : vector<8xf32> to vector<8x1xf32>
    %113 = vector.broadcast %112 : vector<8x1xf32> to vector<8x8xf32>
    %114 = arith.divf %110, %113 : vector<8x8xf32>
    %115 = vector.extract_strided_slice %98 {offsets = [0, 0], sizes = [8, 16], strides = [1, 1]} : vector<8x32xf32> to vector<8x16xf32>
    %cst_42 = arith.constant dense<0.000000e+00> : vector<8x16xf32>
    %116 = tpu.matmul %114, %115, %cst_42 {dimension_numbers = #tpu.dot_dimension_numbers<[1], [0], [0], [1], [0, 0, 1, 1], [], []>} : vector<8x8xf32>, vector<8x16xf32>, vector<8x16xf32> -> vector<8x16xf32>
    %117 = vector.extract_strided_slice %96 {offsets = [0, 16], sizes = [8, 16], strides = [1, 1]} : vector<8x32xf32> to vector<8x16xf32>
    %118 = vector.extract_strided_slice %97 {offsets = [0, 16], sizes = [8, 16], strides = [1, 1]} : vector<8x32xf32> to vector<8x16xf32>
    %cst_43 = arith.constant dense<0.000000e+00> : vector<8x8xf32>
    %119 = tpu.matmul %117, %118, %cst_43 {dimension_numbers = #tpu.dot_dimension_numbers<[1], [1], [0], [0], [0, 0, 1, 0], [], []>} : vector<8x16xf32>, vector<8x16xf32>, vector<8x8xf32> -> vector<8x8xf32>
    %cst_44 = arith.constant 2.500000e-01 : f32
    %120 = vector.broadcast %cst_44 : f32 to vector<8x8xf32>
    %121 = arith.mulf %119, %120 : vector<8x8xf32>
    %122 = vector.broadcast %45 : vector<1x8xf32> to vector<8x8xf32>
    %123 = arith.addf %121, %122 : vector<8x8xf32>
    %cst_45 = arith.constant dense<0xFF800000> : vector<8xf32>
    %124 = vector.multi_reduction <maximumf>, %123, %cst_45 [1] : vector<8x8xf32> to vector<8xf32>
    %125 = vector.shape_cast %124 : vector<8xf32> to vector<8x1xf32>
    %126 = vector.broadcast %125 : vector<8x1xf32> to vector<8x8xf32>
    %127 = arith.subf %123, %126 : vector<8x8xf32>
    %128 = math.exp %127 : vector<8x8xf32>
    %cst_46 = arith.constant dense<0.000000e+00> : vector<8xf32>
    %129 = vector.multi_reduction <add>, %128, %cst_46 [1] : vector<8x8xf32> to vector<8xf32>
    %130 = vector.shape_cast %129 : vector<8xf32> to vector<8x1xf32>
    %131 = vector.broadcast %130 : vector<8x1xf32> to vector<8x8xf32>
    %132 = arith.divf %128, %131 : vector<8x8xf32>
    %133 = vector.extract_strided_slice %98 {offsets = [0, 16], sizes = [8, 16], strides = [1, 1]} : vector<8x32xf32> to vector<8x16xf32>
    %cst_47 = arith.constant dense<0.000000e+00> : vector<8x16xf32>
    %134 = tpu.matmul %132, %133, %cst_47 {dimension_numbers = #tpu.dot_dimension_numbers<[1], [0], [0], [1], [0, 0, 1, 1], [], []>} : vector<8x8xf32>, vector<8x16xf32>, vector<8x16xf32> -> vector<8x16xf32>
    %135 = tpu.concatenate %116, %134 in 1 : vector<8x16xf32>, vector<8x16xf32> -> vector<8x32xf32>
    %136 = tpu.concatenate %95, %135 in 0 : vector<8x32xf32>, vector<8x32xf32> -> vector<16x32xf32>
    %c0_48 = arith.constant 0 : index
    %c0_49 = arith.constant 0 : index
    %c0_50 = arith.constant 0 : index
    %137 = vector.load %arg13[%c0_48, %c0_49, %c0_50] : memref<2x32x32xf32, #tpu.memory_space<vmem>>, vector<1x32x32xf32>
    %138 = vector.shape_cast %137 : vector<1x32x32xf32> to vector<32x32xf32>
    %cst_51 = arith.constant dense<0.000000e+00> : vector<16x32xf32>
    %139 = tpu.matmul %136, %138, %cst_51 {dimension_numbers = #tpu.dot_dimension_numbers<[1], [0], [0], [1], [0, 0, 1, 1], [], []>} : vector<16x32xf32>, vector<32x32xf32>, vector<16x32xf32> -> vector<16x32xf32>
    %c0_52 = arith.constant 0 : index
    %c0_53 = arith.constant 0 : index
    %c0_54 = arith.constant 0 : index
    %140 = vector.load %arg14[%c0_52, %c0_53, %c0_54] : memref<2x1x32xf32, #tpu.memory_space<vmem>>, vector<1x1x32xf32>
    %141 = vector.shape_cast %140 : vector<1x1x32xf32> to vector<1x32xf32>
    %142 = vector.broadcast %141 : vector<1x32xf32> to vector<16x32xf32>
    %143 = arith.addf %139, %142 : vector<16x32xf32>
    %144 = arith.addf %34, %143 : vector<16x32xf32>
    %c0_55 = arith.constant 0 : index
    %c0_56 = arith.constant 0 : index
    %c0_57 = arith.constant 0 : index
    %145 = vector.load %arg15[%c0_55, %c0_56, %c0_57] : memref<2x1x32xf32, #tpu.memory_space<vmem>>, vector<1x1x32xf32>
    %146 = vector.shape_cast %145 : vector<1x1x32xf32> to vector<1x32xf32>
    %c0_58 = arith.constant 0 : index
    %c0_59 = arith.constant 0 : index
    %c0_60 = arith.constant 0 : index
    %147 = vector.load %arg16[%c0_58, %c0_59, %c0_60] : memref<2x1x32xf32, #tpu.memory_space<vmem>>, vector<1x1x32xf32>
    %148 = vector.shape_cast %147 : vector<1x1x32xf32> to vector<1x32xf32>
    %cst_61 = arith.constant dense<0.000000e+00> : vector<16xf32>
    %149 = vector.multi_reduction <add>, %144, %cst_61 [1] : vector<16x32xf32> to vector<16xf32>
    %150 = vector.shape_cast %149 : vector<16xf32> to vector<16x1xf32>
    %cst_62 = arith.constant 3.200000e+01 : f32
    %151 = vector.broadcast %cst_62 : f32 to vector<16x1xf32>
    %152 = arith.divf %150, %151 : vector<16x1xf32>
    %153 = vector.broadcast %152 : vector<16x1xf32> to vector<16x32xf32>
    %154 = arith.subf %144, %153 : vector<16x32xf32>
    %155 = arith.mulf %154, %154 : vector<16x32xf32>
    %cst_63 = arith.constant dense<0.000000e+00> : vector<16xf32>
    %156 = vector.multi_reduction <add>, %155, %cst_63 [1] : vector<16x32xf32> to vector<16xf32>
    %157 = vector.shape_cast %156 : vector<16xf32> to vector<16x1xf32>
    %cst_64 = arith.constant 3.200000e+01 : f32
    %158 = vector.broadcast %cst_64 : f32 to vector<16x1xf32>
    %159 = arith.divf %157, %158 : vector<16x1xf32>
    %cst_65 = arith.constant 9.99999974E-6 : f32
    %160 = vector.broadcast %cst_65 : f32 to vector<16x1xf32>
    %161 = arith.addf %159, %160 : vector<16x1xf32>
    %162 = math.rsqrt %161 : vector<16x1xf32>
    %163 = vector.broadcast %162 : vector<16x1xf32> to vector<16x32xf32>
    %164 = arith.mulf %154, %163 : vector<16x32xf32>
    %165 = vector.broadcast %146 : vector<1x32xf32> to vector<16x32xf32>
    %166 = arith.mulf %164, %165 : vector<16x32xf32>
    %167 = vector.broadcast %148 : vector<1x32xf32> to vector<16x32xf32>
    %168 = arith.addf %166, %167 : vector<16x32xf32>
    %c0_66 = arith.constant 0 : index
    %c0_67 = arith.constant 0 : index
    %c0_68 = arith.constant 0 : index
    %169 = vector.load %arg17[%c0_66, %c0_67, %c0_68] : memref<2x32x64xf32, #tpu.memory_space<vmem>>, vector<1x32x64xf32>
    %170 = vector.shape_cast %169 : vector<1x32x64xf32> to vector<32x64xf32>
    %cst_69 = arith.constant dense<0.000000e+00> : vector<16x64xf32>
    %171 = tpu.matmul %168, %170, %cst_69 {dimension_numbers = #tpu.dot_dimension_numbers<[1], [0], [0], [1], [0, 0, 1, 1], [], []>} : vector<16x32xf32>, vector<32x64xf32>, vector<16x64xf32> -> vector<16x64xf32>
    %c0_70 = arith.constant 0 : index
    %c0_71 = arith.constant 0 : index
    %c0_72 = arith.constant 0 : index
    %172 = vector.load %arg18[%c0_70, %c0_71, %c0_72] : memref<2x1x64xf32, #tpu.memory_space<vmem>>, vector<1x1x64xf32>
    %173 = vector.shape_cast %172 : vector<1x1x64xf32> to vector<1x64xf32>
    %174 = vector.broadcast %173 : vector<1x64xf32> to vector<16x64xf32>
    %175 = arith.addf %171, %174 : vector<16x64xf32>
    %cst_73 = arith.constant 5.000000e-01 : f32
    %176 = vector.broadcast %cst_73 : f32 to vector<16x64xf32>
    %177 = arith.mulf %176, %175 : vector<16x64xf32>
    %cst_74 = arith.constant 0.707106769 : f32
    %178 = vector.broadcast %cst_74 : f32 to vector<16x64xf32>
    %179 = arith.mulf %175, %178 : vector<16x64xf32>
    %180 = math.absf %179 : vector<16x64xf32>
    %cst_75 = arith.constant 0.327591091 : f32
    %181 = vector.broadcast %cst_75 : f32 to vector<16x64xf32>
    %182 = arith.mulf %181, %180 : vector<16x64xf32>
    %cst_76 = arith.constant 1.000000e+00 : f32
    %183 = vector.broadcast %cst_76 : f32 to vector<16x64xf32>
    %184 = arith.addf %183, %182 : vector<16x64xf32>
    %cst_77 = arith.constant 1.000000e+00 : f32
    %185 = vector.broadcast %cst_77 : f32 to vector<16x64xf32>
    %186 = arith.divf %185, %184 : vector<16x64xf32>
    %cst_78 = arith.constant 1.06140542 : f32
    %187 = vector.broadcast %cst_78 : f32 to vector<16x64xf32>
    %188 = arith.mulf %187, %186 : vector<16x64xf32>
    %cst_79 = arith.constant 1.45315206 : f32
    %189 = vector.broadcast %cst_79 : f32 to vector<16x64xf32>
    %190 = arith.subf %188, %189 : vector<16x64xf32>
    %191 = arith.mulf %190, %186 : vector<16x64xf32>
    %cst_80 = arith.constant 1.42141378 : f32
    %192 = vector.broadcast %cst_80 : f32 to vector<16x64xf32>
    %193 = arith.addf %191, %192 : vector<16x64xf32>
    %194 = arith.mulf %193, %186 : vector<16x64xf32>
    %cst_81 = arith.constant 0.284496725 : f32
    %195 = vector.broadcast %cst_81 : f32 to vector<16x64xf32>
    %196 = arith.subf %194, %195 : vector<16x64xf32>
    %197 = arith.mulf %196, %186 : vector<16x64xf32>
    %cst_82 = arith.constant 0.254829586 : f32
    %198 = vector.broadcast %cst_82 : f32 to vector<16x64xf32>
    %199 = arith.addf %197, %198 : vector<16x64xf32>
    %200 = arith.mulf %199, %186 : vector<16x64xf32>
    %201 = arith.mulf %180, %180 : vector<16x64xf32>
    %cst_83 = arith.constant 0.000000e+00 : f32
    %202 = vector.broadcast %cst_83 : f32 to vector<16x64xf32>
    %203 = arith.subf %202, %201 : vector<16x64xf32>
    %204 = math.exp %203 : vector<16x64xf32>
    %205 = arith.mulf %200, %204 : vector<16x64xf32>
    %cst_84 = arith.constant 1.000000e+00 : f32
    %206 = vector.broadcast %cst_84 : f32 to vector<16x64xf32>
    %207 = arith.subf %206, %205 : vector<16x64xf32>
    %cst_85 = arith.constant 0.000000e+00 : f32
    %208 = vector.broadcast %cst_85 : f32 to vector<16x64xf32>
    %209 = arith.cmpf oge, %179, %208 : vector<16x64xf32>
    %cst_86 = arith.constant 0.000000e+00 : f32
    %210 = vector.broadcast %cst_86 : f32 to vector<16x64xf32>
    %211 = arith.subf %210, %207 : vector<16x64xf32>
    %212 = arith.select %209, %207, %211 : vector<16x64xi1>, vector<16x64xf32>
    %cst_87 = arith.constant 1.000000e+00 : f32
    %213 = vector.broadcast %cst_87 : f32 to vector<16x64xf32>
    %214 = arith.addf %213, %212 : vector<16x64xf32>
    %215 = arith.mulf %177, %214 : vector<16x64xf32>
    %c0_88 = arith.constant 0 : index
    %c0_89 = arith.constant 0 : index
    %c0_90 = arith.constant 0 : index
    %216 = vector.load %arg19[%c0_88, %c0_89, %c0_90] : memref<2x64x32xf32, #tpu.memory_space<vmem>>, vector<1x64x32xf32>
    %217 = vector.shape_cast %216 : vector<1x64x32xf32> to vector<64x32xf32>
    %cst_91 = arith.constant dense<0.000000e+00> : vector<16x32xf32>
    %218 = tpu.matmul %215, %217, %cst_91 {dimension_numbers = #tpu.dot_dimension_numbers<[1], [0], [0], [1], [0, 0, 1, 1], [], []>} : vector<16x64xf32>, vector<64x32xf32>, vector<16x32xf32> -> vector<16x32xf32>
    %c0_92 = arith.constant 0 : index
    %c0_93 = arith.constant 0 : index
    %c0_94 = arith.constant 0 : index
    %219 = vector.load %arg20[%c0_92, %c0_93, %c0_94] : memref<2x1x32xf32, #tpu.memory_space<vmem>>, vector<1x1x32xf32>
    %220 = vector.shape_cast %219 : vector<1x1x32xf32> to vector<1x32xf32>
    %221 = vector.broadcast %220 : vector<1x32xf32> to vector<16x32xf32>
    %222 = arith.addf %218, %221 : vector<16x32xf32>
    %223 = arith.addf %168, %222 : vector<16x32xf32>
    %c0_95 = arith.constant 0 : index
    %c0_96 = arith.constant 0 : index
    %c0_97 = arith.constant 0 : index
    %224 = vector.load %arg21[%c0_95, %c0_96, %c0_97] : memref<2x1x32xf32, #tpu.memory_space<vmem>>, vector<1x1x32xf32>
    %225 = vector.shape_cast %224 : vector<1x1x32xf32> to vector<1x32xf32>
    %c0_98 = arith.constant 0 : index
    %c0_99 = arith.constant 0 : index
    %c0_100 = arith.constant 0 : index
    %226 = vector.load %arg22[%c0_98, %c0_99, %c0_100] : memref<2x1x32xf32, #tpu.memory_space<vmem>>, vector<1x1x32xf32>
    %227 = vector.shape_cast %226 : vector<1x1x32xf32> to vector<1x32xf32>
    %cst_101 = arith.constant dense<0.000000e+00> : vector<16xf32>
    %228 = vector.multi_reduction <add>, %223, %cst_101 [1] : vector<16x32xf32> to vector<16xf32>
    %229 = vector.shape_cast %228 : vector<16xf32> to vector<16x1xf32>
    %cst_102 = arith.constant 3.200000e+01 : f32
    %230 = vector.broadcast %cst_102 : f32 to vector<16x1xf32>
    %231 = arith.divf %229, %230 : vector<16x1xf32>
    %232 = vector.broadcast %231 : vector<16x1xf32> to vector<16x32xf32>
    %233 = arith.subf %223, %232 : vector<16x32xf32>
    %234 = arith.mulf %233, %233 : vector<16x32xf32>
    %cst_103 = arith.constant dense<0.000000e+00> : vector<16xf32>
    %235 = vector.multi_reduction <add>, %234, %cst_103 [1] : vector<16x32xf32> to vector<16xf32>
    %236 = vector.shape_cast %235 : vector<16xf32> to vector<16x1xf32>
    %cst_104 = arith.constant 3.200000e+01 : f32
    %237 = vector.broadcast %cst_104 : f32 to vector<16x1xf32>
    %238 = arith.divf %236, %237 : vector<16x1xf32>
    %cst_105 = arith.constant 9.99999974E-6 : f32
    %239 = vector.broadcast %cst_105 : f32 to vector<16x1xf32>
    %240 = arith.addf %238, %239 : vector<16x1xf32>
    %241 = math.rsqrt %240 : vector<16x1xf32>
    %242 = vector.broadcast %241 : vector<16x1xf32> to vector<16x32xf32>
    %243 = arith.mulf %233, %242 : vector<16x32xf32>
    %244 = vector.broadcast %225 : vector<1x32xf32> to vector<16x32xf32>
    %245 = arith.mulf %243, %244 : vector<16x32xf32>
    %246 = vector.broadcast %227 : vector<1x32xf32> to vector<16x32xf32>
    %247 = arith.addf %245, %246 : vector<16x32xf32>
    %c1 = arith.constant 1 : index
    %c0_106 = arith.constant 0 : index
    %c0_107 = arith.constant 0 : index
    %248 = vector.load %arg11[%c1, %c0_106, %c0_107] : memref<2x32x96xf32, #tpu.memory_space<vmem>>, vector<1x32x96xf32>
    %249 = vector.shape_cast %248 : vector<1x32x96xf32> to vector<32x96xf32>
    %cst_108 = arith.constant dense<0.000000e+00> : vector<16x96xf32>
    %250 = tpu.matmul %247, %249, %cst_108 {dimension_numbers = #tpu.dot_dimension_numbers<[1], [0], [0], [1], [0, 0, 1, 1], [], []>} : vector<16x32xf32>, vector<32x96xf32>, vector<16x96xf32> -> vector<16x96xf32>
    %c1_109 = arith.constant 1 : index
    %c0_110 = arith.constant 0 : index
    %c0_111 = arith.constant 0 : index
    %251 = vector.load %arg12[%c1_109, %c0_110, %c0_111] : memref<2x1x96xf32, #tpu.memory_space<vmem>>, vector<1x1x96xf32>
    %252 = vector.shape_cast %251 : vector<1x1x96xf32> to vector<1x96xf32>
    %253 = vector.broadcast %252 : vector<1x96xf32> to vector<16x96xf32>
    %254 = arith.addf %250, %253 : vector<16x96xf32>
    %255 = vector.extract_strided_slice %254 {offsets = [0, 0], sizes = [16, 32], strides = [1, 1]} : vector<16x96xf32> to vector<16x32xf32>
    %256 = vector.extract_strided_slice %254 {offsets = [0, 32], sizes = [16, 32], strides = [1, 1]} : vector<16x96xf32> to vector<16x32xf32>
    %257 = vector.extract_strided_slice %254 {offsets = [0, 64], sizes = [16, 32], strides = [1, 1]} : vector<16x96xf32> to vector<16x32xf32>
    %258 = vector.extract_strided_slice %255 {offsets = [0, 0], sizes = [8, 32], strides = [1, 1]} : vector<16x32xf32> to vector<8x32xf32>
    %259 = vector.extract_strided_slice %256 {offsets = [0, 0], sizes = [8, 32], strides = [1, 1]} : vector<16x32xf32> to vector<8x32xf32>
    %260 = vector.extract_strided_slice %257 {offsets = [0, 0], sizes = [8, 32], strides = [1, 1]} : vector<16x32xf32> to vector<8x32xf32>
    %261 = vector.extract_strided_slice %258 {offsets = [0, 0], sizes = [8, 16], strides = [1, 1]} : vector<8x32xf32> to vector<8x16xf32>
    %262 = vector.extract_strided_slice %259 {offsets = [0, 0], sizes = [8, 16], strides = [1, 1]} : vector<8x32xf32> to vector<8x16xf32>
    %cst_112 = arith.constant dense<0.000000e+00> : vector<8x8xf32>
    %263 = tpu.matmul %261, %262, %cst_112 {dimension_numbers = #tpu.dot_dimension_numbers<[1], [1], [0], [0], [0, 0, 1, 0], [], []>} : vector<8x16xf32>, vector<8x16xf32>, vector<8x8xf32> -> vector<8x8xf32>
    %cst_113 = arith.constant 2.500000e-01 : f32
    %264 = vector.broadcast %cst_113 : f32 to vector<8x8xf32>
    %265 = arith.mulf %263, %264 : vector<8x8xf32>
    %266 = vector.broadcast %40 : vector<1x8xf32> to vector<8x8xf32>
    %267 = arith.addf %265, %266 : vector<8x8xf32>
    %cst_114 = arith.constant dense<0xFF800000> : vector<8xf32>
    %268 = vector.multi_reduction <maximumf>, %267, %cst_114 [1] : vector<8x8xf32> to vector<8xf32>
    %269 = vector.shape_cast %268 : vector<8xf32> to vector<8x1xf32>
    %270 = vector.broadcast %269 : vector<8x1xf32> to vector<8x8xf32>
    %271 = arith.subf %267, %270 : vector<8x8xf32>
    %272 = math.exp %271 : vector<8x8xf32>
    %cst_115 = arith.constant dense<0.000000e+00> : vector<8xf32>
    %273 = vector.multi_reduction <add>, %272, %cst_115 [1] : vector<8x8xf32> to vector<8xf32>
    %274 = vector.shape_cast %273 : vector<8xf32> to vector<8x1xf32>
    %275 = vector.broadcast %274 : vector<8x1xf32> to vector<8x8xf32>
    %276 = arith.divf %272, %275 : vector<8x8xf32>
    %277 = vector.extract_strided_slice %260 {offsets = [0, 0], sizes = [8, 16], strides = [1, 1]} : vector<8x32xf32> to vector<8x16xf32>
    %cst_116 = arith.constant dense<0.000000e+00> : vector<8x16xf32>
    %278 = tpu.matmul %276, %277, %cst_116 {dimension_numbers = #tpu.dot_dimension_numbers<[1], [0], [0], [1], [0, 0, 1, 1], [], []>} : vector<8x8xf32>, vector<8x16xf32>, vector<8x16xf32> -> vector<8x16xf32>
    %279 = vector.extract_strided_slice %258 {offsets = [0, 16], sizes = [8, 16], strides = [1, 1]} : vector<8x32xf32> to vector<8x16xf32>
    %280 = vector.extract_strided_slice %259 {offsets = [0, 16], sizes = [8, 16], strides = [1, 1]} : vector<8x32xf32> to vector<8x16xf32>
    %cst_117 = arith.constant dense<0.000000e+00> : vector<8x8xf32>
    %281 = tpu.matmul %279, %280, %cst_117 {dimension_numbers = #tpu.dot_dimension_numbers<[1], [1], [0], [0], [0, 0, 1, 0], [], []>} : vector<8x16xf32>, vector<8x16xf32>, vector<8x8xf32> -> vector<8x8xf32>
    %cst_118 = arith.constant 2.500000e-01 : f32
    %282 = vector.broadcast %cst_118 : f32 to vector<8x8xf32>
    %283 = arith.mulf %281, %282 : vector<8x8xf32>
    %284 = vector.broadcast %40 : vector<1x8xf32> to vector<8x8xf32>
    %285 = arith.addf %283, %284 : vector<8x8xf32>
    %cst_119 = arith.constant dense<0xFF800000> : vector<8xf32>
    %286 = vector.multi_reduction <maximumf>, %285, %cst_119 [1] : vector<8x8xf32> to vector<8xf32>
    %287 = vector.shape_cast %286 : vector<8xf32> to vector<8x1xf32>
    %288 = vector.broadcast %287 : vector<8x1xf32> to vector<8x8xf32>
    %289 = arith.subf %285, %288 : vector<8x8xf32>
    %290 = math.exp %289 : vector<8x8xf32>
    %cst_120 = arith.constant dense<0.000000e+00> : vector<8xf32>
    %291 = vector.multi_reduction <add>, %290, %cst_120 [1] : vector<8x8xf32> to vector<8xf32>
    %292 = vector.shape_cast %291 : vector<8xf32> to vector<8x1xf32>
    %293 = vector.broadcast %292 : vector<8x1xf32> to vector<8x8xf32>
    %294 = arith.divf %290, %293 : vector<8x8xf32>
    %295 = vector.extract_strided_slice %260 {offsets = [0, 16], sizes = [8, 16], strides = [1, 1]} : vector<8x32xf32> to vector<8x16xf32>
    %cst_121 = arith.constant dense<0.000000e+00> : vector<8x16xf32>
    %296 = tpu.matmul %294, %295, %cst_121 {dimension_numbers = #tpu.dot_dimension_numbers<[1], [0], [0], [1], [0, 0, 1, 1], [], []>} : vector<8x8xf32>, vector<8x16xf32>, vector<8x16xf32> -> vector<8x16xf32>
    %297 = tpu.concatenate %278, %296 in 1 : vector<8x16xf32>, vector<8x16xf32> -> vector<8x32xf32>
    %298 = vector.extract_strided_slice %255 {offsets = [8, 0], sizes = [8, 32], strides = [1, 1]} : vector<16x32xf32> to vector<8x32xf32>
    %299 = vector.extract_strided_slice %256 {offsets = [8, 0], sizes = [8, 32], strides = [1, 1]} : vector<16x32xf32> to vector<8x32xf32>
    %300 = vector.extract_strided_slice %257 {offsets = [8, 0], sizes = [8, 32], strides = [1, 1]} : vector<16x32xf32> to vector<8x32xf32>
    %301 = vector.extract_strided_slice %298 {offsets = [0, 0], sizes = [8, 16], strides = [1, 1]} : vector<8x32xf32> to vector<8x16xf32>
    %302 = vector.extract_strided_slice %299 {offsets = [0, 0], sizes = [8, 16], strides = [1, 1]} : vector<8x32xf32> to vector<8x16xf32>
    %cst_122 = arith.constant dense<0.000000e+00> : vector<8x8xf32>
    %303 = tpu.matmul %301, %302, %cst_122 {dimension_numbers = #tpu.dot_dimension_numbers<[1], [1], [0], [0], [0, 0, 1, 0], [], []>} : vector<8x16xf32>, vector<8x16xf32>, vector<8x8xf32> -> vector<8x8xf32>
    %cst_123 = arith.constant 2.500000e-01 : f32
    %304 = vector.broadcast %cst_123 : f32 to vector<8x8xf32>
    %305 = arith.mulf %303, %304 : vector<8x8xf32>
    %306 = vector.broadcast %45 : vector<1x8xf32> to vector<8x8xf32>
    %307 = arith.addf %305, %306 : vector<8x8xf32>
    %cst_124 = arith.constant dense<0xFF800000> : vector<8xf32>
    %308 = vector.multi_reduction <maximumf>, %307, %cst_124 [1] : vector<8x8xf32> to vector<8xf32>
    %309 = vector.shape_cast %308 : vector<8xf32> to vector<8x1xf32>
    %310 = vector.broadcast %309 : vector<8x1xf32> to vector<8x8xf32>
    %311 = arith.subf %307, %310 : vector<8x8xf32>
    %312 = math.exp %311 : vector<8x8xf32>
    %cst_125 = arith.constant dense<0.000000e+00> : vector<8xf32>
    %313 = vector.multi_reduction <add>, %312, %cst_125 [1] : vector<8x8xf32> to vector<8xf32>
    %314 = vector.shape_cast %313 : vector<8xf32> to vector<8x1xf32>
    %315 = vector.broadcast %314 : vector<8x1xf32> to vector<8x8xf32>
    %316 = arith.divf %312, %315 : vector<8x8xf32>
    %317 = vector.extract_strided_slice %300 {offsets = [0, 0], sizes = [8, 16], strides = [1, 1]} : vector<8x32xf32> to vector<8x16xf32>
    %cst_126 = arith.constant dense<0.000000e+00> : vector<8x16xf32>
    %318 = tpu.matmul %316, %317, %cst_126 {dimension_numbers = #tpu.dot_dimension_numbers<[1], [0], [0], [1], [0, 0, 1, 1], [], []>} : vector<8x8xf32>, vector<8x16xf32>, vector<8x16xf32> -> vector<8x16xf32>
    %319 = vector.extract_strided_slice %298 {offsets = [0, 16], sizes = [8, 16], strides = [1, 1]} : vector<8x32xf32> to vector<8x16xf32>
    %320 = vector.extract_strided_slice %299 {offsets = [0, 16], sizes = [8, 16], strides = [1, 1]} : vector<8x32xf32> to vector<8x16xf32>
    %cst_127 = arith.constant dense<0.000000e+00> : vector<8x8xf32>
    %321 = tpu.matmul %319, %320, %cst_127 {dimension_numbers = #tpu.dot_dimension_numbers<[1], [1], [0], [0], [0, 0, 1, 0], [], []>} : vector<8x16xf32>, vector<8x16xf32>, vector<8x8xf32> -> vector<8x8xf32>
    %cst_128 = arith.constant 2.500000e-01 : f32
    %322 = vector.broadcast %cst_128 : f32 to vector<8x8xf32>
    %323 = arith.mulf %321, %322 : vector<8x8xf32>
    %324 = vector.broadcast %45 : vector<1x8xf32> to vector<8x8xf32>
    %325 = arith.addf %323, %324 : vector<8x8xf32>
    %cst_129 = arith.constant dense<0xFF800000> : vector<8xf32>
    %326 = vector.multi_reduction <maximumf>, %325, %cst_129 [1] : vector<8x8xf32> to vector<8xf32>
    %327 = vector.shape_cast %326 : vector<8xf32> to vector<8x1xf32>
    %328 = vector.broadcast %327 : vector<8x1xf32> to vector<8x8xf32>
    %329 = arith.subf %325, %328 : vector<8x8xf32>
    %330 = math.exp %329 : vector<8x8xf32>
    %cst_130 = arith.constant dense<0.000000e+00> : vector<8xf32>
    %331 = vector.multi_reduction <add>, %330, %cst_130 [1] : vector<8x8xf32> to vector<8xf32>
    %332 = vector.shape_cast %331 : vector<8xf32> to vector<8x1xf32>
    %333 = vector.broadcast %332 : vector<8x1xf32> to vector<8x8xf32>
    %334 = arith.divf %330, %333 : vector<8x8xf32>
    %335 = vector.extract_strided_slice %300 {offsets = [0, 16], sizes = [8, 16], strides = [1, 1]} : vector<8x32xf32> to vector<8x16xf32>
    %cst_131 = arith.constant dense<0.000000e+00> : vector<8x16xf32>
    %336 = tpu.matmul %334, %335, %cst_131 {dimension_numbers = #tpu.dot_dimension_numbers<[1], [0], [0], [1], [0, 0, 1, 1], [], []>} : vector<8x8xf32>, vector<8x16xf32>, vector<8x16xf32> -> vector<8x16xf32>
    %337 = tpu.concatenate %318, %336 in 1 : vector<8x16xf32>, vector<8x16xf32> -> vector<8x32xf32>
    %338 = tpu.concatenate %297, %337 in 0 : vector<8x32xf32>, vector<8x32xf32> -> vector<16x32xf32>
    %c1_132 = arith.constant 1 : index
    %c0_133 = arith.constant 0 : index
    %c0_134 = arith.constant 0 : index
    %339 = vector.load %arg13[%c1_132, %c0_133, %c0_134] : memref<2x32x32xf32, #tpu.memory_space<vmem>>, vector<1x32x32xf32>
    %340 = vector.shape_cast %339 : vector<1x32x32xf32> to vector<32x32xf32>
    %cst_135 = arith.constant dense<0.000000e+00> : vector<16x32xf32>
    %341 = tpu.matmul %338, %340, %cst_135 {dimension_numbers = #tpu.dot_dimension_numbers<[1], [0], [0], [1], [0, 0, 1, 1], [], []>} : vector<16x32xf32>, vector<32x32xf32>, vector<16x32xf32> -> vector<16x32xf32>
    %c1_136 = arith.constant 1 : index
    %c0_137 = arith.constant 0 : index
    %c0_138 = arith.constant 0 : index
    %342 = vector.load %arg14[%c1_136, %c0_137, %c0_138] : memref<2x1x32xf32, #tpu.memory_space<vmem>>, vector<1x1x32xf32>
    %343 = vector.shape_cast %342 : vector<1x1x32xf32> to vector<1x32xf32>
    %344 = vector.broadcast %343 : vector<1x32xf32> to vector<16x32xf32>
    %345 = arith.addf %341, %344 : vector<16x32xf32>
    %346 = arith.addf %247, %345 : vector<16x32xf32>
    %c1_139 = arith.constant 1 : index
    %c0_140 = arith.constant 0 : index
    %c0_141 = arith.constant 0 : index
    %347 = vector.load %arg15[%c1_139, %c0_140, %c0_141] : memref<2x1x32xf32, #tpu.memory_space<vmem>>, vector<1x1x32xf32>
    %348 = vector.shape_cast %347 : vector<1x1x32xf32> to vector<1x32xf32>
    %c1_142 = arith.constant 1 : index
    %c0_143 = arith.constant 0 : index
    %c0_144 = arith.constant 0 : index
    %349 = vector.load %arg16[%c1_142, %c0_143, %c0_144] : memref<2x1x32xf32, #tpu.memory_space<vmem>>, vector<1x1x32xf32>
    %350 = vector.shape_cast %349 : vector<1x1x32xf32> to vector<1x32xf32>
    %cst_145 = arith.constant dense<0.000000e+00> : vector<16xf32>
    %351 = vector.multi_reduction <add>, %346, %cst_145 [1] : vector<16x32xf32> to vector<16xf32>
    %352 = vector.shape_cast %351 : vector<16xf32> to vector<16x1xf32>
    %cst_146 = arith.constant 3.200000e+01 : f32
    %353 = vector.broadcast %cst_146 : f32 to vector<16x1xf32>
    %354 = arith.divf %352, %353 : vector<16x1xf32>
    %355 = vector.broadcast %354 : vector<16x1xf32> to vector<16x32xf32>
    %356 = arith.subf %346, %355 : vector<16x32xf32>
    %357 = arith.mulf %356, %356 : vector<16x32xf32>
    %cst_147 = arith.constant dense<0.000000e+00> : vector<16xf32>
    %358 = vector.multi_reduction <add>, %357, %cst_147 [1] : vector<16x32xf32> to vector<16xf32>
    %359 = vector.shape_cast %358 : vector<16xf32> to vector<16x1xf32>
    %cst_148 = arith.constant 3.200000e+01 : f32
    %360 = vector.broadcast %cst_148 : f32 to vector<16x1xf32>
    %361 = arith.divf %359, %360 : vector<16x1xf32>
    %cst_149 = arith.constant 9.99999974E-6 : f32
    %362 = vector.broadcast %cst_149 : f32 to vector<16x1xf32>
    %363 = arith.addf %361, %362 : vector<16x1xf32>
    %364 = math.rsqrt %363 : vector<16x1xf32>
    %365 = vector.broadcast %364 : vector<16x1xf32> to vector<16x32xf32>
    %366 = arith.mulf %356, %365 : vector<16x32xf32>
    %367 = vector.broadcast %348 : vector<1x32xf32> to vector<16x32xf32>
    %368 = arith.mulf %366, %367 : vector<16x32xf32>
    %369 = vector.broadcast %350 : vector<1x32xf32> to vector<16x32xf32>
    %370 = arith.addf %368, %369 : vector<16x32xf32>
    %c1_150 = arith.constant 1 : index
    %c0_151 = arith.constant 0 : index
    %c0_152 = arith.constant 0 : index
    %371 = vector.load %arg17[%c1_150, %c0_151, %c0_152] : memref<2x32x64xf32, #tpu.memory_space<vmem>>, vector<1x32x64xf32>
    %372 = vector.shape_cast %371 : vector<1x32x64xf32> to vector<32x64xf32>
    %cst_153 = arith.constant dense<0.000000e+00> : vector<16x64xf32>
    %373 = tpu.matmul %370, %372, %cst_153 {dimension_numbers = #tpu.dot_dimension_numbers<[1], [0], [0], [1], [0, 0, 1, 1], [], []>} : vector<16x32xf32>, vector<32x64xf32>, vector<16x64xf32> -> vector<16x64xf32>
    %c1_154 = arith.constant 1 : index
    %c0_155 = arith.constant 0 : index
    %c0_156 = arith.constant 0 : index
    %374 = vector.load %arg18[%c1_154, %c0_155, %c0_156] : memref<2x1x64xf32, #tpu.memory_space<vmem>>, vector<1x1x64xf32>
    %375 = vector.shape_cast %374 : vector<1x1x64xf32> to vector<1x64xf32>
    %376 = vector.broadcast %375 : vector<1x64xf32> to vector<16x64xf32>
    %377 = arith.addf %373, %376 : vector<16x64xf32>
    %cst_157 = arith.constant 5.000000e-01 : f32
    %378 = vector.broadcast %cst_157 : f32 to vector<16x64xf32>
    %379 = arith.mulf %378, %377 : vector<16x64xf32>
    %cst_158 = arith.constant 0.707106769 : f32
    %380 = vector.broadcast %cst_158 : f32 to vector<16x64xf32>
    %381 = arith.mulf %377, %380 : vector<16x64xf32>
    %382 = math.absf %381 : vector<16x64xf32>
    %cst_159 = arith.constant 0.327591091 : f32
    %383 = vector.broadcast %cst_159 : f32 to vector<16x64xf32>
    %384 = arith.mulf %383, %382 : vector<16x64xf32>
    %cst_160 = arith.constant 1.000000e+00 : f32
    %385 = vector.broadcast %cst_160 : f32 to vector<16x64xf32>
    %386 = arith.addf %385, %384 : vector<16x64xf32>
    %cst_161 = arith.constant 1.000000e+00 : f32
    %387 = vector.broadcast %cst_161 : f32 to vector<16x64xf32>
    %388 = arith.divf %387, %386 : vector<16x64xf32>
    %cst_162 = arith.constant 1.06140542 : f32
    %389 = vector.broadcast %cst_162 : f32 to vector<16x64xf32>
    %390 = arith.mulf %389, %388 : vector<16x64xf32>
    %cst_163 = arith.constant 1.45315206 : f32
    %391 = vector.broadcast %cst_163 : f32 to vector<16x64xf32>
    %392 = arith.subf %390, %391 : vector<16x64xf32>
    %393 = arith.mulf %392, %388 : vector<16x64xf32>
    %cst_164 = arith.constant 1.42141378 : f32
    %394 = vector.broadcast %cst_164 : f32 to vector<16x64xf32>
    %395 = arith.addf %393, %394 : vector<16x64xf32>
    %396 = arith.mulf %395, %388 : vector<16x64xf32>
    %cst_165 = arith.constant 0.284496725 : f32
    %397 = vector.broadcast %cst_165 : f32 to vector<16x64xf32>
    %398 = arith.subf %396, %397 : vector<16x64xf32>
    %399 = arith.mulf %398, %388 : vector<16x64xf32>
    %cst_166 = arith.constant 0.254829586 : f32
    %400 = vector.broadcast %cst_166 : f32 to vector<16x64xf32>
    %401 = arith.addf %399, %400 : vector<16x64xf32>
    %402 = arith.mulf %401, %388 : vector<16x64xf32>
    %403 = arith.mulf %382, %382 : vector<16x64xf32>
    %cst_167 = arith.constant 0.000000e+00 : f32
    %404 = vector.broadcast %cst_167 : f32 to vector<16x64xf32>
    %405 = arith.subf %404, %403 : vector<16x64xf32>
    %406 = math.exp %405 : vector<16x64xf32>
    %407 = arith.mulf %402, %406 : vector<16x64xf32>
    %cst_168 = arith.constant 1.000000e+00 : f32
    %408 = vector.broadcast %cst_168 : f32 to vector<16x64xf32>
    %409 = arith.subf %408, %407 : vector<16x64xf32>
    %cst_169 = arith.constant 0.000000e+00 : f32
    %410 = vector.broadcast %cst_169 : f32 to vector<16x64xf32>
    %411 = arith.cmpf oge, %381, %410 : vector<16x64xf32>
    %cst_170 = arith.constant 0.000000e+00 : f32
    %412 = vector.broadcast %cst_170 : f32 to vector<16x64xf32>
    %413 = arith.subf %412, %409 : vector<16x64xf32>
    %414 = arith.select %411, %409, %413 : vector<16x64xi1>, vector<16x64xf32>
    %cst_171 = arith.constant 1.000000e+00 : f32
    %415 = vector.broadcast %cst_171 : f32 to vector<16x64xf32>
    %416 = arith.addf %415, %414 : vector<16x64xf32>
    %417 = arith.mulf %379, %416 : vector<16x64xf32>
    %c1_172 = arith.constant 1 : index
    %c0_173 = arith.constant 0 : index
    %c0_174 = arith.constant 0 : index
    %418 = vector.load %arg19[%c1_172, %c0_173, %c0_174] : memref<2x64x32xf32, #tpu.memory_space<vmem>>, vector<1x64x32xf32>
    %419 = vector.shape_cast %418 : vector<1x64x32xf32> to vector<64x32xf32>
    %cst_175 = arith.constant dense<0.000000e+00> : vector<16x32xf32>
    %420 = tpu.matmul %417, %419, %cst_175 {dimension_numbers = #tpu.dot_dimension_numbers<[1], [0], [0], [1], [0, 0, 1, 1], [], []>} : vector<16x64xf32>, vector<64x32xf32>, vector<16x32xf32> -> vector<16x32xf32>
    %c1_176 = arith.constant 1 : index
    %c0_177 = arith.constant 0 : index
    %c0_178 = arith.constant 0 : index
    %421 = vector.load %arg20[%c1_176, %c0_177, %c0_178] : memref<2x1x32xf32, #tpu.memory_space<vmem>>, vector<1x1x32xf32>
    %422 = vector.shape_cast %421 : vector<1x1x32xf32> to vector<1x32xf32>
    %423 = vector.broadcast %422 : vector<1x32xf32> to vector<16x32xf32>
    %424 = arith.addf %420, %423 : vector<16x32xf32>
    %425 = arith.addf %370, %424 : vector<16x32xf32>
    %c1_179 = arith.constant 1 : index
    %c0_180 = arith.constant 0 : index
    %c0_181 = arith.constant 0 : index
    %426 = vector.load %arg21[%c1_179, %c0_180, %c0_181] : memref<2x1x32xf32, #tpu.memory_space<vmem>>, vector<1x1x32xf32>
    %427 = vector.shape_cast %426 : vector<1x1x32xf32> to vector<1x32xf32>
    %c1_182 = arith.constant 1 : index
    %c0_183 = arith.constant 0 : index
    %c0_184 = arith.constant 0 : index
    %428 = vector.load %arg22[%c1_182, %c0_183, %c0_184] : memref<2x1x32xf32, #tpu.memory_space<vmem>>, vector<1x1x32xf32>
    %429 = vector.shape_cast %428 : vector<1x1x32xf32> to vector<1x32xf32>
    %cst_185 = arith.constant dense<0.000000e+00> : vector<16xf32>
    %430 = vector.multi_reduction <add>, %425, %cst_185 [1] : vector<16x32xf32> to vector<16xf32>
    %431 = vector.shape_cast %430 : vector<16xf32> to vector<16x1xf32>
    %cst_186 = arith.constant 3.200000e+01 : f32
    %432 = vector.broadcast %cst_186 : f32 to vector<16x1xf32>
    %433 = arith.divf %431, %432 : vector<16x1xf32>
    %434 = vector.broadcast %433 : vector<16x1xf32> to vector<16x32xf32>
    %435 = arith.subf %425, %434 : vector<16x32xf32>
    %436 = arith.mulf %435, %435 : vector<16x32xf32>
    %cst_187 = arith.constant dense<0.000000e+00> : vector<16xf32>
    %437 = vector.multi_reduction <add>, %436, %cst_187 [1] : vector<16x32xf32> to vector<16xf32>
    %438 = vector.shape_cast %437 : vector<16xf32> to vector<16x1xf32>
    %cst_188 = arith.constant 3.200000e+01 : f32
    %439 = vector.broadcast %cst_188 : f32 to vector<16x1xf32>
    %440 = arith.divf %438, %439 : vector<16x1xf32>
    %cst_189 = arith.constant 9.99999974E-6 : f32
    %441 = vector.broadcast %cst_189 : f32 to vector<16x1xf32>
    %442 = arith.addf %440, %441 : vector<16x1xf32>
    %443 = math.rsqrt %442 : vector<16x1xf32>
    %444 = vector.broadcast %443 : vector<16x1xf32> to vector<16x32xf32>
    %445 = arith.mulf %435, %444 : vector<16x32xf32>
    %446 = vector.broadcast %427 : vector<1x32xf32> to vector<16x32xf32>
    %447 = arith.mulf %445, %446 : vector<16x32xf32>
    %448 = vector.broadcast %429 : vector<1x32xf32> to vector<16x32xf32>
    %449 = arith.addf %447, %448 : vector<16x32xf32>
    %cst_190 = arith.constant 1.000000e+00 : f32
    %450 = vector.broadcast %cst_190 : f32 to vector<16x32xf32>
    %451 = arith.mulf %449, %450 : vector<16x32xf32>
    %c0_191 = arith.constant 0 : index
    %c0_192 = arith.constant 0 : index
    %452 = vector.load %arg3[%c0_191, %c0_192] : memref<16x1xi32, #tpu.memory_space<vmem>>, vector<16x1xi32>
    %c0_193 = arith.constant 0 : index
    %c0_194 = arith.constant 0 : index
    %453 = vector.load %arg6[%c0_193, %c0_194] : memref<128x32xf32, #tpu.memory_space<vmem>>, vector<128x32xf32>
    %c0_195 = arith.constant 0 : index
    %c0_196 = arith.constant 0 : index
    %454 = vector.load %arg8[%c0_195, %c0_196] : memref<8x32xf32, #tpu.memory_space<vmem>>, vector<8x32xf32>
    %455 = tpu.iota {dimensions = array<i32: 1>} : vector<16x128xi32>
    %456 = vector.broadcast %452 : vector<16x1xi32> to vector<16x128xi32>
    %457 = arith.cmpi eq, %455, %456 : vector<16x128xi32>
    %458 = arith.extui %457 : vector<16x128xi1> to vector<16x128xi32>
    %459 = arith.sitofp %458 : vector<16x128xi32> to vector<16x128xf32>
    %cst_197 = arith.constant dense<0.000000e+00> : vector<16x32xf32>
    %460 = tpu.matmul %459, %453, %cst_197 {dimension_numbers = #tpu.dot_dimension_numbers<[1], [0], [0], [1], [0, 0, 1, 1], [], []>} : vector<16x128xf32>, vector<128x32xf32>, vector<16x32xf32> -> vector<16x32xf32>
    %cst_198 = arith.constant 1.000000e+00 : f32
    %461 = vector.broadcast %cst_198 : f32 to vector<16x32xf32>
    %462 = arith.mulf %460, %461 : vector<16x32xf32>
    %463 = tpu.concatenate %454, %454 in 0 : vector<8x32xf32>, vector<8x32xf32> -> vector<16x32xf32>
    %464 = arith.addf %462, %463 : vector<16x32xf32>
    %c0_199 = arith.constant 0 : index
    %c0_200 = arith.constant 0 : index
    %465 = vector.load %arg23[%c0_199, %c0_200] : memref<1x32xf32, #tpu.memory_space<vmem>>, vector<1x32xf32>
    %c0_201 = arith.constant 0 : index
    %c0_202 = arith.constant 0 : index
    %466 = vector.load %arg24[%c0_201, %c0_202] : memref<1x32xf32, #tpu.memory_space<vmem>>, vector<1x32xf32>
    %cst_203 = arith.constant dense<0.000000e+00> : vector<16xf32>
    %467 = vector.multi_reduction <add>, %464, %cst_203 [1] : vector<16x32xf32> to vector<16xf32>
    %468 = vector.shape_cast %467 : vector<16xf32> to vector<16x1xf32>
    %cst_204 = arith.constant 3.200000e+01 : f32
    %469 = vector.broadcast %cst_204 : f32 to vector<16x1xf32>
    %470 = arith.divf %468, %469 : vector<16x1xf32>
    %471 = vector.broadcast %470 : vector<16x1xf32> to vector<16x32xf32>
    %472 = arith.subf %464, %471 : vector<16x32xf32>
    %473 = arith.mulf %472, %472 : vector<16x32xf32>
    %cst_205 = arith.constant dense<0.000000e+00> : vector<16xf32>
    %474 = vector.multi_reduction <add>, %473, %cst_205 [1] : vector<16x32xf32> to vector<16xf32>
    %475 = vector.shape_cast %474 : vector<16xf32> to vector<16x1xf32>
    %cst_206 = arith.constant 3.200000e+01 : f32
    %476 = vector.broadcast %cst_206 : f32 to vector<16x1xf32>
    %477 = arith.divf %475, %476 : vector<16x1xf32>
    %cst_207 = arith.constant 9.99999974E-6 : f32
    %478 = vector.broadcast %cst_207 : f32 to vector<16x1xf32>
    %479 = arith.addf %477, %478 : vector<16x1xf32>
    %480 = math.rsqrt %479 : vector<16x1xf32>
    %481 = vector.broadcast %480 : vector<16x1xf32> to vector<16x32xf32>
    %482 = arith.mulf %472, %481 : vector<16x32xf32>
    %483 = vector.broadcast %465 : vector<1x32xf32> to vector<16x32xf32>
    %484 = arith.mulf %482, %483 : vector<16x32xf32>
    %485 = vector.broadcast %466 : vector<1x32xf32> to vector<16x32xf32>
    %486 = arith.addf %484, %485 : vector<16x32xf32>
    %487 = tpu.iota {dimensions = array<i32: 0>} : vector<8x8xi32>
    %488 = tpu.iota {dimensions = array<i32: 1>} : vector<8x8xi32>
    %489 = arith.cmpi sge, %487, %488 : vector<8x8xi32>
    %cst_208 = arith.constant 0.000000e+00 : f32
    %cst_209 = arith.constant -1.000000e+09 : f32
    %490 = vector.broadcast %cst_208 : f32 to vector<8x8xf32>
    %491 = vector.broadcast %cst_209 : f32 to vector<8x8xf32>
    %492 = arith.select %489, %490, %491 : vector<8x8xi1>, vector<8x8xf32>
    %c0_210 = arith.constant 0 : index
    %c0_211 = arith.constant 0 : index
    %493 = vector.load %arg5[%c0_210, %c0_211] : memref<2x8xf32, #tpu.memory_space<vmem>>, vector<2x8xf32>
    %494 = vector.extract_strided_slice %493 {offsets = [0, 0], sizes = [1, 8], strides = [1, 1]} : vector<2x8xf32> to vector<1x8xf32>
    %cst_212 = arith.constant 1.000000e+00 : f32
    %495 = vector.broadcast %cst_212 : f32 to vector<1x8xf32>
    %496 = arith.subf %495, %494 : vector<1x8xf32>
    %cst_213 = arith.constant -1.000000e+09 : f32
    %497 = vector.broadcast %cst_213 : f32 to vector<1x8xf32>
    %498 = arith.mulf %496, %497 : vector<1x8xf32>
    %499 = vector.extract_strided_slice %493 {offsets = [1, 0], sizes = [1, 8], strides = [1, 1]} : vector<2x8xf32> to vector<1x8xf32>
    %cst_214 = arith.constant 1.000000e+00 : f32
    %500 = vector.broadcast %cst_214 : f32 to vector<1x8xf32>
    %501 = arith.subf %500, %499 : vector<1x8xf32>
    %cst_215 = arith.constant -1.000000e+09 : f32
    %502 = vector.broadcast %cst_215 : f32 to vector<1x8xf32>
    %503 = arith.mulf %501, %502 : vector<1x8xf32>
    %c0_216 = arith.constant 0 : index
    %c0_217 = arith.constant 0 : index
    %c0_218 = arith.constant 0 : index
    %504 = vector.load %arg25[%c0_216, %c0_217, %c0_218] : memref<2x32x96xf32, #tpu.memory_space<vmem>>, vector<1x32x96xf32>
    %505 = vector.shape_cast %504 : vector<1x32x96xf32> to vector<32x96xf32>
    %cst_219 = arith.constant dense<0.000000e+00> : vector<16x96xf32>
    %506 = tpu.matmul %486, %505, %cst_219 {dimension_numbers = #tpu.dot_dimension_numbers<[1], [0], [0], [1], [0, 0, 1, 1], [], []>} : vector<16x32xf32>, vector<32x96xf32>, vector<16x96xf32> -> vector<16x96xf32>
    %c0_220 = arith.constant 0 : index
    %c0_221 = arith.constant 0 : index
    %c0_222 = arith.constant 0 : index
    %507 = vector.load %arg26[%c0_220, %c0_221, %c0_222] : memref<2x1x96xf32, #tpu.memory_space<vmem>>, vector<1x1x96xf32>
    %508 = vector.shape_cast %507 : vector<1x1x96xf32> to vector<1x96xf32>
    %509 = vector.broadcast %508 : vector<1x96xf32> to vector<16x96xf32>
    %510 = arith.addf %506, %509 : vector<16x96xf32>
    %511 = vector.extract_strided_slice %510 {offsets = [0, 0], sizes = [16, 32], strides = [1, 1]} : vector<16x96xf32> to vector<16x32xf32>
    %512 = vector.extract_strided_slice %510 {offsets = [0, 32], sizes = [16, 32], strides = [1, 1]} : vector<16x96xf32> to vector<16x32xf32>
    %513 = vector.extract_strided_slice %510 {offsets = [0, 64], sizes = [16, 32], strides = [1, 1]} : vector<16x96xf32> to vector<16x32xf32>
    %514 = vector.extract_strided_slice %511 {offsets = [0, 0], sizes = [8, 32], strides = [1, 1]} : vector<16x32xf32> to vector<8x32xf32>
    %515 = vector.extract_strided_slice %512 {offsets = [0, 0], sizes = [8, 32], strides = [1, 1]} : vector<16x32xf32> to vector<8x32xf32>
    %516 = vector.extract_strided_slice %513 {offsets = [0, 0], sizes = [8, 32], strides = [1, 1]} : vector<16x32xf32> to vector<8x32xf32>
    %517 = vector.extract_strided_slice %514 {offsets = [0, 0], sizes = [8, 16], strides = [1, 1]} : vector<8x32xf32> to vector<8x16xf32>
    %518 = vector.extract_strided_slice %515 {offsets = [0, 0], sizes = [8, 16], strides = [1, 1]} : vector<8x32xf32> to vector<8x16xf32>
    %cst_223 = arith.constant dense<0.000000e+00> : vector<8x8xf32>
    %519 = tpu.matmul %517, %518, %cst_223 {dimension_numbers = #tpu.dot_dimension_numbers<[1], [1], [0], [0], [0, 0, 1, 0], [], []>} : vector<8x16xf32>, vector<8x16xf32>, vector<8x8xf32> -> vector<8x8xf32>
    %cst_224 = arith.constant 2.500000e-01 : f32
    %520 = vector.broadcast %cst_224 : f32 to vector<8x8xf32>
    %521 = arith.mulf %519, %520 : vector<8x8xf32>
    %522 = arith.addf %521, %492 : vector<8x8xf32>
    %cst_225 = arith.constant dense<0xFF800000> : vector<8xf32>
    %523 = vector.multi_reduction <maximumf>, %522, %cst_225 [1] : vector<8x8xf32> to vector<8xf32>
    %524 = vector.shape_cast %523 : vector<8xf32> to vector<8x1xf32>
    %525 = vector.broadcast %524 : vector<8x1xf32> to vector<8x8xf32>
    %526 = arith.subf %522, %525 : vector<8x8xf32>
    %527 = math.exp %526 : vector<8x8xf32>
    %cst_226 = arith.constant dense<0.000000e+00> : vector<8xf32>
    %528 = vector.multi_reduction <add>, %527, %cst_226 [1] : vector<8x8xf32> to vector<8xf32>
    %529 = vector.shape_cast %528 : vector<8xf32> to vector<8x1xf32>
    %530 = vector.broadcast %529 : vector<8x1xf32> to vector<8x8xf32>
    %531 = arith.divf %527, %530 : vector<8x8xf32>
    %532 = vector.extract_strided_slice %516 {offsets = [0, 0], sizes = [8, 16], strides = [1, 1]} : vector<8x32xf32> to vector<8x16xf32>
    %cst_227 = arith.constant dense<0.000000e+00> : vector<8x16xf32>
    %533 = tpu.matmul %531, %532, %cst_227 {dimension_numbers = #tpu.dot_dimension_numbers<[1], [0], [0], [1], [0, 0, 1, 1], [], []>} : vector<8x8xf32>, vector<8x16xf32>, vector<8x16xf32> -> vector<8x16xf32>
    %534 = vector.extract_strided_slice %514 {offsets = [0, 16], sizes = [8, 16], strides = [1, 1]} : vector<8x32xf32> to vector<8x16xf32>
    %535 = vector.extract_strided_slice %515 {offsets = [0, 16], sizes = [8, 16], strides = [1, 1]} : vector<8x32xf32> to vector<8x16xf32>
    %cst_228 = arith.constant dense<0.000000e+00> : vector<8x8xf32>
    %536 = tpu.matmul %534, %535, %cst_228 {dimension_numbers = #tpu.dot_dimension_numbers<[1], [1], [0], [0], [0, 0, 1, 0], [], []>} : vector<8x16xf32>, vector<8x16xf32>, vector<8x8xf32> -> vector<8x8xf32>
    %cst_229 = arith.constant 2.500000e-01 : f32
    %537 = vector.broadcast %cst_229 : f32 to vector<8x8xf32>
    %538 = arith.mulf %536, %537 : vector<8x8xf32>
    %539 = arith.addf %538, %492 : vector<8x8xf32>
    %cst_230 = arith.constant dense<0xFF800000> : vector<8xf32>
    %540 = vector.multi_reduction <maximumf>, %539, %cst_230 [1] : vector<8x8xf32> to vector<8xf32>
    %541 = vector.shape_cast %540 : vector<8xf32> to vector<8x1xf32>
    %542 = vector.broadcast %541 : vector<8x1xf32> to vector<8x8xf32>
    %543 = arith.subf %539, %542 : vector<8x8xf32>
    %544 = math.exp %543 : vector<8x8xf32>
    %cst_231 = arith.constant dense<0.000000e+00> : vector<8xf32>
    %545 = vector.multi_reduction <add>, %544, %cst_231 [1] : vector<8x8xf32> to vector<8xf32>
    %546 = vector.shape_cast %545 : vector<8xf32> to vector<8x1xf32>
    %547 = vector.broadcast %546 : vector<8x1xf32> to vector<8x8xf32>
    %548 = arith.divf %544, %547 : vector<8x8xf32>
    %549 = vector.extract_strided_slice %516 {offsets = [0, 16], sizes = [8, 16], strides = [1, 1]} : vector<8x32xf32> to vector<8x16xf32>
    %cst_232 = arith.constant dense<0.000000e+00> : vector<8x16xf32>
    %550 = tpu.matmul %548, %549, %cst_232 {dimension_numbers = #tpu.dot_dimension_numbers<[1], [0], [0], [1], [0, 0, 1, 1], [], []>} : vector<8x8xf32>, vector<8x16xf32>, vector<8x16xf32> -> vector<8x16xf32>
    %551 = tpu.concatenate %533, %550 in 1 : vector<8x16xf32>, vector<8x16xf32> -> vector<8x32xf32>
    %552 = vector.extract_strided_slice %511 {offsets = [8, 0], sizes = [8, 32], strides = [1, 1]} : vector<16x32xf32> to vector<8x32xf32>
    %553 = vector.extract_strided_slice %512 {offsets = [8, 0], sizes = [8, 32], strides = [1, 1]} : vector<16x32xf32> to vector<8x32xf32>
    %554 = vector.extract_strided_slice %513 {offsets = [8, 0], sizes = [8, 32], strides = [1, 1]} : vector<16x32xf32> to vector<8x32xf32>
    %555 = vector.extract_strided_slice %552 {offsets = [0, 0], sizes = [8, 16], strides = [1, 1]} : vector<8x32xf32> to vector<8x16xf32>
    %556 = vector.extract_strided_slice %553 {offsets = [0, 0], sizes = [8, 16], strides = [1, 1]} : vector<8x32xf32> to vector<8x16xf32>
    %cst_233 = arith.constant dense<0.000000e+00> : vector<8x8xf32>
    %557 = tpu.matmul %555, %556, %cst_233 {dimension_numbers = #tpu.dot_dimension_numbers<[1], [1], [0], [0], [0, 0, 1, 0], [], []>} : vector<8x16xf32>, vector<8x16xf32>, vector<8x8xf32> -> vector<8x8xf32>
    %cst_234 = arith.constant 2.500000e-01 : f32
    %558 = vector.broadcast %cst_234 : f32 to vector<8x8xf32>
    %559 = arith.mulf %557, %558 : vector<8x8xf32>
    %560 = arith.addf %559, %492 : vector<8x8xf32>
    %cst_235 = arith.constant dense<0xFF800000> : vector<8xf32>
    %561 = vector.multi_reduction <maximumf>, %560, %cst_235 [1] : vector<8x8xf32> to vector<8xf32>
    %562 = vector.shape_cast %561 : vector<8xf32> to vector<8x1xf32>
    %563 = vector.broadcast %562 : vector<8x1xf32> to vector<8x8xf32>
    %564 = arith.subf %560, %563 : vector<8x8xf32>
    %565 = math.exp %564 : vector<8x8xf32>
    %cst_236 = arith.constant dense<0.000000e+00> : vector<8xf32>
    %566 = vector.multi_reduction <add>, %565, %cst_236 [1] : vector<8x8xf32> to vector<8xf32>
    %567 = vector.shape_cast %566 : vector<8xf32> to vector<8x1xf32>
    %568 = vector.broadcast %567 : vector<8x1xf32> to vector<8x8xf32>
    %569 = arith.divf %565, %568 : vector<8x8xf32>
    %570 = vector.extract_strided_slice %554 {offsets = [0, 0], sizes = [8, 16], strides = [1, 1]} : vector<8x32xf32> to vector<8x16xf32>
    %cst_237 = arith.constant dense<0.000000e+00> : vector<8x16xf32>
    %571 = tpu.matmul %569, %570, %cst_237 {dimension_numbers = #tpu.dot_dimension_numbers<[1], [0], [0], [1], [0, 0, 1, 1], [], []>} : vector<8x8xf32>, vector<8x16xf32>, vector<8x16xf32> -> vector<8x16xf32>
    %572 = vector.extract_strided_slice %552 {offsets = [0, 16], sizes = [8, 16], strides = [1, 1]} : vector<8x32xf32> to vector<8x16xf32>
    %573 = vector.extract_strided_slice %553 {offsets = [0, 16], sizes = [8, 16], strides = [1, 1]} : vector<8x32xf32> to vector<8x16xf32>
    %cst_238 = arith.constant dense<0.000000e+00> : vector<8x8xf32>
    %574 = tpu.matmul %572, %573, %cst_238 {dimension_numbers = #tpu.dot_dimension_numbers<[1], [1], [0], [0], [0, 0, 1, 0], [], []>} : vector<8x16xf32>, vector<8x16xf32>, vector<8x8xf32> -> vector<8x8xf32>
    %cst_239 = arith.constant 2.500000e-01 : f32
    %575 = vector.broadcast %cst_239 : f32 to vector<8x8xf32>
    %576 = arith.mulf %574, %575 : vector<8x8xf32>
    %577 = arith.addf %576, %492 : vector<8x8xf32>
    %cst_240 = arith.constant dense<0xFF800000> : vector<8xf32>
    %578 = vector.multi_reduction <maximumf>, %577, %cst_240 [1] : vector<8x8xf32> to vector<8xf32>
    %579 = vector.shape_cast %578 : vector<8xf32> to vector<8x1xf32>
    %580 = vector.broadcast %579 : vector<8x1xf32> to vector<8x8xf32>
    %581 = arith.subf %577, %580 : vector<8x8xf32>
    %582 = math.exp %581 : vector<8x8xf32>
    %cst_241 = arith.constant dense<0.000000e+00> : vector<8xf32>
    %583 = vector.multi_reduction <add>, %582, %cst_241 [1] : vector<8x8xf32> to vector<8xf32>
    %584 = vector.shape_cast %583 : vector<8xf32> to vector<8x1xf32>
    %585 = vector.broadcast %584 : vector<8x1xf32> to vector<8x8xf32>
    %586 = arith.divf %582, %585 : vector<8x8xf32>
    %587 = vector.extract_strided_slice %554 {offsets = [0, 16], sizes = [8, 16], strides = [1, 1]} : vector<8x32xf32> to vector<8x16xf32>
    %cst_242 = arith.constant dense<0.000000e+00> : vector<8x16xf32>
    %588 = tpu.matmul %586, %587, %cst_242 {dimension_numbers = #tpu.dot_dimension_numbers<[1], [0], [0], [1], [0, 0, 1, 1], [], []>} : vector<8x8xf32>, vector<8x16xf32>, vector<8x16xf32> -> vector<8x16xf32>
    %589 = tpu.concatenate %571, %588 in 1 : vector<8x16xf32>, vector<8x16xf32> -> vector<8x32xf32>
    %590 = tpu.concatenate %551, %589 in 0 : vector<8x32xf32>, vector<8x32xf32> -> vector<16x32xf32>
    %c0_243 = arith.constant 0 : index
    %c0_244 = arith.constant 0 : index
    %c0_245 = arith.constant 0 : index
    %591 = vector.load %arg27[%c0_243, %c0_244, %c0_245] : memref<2x32x32xf32, #tpu.memory_space<vmem>>, vector<1x32x32xf32>
    %592 = vector.shape_cast %591 : vector<1x32x32xf32> to vector<32x32xf32>
    %cst_246 = arith.constant dense<0.000000e+00> : vector<16x32xf32>
    %593 = tpu.matmul %590, %592, %cst_246 {dimension_numbers = #tpu.dot_dimension_numbers<[1], [0], [0], [1], [0, 0, 1, 1], [], []>} : vector<16x32xf32>, vector<32x32xf32>, vector<16x32xf32> -> vector<16x32xf32>
    %c0_247 = arith.constant 0 : index
    %c0_248 = arith.constant 0 : index
    %c0_249 = arith.constant 0 : index
    %594 = vector.load %arg28[%c0_247, %c0_248, %c0_249] : memref<2x1x32xf32, #tpu.memory_space<vmem>>, vector<1x1x32xf32>
    %595 = vector.shape_cast %594 : vector<1x1x32xf32> to vector<1x32xf32>
    %596 = vector.broadcast %595 : vector<1x32xf32> to vector<16x32xf32>
    %597 = arith.addf %593, %596 : vector<16x32xf32>
    %598 = arith.addf %486, %597 : vector<16x32xf32>
    %c0_250 = arith.constant 0 : index
    %c0_251 = arith.constant 0 : index
    %c0_252 = arith.constant 0 : index
    %599 = vector.load %arg29[%c0_250, %c0_251, %c0_252] : memref<2x1x32xf32, #tpu.memory_space<vmem>>, vector<1x1x32xf32>
    %600 = vector.shape_cast %599 : vector<1x1x32xf32> to vector<1x32xf32>
    %c0_253 = arith.constant 0 : index
    %c0_254 = arith.constant 0 : index
    %c0_255 = arith.constant 0 : index
    %601 = vector.load %arg30[%c0_253, %c0_254, %c0_255] : memref<2x1x32xf32, #tpu.memory_space<vmem>>, vector<1x1x32xf32>
    %602 = vector.shape_cast %601 : vector<1x1x32xf32> to vector<1x32xf32>
    %cst_256 = arith.constant dense<0.000000e+00> : vector<16xf32>
    %603 = vector.multi_reduction <add>, %598, %cst_256 [1] : vector<16x32xf32> to vector<16xf32>
    %604 = vector.shape_cast %603 : vector<16xf32> to vector<16x1xf32>
    %cst_257 = arith.constant 3.200000e+01 : f32
    %605 = vector.broadcast %cst_257 : f32 to vector<16x1xf32>
    %606 = arith.divf %604, %605 : vector<16x1xf32>
    %607 = vector.broadcast %606 : vector<16x1xf32> to vector<16x32xf32>
    %608 = arith.subf %598, %607 : vector<16x32xf32>
    %609 = arith.mulf %608, %608 : vector<16x32xf32>
    %cst_258 = arith.constant dense<0.000000e+00> : vector<16xf32>
    %610 = vector.multi_reduction <add>, %609, %cst_258 [1] : vector<16x32xf32> to vector<16xf32>
    %611 = vector.shape_cast %610 : vector<16xf32> to vector<16x1xf32>
    %cst_259 = arith.constant 3.200000e+01 : f32
    %612 = vector.broadcast %cst_259 : f32 to vector<16x1xf32>
    %613 = arith.divf %611, %612 : vector<16x1xf32>
    %cst_260 = arith.constant 9.99999974E-6 : f32
    %614 = vector.broadcast %cst_260 : f32 to vector<16x1xf32>
    %615 = arith.addf %613, %614 : vector<16x1xf32>
    %616 = math.rsqrt %615 : vector<16x1xf32>
    %617 = vector.broadcast %616 : vector<16x1xf32> to vector<16x32xf32>
    %618 = arith.mulf %608, %617 : vector<16x32xf32>
    %619 = vector.broadcast %600 : vector<1x32xf32> to vector<16x32xf32>
    %620 = arith.mulf %618, %619 : vector<16x32xf32>
    %621 = vector.broadcast %602 : vector<1x32xf32> to vector<16x32xf32>
    %622 = arith.addf %620, %621 : vector<16x32xf32>
    %c0_261 = arith.constant 0 : index
    %c0_262 = arith.constant 0 : index
    %c0_263 = arith.constant 0 : index
    %623 = vector.load %arg31[%c0_261, %c0_262, %c0_263] : memref<2x32x32xf32, #tpu.memory_space<vmem>>, vector<1x32x32xf32>
    %624 = vector.shape_cast %623 : vector<1x32x32xf32> to vector<32x32xf32>
    %cst_264 = arith.constant dense<0.000000e+00> : vector<16x32xf32>
    %625 = tpu.matmul %622, %624, %cst_264 {dimension_numbers = #tpu.dot_dimension_numbers<[1], [0], [0], [1], [0, 0, 1, 1], [], []>} : vector<16x32xf32>, vector<32x32xf32>, vector<16x32xf32> -> vector<16x32xf32>
    %c0_265 = arith.constant 0 : index
    %c0_266 = arith.constant 0 : index
    %c0_267 = arith.constant 0 : index
    %626 = vector.load %arg32[%c0_265, %c0_266, %c0_267] : memref<2x1x32xf32, #tpu.memory_space<vmem>>, vector<1x1x32xf32>
    %627 = vector.shape_cast %626 : vector<1x1x32xf32> to vector<1x32xf32>
    %628 = vector.broadcast %627 : vector<1x32xf32> to vector<16x32xf32>
    %629 = arith.addf %625, %628 : vector<16x32xf32>
    %c0_268 = arith.constant 0 : index
    %c0_269 = arith.constant 0 : index
    %c0_270 = arith.constant 0 : index
    %630 = vector.load %arg33[%c0_268, %c0_269, %c0_270] : memref<2x32x64xf32, #tpu.memory_space<vmem>>, vector<1x32x64xf32>
    %631 = vector.shape_cast %630 : vector<1x32x64xf32> to vector<32x64xf32>
    %cst_271 = arith.constant dense<0.000000e+00> : vector<16x64xf32>
    %632 = tpu.matmul %451, %631, %cst_271 {dimension_numbers = #tpu.dot_dimension_numbers<[1], [0], [0], [1], [0, 0, 1, 1], [], []>} : vector<16x32xf32>, vector<32x64xf32>, vector<16x64xf32> -> vector<16x64xf32>
    %c0_272 = arith.constant 0 : index
    %c0_273 = arith.constant 0 : index
    %c0_274 = arith.constant 0 : index
    %633 = vector.load %arg34[%c0_272, %c0_273, %c0_274] : memref<2x1x64xf32, #tpu.memory_space<vmem>>, vector<1x1x64xf32>
    %634 = vector.shape_cast %633 : vector<1x1x64xf32> to vector<1x64xf32>
    %635 = vector.broadcast %634 : vector<1x64xf32> to vector<16x64xf32>
    %636 = arith.addf %632, %635 : vector<16x64xf32>
    %637 = vector.extract_strided_slice %636 {offsets = [0, 0], sizes = [16, 32], strides = [1, 1]} : vector<16x64xf32> to vector<16x32xf32>
    %638 = vector.extract_strided_slice %636 {offsets = [0, 32], sizes = [16, 32], strides = [1, 1]} : vector<16x64xf32> to vector<16x32xf32>
    %639 = vector.extract_strided_slice %629 {offsets = [0, 0], sizes = [8, 32], strides = [1, 1]} : vector<16x32xf32> to vector<8x32xf32>
    %640 = vector.extract_strided_slice %637 {offsets = [0, 0], sizes = [8, 32], strides = [1, 1]} : vector<16x32xf32> to vector<8x32xf32>
    %641 = vector.extract_strided_slice %638 {offsets = [0, 0], sizes = [8, 32], strides = [1, 1]} : vector<16x32xf32> to vector<8x32xf32>
    %642 = vector.extract_strided_slice %639 {offsets = [0, 0], sizes = [8, 16], strides = [1, 1]} : vector<8x32xf32> to vector<8x16xf32>
    %643 = vector.extract_strided_slice %640 {offsets = [0, 0], sizes = [8, 16], strides = [1, 1]} : vector<8x32xf32> to vector<8x16xf32>
    %cst_275 = arith.constant dense<0.000000e+00> : vector<8x8xf32>
    %644 = tpu.matmul %642, %643, %cst_275 {dimension_numbers = #tpu.dot_dimension_numbers<[1], [1], [0], [0], [0, 0, 1, 0], [], []>} : vector<8x16xf32>, vector<8x16xf32>, vector<8x8xf32> -> vector<8x8xf32>
    %cst_276 = arith.constant 2.500000e-01 : f32
    %645 = vector.broadcast %cst_276 : f32 to vector<8x8xf32>
    %646 = arith.mulf %644, %645 : vector<8x8xf32>
    %647 = vector.broadcast %498 : vector<1x8xf32> to vector<8x8xf32>
    %648 = arith.addf %646, %647 : vector<8x8xf32>
    %cst_277 = arith.constant dense<0xFF800000> : vector<8xf32>
    %649 = vector.multi_reduction <maximumf>, %648, %cst_277 [1] : vector<8x8xf32> to vector<8xf32>
    %650 = vector.shape_cast %649 : vector<8xf32> to vector<8x1xf32>
    %651 = vector.broadcast %650 : vector<8x1xf32> to vector<8x8xf32>
    %652 = arith.subf %648, %651 : vector<8x8xf32>
    %653 = math.exp %652 : vector<8x8xf32>
    %cst_278 = arith.constant dense<0.000000e+00> : vector<8xf32>
    %654 = vector.multi_reduction <add>, %653, %cst_278 [1] : vector<8x8xf32> to vector<8xf32>
    %655 = vector.shape_cast %654 : vector<8xf32> to vector<8x1xf32>
    %656 = vector.broadcast %655 : vector<8x1xf32> to vector<8x8xf32>
    %657 = arith.divf %653, %656 : vector<8x8xf32>
    %658 = vector.extract_strided_slice %641 {offsets = [0, 0], sizes = [8, 16], strides = [1, 1]} : vector<8x32xf32> to vector<8x16xf32>
    %cst_279 = arith.constant dense<0.000000e+00> : vector<8x16xf32>
    %659 = tpu.matmul %657, %658, %cst_279 {dimension_numbers = #tpu.dot_dimension_numbers<[1], [0], [0], [1], [0, 0, 1, 1], [], []>} : vector<8x8xf32>, vector<8x16xf32>, vector<8x16xf32> -> vector<8x16xf32>
    %660 = vector.extract_strided_slice %639 {offsets = [0, 16], sizes = [8, 16], strides = [1, 1]} : vector<8x32xf32> to vector<8x16xf32>
    %661 = vector.extract_strided_slice %640 {offsets = [0, 16], sizes = [8, 16], strides = [1, 1]} : vector<8x32xf32> to vector<8x16xf32>
    %cst_280 = arith.constant dense<0.000000e+00> : vector<8x8xf32>
    %662 = tpu.matmul %660, %661, %cst_280 {dimension_numbers = #tpu.dot_dimension_numbers<[1], [1], [0], [0], [0, 0, 1, 0], [], []>} : vector<8x16xf32>, vector<8x16xf32>, vector<8x8xf32> -> vector<8x8xf32>
    %cst_281 = arith.constant 2.500000e-01 : f32
    %663 = vector.broadcast %cst_281 : f32 to vector<8x8xf32>
    %664 = arith.mulf %662, %663 : vector<8x8xf32>
    %665 = vector.broadcast %498 : vector<1x8xf32> to vector<8x8xf32>
    %666 = arith.addf %664, %665 : vector<8x8xf32>
    %cst_282 = arith.constant dense<0xFF800000> : vector<8xf32>
    %667 = vector.multi_reduction <maximumf>, %666, %cst_282 [1] : vector<8x8xf32> to vector<8xf32>
    %668 = vector.shape_cast %667 : vector<8xf32> to vector<8x1xf32>
    %669 = vector.broadcast %668 : vector<8x1xf32> to vector<8x8xf32>
    %670 = arith.subf %666, %669 : vector<8x8xf32>
    %671 = math.exp %670 : vector<8x8xf32>
    %cst_283 = arith.constant dense<0.000000e+00> : vector<8xf32>
    %672 = vector.multi_reduction <add>, %671, %cst_283 [1] : vector<8x8xf32> to vector<8xf32>
    %673 = vector.shape_cast %672 : vector<8xf32> to vector<8x1xf32>
    %674 = vector.broadcast %673 : vector<8x1xf32> to vector<8x8xf32>
    %675 = arith.divf %671, %674 : vector<8x8xf32>
    %676 = vector.extract_strided_slice %641 {offsets = [0, 16], sizes = [8, 16], strides = [1, 1]} : vector<8x32xf32> to vector<8x16xf32>
    %cst_284 = arith.constant dense<0.000000e+00> : vector<8x16xf32>
    %677 = tpu.matmul %675, %676, %cst_284 {dimension_numbers = #tpu.dot_dimension_numbers<[1], [0], [0], [1], [0, 0, 1, 1], [], []>} : vector<8x8xf32>, vector<8x16xf32>, vector<8x16xf32> -> vector<8x16xf32>
    %678 = tpu.concatenate %659, %677 in 1 : vector<8x16xf32>, vector<8x16xf32> -> vector<8x32xf32>
    %679 = vector.extract_strided_slice %629 {offsets = [8, 0], sizes = [8, 32], strides = [1, 1]} : vector<16x32xf32> to vector<8x32xf32>
    %680 = vector.extract_strided_slice %637 {offsets = [8, 0], sizes = [8, 32], strides = [1, 1]} : vector<16x32xf32> to vector<8x32xf32>
    %681 = vector.extract_strided_slice %638 {offsets = [8, 0], sizes = [8, 32], strides = [1, 1]} : vector<16x32xf32> to vector<8x32xf32>
    %682 = vector.extract_strided_slice %679 {offsets = [0, 0], sizes = [8, 16], strides = [1, 1]} : vector<8x32xf32> to vector<8x16xf32>
    %683 = vector.extract_strided_slice %680 {offsets = [0, 0], sizes = [8, 16], strides = [1, 1]} : vector<8x32xf32> to vector<8x16xf32>
    %cst_285 = arith.constant dense<0.000000e+00> : vector<8x8xf32>
    %684 = tpu.matmul %682, %683, %cst_285 {dimension_numbers = #tpu.dot_dimension_numbers<[1], [1], [0], [0], [0, 0, 1, 0], [], []>} : vector<8x16xf32>, vector<8x16xf32>, vector<8x8xf32> -> vector<8x8xf32>
    %cst_286 = arith.constant 2.500000e-01 : f32
    %685 = vector.broadcast %cst_286 : f32 to vector<8x8xf32>
    %686 = arith.mulf %684, %685 : vector<8x8xf32>
    %687 = vector.broadcast %503 : vector<1x8xf32> to vector<8x8xf32>
    %688 = arith.addf %686, %687 : vector<8x8xf32>
    %cst_287 = arith.constant dense<0xFF800000> : vector<8xf32>
    %689 = vector.multi_reduction <maximumf>, %688, %cst_287 [1] : vector<8x8xf32> to vector<8xf32>
    %690 = vector.shape_cast %689 : vector<8xf32> to vector<8x1xf32>
    %691 = vector.broadcast %690 : vector<8x1xf32> to vector<8x8xf32>
    %692 = arith.subf %688, %691 : vector<8x8xf32>
    %693 = math.exp %692 : vector<8x8xf32>
    %cst_288 = arith.constant dense<0.000000e+00> : vector<8xf32>
    %694 = vector.multi_reduction <add>, %693, %cst_288 [1] : vector<8x8xf32> to vector<8xf32>
    %695 = vector.shape_cast %694 : vector<8xf32> to vector<8x1xf32>
    %696 = vector.broadcast %695 : vector<8x1xf32> to vector<8x8xf32>
    %697 = arith.divf %693, %696 : vector<8x8xf32>
    %698 = vector.extract_strided_slice %681 {offsets = [0, 0], sizes = [8, 16], strides = [1, 1]} : vector<8x32xf32> to vector<8x16xf32>
    %cst_289 = arith.constant dense<0.000000e+00> : vector<8x16xf32>
    %699 = tpu.matmul %697, %698, %cst_289 {dimension_numbers = #tpu.dot_dimension_numbers<[1], [0], [0], [1], [0, 0, 1, 1], [], []>} : vector<8x8xf32>, vector<8x16xf32>, vector<8x16xf32> -> vector<8x16xf32>
    %700 = vector.extract_strided_slice %679 {offsets = [0, 16], sizes = [8, 16], strides = [1, 1]} : vector<8x32xf32> to vector<8x16xf32>
    %701 = vector.extract_strided_slice %680 {offsets = [0, 16], sizes = [8, 16], strides = [1, 1]} : vector<8x32xf32> to vector<8x16xf32>
    %cst_290 = arith.constant dense<0.000000e+00> : vector<8x8xf32>
    %702 = tpu.matmul %700, %701, %cst_290 {dimension_numbers = #tpu.dot_dimension_numbers<[1], [1], [0], [0], [0, 0, 1, 0], [], []>} : vector<8x16xf32>, vector<8x16xf32>, vector<8x8xf32> -> vector<8x8xf32>
    %cst_291 = arith.constant 2.500000e-01 : f32
    %703 = vector.broadcast %cst_291 : f32 to vector<8x8xf32>
    %704 = arith.mulf %702, %703 : vector<8x8xf32>
    %705 = vector.broadcast %503 : vector<1x8xf32> to vector<8x8xf32>
    %706 = arith.addf %704, %705 : vector<8x8xf32>
    %cst_292 = arith.constant dense<0xFF800000> : vector<8xf32>
    %707 = vector.multi_reduction <maximumf>, %706, %cst_292 [1] : vector<8x8xf32> to vector<8xf32>
    %708 = vector.shape_cast %707 : vector<8xf32> to vector<8x1xf32>
    %709 = vector.broadcast %708 : vector<8x1xf32> to vector<8x8xf32>
    %710 = arith.subf %706, %709 : vector<8x8xf32>
    %711 = math.exp %710 : vector<8x8xf32>
    %cst_293 = arith.constant dense<0.000000e+00> : vector<8xf32>
    %712 = vector.multi_reduction <add>, %711, %cst_293 [1] : vector<8x8xf32> to vector<8xf32>
    %713 = vector.shape_cast %712 : vector<8xf32> to vector<8x1xf32>
    %714 = vector.broadcast %713 : vector<8x1xf32> to vector<8x8xf32>
    %715 = arith.divf %711, %714 : vector<8x8xf32>
    %716 = vector.extract_strided_slice %681 {offsets = [0, 16], sizes = [8, 16], strides = [1, 1]} : vector<8x32xf32> to vector<8x16xf32>
    %cst_294 = arith.constant dense<0.000000e+00> : vector<8x16xf32>
    %717 = tpu.matmul %715, %716, %cst_294 {dimension_numbers = #tpu.dot_dimension_numbers<[1], [0], [0], [1], [0, 0, 1, 1], [], []>} : vector<8x8xf32>, vector<8x16xf32>, vector<8x16xf32> -> vector<8x16xf32>
    %718 = tpu.concatenate %699, %717 in 1 : vector<8x16xf32>, vector<8x16xf32> -> vector<8x32xf32>
    %719 = tpu.concatenate %678, %718 in 0 : vector<8x32xf32>, vector<8x32xf32> -> vector<16x32xf32>
    %c0_295 = arith.constant 0 : index
    %c0_296 = arith.constant 0 : index
    %c0_297 = arith.constant 0 : index
    %720 = vector.load %arg35[%c0_295, %c0_296, %c0_297] : memref<2x32x32xf32, #tpu.memory_space<vmem>>, vector<1x32x32xf32>
    %721 = vector.shape_cast %720 : vector<1x32x32xf32> to vector<32x32xf32>
    %cst_298 = arith.constant dense<0.000000e+00> : vector<16x32xf32>
    %722 = tpu.matmul %719, %721, %cst_298 {dimension_numbers = #tpu.dot_dimension_numbers<[1], [0], [0], [1], [0, 0, 1, 1], [], []>} : vector<16x32xf32>, vector<32x32xf32>, vector<16x32xf32> -> vector<16x32xf32>
    %c0_299 = arith.constant 0 : index
    %c0_300 = arith.constant 0 : index
    %c0_301 = arith.constant 0 : index
    %723 = vector.load %arg36[%c0_299, %c0_300, %c0_301] : memref<2x1x32xf32, #tpu.memory_space<vmem>>, vector<1x1x32xf32>
    %724 = vector.shape_cast %723 : vector<1x1x32xf32> to vector<1x32xf32>
    %725 = vector.broadcast %724 : vector<1x32xf32> to vector<16x32xf32>
    %726 = arith.addf %722, %725 : vector<16x32xf32>
    %727 = arith.addf %622, %726 : vector<16x32xf32>
    %c0_302 = arith.constant 0 : index
    %c0_303 = arith.constant 0 : index
    %c0_304 = arith.constant 0 : index
    %728 = vector.load %arg37[%c0_302, %c0_303, %c0_304] : memref<2x1x32xf32, #tpu.memory_space<vmem>>, vector<1x1x32xf32>
    %729 = vector.shape_cast %728 : vector<1x1x32xf32> to vector<1x32xf32>
    %c0_305 = arith.constant 0 : index
    %c0_306 = arith.constant 0 : index
    %c0_307 = arith.constant 0 : index
    %730 = vector.load %arg38[%c0_305, %c0_306, %c0_307] : memref<2x1x32xf32, #tpu.memory_space<vmem>>, vector<1x1x32xf32>
    %731 = vector.shape_cast %730 : vector<1x1x32xf32> to vector<1x32xf32>
    %cst_308 = arith.constant dense<0.000000e+00> : vector<16xf32>
    %732 = vector.multi_reduction <add>, %727, %cst_308 [1] : vector<16x32xf32> to vector<16xf32>
    %733 = vector.shape_cast %732 : vector<16xf32> to vector<16x1xf32>
    %cst_309 = arith.constant 3.200000e+01 : f32
    %734 = vector.broadcast %cst_309 : f32 to vector<16x1xf32>
    %735 = arith.divf %733, %734 : vector<16x1xf32>
    %736 = vector.broadcast %735 : vector<16x1xf32> to vector<16x32xf32>
    %737 = arith.subf %727, %736 : vector<16x32xf32>
    %738 = arith.mulf %737, %737 : vector<16x32xf32>
    %cst_310 = arith.constant dense<0.000000e+00> : vector<16xf32>
    %739 = vector.multi_reduction <add>, %738, %cst_310 [1] : vector<16x32xf32> to vector<16xf32>
    %740 = vector.shape_cast %739 : vector<16xf32> to vector<16x1xf32>
    %cst_311 = arith.constant 3.200000e+01 : f32
    %741 = vector.broadcast %cst_311 : f32 to vector<16x1xf32>
    %742 = arith.divf %740, %741 : vector<16x1xf32>
    %cst_312 = arith.constant 9.99999974E-6 : f32
    %743 = vector.broadcast %cst_312 : f32 to vector<16x1xf32>
    %744 = arith.addf %742, %743 : vector<16x1xf32>
    %745 = math.rsqrt %744 : vector<16x1xf32>
    %746 = vector.broadcast %745 : vector<16x1xf32> to vector<16x32xf32>
    %747 = arith.mulf %737, %746 : vector<16x32xf32>
    %748 = vector.broadcast %729 : vector<1x32xf32> to vector<16x32xf32>
    %749 = arith.mulf %747, %748 : vector<16x32xf32>
    %750 = vector.broadcast %731 : vector<1x32xf32> to vector<16x32xf32>
    %751 = arith.addf %749, %750 : vector<16x32xf32>
    %c0_313 = arith.constant 0 : index
    %c0_314 = arith.constant 0 : index
    %c0_315 = arith.constant 0 : index
    %752 = vector.load %arg39[%c0_313, %c0_314, %c0_315] : memref<2x32x64xf32, #tpu.memory_space<vmem>>, vector<1x32x64xf32>
    %753 = vector.shape_cast %752 : vector<1x32x64xf32> to vector<32x64xf32>
    %cst_316 = arith.constant dense<0.000000e+00> : vector<16x64xf32>
    %754 = tpu.matmul %751, %753, %cst_316 {dimension_numbers = #tpu.dot_dimension_numbers<[1], [0], [0], [1], [0, 0, 1, 1], [], []>} : vector<16x32xf32>, vector<32x64xf32>, vector<16x64xf32> -> vector<16x64xf32>
    %c0_317 = arith.constant 0 : index
    %c0_318 = arith.constant 0 : index
    %c0_319 = arith.constant 0 : index
    %755 = vector.load %arg40[%c0_317, %c0_318, %c0_319] : memref<2x1x64xf32, #tpu.memory_space<vmem>>, vector<1x1x64xf32>
    %756 = vector.shape_cast %755 : vector<1x1x64xf32> to vector<1x64xf32>
    %757 = vector.broadcast %756 : vector<1x64xf32> to vector<16x64xf32>
    %758 = arith.addf %754, %757 : vector<16x64xf32>
    %cst_320 = arith.constant 5.000000e-01 : f32
    %759 = vector.broadcast %cst_320 : f32 to vector<16x64xf32>
    %760 = arith.mulf %759, %758 : vector<16x64xf32>
    %cst_321 = arith.constant 0.707106769 : f32
    %761 = vector.broadcast %cst_321 : f32 to vector<16x64xf32>
    %762 = arith.mulf %758, %761 : vector<16x64xf32>
    %763 = math.absf %762 : vector<16x64xf32>
    %cst_322 = arith.constant 0.327591091 : f32
    %764 = vector.broadcast %cst_322 : f32 to vector<16x64xf32>
    %765 = arith.mulf %764, %763 : vector<16x64xf32>
    %cst_323 = arith.constant 1.000000e+00 : f32
    %766 = vector.broadcast %cst_323 : f32 to vector<16x64xf32>
    %767 = arith.addf %766, %765 : vector<16x64xf32>
    %cst_324 = arith.constant 1.000000e+00 : f32
    %768 = vector.broadcast %cst_324 : f32 to vector<16x64xf32>
    %769 = arith.divf %768, %767 : vector<16x64xf32>
    %cst_325 = arith.constant 1.06140542 : f32
    %770 = vector.broadcast %cst_325 : f32 to vector<16x64xf32>
    %771 = arith.mulf %770, %769 : vector<16x64xf32>
    %cst_326 = arith.constant 1.45315206 : f32
    %772 = vector.broadcast %cst_326 : f32 to vector<16x64xf32>
    %773 = arith.subf %771, %772 : vector<16x64xf32>
    %774 = arith.mulf %773, %769 : vector<16x64xf32>
    %cst_327 = arith.constant 1.42141378 : f32
    %775 = vector.broadcast %cst_327 : f32 to vector<16x64xf32>
    %776 = arith.addf %774, %775 : vector<16x64xf32>
    %777 = arith.mulf %776, %769 : vector<16x64xf32>
    %cst_328 = arith.constant 0.284496725 : f32
    %778 = vector.broadcast %cst_328 : f32 to vector<16x64xf32>
    %779 = arith.subf %777, %778 : vector<16x64xf32>
    %780 = arith.mulf %779, %769 : vector<16x64xf32>
    %cst_329 = arith.constant 0.254829586 : f32
    %781 = vector.broadcast %cst_329 : f32 to vector<16x64xf32>
    %782 = arith.addf %780, %781 : vector<16x64xf32>
    %783 = arith.mulf %782, %769 : vector<16x64xf32>
    %784 = arith.mulf %763, %763 : vector<16x64xf32>
    %cst_330 = arith.constant 0.000000e+00 : f32
    %785 = vector.broadcast %cst_330 : f32 to vector<16x64xf32>
    %786 = arith.subf %785, %784 : vector<16x64xf32>
    %787 = math.exp %786 : vector<16x64xf32>
    %788 = arith.mulf %783, %787 : vector<16x64xf32>
    %cst_331 = arith.constant 1.000000e+00 : f32
    %789 = vector.broadcast %cst_331 : f32 to vector<16x64xf32>
    %790 = arith.subf %789, %788 : vector<16x64xf32>
    %cst_332 = arith.constant 0.000000e+00 : f32
    %791 = vector.broadcast %cst_332 : f32 to vector<16x64xf32>
    %792 = arith.cmpf oge, %762, %791 : vector<16x64xf32>
    %cst_333 = arith.constant 0.000000e+00 : f32
    %793 = vector.broadcast %cst_333 : f32 to vector<16x64xf32>
    %794 = arith.subf %793, %790 : vector<16x64xf32>
    %795 = arith.select %792, %790, %794 : vector<16x64xi1>, vector<16x64xf32>
    %cst_334 = arith.constant 1.000000e+00 : f32
    %796 = vector.broadcast %cst_334 : f32 to vector<16x64xf32>
    %797 = arith.addf %796, %795 : vector<16x64xf32>
    %798 = arith.mulf %760, %797 : vector<16x64xf32>
    %c0_335 = arith.constant 0 : index
    %c0_336 = arith.constant 0 : index
    %c0_337 = arith.constant 0 : index
    %799 = vector.load %arg41[%c0_335, %c0_336, %c0_337] : memref<2x64x32xf32, #tpu.memory_space<vmem>>, vector<1x64x32xf32>
    %800 = vector.shape_cast %799 : vector<1x64x32xf32> to vector<64x32xf32>
    %cst_338 = arith.constant dense<0.000000e+00> : vector<16x32xf32>
    %801 = tpu.matmul %798, %800, %cst_338 {dimension_numbers = #tpu.dot_dimension_numbers<[1], [0], [0], [1], [0, 0, 1, 1], [], []>} : vector<16x64xf32>, vector<64x32xf32>, vector<16x32xf32> -> vector<16x32xf32>
    %c0_339 = arith.constant 0 : index
    %c0_340 = arith.constant 0 : index
    %c0_341 = arith.constant 0 : index
    %802 = vector.load %arg42[%c0_339, %c0_340, %c0_341] : memref<2x1x32xf32, #tpu.memory_space<vmem>>, vector<1x1x32xf32>
    %803 = vector.shape_cast %802 : vector<1x1x32xf32> to vector<1x32xf32>
    %804 = vector.broadcast %803 : vector<1x32xf32> to vector<16x32xf32>
    %805 = arith.addf %801, %804 : vector<16x32xf32>
    %806 = arith.addf %751, %805 : vector<16x32xf32>
    %c0_342 = arith.constant 0 : index
    %c0_343 = arith.constant 0 : index
    %c0_344 = arith.constant 0 : index
    %807 = vector.load %arg43[%c0_342, %c0_343, %c0_344] : memref<2x1x32xf32, #tpu.memory_space<vmem>>, vector<1x1x32xf32>
    %808 = vector.shape_cast %807 : vector<1x1x32xf32> to vector<1x32xf32>
    %c0_345 = arith.constant 0 : index
    %c0_346 = arith.constant 0 : index
    %c0_347 = arith.constant 0 : index
    %809 = vector.load %arg44[%c0_345, %c0_346, %c0_347] : memref<2x1x32xf32, #tpu.memory_space<vmem>>, vector<1x1x32xf32>
    %810 = vector.shape_cast %809 : vector<1x1x32xf32> to vector<1x32xf32>
    %cst_348 = arith.constant dense<0.000000e+00> : vector<16xf32>
    %811 = vector.multi_reduction <add>, %806, %cst_348 [1] : vector<16x32xf32> to vector<16xf32>
    %812 = vector.shape_cast %811 : vector<16xf32> to vector<16x1xf32>
    %cst_349 = arith.constant 3.200000e+01 : f32
    %813 = vector.broadcast %cst_349 : f32 to vector<16x1xf32>
    %814 = arith.divf %812, %813 : vector<16x1xf32>
    %815 = vector.broadcast %814 : vector<16x1xf32> to vector<16x32xf32>
    %816 = arith.subf %806, %815 : vector<16x32xf32>
    %817 = arith.mulf %816, %816 : vector<16x32xf32>
    %cst_350 = arith.constant dense<0.000000e+00> : vector<16xf32>
    %818 = vector.multi_reduction <add>, %817, %cst_350 [1] : vector<16x32xf32> to vector<16xf32>
    %819 = vector.shape_cast %818 : vector<16xf32> to vector<16x1xf32>
    %cst_351 = arith.constant 3.200000e+01 : f32
    %820 = vector.broadcast %cst_351 : f32 to vector<16x1xf32>
    %821 = arith.divf %819, %820 : vector<16x1xf32>
    %cst_352 = arith.constant 9.99999974E-6 : f32
    %822 = vector.broadcast %cst_352 : f32 to vector<16x1xf32>
    %823 = arith.addf %821, %822 : vector<16x1xf32>
    %824 = math.rsqrt %823 : vector<16x1xf32>
    %825 = vector.broadcast %824 : vector<16x1xf32> to vector<16x32xf32>
    %826 = arith.mulf %816, %825 : vector<16x32xf32>
    %827 = vector.broadcast %808 : vector<1x32xf32> to vector<16x32xf32>
    %828 = arith.mulf %826, %827 : vector<16x32xf32>
    %829 = vector.broadcast %810 : vector<1x32xf32> to vector<16x32xf32>
    %830 = arith.addf %828, %829 : vector<16x32xf32>
    %c1_353 = arith.constant 1 : index
    %c0_354 = arith.constant 0 : index
    %c0_355 = arith.constant 0 : index
    %831 = vector.load %arg25[%c1_353, %c0_354, %c0_355] : memref<2x32x96xf32, #tpu.memory_space<vmem>>, vector<1x32x96xf32>
    %832 = vector.shape_cast %831 : vector<1x32x96xf32> to vector<32x96xf32>
    %cst_356 = arith.constant dense<0.000000e+00> : vector<16x96xf32>
    %833 = tpu.matmul %830, %832, %cst_356 {dimension_numbers = #tpu.dot_dimension_numbers<[1], [0], [0], [1], [0, 0, 1, 1], [], []>} : vector<16x32xf32>, vector<32x96xf32>, vector<16x96xf32> -> vector<16x96xf32>
    %c1_357 = arith.constant 1 : index
    %c0_358 = arith.constant 0 : index
    %c0_359 = arith.constant 0 : index
    %834 = vector.load %arg26[%c1_357, %c0_358, %c0_359] : memref<2x1x96xf32, #tpu.memory_space<vmem>>, vector<1x1x96xf32>
    %835 = vector.shape_cast %834 : vector<1x1x96xf32> to vector<1x96xf32>
    %836 = vector.broadcast %835 : vector<1x96xf32> to vector<16x96xf32>
    %837 = arith.addf %833, %836 : vector<16x96xf32>
    %838 = vector.extract_strided_slice %837 {offsets = [0, 0], sizes = [16, 32], strides = [1, 1]} : vector<16x96xf32> to vector<16x32xf32>
    %839 = vector.extract_strided_slice %837 {offsets = [0, 32], sizes = [16, 32], strides = [1, 1]} : vector<16x96xf32> to vector<16x32xf32>
    %840 = vector.extract_strided_slice %837 {offsets = [0, 64], sizes = [16, 32], strides = [1, 1]} : vector<16x96xf32> to vector<16x32xf32>
    %841 = vector.extract_strided_slice %838 {offsets = [0, 0], sizes = [8, 32], strides = [1, 1]} : vector<16x32xf32> to vector<8x32xf32>
    %842 = vector.extract_strided_slice %839 {offsets = [0, 0], sizes = [8, 32], strides = [1, 1]} : vector<16x32xf32> to vector<8x32xf32>
    %843 = vector.extract_strided_slice %840 {offsets = [0, 0], sizes = [8, 32], strides = [1, 1]} : vector<16x32xf32> to vector<8x32xf32>
    %844 = vector.extract_strided_slice %841 {offsets = [0, 0], sizes = [8, 16], strides = [1, 1]} : vector<8x32xf32> to vector<8x16xf32>
    %845 = vector.extract_strided_slice %842 {offsets = [0, 0], sizes = [8, 16], strides = [1, 1]} : vector<8x32xf32> to vector<8x16xf32>
    %cst_360 = arith.constant dense<0.000000e+00> : vector<8x8xf32>
    %846 = tpu.matmul %844, %845, %cst_360 {dimension_numbers = #tpu.dot_dimension_numbers<[1], [1], [0], [0], [0, 0, 1, 0], [], []>} : vector<8x16xf32>, vector<8x16xf32>, vector<8x8xf32> -> vector<8x8xf32>
    %cst_361 = arith.constant 2.500000e-01 : f32
    %847 = vector.broadcast %cst_361 : f32 to vector<8x8xf32>
    %848 = arith.mulf %846, %847 : vector<8x8xf32>
    %849 = arith.addf %848, %492 : vector<8x8xf32>
    %cst_362 = arith.constant dense<0xFF800000> : vector<8xf32>
    %850 = vector.multi_reduction <maximumf>, %849, %cst_362 [1] : vector<8x8xf32> to vector<8xf32>
    %851 = vector.shape_cast %850 : vector<8xf32> to vector<8x1xf32>
    %852 = vector.broadcast %851 : vector<8x1xf32> to vector<8x8xf32>
    %853 = arith.subf %849, %852 : vector<8x8xf32>
    %854 = math.exp %853 : vector<8x8xf32>
    %cst_363 = arith.constant dense<0.000000e+00> : vector<8xf32>
    %855 = vector.multi_reduction <add>, %854, %cst_363 [1] : vector<8x8xf32> to vector<8xf32>
    %856 = vector.shape_cast %855 : vector<8xf32> to vector<8x1xf32>
    %857 = vector.broadcast %856 : vector<8x1xf32> to vector<8x8xf32>
    %858 = arith.divf %854, %857 : vector<8x8xf32>
    %859 = vector.extract_strided_slice %843 {offsets = [0, 0], sizes = [8, 16], strides = [1, 1]} : vector<8x32xf32> to vector<8x16xf32>
    %cst_364 = arith.constant dense<0.000000e+00> : vector<8x16xf32>
    %860 = tpu.matmul %858, %859, %cst_364 {dimension_numbers = #tpu.dot_dimension_numbers<[1], [0], [0], [1], [0, 0, 1, 1], [], []>} : vector<8x8xf32>, vector<8x16xf32>, vector<8x16xf32> -> vector<8x16xf32>
    %861 = vector.extract_strided_slice %841 {offsets = [0, 16], sizes = [8, 16], strides = [1, 1]} : vector<8x32xf32> to vector<8x16xf32>
    %862 = vector.extract_strided_slice %842 {offsets = [0, 16], sizes = [8, 16], strides = [1, 1]} : vector<8x32xf32> to vector<8x16xf32>
    %cst_365 = arith.constant dense<0.000000e+00> : vector<8x8xf32>
    %863 = tpu.matmul %861, %862, %cst_365 {dimension_numbers = #tpu.dot_dimension_numbers<[1], [1], [0], [0], [0, 0, 1, 0], [], []>} : vector<8x16xf32>, vector<8x16xf32>, vector<8x8xf32> -> vector<8x8xf32>
    %cst_366 = arith.constant 2.500000e-01 : f32
    %864 = vector.broadcast %cst_366 : f32 to vector<8x8xf32>
    %865 = arith.mulf %863, %864 : vector<8x8xf32>
    %866 = arith.addf %865, %492 : vector<8x8xf32>
    %cst_367 = arith.constant dense<0xFF800000> : vector<8xf32>
    %867 = vector.multi_reduction <maximumf>, %866, %cst_367 [1] : vector<8x8xf32> to vector<8xf32>
    %868 = vector.shape_cast %867 : vector<8xf32> to vector<8x1xf32>
    %869 = vector.broadcast %868 : vector<8x1xf32> to vector<8x8xf32>
    %870 = arith.subf %866, %869 : vector<8x8xf32>
    %871 = math.exp %870 : vector<8x8xf32>
    %cst_368 = arith.constant dense<0.000000e+00> : vector<8xf32>
    %872 = vector.multi_reduction <add>, %871, %cst_368 [1] : vector<8x8xf32> to vector<8xf32>
    %873 = vector.shape_cast %872 : vector<8xf32> to vector<8x1xf32>
    %874 = vector.broadcast %873 : vector<8x1xf32> to vector<8x8xf32>
    %875 = arith.divf %871, %874 : vector<8x8xf32>
    %876 = vector.extract_strided_slice %843 {offsets = [0, 16], sizes = [8, 16], strides = [1, 1]} : vector<8x32xf32> to vector<8x16xf32>
    %cst_369 = arith.constant dense<0.000000e+00> : vector<8x16xf32>
    %877 = tpu.matmul %875, %876, %cst_369 {dimension_numbers = #tpu.dot_dimension_numbers<[1], [0], [0], [1], [0, 0, 1, 1], [], []>} : vector<8x8xf32>, vector<8x16xf32>, vector<8x16xf32> -> vector<8x16xf32>
    %878 = tpu.concatenate %860, %877 in 1 : vector<8x16xf32>, vector<8x16xf32> -> vector<8x32xf32>
    %879 = vector.extract_strided_slice %838 {offsets = [8, 0], sizes = [8, 32], strides = [1, 1]} : vector<16x32xf32> to vector<8x32xf32>
    %880 = vector.extract_strided_slice %839 {offsets = [8, 0], sizes = [8, 32], strides = [1, 1]} : vector<16x32xf32> to vector<8x32xf32>
    %881 = vector.extract_strided_slice %840 {offsets = [8, 0], sizes = [8, 32], strides = [1, 1]} : vector<16x32xf32> to vector<8x32xf32>
    %882 = vector.extract_strided_slice %879 {offsets = [0, 0], sizes = [8, 16], strides = [1, 1]} : vector<8x32xf32> to vector<8x16xf32>
    %883 = vector.extract_strided_slice %880 {offsets = [0, 0], sizes = [8, 16], strides = [1, 1]} : vector<8x32xf32> to vector<8x16xf32>
    %cst_370 = arith.constant dense<0.000000e+00> : vector<8x8xf32>
    %884 = tpu.matmul %882, %883, %cst_370 {dimension_numbers = #tpu.dot_dimension_numbers<[1], [1], [0], [0], [0, 0, 1, 0], [], []>} : vector<8x16xf32>, vector<8x16xf32>, vector<8x8xf32> -> vector<8x8xf32>
    %cst_371 = arith.constant 2.500000e-01 : f32
    %885 = vector.broadcast %cst_371 : f32 to vector<8x8xf32>
    %886 = arith.mulf %884, %885 : vector<8x8xf32>
    %887 = arith.addf %886, %492 : vector<8x8xf32>
    %cst_372 = arith.constant dense<0xFF800000> : vector<8xf32>
    %888 = vector.multi_reduction <maximumf>, %887, %cst_372 [1] : vector<8x8xf32> to vector<8xf32>
    %889 = vector.shape_cast %888 : vector<8xf32> to vector<8x1xf32>
    %890 = vector.broadcast %889 : vector<8x1xf32> to vector<8x8xf32>
    %891 = arith.subf %887, %890 : vector<8x8xf32>
    %892 = math.exp %891 : vector<8x8xf32>
    %cst_373 = arith.constant dense<0.000000e+00> : vector<8xf32>
    %893 = vector.multi_reduction <add>, %892, %cst_373 [1] : vector<8x8xf32> to vector<8xf32>
    %894 = vector.shape_cast %893 : vector<8xf32> to vector<8x1xf32>
    %895 = vector.broadcast %894 : vector<8x1xf32> to vector<8x8xf32>
    %896 = arith.divf %892, %895 : vector<8x8xf32>
    %897 = vector.extract_strided_slice %881 {offsets = [0, 0], sizes = [8, 16], strides = [1, 1]} : vector<8x32xf32> to vector<8x16xf32>
    %cst_374 = arith.constant dense<0.000000e+00> : vector<8x16xf32>
    %898 = tpu.matmul %896, %897, %cst_374 {dimension_numbers = #tpu.dot_dimension_numbers<[1], [0], [0], [1], [0, 0, 1, 1], [], []>} : vector<8x8xf32>, vector<8x16xf32>, vector<8x16xf32> -> vector<8x16xf32>
    %899 = vector.extract_strided_slice %879 {offsets = [0, 16], sizes = [8, 16], strides = [1, 1]} : vector<8x32xf32> to vector<8x16xf32>
    %900 = vector.extract_strided_slice %880 {offsets = [0, 16], sizes = [8, 16], strides = [1, 1]} : vector<8x32xf32> to vector<8x16xf32>
    %cst_375 = arith.constant dense<0.000000e+00> : vector<8x8xf32>
    %901 = tpu.matmul %899, %900, %cst_375 {dimension_numbers = #tpu.dot_dimension_numbers<[1], [1], [0], [0], [0, 0, 1, 0], [], []>} : vector<8x16xf32>, vector<8x16xf32>, vector<8x8xf32> -> vector<8x8xf32>
    %cst_376 = arith.constant 2.500000e-01 : f32
    %902 = vector.broadcast %cst_376 : f32 to vector<8x8xf32>
    %903 = arith.mulf %901, %902 : vector<8x8xf32>
    %904 = arith.addf %903, %492 : vector<8x8xf32>
    %cst_377 = arith.constant dense<0xFF800000> : vector<8xf32>
    %905 = vector.multi_reduction <maximumf>, %904, %cst_377 [1] : vector<8x8xf32> to vector<8xf32>
    %906 = vector.shape_cast %905 : vector<8xf32> to vector<8x1xf32>
    %907 = vector.broadcast %906 : vector<8x1xf32> to vector<8x8xf32>
    %908 = arith.subf %904, %907 : vector<8x8xf32>
    %909 = math.exp %908 : vector<8x8xf32>
    %cst_378 = arith.constant dense<0.000000e+00> : vector<8xf32>
    %910 = vector.multi_reduction <add>, %909, %cst_378 [1] : vector<8x8xf32> to vector<8xf32>
    %911 = vector.shape_cast %910 : vector<8xf32> to vector<8x1xf32>
    %912 = vector.broadcast %911 : vector<8x1xf32> to vector<8x8xf32>
    %913 = arith.divf %909, %912 : vector<8x8xf32>
    %914 = vector.extract_strided_slice %881 {offsets = [0, 16], sizes = [8, 16], strides = [1, 1]} : vector<8x32xf32> to vector<8x16xf32>
    %cst_379 = arith.constant dense<0.000000e+00> : vector<8x16xf32>
    %915 = tpu.matmul %913, %914, %cst_379 {dimension_numbers = #tpu.dot_dimension_numbers<[1], [0], [0], [1], [0, 0, 1, 1], [], []>} : vector<8x8xf32>, vector<8x16xf32>, vector<8x16xf32> -> vector<8x16xf32>
    %916 = tpu.concatenate %898, %915 in 1 : vector<8x16xf32>, vector<8x16xf32> -> vector<8x32xf32>
    %917 = tpu.concatenate %878, %916 in 0 : vector<8x32xf32>, vector<8x32xf32> -> vector<16x32xf32>
    %c1_380 = arith.constant 1 : index
    %c0_381 = arith.constant 0 : index
    %c0_382 = arith.constant 0 : index
    %918 = vector.load %arg27[%c1_380, %c0_381, %c0_382] : memref<2x32x32xf32, #tpu.memory_space<vmem>>, vector<1x32x32xf32>
    %919 = vector.shape_cast %918 : vector<1x32x32xf32> to vector<32x32xf32>
    %cst_383 = arith.constant dense<0.000000e+00> : vector<16x32xf32>
    %920 = tpu.matmul %917, %919, %cst_383 {dimension_numbers = #tpu.dot_dimension_numbers<[1], [0], [0], [1], [0, 0, 1, 1], [], []>} : vector<16x32xf32>, vector<32x32xf32>, vector<16x32xf32> -> vector<16x32xf32>
    %c1_384 = arith.constant 1 : index
    %c0_385 = arith.constant 0 : index
    %c0_386 = arith.constant 0 : index
    %921 = vector.load %arg28[%c1_384, %c0_385, %c0_386] : memref<2x1x32xf32, #tpu.memory_space<vmem>>, vector<1x1x32xf32>
    %922 = vector.shape_cast %921 : vector<1x1x32xf32> to vector<1x32xf32>
    %923 = vector.broadcast %922 : vector<1x32xf32> to vector<16x32xf32>
    %924 = arith.addf %920, %923 : vector<16x32xf32>
    %925 = arith.addf %830, %924 : vector<16x32xf32>
    %c1_387 = arith.constant 1 : index
    %c0_388 = arith.constant 0 : index
    %c0_389 = arith.constant 0 : index
    %926 = vector.load %arg29[%c1_387, %c0_388, %c0_389] : memref<2x1x32xf32, #tpu.memory_space<vmem>>, vector<1x1x32xf32>
    %927 = vector.shape_cast %926 : vector<1x1x32xf32> to vector<1x32xf32>
    %c1_390 = arith.constant 1 : index
    %c0_391 = arith.constant 0 : index
    %c0_392 = arith.constant 0 : index
    %928 = vector.load %arg30[%c1_390, %c0_391, %c0_392] : memref<2x1x32xf32, #tpu.memory_space<vmem>>, vector<1x1x32xf32>
    %929 = vector.shape_cast %928 : vector<1x1x32xf32> to vector<1x32xf32>
    %cst_393 = arith.constant dense<0.000000e+00> : vector<16xf32>
    %930 = vector.multi_reduction <add>, %925, %cst_393 [1] : vector<16x32xf32> to vector<16xf32>
    %931 = vector.shape_cast %930 : vector<16xf32> to vector<16x1xf32>
    %cst_394 = arith.constant 3.200000e+01 : f32
    %932 = vector.broadcast %cst_394 : f32 to vector<16x1xf32>
    %933 = arith.divf %931, %932 : vector<16x1xf32>
    %934 = vector.broadcast %933 : vector<16x1xf32> to vector<16x32xf32>
    %935 = arith.subf %925, %934 : vector<16x32xf32>
    %936 = arith.mulf %935, %935 : vector<16x32xf32>
    %cst_395 = arith.constant dense<0.000000e+00> : vector<16xf32>
    %937 = vector.multi_reduction <add>, %936, %cst_395 [1] : vector<16x32xf32> to vector<16xf32>
    %938 = vector.shape_cast %937 : vector<16xf32> to vector<16x1xf32>
    %cst_396 = arith.constant 3.200000e+01 : f32
    %939 = vector.broadcast %cst_396 : f32 to vector<16x1xf32>
    %940 = arith.divf %938, %939 : vector<16x1xf32>
    %cst_397 = arith.constant 9.99999974E-6 : f32
    %941 = vector.broadcast %cst_397 : f32 to vector<16x1xf32>
    %942 = arith.addf %940, %941 : vector<16x1xf32>
    %943 = math.rsqrt %942 : vector<16x1xf32>
    %944 = vector.broadcast %943 : vector<16x1xf32> to vector<16x32xf32>
    %945 = arith.mulf %935, %944 : vector<16x32xf32>
    %946 = vector.broadcast %927 : vector<1x32xf32> to vector<16x32xf32>
    %947 = arith.mulf %945, %946 : vector<16x32xf32>
    %948 = vector.broadcast %929 : vector<1x32xf32> to vector<16x32xf32>
    %949 = arith.addf %947, %948 : vector<16x32xf32>
    %c1_398 = arith.constant 1 : index
    %c0_399 = arith.constant 0 : index
    %c0_400 = arith.constant 0 : index
    %950 = vector.load %arg31[%c1_398, %c0_399, %c0_400] : memref<2x32x32xf32, #tpu.memory_space<vmem>>, vector<1x32x32xf32>
    %951 = vector.shape_cast %950 : vector<1x32x32xf32> to vector<32x32xf32>
    %cst_401 = arith.constant dense<0.000000e+00> : vector<16x32xf32>
    %952 = tpu.matmul %949, %951, %cst_401 {dimension_numbers = #tpu.dot_dimension_numbers<[1], [0], [0], [1], [0, 0, 1, 1], [], []>} : vector<16x32xf32>, vector<32x32xf32>, vector<16x32xf32> -> vector<16x32xf32>
    %c1_402 = arith.constant 1 : index
    %c0_403 = arith.constant 0 : index
    %c0_404 = arith.constant 0 : index
    %953 = vector.load %arg32[%c1_402, %c0_403, %c0_404] : memref<2x1x32xf32, #tpu.memory_space<vmem>>, vector<1x1x32xf32>
    %954 = vector.shape_cast %953 : vector<1x1x32xf32> to vector<1x32xf32>
    %955 = vector.broadcast %954 : vector<1x32xf32> to vector<16x32xf32>
    %956 = arith.addf %952, %955 : vector<16x32xf32>
    %c1_405 = arith.constant 1 : index
    %c0_406 = arith.constant 0 : index
    %c0_407 = arith.constant 0 : index
    %957 = vector.load %arg33[%c1_405, %c0_406, %c0_407] : memref<2x32x64xf32, #tpu.memory_space<vmem>>, vector<1x32x64xf32>
    %958 = vector.shape_cast %957 : vector<1x32x64xf32> to vector<32x64xf32>
    %cst_408 = arith.constant dense<0.000000e+00> : vector<16x64xf32>
    %959 = tpu.matmul %451, %958, %cst_408 {dimension_numbers = #tpu.dot_dimension_numbers<[1], [0], [0], [1], [0, 0, 1, 1], [], []>} : vector<16x32xf32>, vector<32x64xf32>, vector<16x64xf32> -> vector<16x64xf32>
    %c1_409 = arith.constant 1 : index
    %c0_410 = arith.constant 0 : index
    %c0_411 = arith.constant 0 : index
    %960 = vector.load %arg34[%c1_409, %c0_410, %c0_411] : memref<2x1x64xf32, #tpu.memory_space<vmem>>, vector<1x1x64xf32>
    %961 = vector.shape_cast %960 : vector<1x1x64xf32> to vector<1x64xf32>
    %962 = vector.broadcast %961 : vector<1x64xf32> to vector<16x64xf32>
    %963 = arith.addf %959, %962 : vector<16x64xf32>
    %964 = vector.extract_strided_slice %963 {offsets = [0, 0], sizes = [16, 32], strides = [1, 1]} : vector<16x64xf32> to vector<16x32xf32>
    %965 = vector.extract_strided_slice %963 {offsets = [0, 32], sizes = [16, 32], strides = [1, 1]} : vector<16x64xf32> to vector<16x32xf32>
    %966 = vector.extract_strided_slice %956 {offsets = [0, 0], sizes = [8, 32], strides = [1, 1]} : vector<16x32xf32> to vector<8x32xf32>
    %967 = vector.extract_strided_slice %964 {offsets = [0, 0], sizes = [8, 32], strides = [1, 1]} : vector<16x32xf32> to vector<8x32xf32>
    %968 = vector.extract_strided_slice %965 {offsets = [0, 0], sizes = [8, 32], strides = [1, 1]} : vector<16x32xf32> to vector<8x32xf32>
    %969 = vector.extract_strided_slice %966 {offsets = [0, 0], sizes = [8, 16], strides = [1, 1]} : vector<8x32xf32> to vector<8x16xf32>
    %970 = vector.extract_strided_slice %967 {offsets = [0, 0], sizes = [8, 16], strides = [1, 1]} : vector<8x32xf32> to vector<8x16xf32>
    %cst_412 = arith.constant dense<0.000000e+00> : vector<8x8xf32>
    %971 = tpu.matmul %969, %970, %cst_412 {dimension_numbers = #tpu.dot_dimension_numbers<[1], [1], [0], [0], [0, 0, 1, 0], [], []>} : vector<8x16xf32>, vector<8x16xf32>, vector<8x8xf32> -> vector<8x8xf32>
    %cst_413 = arith.constant 2.500000e-01 : f32
    %972 = vector.broadcast %cst_413 : f32 to vector<8x8xf32>
    %973 = arith.mulf %971, %972 : vector<8x8xf32>
    %974 = vector.broadcast %498 : vector<1x8xf32> to vector<8x8xf32>
    %975 = arith.addf %973, %974 : vector<8x8xf32>
    %cst_414 = arith.constant dense<0xFF800000> : vector<8xf32>
    %976 = vector.multi_reduction <maximumf>, %975, %cst_414 [1] : vector<8x8xf32> to vector<8xf32>
    %977 = vector.shape_cast %976 : vector<8xf32> to vector<8x1xf32>
    %978 = vector.broadcast %977 : vector<8x1xf32> to vector<8x8xf32>
    %979 = arith.subf %975, %978 : vector<8x8xf32>
    %980 = math.exp %979 : vector<8x8xf32>
    %cst_415 = arith.constant dense<0.000000e+00> : vector<8xf32>
    %981 = vector.multi_reduction <add>, %980, %cst_415 [1] : vector<8x8xf32> to vector<8xf32>
    %982 = vector.shape_cast %981 : vector<8xf32> to vector<8x1xf32>
    %983 = vector.broadcast %982 : vector<8x1xf32> to vector<8x8xf32>
    %984 = arith.divf %980, %983 : vector<8x8xf32>
    %985 = vector.extract_strided_slice %968 {offsets = [0, 0], sizes = [8, 16], strides = [1, 1]} : vector<8x32xf32> to vector<8x16xf32>
    %cst_416 = arith.constant dense<0.000000e+00> : vector<8x16xf32>
    %986 = tpu.matmul %984, %985, %cst_416 {dimension_numbers = #tpu.dot_dimension_numbers<[1], [0], [0], [1], [0, 0, 1, 1], [], []>} : vector<8x8xf32>, vector<8x16xf32>, vector<8x16xf32> -> vector<8x16xf32>
    %987 = vector.extract_strided_slice %966 {offsets = [0, 16], sizes = [8, 16], strides = [1, 1]} : vector<8x32xf32> to vector<8x16xf32>
    %988 = vector.extract_strided_slice %967 {offsets = [0, 16], sizes = [8, 16], strides = [1, 1]} : vector<8x32xf32> to vector<8x16xf32>
    %cst_417 = arith.constant dense<0.000000e+00> : vector<8x8xf32>
    %989 = tpu.matmul %987, %988, %cst_417 {dimension_numbers = #tpu.dot_dimension_numbers<[1], [1], [0], [0], [0, 0, 1, 0], [], []>} : vector<8x16xf32>, vector<8x16xf32>, vector<8x8xf32> -> vector<8x8xf32>
    %cst_418 = arith.constant 2.500000e-01 : f32
    %990 = vector.broadcast %cst_418 : f32 to vector<8x8xf32>
    %991 = arith.mulf %989, %990 : vector<8x8xf32>
    %992 = vector.broadcast %498 : vector<1x8xf32> to vector<8x8xf32>
    %993 = arith.addf %991, %992 : vector<8x8xf32>
    %cst_419 = arith.constant dense<0xFF800000> : vector<8xf32>
    %994 = vector.multi_reduction <maximumf>, %993, %cst_419 [1] : vector<8x8xf32> to vector<8xf32>
    %995 = vector.shape_cast %994 : vector<8xf32> to vector<8x1xf32>
    %996 = vector.broadcast %995 : vector<8x1xf32> to vector<8x8xf32>
    %997 = arith.subf %993, %996 : vector<8x8xf32>
    %998 = math.exp %997 : vector<8x8xf32>
    %cst_420 = arith.constant dense<0.000000e+00> : vector<8xf32>
    %999 = vector.multi_reduction <add>, %998, %cst_420 [1] : vector<8x8xf32> to vector<8xf32>
    %1000 = vector.shape_cast %999 : vector<8xf32> to vector<8x1xf32>
    %1001 = vector.broadcast %1000 : vector<8x1xf32> to vector<8x8xf32>
    %1002 = arith.divf %998, %1001 : vector<8x8xf32>
    %1003 = vector.extract_strided_slice %968 {offsets = [0, 16], sizes = [8, 16], strides = [1, 1]} : vector<8x32xf32> to vector<8x16xf32>
    %cst_421 = arith.constant dense<0.000000e+00> : vector<8x16xf32>
    %1004 = tpu.matmul %1002, %1003, %cst_421 {dimension_numbers = #tpu.dot_dimension_numbers<[1], [0], [0], [1], [0, 0, 1, 1], [], []>} : vector<8x8xf32>, vector<8x16xf32>, vector<8x16xf32> -> vector<8x16xf32>
    %1005 = tpu.concatenate %986, %1004 in 1 : vector<8x16xf32>, vector<8x16xf32> -> vector<8x32xf32>
    %1006 = vector.extract_strided_slice %956 {offsets = [8, 0], sizes = [8, 32], strides = [1, 1]} : vector<16x32xf32> to vector<8x32xf32>
    %1007 = vector.extract_strided_slice %964 {offsets = [8, 0], sizes = [8, 32], strides = [1, 1]} : vector<16x32xf32> to vector<8x32xf32>
    %1008 = vector.extract_strided_slice %965 {offsets = [8, 0], sizes = [8, 32], strides = [1, 1]} : vector<16x32xf32> to vector<8x32xf32>
    %1009 = vector.extract_strided_slice %1006 {offsets = [0, 0], sizes = [8, 16], strides = [1, 1]} : vector<8x32xf32> to vector<8x16xf32>
    %1010 = vector.extract_strided_slice %1007 {offsets = [0, 0], sizes = [8, 16], strides = [1, 1]} : vector<8x32xf32> to vector<8x16xf32>
    %cst_422 = arith.constant dense<0.000000e+00> : vector<8x8xf32>
    %1011 = tpu.matmul %1009, %1010, %cst_422 {dimension_numbers = #tpu.dot_dimension_numbers<[1], [1], [0], [0], [0, 0, 1, 0], [], []>} : vector<8x16xf32>, vector<8x16xf32>, vector<8x8xf32> -> vector<8x8xf32>
    %cst_423 = arith.constant 2.500000e-01 : f32
    %1012 = vector.broadcast %cst_423 : f32 to vector<8x8xf32>
    %1013 = arith.mulf %1011, %1012 : vector<8x8xf32>
    %1014 = vector.broadcast %503 : vector<1x8xf32> to vector<8x8xf32>
    %1015 = arith.addf %1013, %1014 : vector<8x8xf32>
    %cst_424 = arith.constant dense<0xFF800000> : vector<8xf32>
    %1016 = vector.multi_reduction <maximumf>, %1015, %cst_424 [1] : vector<8x8xf32> to vector<8xf32>
    %1017 = vector.shape_cast %1016 : vector<8xf32> to vector<8x1xf32>
    %1018 = vector.broadcast %1017 : vector<8x1xf32> to vector<8x8xf32>
    %1019 = arith.subf %1015, %1018 : vector<8x8xf32>
    %1020 = math.exp %1019 : vector<8x8xf32>
    %cst_425 = arith.constant dense<0.000000e+00> : vector<8xf32>
    %1021 = vector.multi_reduction <add>, %1020, %cst_425 [1] : vector<8x8xf32> to vector<8xf32>
    %1022 = vector.shape_cast %1021 : vector<8xf32> to vector<8x1xf32>
    %1023 = vector.broadcast %1022 : vector<8x1xf32> to vector<8x8xf32>
    %1024 = arith.divf %1020, %1023 : vector<8x8xf32>
    %1025 = vector.extract_strided_slice %1008 {offsets = [0, 0], sizes = [8, 16], strides = [1, 1]} : vector<8x32xf32> to vector<8x16xf32>
    %cst_426 = arith.constant dense<0.000000e+00> : vector<8x16xf32>
    %1026 = tpu.matmul %1024, %1025, %cst_426 {dimension_numbers = #tpu.dot_dimension_numbers<[1], [0], [0], [1], [0, 0, 1, 1], [], []>} : vector<8x8xf32>, vector<8x16xf32>, vector<8x16xf32> -> vector<8x16xf32>
    %1027 = vector.extract_strided_slice %1006 {offsets = [0, 16], sizes = [8, 16], strides = [1, 1]} : vector<8x32xf32> to vector<8x16xf32>
    %1028 = vector.extract_strided_slice %1007 {offsets = [0, 16], sizes = [8, 16], strides = [1, 1]} : vector<8x32xf32> to vector<8x16xf32>
    %cst_427 = arith.constant dense<0.000000e+00> : vector<8x8xf32>
    %1029 = tpu.matmul %1027, %1028, %cst_427 {dimension_numbers = #tpu.dot_dimension_numbers<[1], [1], [0], [0], [0, 0, 1, 0], [], []>} : vector<8x16xf32>, vector<8x16xf32>, vector<8x8xf32> -> vector<8x8xf32>
    %cst_428 = arith.constant 2.500000e-01 : f32
    %1030 = vector.broadcast %cst_428 : f32 to vector<8x8xf32>
    %1031 = arith.mulf %1029, %1030 : vector<8x8xf32>
    %1032 = vector.broadcast %503 : vector<1x8xf32> to vector<8x8xf32>
    %1033 = arith.addf %1031, %1032 : vector<8x8xf32>
    %cst_429 = arith.constant dense<0xFF800000> : vector<8xf32>
    %1034 = vector.multi_reduction <maximumf>, %1033, %cst_429 [1] : vector<8x8xf32> to vector<8xf32>
    %1035 = vector.shape_cast %1034 : vector<8xf32> to vector<8x1xf32>
    %1036 = vector.broadcast %1035 : vector<8x1xf32> to vector<8x8xf32>
    %1037 = arith.subf %1033, %1036 : vector<8x8xf32>
    %1038 = math.exp %1037 : vector<8x8xf32>
    %cst_430 = arith.constant dense<0.000000e+00> : vector<8xf32>
    %1039 = vector.multi_reduction <add>, %1038, %cst_430 [1] : vector<8x8xf32> to vector<8xf32>
    %1040 = vector.shape_cast %1039 : vector<8xf32> to vector<8x1xf32>
    %1041 = vector.broadcast %1040 : vector<8x1xf32> to vector<8x8xf32>
    %1042 = arith.divf %1038, %1041 : vector<8x8xf32>
    %1043 = vector.extract_strided_slice %1008 {offsets = [0, 16], sizes = [8, 16], strides = [1, 1]} : vector<8x32xf32> to vector<8x16xf32>
    %cst_431 = arith.constant dense<0.000000e+00> : vector<8x16xf32>
    %1044 = tpu.matmul %1042, %1043, %cst_431 {dimension_numbers = #tpu.dot_dimension_numbers<[1], [0], [0], [1], [0, 0, 1, 1], [], []>} : vector<8x8xf32>, vector<8x16xf32>, vector<8x16xf32> -> vector<8x16xf32>
    %1045 = tpu.concatenate %1026, %1044 in 1 : vector<8x16xf32>, vector<8x16xf32> -> vector<8x32xf32>
    %1046 = tpu.concatenate %1005, %1045 in 0 : vector<8x32xf32>, vector<8x32xf32> -> vector<16x32xf32>
    %c1_432 = arith.constant 1 : index
    %c0_433 = arith.constant 0 : index
    %c0_434 = arith.constant 0 : index
    %1047 = vector.load %arg35[%c1_432, %c0_433, %c0_434] : memref<2x32x32xf32, #tpu.memory_space<vmem>>, vector<1x32x32xf32>
    %1048 = vector.shape_cast %1047 : vector<1x32x32xf32> to vector<32x32xf32>
    %cst_435 = arith.constant dense<0.000000e+00> : vector<16x32xf32>
    %1049 = tpu.matmul %1046, %1048, %cst_435 {dimension_numbers = #tpu.dot_dimension_numbers<[1], [0], [0], [1], [0, 0, 1, 1], [], []>} : vector<16x32xf32>, vector<32x32xf32>, vector<16x32xf32> -> vector<16x32xf32>
    %c1_436 = arith.constant 1 : index
    %c0_437 = arith.constant 0 : index
    %c0_438 = arith.constant 0 : index
    %1050 = vector.load %arg36[%c1_436, %c0_437, %c0_438] : memref<2x1x32xf32, #tpu.memory_space<vmem>>, vector<1x1x32xf32>
    %1051 = vector.shape_cast %1050 : vector<1x1x32xf32> to vector<1x32xf32>
    %1052 = vector.broadcast %1051 : vector<1x32xf32> to vector<16x32xf32>
    %1053 = arith.addf %1049, %1052 : vector<16x32xf32>
    %1054 = arith.addf %949, %1053 : vector<16x32xf32>
    %c1_439 = arith.constant 1 : index
    %c0_440 = arith.constant 0 : index
    %c0_441 = arith.constant 0 : index
    %1055 = vector.load %arg37[%c1_439, %c0_440, %c0_441] : memref<2x1x32xf32, #tpu.memory_space<vmem>>, vector<1x1x32xf32>
    %1056 = vector.shape_cast %1055 : vector<1x1x32xf32> to vector<1x32xf32>
    %c1_442 = arith.constant 1 : index
    %c0_443 = arith.constant 0 : index
    %c0_444 = arith.constant 0 : index
    %1057 = vector.load %arg38[%c1_442, %c0_443, %c0_444] : memref<2x1x32xf32, #tpu.memory_space<vmem>>, vector<1x1x32xf32>
    %1058 = vector.shape_cast %1057 : vector<1x1x32xf32> to vector<1x32xf32>
    %cst_445 = arith.constant dense<0.000000e+00> : vector<16xf32>
    %1059 = vector.multi_reduction <add>, %1054, %cst_445 [1] : vector<16x32xf32> to vector<16xf32>
    %1060 = vector.shape_cast %1059 : vector<16xf32> to vector<16x1xf32>
    %cst_446 = arith.constant 3.200000e+01 : f32
    %1061 = vector.broadcast %cst_446 : f32 to vector<16x1xf32>
    %1062 = arith.divf %1060, %1061 : vector<16x1xf32>
    %1063 = vector.broadcast %1062 : vector<16x1xf32> to vector<16x32xf32>
    %1064 = arith.subf %1054, %1063 : vector<16x32xf32>
    %1065 = arith.mulf %1064, %1064 : vector<16x32xf32>
    %cst_447 = arith.constant dense<0.000000e+00> : vector<16xf32>
    %1066 = vector.multi_reduction <add>, %1065, %cst_447 [1] : vector<16x32xf32> to vector<16xf32>
    %1067 = vector.shape_cast %1066 : vector<16xf32> to vector<16x1xf32>
    %cst_448 = arith.constant 3.200000e+01 : f32
    %1068 = vector.broadcast %cst_448 : f32 to vector<16x1xf32>
    %1069 = arith.divf %1067, %1068 : vector<16x1xf32>
    %cst_449 = arith.constant 9.99999974E-6 : f32
    %1070 = vector.broadcast %cst_449 : f32 to vector<16x1xf32>
    %1071 = arith.addf %1069, %1070 : vector<16x1xf32>
    %1072 = math.rsqrt %1071 : vector<16x1xf32>
    %1073 = vector.broadcast %1072 : vector<16x1xf32> to vector<16x32xf32>
    %1074 = arith.mulf %1064, %1073 : vector<16x32xf32>
    %1075 = vector.broadcast %1056 : vector<1x32xf32> to vector<16x32xf32>
    %1076 = arith.mulf %1074, %1075 : vector<16x32xf32>
    %1077 = vector.broadcast %1058 : vector<1x32xf32> to vector<16x32xf32>
    %1078 = arith.addf %1076, %1077 : vector<16x32xf32>
    %c1_450 = arith.constant 1 : index
    %c0_451 = arith.constant 0 : index
    %c0_452 = arith.constant 0 : index
    %1079 = vector.load %arg39[%c1_450, %c0_451, %c0_452] : memref<2x32x64xf32, #tpu.memory_space<vmem>>, vector<1x32x64xf32>
    %1080 = vector.shape_cast %1079 : vector<1x32x64xf32> to vector<32x64xf32>
    %cst_453 = arith.constant dense<0.000000e+00> : vector<16x64xf32>
    %1081 = tpu.matmul %1078, %1080, %cst_453 {dimension_numbers = #tpu.dot_dimension_numbers<[1], [0], [0], [1], [0, 0, 1, 1], [], []>} : vector<16x32xf32>, vector<32x64xf32>, vector<16x64xf32> -> vector<16x64xf32>
    %c1_454 = arith.constant 1 : index
    %c0_455 = arith.constant 0 : index
    %c0_456 = arith.constant 0 : index
    %1082 = vector.load %arg40[%c1_454, %c0_455, %c0_456] : memref<2x1x64xf32, #tpu.memory_space<vmem>>, vector<1x1x64xf32>
    %1083 = vector.shape_cast %1082 : vector<1x1x64xf32> to vector<1x64xf32>
    %1084 = vector.broadcast %1083 : vector<1x64xf32> to vector<16x64xf32>
    %1085 = arith.addf %1081, %1084 : vector<16x64xf32>
    %cst_457 = arith.constant 5.000000e-01 : f32
    %1086 = vector.broadcast %cst_457 : f32 to vector<16x64xf32>
    %1087 = arith.mulf %1086, %1085 : vector<16x64xf32>
    %cst_458 = arith.constant 0.707106769 : f32
    %1088 = vector.broadcast %cst_458 : f32 to vector<16x64xf32>
    %1089 = arith.mulf %1085, %1088 : vector<16x64xf32>
    %1090 = math.absf %1089 : vector<16x64xf32>
    %cst_459 = arith.constant 0.327591091 : f32
    %1091 = vector.broadcast %cst_459 : f32 to vector<16x64xf32>
    %1092 = arith.mulf %1091, %1090 : vector<16x64xf32>
    %cst_460 = arith.constant 1.000000e+00 : f32
    %1093 = vector.broadcast %cst_460 : f32 to vector<16x64xf32>
    %1094 = arith.addf %1093, %1092 : vector<16x64xf32>
    %cst_461 = arith.constant 1.000000e+00 : f32
    %1095 = vector.broadcast %cst_461 : f32 to vector<16x64xf32>
    %1096 = arith.divf %1095, %1094 : vector<16x64xf32>
    %cst_462 = arith.constant 1.06140542 : f32
    %1097 = vector.broadcast %cst_462 : f32 to vector<16x64xf32>
    %1098 = arith.mulf %1097, %1096 : vector<16x64xf32>
    %cst_463 = arith.constant 1.45315206 : f32
    %1099 = vector.broadcast %cst_463 : f32 to vector<16x64xf32>
    %1100 = arith.subf %1098, %1099 : vector<16x64xf32>
    %1101 = arith.mulf %1100, %1096 : vector<16x64xf32>
    %cst_464 = arith.constant 1.42141378 : f32
    %1102 = vector.broadcast %cst_464 : f32 to vector<16x64xf32>
    %1103 = arith.addf %1101, %1102 : vector<16x64xf32>
    %1104 = arith.mulf %1103, %1096 : vector<16x64xf32>
    %cst_465 = arith.constant 0.284496725 : f32
    %1105 = vector.broadcast %cst_465 : f32 to vector<16x64xf32>
    %1106 = arith.subf %1104, %1105 : vector<16x64xf32>
    %1107 = arith.mulf %1106, %1096 : vector<16x64xf32>
    %cst_466 = arith.constant 0.254829586 : f32
    %1108 = vector.broadcast %cst_466 : f32 to vector<16x64xf32>
    %1109 = arith.addf %1107, %1108 : vector<16x64xf32>
    %1110 = arith.mulf %1109, %1096 : vector<16x64xf32>
    %1111 = arith.mulf %1090, %1090 : vector<16x64xf32>
    %cst_467 = arith.constant 0.000000e+00 : f32
    %1112 = vector.broadcast %cst_467 : f32 to vector<16x64xf32>
    %1113 = arith.subf %1112, %1111 : vector<16x64xf32>
    %1114 = math.exp %1113 : vector<16x64xf32>
    %1115 = arith.mulf %1110, %1114 : vector<16x64xf32>
    %cst_468 = arith.constant 1.000000e+00 : f32
    %1116 = vector.broadcast %cst_468 : f32 to vector<16x64xf32>
    %1117 = arith.subf %1116, %1115 : vector<16x64xf32>
    %cst_469 = arith.constant 0.000000e+00 : f32
    %1118 = vector.broadcast %cst_469 : f32 to vector<16x64xf32>
    %1119 = arith.cmpf oge, %1089, %1118 : vector<16x64xf32>
    %cst_470 = arith.constant 0.000000e+00 : f32
    %1120 = vector.broadcast %cst_470 : f32 to vector<16x64xf32>
    %1121 = arith.subf %1120, %1117 : vector<16x64xf32>
    %1122 = arith.select %1119, %1117, %1121 : vector<16x64xi1>, vector<16x64xf32>
    %cst_471 = arith.constant 1.000000e+00 : f32
    %1123 = vector.broadcast %cst_471 : f32 to vector<16x64xf32>
    %1124 = arith.addf %1123, %1122 : vector<16x64xf32>
    %1125 = arith.mulf %1087, %1124 : vector<16x64xf32>
    %c1_472 = arith.constant 1 : index
    %c0_473 = arith.constant 0 : index
    %c0_474 = arith.constant 0 : index
    %1126 = vector.load %arg41[%c1_472, %c0_473, %c0_474] : memref<2x64x32xf32, #tpu.memory_space<vmem>>, vector<1x64x32xf32>
    %1127 = vector.shape_cast %1126 : vector<1x64x32xf32> to vector<64x32xf32>
    %cst_475 = arith.constant dense<0.000000e+00> : vector<16x32xf32>
    %1128 = tpu.matmul %1125, %1127, %cst_475 {dimension_numbers = #tpu.dot_dimension_numbers<[1], [0], [0], [1], [0, 0, 1, 1], [], []>} : vector<16x64xf32>, vector<64x32xf32>, vector<16x32xf32> -> vector<16x32xf32>
    %c1_476 = arith.constant 1 : index
    %c0_477 = arith.constant 0 : index
    %c0_478 = arith.constant 0 : index
    %1129 = vector.load %arg42[%c1_476, %c0_477, %c0_478] : memref<2x1x32xf32, #tpu.memory_space<vmem>>, vector<1x1x32xf32>
    %1130 = vector.shape_cast %1129 : vector<1x1x32xf32> to vector<1x32xf32>
    %1131 = vector.broadcast %1130 : vector<1x32xf32> to vector<16x32xf32>
    %1132 = arith.addf %1128, %1131 : vector<16x32xf32>
    %1133 = arith.addf %1078, %1132 : vector<16x32xf32>
    %c1_479 = arith.constant 1 : index
    %c0_480 = arith.constant 0 : index
    %c0_481 = arith.constant 0 : index
    %1134 = vector.load %arg43[%c1_479, %c0_480, %c0_481] : memref<2x1x32xf32, #tpu.memory_space<vmem>>, vector<1x1x32xf32>
    %1135 = vector.shape_cast %1134 : vector<1x1x32xf32> to vector<1x32xf32>
    %c1_482 = arith.constant 1 : index
    %c0_483 = arith.constant 0 : index
    %c0_484 = arith.constant 0 : index
    %1136 = vector.load %arg44[%c1_482, %c0_483, %c0_484] : memref<2x1x32xf32, #tpu.memory_space<vmem>>, vector<1x1x32xf32>
    %1137 = vector.shape_cast %1136 : vector<1x1x32xf32> to vector<1x32xf32>
    %cst_485 = arith.constant dense<0.000000e+00> : vector<16xf32>
    %1138 = vector.multi_reduction <add>, %1133, %cst_485 [1] : vector<16x32xf32> to vector<16xf32>
    %1139 = vector.shape_cast %1138 : vector<16xf32> to vector<16x1xf32>
    %cst_486 = arith.constant 3.200000e+01 : f32
    %1140 = vector.broadcast %cst_486 : f32 to vector<16x1xf32>
    %1141 = arith.divf %1139, %1140 : vector<16x1xf32>
    %1142 = vector.broadcast %1141 : vector<16x1xf32> to vector<16x32xf32>
    %1143 = arith.subf %1133, %1142 : vector<16x32xf32>
    %1144 = arith.mulf %1143, %1143 : vector<16x32xf32>
    %cst_487 = arith.constant dense<0.000000e+00> : vector<16xf32>
    %1145 = vector.multi_reduction <add>, %1144, %cst_487 [1] : vector<16x32xf32> to vector<16xf32>
    %1146 = vector.shape_cast %1145 : vector<16xf32> to vector<16x1xf32>
    %cst_488 = arith.constant 3.200000e+01 : f32
    %1147 = vector.broadcast %cst_488 : f32 to vector<16x1xf32>
    %1148 = arith.divf %1146, %1147 : vector<16x1xf32>
    %cst_489 = arith.constant 9.99999974E-6 : f32
    %1149 = vector.broadcast %cst_489 : f32 to vector<16x1xf32>
    %1150 = arith.addf %1148, %1149 : vector<16x1xf32>
    %1151 = math.rsqrt %1150 : vector<16x1xf32>
    %1152 = vector.broadcast %1151 : vector<16x1xf32> to vector<16x32xf32>
    %1153 = arith.mulf %1143, %1152 : vector<16x32xf32>
    %1154 = vector.broadcast %1135 : vector<1x32xf32> to vector<16x32xf32>
    %1155 = arith.mulf %1153, %1154 : vector<16x32xf32>
    %1156 = vector.broadcast %1137 : vector<1x32xf32> to vector<16x32xf32>
    %1157 = arith.addf %1155, %1156 : vector<16x32xf32>
    %c0_490 = arith.constant 0 : index
    %c0_491 = arith.constant 0 : index
    %1158 = vector.load %arg6[%c0_490, %c0_491] : memref<128x32xf32, #tpu.memory_space<vmem>>, vector<128x32xf32>
    %cst_492 = arith.constant dense<0.000000e+00> : vector<16x128xf32>
    %1159 = tpu.matmul %1157, %1158, %cst_492 {dimension_numbers = #tpu.dot_dimension_numbers<[1], [1], [0], [0], [0, 0, 1, 0], [], []>} : vector<16x32xf32>, vector<128x32xf32>, vector<16x128xf32> -> vector<16x128xf32>
    %c0_493 = arith.constant 0 : index
    %c0_494 = arith.constant 0 : index
    %1160 = vector.load %arg45[%c0_493, %c0_494] : memref<1x128xf32, #tpu.memory_space<vmem>>, vector<1x128xf32>
    %1161 = vector.broadcast %1160 : vector<1x128xf32> to vector<16x128xf32>
    %1162 = arith.addf %1159, %1161 : vector<16x128xf32>
    %c0_495 = arith.constant 0 : index
    %c0_496 = arith.constant 0 : index
    %1163 = vector.load %arg46[%c0_495, %c0_496] : memref<16x128xf32, #tpu.memory_space<vmem>>, vector<16x128xf32>
    tpu.vector_store %arg46[%c0_495, %c0_496], %1162 {strides = array<i32>} : memref<16x128xf32, #tpu.memory_space<vmem>>, vector<16x128xf32>,
    %c0_497 = arith.constant 0 : index
    %c0_498 = arith.constant 0 : index
    %1164 = vector.load %arg4[%c0_497, %c0_498] : memref<16x1xi32, #tpu.memory_space<vmem>>, vector<16x1xi32>
    %cst_499 = arith.constant dense<0xFF800000> : vector<16xf32>
    %1165 = vector.multi_reduction <maximumf>, %1162, %cst_499 [1] : vector<16x128xf32> to vector<16xf32>
    %1166 = vector.shape_cast %1165 : vector<16xf32> to vector<16x1xf32>
    %1167 = vector.broadcast %1166 : vector<16x1xf32> to vector<16x128xf32>
    %1168 = arith.subf %1162, %1167 : vector<16x128xf32>
    %1169 = math.exp %1168 : vector<16x128xf32>
    %cst_500 = arith.constant dense<0.000000e+00> : vector<16xf32>
    %1170 = vector.multi_reduction <add>, %1169, %cst_500 [1] : vector<16x128xf32> to vector<16xf32>
    %1171 = vector.shape_cast %1170 : vector<16xf32> to vector<16x1xf32>
    %1172 = math.log %1171 : vector<16x1xf32>
    %1173 = arith.addf %1172, %1166 : vector<16x1xf32>
    %1174 = vector.broadcast %1164 : vector<16x1xi32> to vector<16x128xi32>
    %1175 = arith.cmpi eq, %455, %1174 : vector<16x128xi32>
    %1176 = arith.extui %1175 : vector<16x128xi1> to vector<16x128xi32>
    %1177 = arith.sitofp %1176 : vector<16x128xi32> to vector<16x128xf32>
    %1178 = arith.mulf %1162, %1177 : vector<16x128xf32>
    %cst_501 = arith.constant dense<0.000000e+00> : vector<16xf32>
    %1179 = vector.multi_reduction <add>, %1178, %cst_501 [1] : vector<16x128xf32> to vector<16xf32>
    %1180 = vector.shape_cast %1179 : vector<16xf32> to vector<16x1xf32>
    %c-100_i32 = arith.constant -100 : i32
    %1181 = vector.broadcast %c-100_i32 : i32 to vector<16x1xi32>
    %1182 = arith.cmpi ne, %1164, %1181 : vector<16x1xi32>
    %1183 = arith.extui %1182 : vector<16x1xi1> to vector<16x1xi32>
    %1184 = arith.sitofp %1183 : vector<16x1xi32> to vector<16x1xf32>
    %1185 = arith.subf %1173, %1180 : vector<16x1xf32>
    %1186 = arith.mulf %1185, %1184 : vector<16x1xf32>
    %1187 = vector.shape_cast %1186 : vector<16x1xf32> to vector<1x16x1xf32>
    %cst_502 = arith.constant dense<0.000000e+00> : vector<1xf32>
    %1188 = vector.multi_reduction <add>, %1187, %cst_502 [1, 2] : vector<1x16x1xf32> to vector<1xf32>
    %1189 = vector.shape_cast %1188 : vector<1xf32> to vector<1x1x1xf32>
    %1190 = vector.extract %1189[0, 0, 0] : f32 from vector<1x1x1xf32>
    %1191 = vector.broadcast %1190 : f32 to vector<1x1xf32>
    %1192 = vector.shape_cast %1184 : vector<16x1xf32> to vector<1x16x1xf32>
    %cst_503 = arith.constant dense<0.000000e+00> : vector<1xf32>
    %1193 = vector.multi_reduction <add>, %1192, %cst_503 [1, 2] : vector<1x16x1xf32> to vector<1xf32>
    %1194 = vector.shape_cast %1193 : vector<1xf32> to vector<1x1x1xf32>
    %1195 = vector.extract %1194[0, 0, 0] : f32 from vector<1x1x1xf32>
    %1196 = vector.broadcast %1195 : f32 to vector<1x1xf32>
    %1197 = arith.divf %1191, %1196 : vector<1x1xf32>
    %c0_504 = arith.constant 0 : index
    %c0_505 = arith.constant 0 : index
    %1198 = vector.load %arg47[%c0_504, %c0_505] : memref<1x1xf32, #tpu.memory_space<vmem>>, vector<1x1xf32>
    tpu.vector_store %arg47[%c0_504, %c0_505], %1197 {strides = array<i32>} : memref<1x1xf32, #tpu.memory_space<vmem>>, vector<1x1xf32>,
    return
  }
  func.func @transform_0(%arg0: i32) -> (i32, i32) {
    %c0_i32 = arith.constant 0 : i32
    %c0_i32_0 = arith.constant 0 : i32
    %c0_i32_1 = arith.constant 0 : i32
    return %c0_i32, %c0_i32_0 : i32, i32
  }
  func.func @transform_1(%arg0: i32) -> (i32, i32) {
    %c0_i32 = arith.constant 0 : i32
    %c0_i32_0 = arith.constant 0 : i32
    %c0_i32_1 = arith.constant 0 : i32
    return %c0_i32, %c0_i32_0 : i32, i32
  }
  func.func @transform_2(%arg0: i32) -> (i32, i32) {
    %c0_i32 = arith.constant 0 : i32
    %c0_i32_0 = arith.constant 0 : i32
    %c0_i32_1 = arith.constant 0 : i32
    return %c0_i32, %c0_i32_0 : i32, i32
  }
  func.func @transform_3(%arg0: i32) -> (i32, i32) {
    %c0_i32 = arith.constant 0 : i32
    %c0_i32_0 = arith.constant 0 : i32
    %c0_i32_1 = arith.constant 0 : i32
    return %c0_i32, %c0_i32_0 : i32, i32
  }
  func.func @transform_4(%arg0: i32) -> (i32, i32) {
    %c0_i32 = arith.constant 0 : i32
    %c0_i32_0 = arith.constant 0 : i32
    %c0_i32_1 = arith.constant 0 : i32
    return %c0_i32, %c0_i32_0 : i32, i32
  }
  func.func @transform_5(%arg0: i32) -> (i32, i32) {
    %c0_i32 = arith.constant 0 : i32
    %c0_i32_0 = arith.constant 0 : i32
    %c0_i32_1 = arith.constant 0 : i32
    return %c0_i32, %c0_i32_0 : i32, i32
  }
  func.func @transform_6(%arg0: i32) -> (i32, i32) {
    %c0_i32 = arith.constant 0 : i32
    %c0_i32_0 = arith.constant 0 : i32
    %c0_i32_1 = arith.constant 0 : i32
    return %c0_i32, %c0_i32_0 : i32, i32
  }
  func.func @transform_7(%arg0: i32) -> (i32, i32) {
    %c0_i32 = arith.constant 0 : i32
    %c0_i32_0 = arith.constant 0 : i32
    %c0_i32_1 = arith.constant 0 : i32
    return %c0_i32, %c0_i32_0 : i32, i32
  }
  func.func @transform_8(%arg0: i32) -> (i32, i32) {
    %c0_i32 = arith.constant 0 : i32
    %c0_i32_0 = arith.constant 0 : i32
    %c0_i32_1 = arith.constant 0 : i32
    return %c0_i32, %c0_i32_0 : i32, i32
  }
  func.func @transform_9(%arg0: i32) -> (i32, i32) {
    %c0_i32 = arith.constant 0 : i32
    %c0_i32_0 = arith.constant 0 : i32
    %c0_i32_1 = arith.constant 0 : i32
    return %c0_i32, %c0_i32_0 : i32, i32
  }
  func.func @transform_10(%arg0: i32) -> (i32, i32, i32) {
    %c0_i32 = arith.constant 0 : i32
    %c0_i32_0 = arith.constant 0 : i32
    %c0_i32_1 = arith.constant 0 : i32
    %c0_i32_2 = arith.constant 0 : i32
    return %c0_i32, %c0_i32_0, %c0_i32_1 : i32, i32, i32
  }
  func.func @transform_11(%arg0: i32) -> (i32, i32, i32) {
    %c0_i32 = arith.constant 0 : i32
    %c0_i32_0 = arith.constant 0 : i32
    %c0_i32_1 = arith.constant 0 : i32
    %c0_i32_2 = arith.constant 0 : i32
    return %c0_i32, %c0_i32_0, %c0_i32_1 : i32, i32, i32
  }
  func.func @transform_12(%arg0: i32) -> (i32, i32, i32) {
    %c0_i32 = arith.constant 0 : i32
    %c0_i32_0 = arith.constant 0 : i32
    %c0_i32_1 = arith.constant 0 : i32
    %c0_i32_2 = arith.constant 0 : i32
    return %c0_i32, %c0_i32_0, %c0_i32_1 : i32, i32, i32
  }
  func.func @transform_13(%arg0: i32) -> (i32, i32, i32) {
    %c0_i32 = arith.constant 0 : i32
    %c0_i32_0 = arith.constant 0 : i32
    %c0_i32_1 = arith.constant 0 : i32
    %c0_i32_2 = arith.constant 0 : i32
    return %c0_i32, %c0_i32_0, %c0_i32_1 : i32, i32, i32
  }
  func.func @transform_14(%arg0: i32) -> (i32, i32, i32) {
    %c0_i32 = arith.constant 0 : i32
    %c0_i32_0 = arith.constant 0 : i32
    %c0_i32_1 = arith.constant 0 : i32
    %c0_i32_2 = arith.constant 0 : i32
    return %c0_i32, %c0_i32_0, %c0_i32_1 : i32, i32, i32
  }
  func.func @transform_15(%arg0: i32) -> (i32, i32, i32) {
    %c0_i32 = arith.constant 0 : i32
    %c0_i32_0 = arith.constant 0 : i32
    %c0_i32_1 = arith.constant 0 : i32
    %c0_i32_2 = arith.constant 0 : i32
    return %c0_i32, %c0_i32_0, %c0_i32_1 : i32, i32, i32
  }
  func.func @transform_16(%arg0: i32) -> (i32, i32, i32) {
    %c0_i32 = arith.constant 0 : i32
    %c0_i32_0 = arith.constant 0 : i32
    %c0_i32_1 = arith.constant 0 : i32
    %c0_i32_2 = arith.constant 0 : i32
    return %c0_i32, %c0_i32_0, %c0_i32_1 : i32, i32, i32
  }
  func.func @transform_17(%arg0: i32) -> (i32, i32, i32) {
    %c0_i32 = arith.constant 0 : i32
    %c0_i32_0 = arith.constant 0 : i32
    %c0_i32_1 = arith.constant 0 : i32
    %c0_i32_2 = arith.constant 0 : i32
    return %c0_i32, %c0_i32_0, %c0_i32_1 : i32, i32, i32
  }
  func.func @transform_18(%arg0: i32) -> (i32, i32, i32) {
    %c0_i32 = arith.constant 0 : i32
    %c0_i32_0 = arith.constant 0 : i32
    %c0_i32_1 = arith.constant 0 : i32
    %c0_i32_2 = arith.constant 0 : i32
    return %c0_i32, %c0_i32_0, %c0_i32_1 : i32, i32, i32
  }
  func.func @transform_19(%arg0: i32) -> (i32, i32, i32) {
    %c0_i32 = arith.constant 0 : i32
    %c0_i32_0 = arith.constant 0 : i32
    %c0_i32_1 = arith.constant 0 : i32
    %c0_i32_2 = arith.constant 0 : i32
    return %c0_i32, %c0_i32_0, %c0_i32_1 : i32, i32, i32
  }
  func.func @transform_20(%arg0: i32) -> (i32, i32, i32) {
    %c0_i32 = arith.constant 0 : i32
    %c0_i32_0 = arith.constant 0 : i32
    %c0_i32_1 = arith.constant 0 : i32
    %c0_i32_2 = arith.constant 0 : i32
    return %c0_i32, %c0_i32_0, %c0_i32_1 : i32, i32, i32
  }
  func.func @transform_21(%arg0: i32) -> (i32, i32, i32) {
    %c0_i32 = arith.constant 0 : i32
    %c0_i32_0 = arith.constant 0 : i32
    %c0_i32_1 = arith.constant 0 : i32
    %c0_i32_2 = arith.constant 0 : i32
    return %c0_i32, %c0_i32_0, %c0_i32_1 : i32, i32, i32
  }
  func.func @transform_22(%arg0: i32) -> (i32, i32) {
    %c0_i32 = arith.constant 0 : i32
    %c0_i32_0 = arith.constant 0 : i32
    %c0_i32_1 = arith.constant 0 : i32
    return %c0_i32, %c0_i32_0 : i32, i32
  }
  func.func @transform_23(%arg0: i32) -> (i32, i32) {
    %c0_i32 = arith.constant 0 : i32
    %c0_i32_0 = arith.constant 0 : i32
    %c0_i32_1 = arith.constant 0 : i32
    return %c0_i32, %c0_i32_0 : i32, i32
  }
  func.func @transform_24(%arg0: i32) -> (i32, i32, i32) {
    %c0_i32 = arith.constant 0 : i32
    %c0_i32_0 = arith.constant 0 : i32
    %c0_i32_1 = arith.constant 0 : i32
    %c0_i32_2 = arith.constant 0 : i32
    return %c0_i32, %c0_i32_0, %c0_i32_1 : i32, i32, i32
  }
  func.func @transform_25(%arg0: i32) -> (i32, i32, i32) {
    %c0_i32 = arith.constant 0 : i32
    %c0_i32_0 = arith.constant 0 : i32
    %c0_i32_1 = arith.constant 0 : i32
    %c0_i32_2 = arith.constant 0 : i32
    return %c0_i32, %c0_i32_0, %c0_i32_1 : i32, i32, i32
  }
  func.func @transform_26(%arg0: i32) -> (i32, i32, i32) {
    %c0_i32 = arith.constant 0 : i32
    %c0_i32_0 = arith.constant 0 : i32
    %c0_i32_1 = arith.constant 0 : i32
    %c0_i32_2 = arith.constant 0 : i32
    return %c0_i32, %c0_i32_0, %c0_i32_1 : i32, i32, i32
  }
  func.func @transform_27(%arg0: i32) -> (i32, i32, i32) {
    %c0_i32 = arith.constant 0 : i32
    %c0_i32_0 = arith.constant 0 : i32
    %c0_i32_1 = arith.constant 0 : i32
    %c0_i32_2 = arith.constant 0 : i32
    return %c0_i32, %c0_i32_0, %c0_i32_1 : i32, i32, i32
  }
  func.func @transform_28(%arg0: i32) -> (i32, i32, i32) {
    %c0_i32 = arith.constant 0 : i32
    %c0_i32_0 = arith.constant 0 : i32
    %c0_i32_1 = arith.constant 0 : i32
    %c0_i32_2 = arith.constant 0 : i32
    return %c0_i32, %c0_i32_0, %c0_i32_1 : i32, i32, i32
  }
  func.func @transform_29(%arg0: i32) -> (i32, i32, i32) {
    %c0_i32 = arith.constant 0 : i32
    %c0_i32_0 = arith.constant 0 : i32
    %c0_i32_1 = arith.constant 0 : i32
    %c0_i32_2 = arith.constant 0 : i32
    return %c0_i32, %c0_i32_0, %c0_i32_1 : i32, i32, i32
  }
  func.func @transform_30(%arg0: i32) -> (i32, i32, i32) {
    %c0_i32 = arith.constant 0 : i32
    %c0_i32_0 = arith.constant 0 : i32
    %c0_i32_1 = arith.constant 0 : i32
    %c0_i32_2 = arith.constant 0 : i32
    return %c0_i32, %c0_i32_0, %c0_i32_1 : i32, i32, i32
  }
  func.func @transform_31(%arg0: i32) -> (i32, i32, i32) {
    %c0_i32 = arith.constant 0 : i32
    %c0_i32_0 = arith.constant 0 : i32
    %c0_i32_1 = arith.constant 0 : i32
    %c0_i32_2 = arith.constant 0 : i32
    return %c0_i32, %c0_i32_0, %c0_i32_1 : i32, i32, i32
  }
  func.func @transform_32(%arg0: i32) -> (i32, i32, i32) {
    %c0_i32 = arith.constant 0 : i32
    %c0_i32_0 = arith.constant 0 : i32
    %c0_i32_1 = arith.constant 0 : i32
    %c0_i32_2 = arith.constant 0 : i32
    return %c0_i32, %c0_i32_0, %c0_i32_1 : i32, i32, i32
  }
  func.func @transform_33(%arg0: i32) -> (i32, i32, i32) {
    %c0_i32 = arith.constant 0 : i32
    %c0_i32_0 = arith.constant 0 : i32
    %c0_i32_1 = arith.constant 0 : i32
    %c0_i32_2 = arith.constant 0 : i32
    return %c0_i32, %c0_i32_0, %c0_i32_1 : i32, i32, i32
  }
  func.func @transform_34(%arg0: i32) -> (i32, i32, i32) {
    %c0_i32 = arith.constant 0 : i32
    %c0_i32_0 = arith.constant 0 : i32
    %c0_i32_1 = arith.constant 0 : i32
    %c0_i32_2 = arith.constant 0 : i32
    return %c0_i32, %c0_i32_0, %c0_i32_1 : i32, i32, i32
  }
  func.func @transform_35(%arg0: i32) -> (i32, i32, i32) {
    %c0_i32 = arith.constant 0 : i32
    %c0_i32_0 = arith.constant 0 : i32
    %c0_i32_1 = arith.constant 0 : i32
    %c0_i32_2 = arith.constant 0 : i32
    return %c0_i32, %c0_i32_0, %c0_i32_1 : i32, i32, i32
  }
  func.func @transform_36(%arg0: i32) -> (i32, i32, i32) {
    %c0_i32 = arith.constant 0 : i32
    %c0_i32_0 = arith.constant 0 : i32
    %c0_i32_1 = arith.constant 0 : i32
    %c0_i32_2 = arith.constant 0 : i32
    return %c0_i32, %c0_i32_0, %c0_i32_1 : i32, i32, i32
  }
  func.func @transform_37(%arg0: i32) -> (i32, i32, i32) {
    %c0_i32 = arith.constant 0 : i32
    %c0_i32_0 = arith.constant 0 : i32
    %c0_i32_1 = arith.constant 0 : i32
    %c0_i32_2 = arith.constant 0 : i32
    return %c0_i32, %c0_i32_0, %c0_i32_1 : i32, i32, i32
  }
  func.func @transform_38(%arg0: i32) -> (i32, i32, i32) {
    %c0_i32 = arith.constant 0 : i32
    %c0_i32_0 = arith.constant 0 : i32
    %c0_i32_1 = arith.constant 0 : i32
    %c0_i32_2 = arith.constant 0 : i32
    return %c0_i32, %c0_i32_0, %c0_i32_1 : i32, i32, i32
  }
  func.func @transform_39(%arg0: i32) -> (i32, i32, i32) {
    %c0_i32 = arith.constant 0 : i32
    %c0_i32_0 = arith.constant 0 : i32
    %c0_i32_1 = arith.constant 0 : i32
    %c0_i32_2 = arith.constant 0 : i32
    return %c0_i32, %c0_i32_0, %c0_i32_1 : i32, i32, i32
  }
  func.func @transform_40(%arg0: i32) -> (i32, i32, i32) {
    %c0_i32 = arith.constant 0 : i32
    %c0_i32_0 = arith.constant 0 : i32
    %c0_i32_1 = arith.constant 0 : i32
    %c0_i32_2 = arith.constant 0 : i32
    return %c0_i32, %c0_i32_0, %c0_i32_1 : i32, i32, i32
  }
  func.func @transform_41(%arg0: i32) -> (i32, i32, i32) {
    %c0_i32 = arith.constant 0 : i32
    %c0_i32_0 = arith.constant 0 : i32
    %c0_i32_1 = arith.constant 0 : i32
    %c0_i32_2 = arith.constant 0 : i32
    return %c0_i32, %c0_i32_0, %c0_i32_1 : i32, i32, i32
  }
  func.func @transform_42(%arg0: i32) -> (i32, i32, i32) {
    %c0_i32 = arith.constant 0 : i32
    %c0_i32_0 = arith.constant 0 : i32
    %c0_i32_1 = arith.constant 0 : i32
    %c0_i32_2 = arith.constant 0 : i32
    return %c0_i32, %c0_i32_0, %c0_i32_1 : i32, i32, i32
  }
  func.func @transform_43(%arg0: i32) -> (i32, i32, i32) {
    %c0_i32 = arith.constant 0 : i32
    %c0_i32_0 = arith.constant 0 : i32
    %c0_i32_1 = arith.constant 0 : i32
    %c0_i32_2 = arith.constant 0 : i32
    return %c0_i32, %c0_i32_0, %c0_i32_1 : i32, i32, i32
  }
  func.func @transform_44(%arg0: i32) -> (i32, i32) {
    %c0_i32 = arith.constant 0 : i32
    %c0_i32_0 = arith.constant 0 : i32
    %c0_i32_1 = arith.constant 0 : i32
    return %c0_i32, %c0_i32_0 : i32, i32
  }
  func.func @transform_45(%arg0: i32) -> (i32, i32) {
    %c0_i32 = arith.constant 0 : i32
    %c0_i32_0 = arith.constant 0 : i32
    %c0_i32_1 = arith.constant 0 : i32
    return %c0_i32, %c0_i32_0 : i32, i32
  }
  func.func @transform_46(%arg0: i32) -> (i32, i32) {
    %c0_i32 = arith.constant 0 : i32
    %c0_i32_0 = arith.constant 0 : i32
    %c0_i32_1 = arith.constant 0 : i32
    return %c0_i32, %c0_i32_0 : i32, i32
  }
}

</mosaic_0001>

<llo_original>
// kernel: bart_embedder_forward.1
$region0: #{bart_embedder_forward.1}
  #allocation0 [shape = 'u32[]', space=smem, size = 0x4, offset = 0x4, fixed_abs, tag = 'smem constant byte address 0x4 - core index']
  #allocation1 [shape = 'u32[72,128]{1,0:T(1,128)}', space=vmem, size = 0x9000, scoped, tag = 'internal scratch']
  %s0 = inlined_call_operand.smem [shape: u32[47], index: -1, kind: input, shape index: {}]
  %s1 = sld [smem:[%s0]]
  %s2 = scalar_lea.smem %s0, 1
  %s3 = sld [smem:[%s2]]
  %s4 = scalar_lea.smem %s0, 2
  %s5 = sld [smem:[%s4]]
  %s6 = scalar_lea.smem %s0, 3
  %s7 = sld [smem:[%s6]]
  %s8 = scalar_lea.smem %s0, 4
  %s9 = sld [smem:[%s8]]
  %s10 = scalar_lea.smem %s0, 5
  %s11 = sld [smem:[%s10]]
  %s12 = scalar_lea.smem %s0, 6
  %s13 = sld [smem:[%s12]]
  %s14 = scalar_lea.smem %s0, 7
  %s15 = sld [smem:[%s14]]
  %s16 = scalar_lea.smem %s0, 8
  %s17 = sld [smem:[%s16]]
  %s18 = scalar_lea.smem %s0, 9
  %s19 = sld [smem:[%s18]]
  %s20 = scalar_lea.smem %s0, 10
  %s21 = sld [smem:[%s20]]
  %s22 = scalar_lea.smem %s0, 11
  %s23 = sld [smem:[%s22]]
  %s24 = scalar_lea.smem %s0, 12
  %s25 = sld [smem:[%s24]]
  %s26 = scalar_lea.smem %s0, 13
  %s27 = sld [smem:[%s26]]
  %s28 = scalar_lea.smem %s0, 14
  %s29 = sld [smem:[%s28]]
  %s30 = scalar_lea.smem %s0, 15
  %s31 = sld [smem:[%s30]]
  %s32 = scalar_lea.smem %s0, 16
  %s33 = sld [smem:[%s32]]
  %s34 = scalar_lea.smem %s0, 17
  %s35 = sld [smem:[%s34]]
  %s36 = scalar_lea.smem %s0, 18
  %s37 = sld [smem:[%s36]]
  %s38 = scalar_lea.smem %s0, 19
  %s39 = sld [smem:[%s38]]
  %s40 = scalar_lea.smem %s0, 20
  %s41 = sld [smem:[%s40]]
  %s42 = scalar_lea.smem %s0, 21
  %s43 = sld [smem:[%s42]]
  %s44 = scalar_lea.smem %s0, 22
  %s45 = sld [smem:[%s44]]
  %s46 = scalar_lea.smem %s0, 23
  %s47 = sld [smem:[%s46]]
  %s48 = scalar_lea.smem %s0, 24
  %s49 = sld [smem:[%s48]]
  %s50 = scalar_lea.smem %s0, 25
  %s51 = sld [smem:[%s50]]
  %s52 = scalar_lea.smem %s0, 26
  %s53 = sld [smem:[%s52]]
  %s54 = scalar_lea.smem %s0, 27
  %s55 = sld [smem:[%s54]]
  %s56 = scalar_lea.smem %s0, 28
  %s57 = sld [smem:[%s56]]
  %s58 = scalar_lea.smem %s0, 29
  %s59 = sld [smem:[%s58]]
  %s60 = scalar_lea.smem %s0, 30
  %s61 = sld [smem:[%s60]]
  %s62 = scalar_lea.smem %s0, 31
  %s63 = sld [smem:[%s62]]
  %s64 = scalar_lea.smem %s0, 32
  %s65 = sld [smem:[%s64]]
  %s66 = scalar_lea.smem %s0, 33
  %s67 = sld [smem:[%s66]]
  %s68 = scalar_lea.smem %s0, 34
  %s69 = sld [smem:[%s68]]
  %s70 = scalar_lea.smem %s0, 35
  %s71 = sld [smem:[%s70]]
  %s72 = scalar_lea.smem %s0, 36
  %s73 = sld [smem:[%s72]]
  %s74 = scalar_lea.smem %s0, 37
  %s75 = sld [smem:[%s74]]
  %s76 = scalar_lea.smem %s0, 38
  %s77 = sld [smem:[%s76]]
  %s78 = scalar_lea.smem %s0, 39
  %s79 = sld [smem:[%s78]]
  %s80 = scalar_lea.smem %s0, 40
  %s81 = sld [smem:[%s80]]
  %s82 = scalar_lea.smem %s0, 41
  %s83 = sld [smem:[%s82]]
  %s84 = scalar_lea.smem %s0, 42
  %s85 = sld [smem:[%s84]]
  %s86 = scalar_lea.smem %s0, 43
  %s87 = sld [smem:[%s86]]
  %s88 = scalar_lea.smem %s0, 44
  %s89 = sld [smem:[%s88]]
  %s90 = scalar_lea.smem %s0, 45
  %s91 = sld [smem:[%s90]]
  %s92 = scalar_lea.smem %s0, 46
  %s93 = sld [smem:[%s92]]
  %94 = xla_tuple %s91, %s93
  %s95 = sld [smem:[#allocation0]]
  $region250: #{bart_embedder_forward.1} parent=0
    _
  %s97 = ssub.s32 1, %s95
  %s98 = scalar_select 0, %s97, %s95
  $region1: #{bart_embedder_forward.1} parent=0
    #allocation2 [shape = 'u8[512]{0}', space=vmem, size = 0x400, scoped, tag = 'input window, operand 22, single buffered']
    #allocation3 [shape = 's32[1]{0}', space=sflag, size = 0x4, scoped, tag = 'scoped memory for bart_embedder_forward.1']
    #allocation4 [shape = 's32[1]{0}', space=sflag, size = 0x4, scoped, tag = 'scoped memory for bart_embedder_forward.1']
    #allocation5 [shape = 'u8[512]{0}', space=vmem, size = 0x400, scoped, tag = 'input window, operand 23, single buffered']
    #allocation6 [shape = 's32[1]{0}', space=sflag, size = 0x4, scoped, tag = 'scoped memory for bart_embedder_forward.1']
    #allocation7 [shape = 'u8[1024]{0}', space=vmem, size = 0x400, scoped, tag = 'input window, operand 28, single buffered']
    #allocation8 [shape = 'u8[1024]{0}', space=vmem, size = 0x400, scoped, tag = 'input window, operand 29, single buffered']
    #allocation9 [shape = 's32[1]{0}', space=sflag, size = 0x4, scoped, tag = 'scoped memory for bart_embedder_forward.1']
    #allocation10 [shape = 'u8[1024]{0}', space=vmem, size = 0x400, scoped, tag = 'input window, operand 31, single buffered']
    #allocation11 [shape = 'u8[1024]{0}', space=vmem, size = 0x400, scoped, tag = 'input window, operand 33, single buffered']
    #allocation12 [shape = 's32[1]{0}', space=sflag, size = 0x4, scoped, tag = 'scoped memory for bart_embedder_forward.1']
    #allocation13 [shape = 'u8[1024]{0}', space=vmem, size = 0x400, scoped, tag = 'input window, operand 35, single buffered']
    #allocation14 [shape = 'u8[1024]{0}', space=vmem, size = 0x400, scoped, tag = 'input window, operand 36, single buffered']
    #allocation15 [shape = 's32[1]{0}', space=sflag, size = 0x4, scoped, tag = 'scoped memory for bart_embedder_forward.1']
    #allocation16 [shape = 'u8[1024]{0}', space=vmem, size = 0x400, scoped, tag = 'input window, operand 37, single buffered']
    #allocation17 [shape = 'u8[1024]{0}', space=vmem, size = 0x400, scoped, tag = 'input window, operand 39, single buffered']
    #allocation18 [shape = 's32[1]{0}', space=sflag, size = 0x4, scoped, tag = 'scoped memory for bart_embedder_forward.1']
    #allocation19 [shape = 'u8[1024]{0}', space=vmem, size = 0x400, scoped, tag = 'input window, operand 41, single buffered']
    #allocation20 [shape = 'u8[1024]{0}', space=vmem, size = 0x400, scoped, tag = 'input window, operand 42, single buffered']
    #allocation21 [shape = 's32[1]{0}', space=sflag, size = 0x4, scoped, tag = 'scoped memory for bart_embedder_forward.1']
    #allocation22 [shape = 'u8[1024]{0}', space=vmem, size = 0x400, scoped, tag = 'input window, operand 43, single buffered']
    #allocation23 [shape = 'u8[8192]{0}', space=vmem, size = 0x2000, scoped, tag = 'output window, operand 0, single buffered']
    #allocation24 [shape = 'u8[512]{0}', space=vmem, size = 0x400, scoped, tag = 'output window, operand 1, single buffered']
    #allocation25 [shape = 's32[1]{0}', space=sflag, size = 0x4, scoped, tag = 'scoped memory for bart_embedder_forward.1']
    %99 = vsyncpa [#allocation3], 0
    %100 = vsyncpa [#allocation6], 0
    %101 = vsyncpa [#allocation9], 0
    %102 = vsyncpa [#allocation12], 0
    %103 = vsyncpa [#allocation15], 0
    %104 = vsyncpa [#allocation18], 0
    %105 = vsyncpa [#allocation21], 0
    %106 = vsyncpa [#allocation4], 0
    %107 = vsyncpa [#allocation25], 0
    // Predicated region
    $region2: #{bart_embedder_forward.1} parent=1 // pred_check
      _
    $region3: #{bart_embedder_forward.1} parent=1 // pred_check_branch
      %109 = sbr.rel (0) target = $region5
    $region4: #{bart_embedder_forward.1} parent=1 // pred_region
      _
    $region5: #{bart_embedder_forward.1} parent=1 // pred_fallthru
      _
    // Predicated region
    $region6: #{bart_embedder_forward.1} parent=1 // pred_check
      _
    $region7: #{bart_embedder_forward.1} parent=1 // pred_check_branch
      %111 = sbr.rel (0) target = $region9
    $region8: #{bart_embedder_forward.1} parent=1 // pred_region
      _
    $region9: #{bart_embedder_forward.1} parent=1 // pred_fallthru
      _
    // Predicated region
    $region10: #{bart_embedder_forward.1} parent=1 // pred_check
      _
    $region11: #{bart_embedder_forward.1} parent=1 // pred_check_branch
      %113 = sbr.rel (0) target = $region13
    $region12: #{bart_embedder_forward.1} parent=1 // pred_region
      _
    $region13: #{bart_embedder_forward.1} parent=1 // pred_fallthru
      _
    // Predicated region
    $region14: #{bart_embedder_forward.1} parent=1 // pred_check
      _
    $region15: #{bart_embedder_forward.1} parent=1 // pred_check_branch
      %115 = sbr.rel (0) target = $region17
    $region16: #{bart_embedder_forward.1} parent=1 // pred_region
      _
    $region17: #{bart_embedder_forward.1} parent=1 // pred_fallthru
      _
    // Predicated region
    $region18: #{bart_embedder_forward.1} parent=1 // pred_check
      _
    $region19: #{bart_embedder_forward.1} parent=1 // pred_check_branch
      %117 = sbr.rel (0) target = $region21
    $region20: #{bart_embedder_forward.1} parent=1 // pred_region
      _
    $region21: #{bart_embedder_forward.1} parent=1 // pred_fallthru
      _
    // Predicated region
    $region22: #{bart_embedder_forward.1} parent=1 // pred_check
      _
    $region23: #{bart_embedder_forward.1} parent=1 // pred_check_branch
      %119 = sbr.rel (0) target = $region25
    $region24: #{bart_embedder_forward.1} parent=1 // pred_region
      _
    $region25: #{bart_embedder_forward.1} parent=1 // pred_fallthru
      _
    // Predicated region
    $region26: #{bart_embedder_forward.1} parent=1 // pred_check
      _
    $region27: #{bart_embedder_forward.1} parent=1 // pred_check_branch
      %121 = sbr.rel (0) target = $region29
    $region28: #{bart_embedder_forward.1} parent=1 // pred_region
      _
    $region29: #{bart_embedder_forward.1} parent=1 // pred_fallthru
      _
    // Predicated region
    $region30: #{bart_embedder_forward.1} parent=1 // pred_check
      _
    $region31: #{bart_embedder_forward.1} parent=1 // pred_check_branch
      %123 = sbr.rel (0) target = $region33
    $region32: #{bart_embedder_forward.1} parent=1 // pred_region
      _
    $region33: #{bart_embedder_forward.1} parent=1 // pred_fallthru
      _
    // Predicated region
    $region34: #{bart_embedder_forward.1} parent=1 // pred_check
      _
    $region35: #{bart_embedder_forward.1} parent=1 // pred_check_branch
      %125 = sbr.rel (0) target = $region37
    $region36: #{bart_embedder_forward.1} parent=1 // pred_region
      _
    $region37: #{bart_embedder_forward.1} parent=1 // pred_fallthru
      _
    // Predicated region
    $region38: #{bart_embedder_forward.1} parent=1 // pred_check
      _
    $region39: #{bart_embedder_forward.1} parent=1 // pred_check_branch
      %127 = sbr.rel (0) target = $region41
    $region40: #{bart_embedder_forward.1} parent=1 // pred_region
      _
    $region41: #{bart_embedder_forward.1} parent=1 // pred_fallthru
      _
    // Predicated region
    $region42: #{bart_embedder_forward.1} parent=1 // pred_check
      _
    $region43: #{bart_embedder_forward.1} parent=1 // pred_check_branch
      %129 = sbr.rel (0) target = $region45
    $region44: #{bart_embedder_forward.1} parent=1 // pred_region
      _
    $region45: #{bart_embedder_forward.1} parent=1 // pred_fallthru
      _
    // Predicated region
    $region46: #{bart_embedder_forward.1} parent=1 // pred_check
      _
    $region47: #{bart_embedder_forward.1} parent=1 // pred_check_branch
      %131 = sbr.rel (0) target = $region49
    $region48: #{bart_embedder_forward.1} parent=1 // pred_region
      _
    $region49: #{bart_embedder_forward.1} parent=1 // pred_fallthru
      _
    // Predicated region
    $region50: #{bart_embedder_forward.1} parent=1 // pred_check
      _
    $region51: #{bart_embedder_forward.1} parent=1 // pred_check_branch
      %133 = sbr.rel (0) target = $region53
    $region52: #{bart_embedder_forward.1} parent=1 // pred_region
      _
    $region53: #{bart_embedder_forward.1} parent=1 // pred_fallthru
      _
    // Predicated region
    $region54: #{bart_embedder_forward.1} parent=1 // pred_check
      _
    $region55: #{bart_embedder_forward.1} parent=1 // pred_check_branch
      %135 = sbr.rel (0) target = $region57
    $region56: #{bart_embedder_forward.1} parent=1 // pred_region
      _
    $region57: #{bart_embedder_forward.1} parent=1 // pred_fallthru
      _
    // Predicated region
    $region58: #{bart_embedder_forward.1} parent=1 // pred_check
      _
    $region59: #{bart_embedder_forward.1} parent=1 // pred_check_branch
      %137 = sbr.rel (0) target = $region61
    $region60: #{bart_embedder_forward.1} parent=1 // pred_region
      _
    $region61: #{bart_embedder_forward.1} parent=1 // pred_fallthru
      _
    // Predicated region
    $region62: #{bart_embedder_forward.1} parent=1 // pred_check
      _
    $region63: #{bart_embedder_forward.1} parent=1 // pred_check_branch
      %139 = sbr.rel (0) target = $region65
    $region64: #{bart_embedder_forward.1} parent=1 // pred_region
      _
    $region65: #{bart_embedder_forward.1} parent=1 // pred_fallthru
      _
    // Predicated region
    $region66: #{bart_embedder_forward.1} parent=1 // pred_check
      _
    $region67: #{bart_embedder_forward.1} parent=1 // pred_check_branch
      %141 = sbr.rel (0) target = $region69
    $region68: #{bart_embedder_forward.1} parent=1 // pred_region
      _
    $region69: #{bart_embedder_forward.1} parent=1 // pred_fallthru
      _
    // Predicated region
    $region70: #{bart_embedder_forward.1} parent=1 // pred_check
      _
    $region71: #{bart_embedder_forward.1} parent=1 // pred_check_branch
      %143 = sbr.rel (0) target = $region73
    $region72: #{bart_embedder_forward.1} parent=1 // pred_region
      _
    $region73: #{bart_embedder_forward.1} parent=1 // pred_fallthru
      _
    // Predicated region
    $region74: #{bart_embedder_forward.1} parent=1 // pred_check
      _
    $region75: #{bart_embedder_forward.1} parent=1 // pred_check_branch
      %145 = sbr.rel (0) target = $region77
    $region76: #{bart_embedder_forward.1} parent=1 // pred_region
      _
    $region77: #{bart_embedder_forward.1} parent=1 // pred_fallthru
      _
    // Predicated region
    $region78: #{bart_embedder_forward.1} parent=1 // pred_check
      _
    $region79: #{bart_embedder_forward.1} parent=1 // pred_check_branch
      %147 = sbr.rel (0) target = $region81
    $region80: #{bart_embedder_forward.1} parent=1 // pred_region
      _
    $region81: #{bart_embedder_forward.1} parent=1 // pred_fallthru
      _
    // Predicated region
    $region82: #{bart_embedder_forward.1} parent=1 // pred_check
      _
    $region83: #{bart_embedder_forward.1} parent=1 // pred_check_branch
      %149 = sbr.rel (0) target = $region85
    $region84: #{bart_embedder_forward.1} parent=1 // pred_region
      _
    $region85: #{bart_embedder_forward.1} parent=1 // pred_fallthru
      _
    // Predicated region
    $region86: #{bart_embedder_forward.1} parent=1 // pred_check
      _
    $region87: #{bart_embedder_forward.1} parent=1 // pred_check_branch
      %151 = sbr.rel (0) target = $region89
    $region88: #{bart_embedder_forward.1} parent=1 // pred_region
      _
    $region89: #{bart_embedder_forward.1} parent=1 // pred_fallthru
      _
    // Predicated region
    $region90: #{bart_embedder_forward.1} parent=1 // pred_check
      _
    $region91: #{bart_embedder_forward.1} parent=1 // pred_check_branch
      %153 = sbr.rel (0) target = $region93
    $region92: #{bart_embedder_forward.1} parent=1 // pred_region
      %155 = vsyncadd [#allocation3], 0
      %s157 = sshll.u32 %s45, 4
      %s158 = int_to_ptr.hbm [resolvable:$true] %s157
      %s159 = sshll.u32 [#allocation2], 4
      %s160 = int_to_ptr.vmem [resolvable:$true] %s159
      %162 = dma.hbm_to_vmem [thread:$0]  %s158, 16, %s160, [#allocation3]
    $region93: #{bart_embedder_forward.1} parent=1 // pred_fallthru
      _
    // Predicated region
    $region94: #{bart_embedder_forward.1} parent=1 // pred_check
      _
    $region95: #{bart_embedder_forward.1} parent=1 // pred_check_branch
      %164 = sbr.rel (0) target = $region97
    $region96: #{bart_embedder_forward.1} parent=1 // pred_region
      %166 = vsyncadd [#allocation6], 0
      %s168 = sshll.u32 %s47, 4
      %s169 = int_to_ptr.hbm [resolvable:$true] %s168
      %s170 = sshll.u32 [#allocation5], 4
      %s171 = int_to_ptr.vmem [resolvable:$true] %s170
      %173 = dma.hbm_to_vmem [thread:$0]  %s169, 16, %s171, [#allocation6]
    $region97: #{bart_embedder_forward.1} parent=1 // pred_fallthru
      _
    // Predicated region
    $region98: #{bart_embedder_forward.1} parent=1 // pred_check
      _
    $region99: #{bart_embedder_forward.1} parent=1 // pred_check_branch
      %175 = sbr.rel (0) target = $region101
    $region100: #{bart_embedder_forward.1} parent=1 // pred_region
      _
    $region101: #{bart_embedder_forward.1} parent=1 // pred_fallthru
      _
    // Predicated region
    $region102: #{bart_embedder_forward.1} parent=1 // pred_check
      _
    $region103: #{bart_embedder_forward.1} parent=1 // pred_check_branch
      %177 = sbr.rel (0) target = $region105
    $region104: #{bart_embedder_forward.1} parent=1 // pred_region
      _
    $region105: #{bart_embedder_forward.1} parent=1 // pred_fallthru
      _
    // Predicated region
    $region106: #{bart_embedder_forward.1} parent=1 // pred_check
      _
    $region107: #{bart_embedder_forward.1} parent=1 // pred_check_branch
      %179 = sbr.rel (0) target = $region109
    $region108: #{bart_embedder_forward.1} parent=1 // pred_region
      _
    $region109: #{bart_embedder_forward.1} parent=1 // pred_fallthru
      _
    // Predicated region
    $region110: #{bart_embedder_forward.1} parent=1 // pred_check
      _
    $region111: #{bart_embedder_forward.1} parent=1 // pred_check_branch
      %181 = sbr.rel (0) target = $region113
    $region112: #{bart_embedder_forward.1} parent=1 // pred_region
      _
    $region113: #{bart_embedder_forward.1} parent=1 // pred_fallthru
      _
    // Predicated region
    $region114: #{bart_embedder_forward.1} parent=1 // pred_check
      _
    $region115: #{bart_embedder_forward.1} parent=1 // pred_check_branch
      %183 = sbr.rel (0) target = $region117
    $region116: #{bart_embedder_forward.1} parent=1 // pred_region
      %185 = vsyncadd [#allocation6], 0
      %s186 = sshll.u32 %s57, 4
      %s187 = int_to_ptr.hbm [resolvable:$true] %s186
      %s188 = sshll.u32 [#allocation7], 4
      %s189 = int_to_ptr.vmem [resolvable:$true] %s188
      %194 = dma.hbm_to_vmem [thread:$0]  %s187, 32, %s189, [#allocation6], 16, 16, 1
    $region117: #{bart_embedder_forward.1} parent=1 // pred_fallthru
      _
    // Predicated region
    $region118: #{bart_embedder_forward.1} parent=1 // pred_check
      _
    $region119: #{bart_embedder_forward.1} parent=1 // pred_check_branch
      %196 = sbr.rel (0) target = $region121
    $region120: #{bart_embedder_forward.1} parent=1 // pred_region
      %198 = vsyncadd [#allocation9], 0
      %s199 = sshll.u32 %s59, 4
      %s200 = int_to_ptr.hbm [resolvable:$true] %s199
      %s201 = sshll.u32 [#allocation8], 4
      %s202 = int_to_ptr.vmem [resolvable:$true] %s201
      %207 = dma.hbm_to_vmem [thread:$0]  %s200, 32, %s202, [#allocation9], 16, 16, 1
    $region121: #{bart_embedder_forward.1} parent=1 // pred_fallthru
      _
    // Predicated region
    $region122: #{bart_embedder_forward.1} parent=1 // pred_check
      _
    $region123: #{bart_embedder_forward.1} parent=1 // pred_check_branch
      %209 = sbr.rel (0) target = $region125
    $region124: #{bart_embedder_forward.1} parent=1 // pred_region
      _
    $region125: #{bart_embedder_forward.1} parent=1 // pred_fallthru
      _
    // Predicated region
    $region126: #{bart_embedder_forward.1} parent=1 // pred_check
      _
    $region127: #{bart_embedder_forward.1} parent=1 // pred_check_branch
      %211 = sbr.rel (0) target = $region129
    $region128: #{bart_embedder_forward.1} parent=1 // pred_region
      %213 = vsyncadd [#allocation9], 0
      %s214 = sshll.u32 %s63, 4
      %s215 = int_to_ptr.hbm [resolvable:$true] %s214
      %s216 = sshll.u32 [#allocation10], 4
      %s217 = int_to_ptr.vmem [resolvable:$true] %s216
      %222 = dma.hbm_to_vmem [thread:$0]  %s215, 32, %s217, [#allocation9], 16, 16, 1
    $region129: #{bart_embedder_forward.1} parent=1 // pred_fallthru
      _
    // Predicated region
    $region130: #{bart_embedder_forward.1} parent=1 // pred_check
      _
    $region131: #{bart_embedder_forward.1} parent=1 // pred_check_branch
      %224 = sbr.rel (0) target = $region133
    $region132: #{bart_embedder_forward.1} parent=1 // pred_region
      _
    $region133: #{bart_embedder_forward.1} parent=1 // pred_fallthru
      _
    // Predicated region
    $region134: #{bart_embedder_forward.1} parent=1 // pred_check
      _
    $region135: #{bart_embedder_forward.1} parent=1 // pred_check_branch
      %226 = sbr.rel (0) target = $region137
    $region136: #{bart_embedder_forward.1} parent=1 // pred_region
      %228 = vsyncadd [#allocation12], 0
      %s229 = sshll.u32 %s67, 4
      %s230 = int_to_ptr.hbm [resolvable:$true] %s229
      %s231 = sshll.u32 [#allocation11], 4
      %s232 = int_to_ptr.vmem [resolvable:$true] %s231
      %237 = dma.hbm_to_vmem [thread:$0]  %s230, 32, %s232, [#allocation12], 16, 16, 1
    $region137: #{bart_embedder_forward.1} parent=1 // pred_fallthru
      _
    // Predicated region
    $region138: #{bart_embedder_forward.1} parent=1 // pred_check
      _
    $region139: #{bart_embedder_forward.1} parent=1 // pred_check_branch
      %239 = sbr.rel (0) target = $region141
    $region140: #{bart_embedder_forward.1} parent=1 // pred_region
      _
    $region141: #{bart_embedder_forward.1} parent=1 // pred_fallthru
      _
    // Predicated region
    $region142: #{bart_embedder_forward.1} parent=1 // pred_check
      _
    $region143: #{bart_embedder_forward.1} parent=1 // pred_check_branch
      %241 = sbr.rel (0) target = $region145
    $region144: #{bart_embedder_forward.1} parent=1 // pred_region
      %243 = vsyncadd [#allocation12], 0
      %s244 = sshll.u32 %s71, 4
      %s245 = int_to_ptr.hbm [resolvable:$true] %s244
      %s246 = sshll.u32 [#allocation13], 4
      %s247 = int_to_ptr.vmem [resolvable:$true] %s246
      %252 = dma.hbm_to_vmem [thread:$0]  %s245, 32, %s247, [#allocation12], 16, 16, 1
    $region145: #{bart_embedder_forward.1} parent=1 // pred_fallthru
      _
    // Predicated region
    $region146: #{bart_embedder_forward.1} parent=1 // pred_check
      _
    $region147: #{bart_embedder_forward.1} parent=1 // pred_check_branch
      %254 = sbr.rel (0) target = $region149
    $region148: #{bart_embedder_forward.1} parent=1 // pred_region
      %256 = vsyncadd [#allocation15], 0
      %s257 = sshll.u32 %s73, 4
      %s258 = int_to_ptr.hbm [resolvable:$true] %s257
      %s259 = sshll.u32 [#allocation14], 4
      %s260 = int_to_ptr.vmem [resolvable:$true] %s259
      %265 = dma.hbm_to_vmem [thread:$0]  %s258, 32, %s260, [#allocation15], 16, 16, 1
    $region149: #{bart_embedder_forward.1} parent=1 // pred_fallthru
      _
    // Predicated region
    $region150: #{bart_embedder_forward.1} parent=1 // pred_check
      _
    $region151: #{bart_embedder_forward.1} parent=1 // pred_check_branch
      %267 = sbr.rel (0) target = $region153
    $region152: #{bart_embedder_forward.1} parent=1 // pred_region
      %269 = vsyncadd [#allocation15], 0
      %s270 = sshll.u32 %s75, 4
      %s271 = int_to_ptr.hbm [resolvable:$true] %s270
      %s272 = sshll.u32 [#allocation16], 4
      %s273 = int_to_ptr.vmem [resolvable:$true] %s272
      %278 = dma.hbm_to_vmem [thread:$0]  %s271, 32, %s273, [#allocation15], 16, 16, 1
    $region153: #{bart_embedder_forward.1} parent=1 // pred_fallthru
      _
    // Predicated region
    $region154: #{bart_embedder_forward.1} parent=1 // pred_check
      _
    $region155: #{bart_embedder_forward.1} parent=1 // pred_check_branch
      %280 = sbr.rel (0) target = $region157
    $region156: #{bart_embedder_forward.1} parent=1 // pred_region
      _
    $region157: #{bart_embedder_forward.1} parent=1 // pred_fallthru
      _
    // Predicated region
    $region158: #{bart_embedder_forward.1} parent=1 // pred_check
      _
    $region159: #{bart_embedder_forward.1} parent=1 // pred_check_branch
      %282 = sbr.rel (0) target = $region161
    $region160: #{bart_embedder_forward.1} parent=1 // pred_region
      %284 = vsyncadd [#allocation18], 0
      %s285 = sshll.u32 %s79, 4
      %s286 = int_to_ptr.hbm [resolvable:$true] %s285
      %s287 = sshll.u32 [#allocation17], 4
      %s288 = int_to_ptr.vmem [resolvable:$true] %s287
      %293 = dma.hbm_to_vmem [thread:$0]  %s286, 32, %s288, [#allocation18], 16, 16, 1
    $region161: #{bart_embedder_forward.1} parent=1 // pred_fallthru
      _
    // Predicated region
    $region162: #{bart_embedder_forward.1} parent=1 // pred_check
      _
    $region163: #{bart_embedder_forward.1} parent=1 // pred_check_branch
      %295 = sbr.rel (0) target = $region165
    $region164: #{bart_embedder_forward.1} parent=1 // pred_region
      _
    $region165: #{bart_embedder_forward.1} parent=1 // pred_fallthru
      _
    // Predicated region
    $region166: #{bart_embedder_forward.1} parent=1 // pred_check
      _
    $region167: #{bart_embedder_forward.1} parent=1 // pred_check_branch
      %297 = sbr.rel (0) target = $region169
    $region168: #{bart_embedder_forward.1} parent=1 // pred_region
      %299 = vsyncadd [#allocation18], 0
      %s300 = sshll.u32 %s83, 4
      %s301 = int_to_ptr.hbm [resolvable:$true] %s300
      %s302 = sshll.u32 [#allocation19], 4
      %s303 = int_to_ptr.vmem [resolvable:$true] %s302
      %308 = dma.hbm_to_vmem [thread:$0]  %s301, 32, %s303, [#allocation18], 16, 16, 1
    $region169: #{bart_embedder_forward.1} parent=1 // pred_fallthru
      _
    // Predicated region
    $region170: #{bart_embedder_forward.1} parent=1 // pred_check
      _
    $region171: #{bart_embedder_forward.1} parent=1 // pred_check_branch
      %310 = sbr.rel (0) target = $region173
    $region172: #{bart_embedder_forward.1} parent=1 // pred_region
      %312 = vsyncadd [#allocation21], 0
      %s313 = sshll.u32 %s85, 4
      %s314 = int_to_ptr.hbm [resolvable:$true] %s313
      %s315 = sshll.u32 [#allocation20], 4
      %s316 = int_to_ptr.vmem [resolvable:$true] %s315
      %321 = dma.hbm_to_vmem [thread:$0]  %s314, 32, %s316, [#allocation21], 16, 16, 1
    $region173: #{bart_embedder_forward.1} parent=1 // pred_fallthru
      _
    // Predicated region
    $region174: #{bart_embedder_forward.1} parent=1 // pred_check
      _
    $region175: #{bart_embedder_forward.1} parent=1 // pred_check_branch
      %323 = sbr.rel (0) target = $region177
    $region176: #{bart_embedder_forward.1} parent=1 // pred_region
      %325 = vsyncadd [#allocation21], 0
      %s326 = sshll.u32 %s87, 4
      %s327 = int_to_ptr.hbm [resolvable:$true] %s326
      %s328 = sshll.u32 [#allocation22], 4
      %s329 = int_to_ptr.vmem [resolvable:$true] %s328
      %334 = dma.hbm_to_vmem [thread:$0]  %s327, 32, %s329, [#allocation21], 16, 16, 1
    $region177: #{bart_embedder_forward.1} parent=1 // pred_fallthru
      _
    // Predicated region
    $region178: #{bart_embedder_forward.1} parent=1 // pred_check
      _
    $region179: #{bart_embedder_forward.1} parent=1 // pred_check_branch
      %336 = sbr.rel (0) target = $region181
    $region180: #{bart_embedder_forward.1} parent=1 // pred_region
      _
    $region181: #{bart_embedder_forward.1} parent=1 // pred_fallthru
      _
    // Predicated region
    $region182: #{bart_embedder_forward.1} parent=1 // pred_check
      _
    $region183: #{bart_embedder_forward.1} parent=1 // pred_check_branch
      %338 = sbr.rel (0) target = $region185
    $region184: #{bart_embedder_forward.1} parent=1 // pred_region
      %340 = dma.done [#allocation3], 16
    $region185: #{bart_embedder_forward.1} parent=1 // pred_fallthru
      _
    // Predicated region
    $region186: #{bart_embedder_forward.1} parent=1 // pred_check
      _
    $region187: #{bart_embedder_forward.1} parent=1 // pred_check_branch
      %342 = sbr.rel (0) target = $region189
    $region188: #{bart_embedder_forward.1} parent=1 // pred_region
      %344 = dma.done [#allocation6], 16
    $region189: #{bart_embedder_forward.1} parent=1 // pred_fallthru
      _
    // Predicated region
    $region190: #{bart_embedder_forward.1} parent=1 // pred_check
      _
    $region191: #{bart_embedder_forward.1} parent=1 // pred_check_branch
      %346 = sbr.rel (0) target = $region193
    $region192: #{bart_embedder_forward.1} parent=1 // pred_region
      %348 = dma.done [#allocation6], 32
    $region193: #{bart_embedder_forward.1} parent=1 // pred_fallthru
      _
    // Predicated region
    $region194: #{bart_embedder_forward.1} parent=1 // pred_check
      _
    $region195: #{bart_embedder_forward.1} parent=1 // pred_check_branch
      %350 = sbr.rel (0) target = $region197
    $region196: #{bart_embedder_forward.1} parent=1 // pred_region
      %352 = dma.done [#allocation9], 32
    $region197: #{bart_embedder_forward.1} parent=1 // pred_fallthru
      _
    // Predicated region
    $region198: #{bart_embedder_forward.1} parent=1 // pred_check
      _
    $region199: #{bart_embedder_forward.1} parent=1 // pred_check_branch
      %354 = sbr.rel (0) target = $region201
    $region200: #{bart_embedder_forward.1} parent=1 // pred_region
      %356 = dma.done [#allocation9], 32
    $region201: #{bart_embedder_forward.1} parent=1 // pred_fallthru
      _
    // Predicated region
    $region202: #{bart_embedder_forward.1} parent=1 // pred_check
      _
    $region203: #{bart_embedder_forward.1} parent=1 // pred_check_branch
      %358 = sbr.rel (0) target = $region205
    $region204: #{bart_embedder_forward.1} parent=1 // pred_region
      %360 = dma.done [#allocation12], 32
    $region205: #{bart_embedder_forward.1} parent=1 // pred_fallthru
      _
    // Predicated region
    $region206: #{bart_embedder_forward.1} parent=1 // pred_check
      _
    $region207: #{bart_embedder_forward.1} parent=1 // pred_check_branch
      %362 = sbr.rel (0) target = $region209
    $region208: #{bart_embedder_forward.1} parent=1 // pred_region
      %364 = dma.done [#allocation12], 32
    $region209: #{bart_embedder_forward.1} parent=1 // pred_fallthru
      _
    // Predicated region
    $region210: #{bart_embedder_forward.1} parent=1 // pred_check
      _
    $region211: #{bart_embedder_forward.1} parent=1 // pred_check_branch
      %366 = sbr.rel (0) target = $region213
    $region212: #{bart_embedder_forward.1} parent=1 // pred_region
      %368 = dma.done [#allocation15], 32
    $region213: #{bart_embedder_forward.1} parent=1 // pred_fallthru
      _
    // Predicated region
    $region214: #{bart_embedder_forward.1} parent=1 // pred_check
      _
    $region215: #{bart_embedder_forward.1} parent=1 // pred_check_branch
      %370 = sbr.rel (0) target = $region217
    $region216: #{bart_embedder_forward.1} parent=1 // pred_region
      %372 = dma.done [#allocation15], 32
    $region217: #{bart_embedder_forward.1} parent=1 // pred_fallthru
      _
    // Predicated region
    $region218: #{bart_embedder_forward.1} parent=1 // pred_check
      _
    $region219: #{bart_embedder_forward.1} parent=1 // pred_check_branch
      %374 = sbr.rel (0) target = $region221
    $region220: #{bart_embedder_forward.1} parent=1 // pred_region
      %376 = dma.done [#allocation18], 32
    $region221: #{bart_embedder_forward.1} parent=1 // pred_fallthru
      _
    // Predicated region
    $region222: #{bart_embedder_forward.1} parent=1 // pred_check
      _
    $region223: #{bart_embedder_forward.1} parent=1 // pred_check_branch
      %378 = sbr.rel (0) target = $region225
    $region224: #{bart_embedder_forward.1} parent=1 // pred_region
      %380 = dma.done [#allocation18], 32
    $region225: #{bart_embedder_forward.1} parent=1 // pred_fallthru
      _
    // Predicated region
    $region226: #{bart_embedder_forward.1} parent=1 // pred_check
      _
    $region227: #{bart_embedder_forward.1} parent=1 // pred_check_branch
      %382 = sbr.rel (0) target = $region229
    $region228: #{bart_embedder_forward.1} parent=1 // pred_region
      %384 = dma.done [#allocation21], 32
    $region229: #{bart_embedder_forward.1} parent=1 // pred_fallthru
      _
    // Predicated region
    $region230: #{bart_embedder_forward.1} parent=1 // pred_check
      _
    $region231: #{bart_embedder_forward.1} parent=1 // pred_check_branch
      %386 = sbr.rel (0) target = $region233
    $region232: #{bart_embedder_forward.1} parent=1 // pred_region
      %388 = dma.done [#allocation21], 32
    $region233: #{bart_embedder_forward.1} parent=1 // pred_fallthru
      _
    %v389 = vld [vmem:[%s1] sm:$0xff]
    %v390 = vld [vmem:[%s1 + $0x8] sm:$0xff]
    %v391 = vld [vmem:[%s11] sm:$0xff]
    %v392 = vld [vmem:[%s11 + $0x8] sm:$0xff]
    %v393 = vld [vmem:[%s11 + $0x10] sm:$0xff]
    %v394 = vld [vmem:[%s11 + $0x18] sm:$0xff]
    %v395 = vld [vmem:[%s11 + $0x20] sm:$0xff]
    %v396 = vld [vmem:[%s11 + $0x28] sm:$0xff]
    %v397 = vld [vmem:[%s11 + $0x30] sm:$0xff]
    %v398 = vld [vmem:[%s11 + $0x38] sm:$0xff]
    %v399 = vld [vmem:[%s11 + $0x40] sm:$0xff]
    %v400 = vld [vmem:[%s11 + $0x48] sm:$0xff]
    %v401 = vld [vmem:[%s11 + $0x50] sm:$0xff]
    %v402 = vld [vmem:[%s11 + $0x58] sm:$0xff]
    %v403 = vld [vmem:[%s11 + $0x60] sm:$0xff]
    %v404 = vld [vmem:[%s11 + $0x68] sm:$0xff]
    %v405 = vld [vmem:[%s11 + $0x70] sm:$0xff]
    %v406 = vld [vmem:[%s11 + $0x78] sm:$0xff]
    %v407 = vld [vmem:[%s13] sm:$0xff]
    %v408 = vlaneseq
    %v409 = vand.u32 %v408, 127
    %410 = vset.pattern.permute.xlu0 0
    %411 = vperm.xlu0 %410, %v389
    %v412 = vpop.permute.xlu0 %411
    %413 = vset.pattern.permute.xlu0 0
    %414 = vperm.xlu0 %413, %v390
    %v415 = vpop.permute.xlu0 %414
    %vm416 = vcmp.eq.s32.totalorder %v409, %v412
    %vm417 = vcmp.eq.s32.totalorder %v409, %v415
    %v418 = vsel %vm416, 1, 0
    %v419 = vsel %vm417, 1, 0
    %v420 = vcvt.s32.f32 %v418
    %v421 = vcvt.s32.f32 %v419
    %422 = vmatpush.msra.mxu0 %v406
    %423 = vmatpush.msra.mxu0 %v405
    %424 = vmatpush.msra.mxu0 %v404
    %425 = vmatpush.msra.mxu0 %v403
    %426 = vmatpush.msra.mxu0 %v402
    %427 = vmatpush.msra.mxu0 %v401
    %428 = vmatpush.msra.mxu0 %v400
    %429 = vmatpush.msra.mxu0 %v399
    %430 = vmatpush.msra.mxu0 %v398
    %431 = vmatpush.msra.mxu0 %v397
    %432 = vmatpush.msra.mxu0 %v396
    %433 = vmatpush.msra.mxu0 %v395
    %434 = vmatpush.msra.mxu0 %v394
    %435 = vmatpush.msra.mxu0 %v393
    %436 = vmatpush.msra.mxu0 %v392
    %437 = vmatpush.msra.mxu0 %v391
    %438 = vmatmul.f32.gmra.mxu0 %v420
    %v439 = vpop.f32.mrf.mxu0
    %v440 = vadd.f32 %v407, %v439
    %441 = vmatmul.f32.gmra.mxu0 %v421
    %v442 = vpop.f32.mrf.mxu0
    %v443 = vadd.f32 %v407, %v442
    %444 = vdwg.mxu0
    %v445 = vld [vmem:[%s17] sm:$0x1]
    %v446 = vld [vmem:[%s19] sm:$0x1]
    %vm447 = vcmask 261120
    %v448 = vsel %vm447, %v440, 0.0
    %449 = vadd.xlane.f32.xlu0 %v448
    %v450 = vpop.xlane.xlu0 %449
    %v451 = vsel %vm447, %v443, 0.0
    %452 = vadd.xlane.f32.xlu0 %v451
    %v453 = vpop.xlane.xlu0 %452
    %v454 = vrcp.pop 32.0
    %v455 = vmul.f32 32.0, %v454
    %v456 = vsub.f32 1.0, %v455
    %v457 = vmul.f32 %v454, %v456
    %v458 = vadd.f32 %v454, %v457
    %vm459 = vweird.f32 %v454
    %v460 = vsel %vm459, %v454, %v458
    %v461 = vmul.f32 %v450, %v460
    %v462 = vmul.f32 %v453, %v460
    %v463 = vsub.f32 %v440, %v461
    %v464 = vsub.f32 %v443, %v462
    %v465 = vmul.f32 %v463, %v463
    %v466 = vmul.f32 %v464, %v464
    %v467 = vsel %vm447, %v465, 0.0
    %468 = vadd.xlane.f32.xlu0 %v467
    %v469 = vpop.xlane.xlu0 %468
    %v470 = vsel %vm447, %v466, 0.0
    %471 = vadd.xlane.f32.xlu0 %v470
    %v472 = vpop.xlane.xlu0 %471
    %v473 = vmul.f32 %v469, %v460
    %v474 = vmul.f32 %v472, %v460
    %v475 = vadd.f32 %v473, 1e-05
    %v476 = vadd.f32 %v474, 1e-05
    %v477 = vrsqrt.pop %v475
    %v478 = vmul.f32 %v477, %v475
    %v479 = vmul.f32 %v478, %v477
    %v480 = vmul.f32 0.5, %v479
    %v481 = vsub.f32 1.5, %v480
    %v482 = vmul.f32 %v477, %v481
    %vm483 = vweird.f32 %v475
    %vm484 = vweird.f32 %v477
    %vm485 = vmor %vm483, %vm484
    %v486 = vsel %vm485, %v477, %v482
    %v487 = vrsqrt.pop %v476
    %v488 = vmul.f32 %v487, %v476
    %v489 = vmul.f32 %v488, %v487
    %v490 = vmul.f32 0.5, %v489
    %v491 = vsub.f32 1.5, %v490
    %v492 = vmul.f32 %v487, %v491
    %vm493 = vweird.f32 %v476
    %vm494 = vweird.f32 %v487
    %vm495 = vmor %vm493, %vm494
    %v496 = vsel %vm495, %v487, %v492
    %v497 = vmul.f32 %v463, %v486
    %v498 = vmul.f32 %v464, %v496
    %v500 = vperm.slane %v445, 0
    %v502 = vmul.f32 %v497, %v500
    %v503 = vmul.f32 %v498, %v500
    %v505 = vperm.slane %v446, 0
    %v507 = vadd.f32 %v502, %v505
    %v508 = vadd.f32 %v503, %v505
    %v509 = vld [vmem:[%s3] sm:$0x3]
    %v510 = vsub.f32 1.0, %v509
    %v511 = vmul.f32 %v510, -1e+09
    %v512 = vld [vmem:[%s21] sm:$0xff]
    %v513 = vld [vmem:[%s21 + $0x8] sm:$0xff]
    %v514 = vld [vmem:[%s21 + $0x10] sm:$0xff]
    %v515 = vld [vmem:[%s21 + $0x18] sm:$0xff]
    %v516 = vld [vmem:[%s23] sm:$0x1]
    %v518 = vperm.slane %v516, 0
    %v521 = vsel %vm447, %v507, 0
    %v524 = vsel %vm447, %v508, 0
    %526 = vmatpush.msra.mxu0 0.0
    %527 = vmatpush.msra.mxu0 0.0
    %528 = vmatpush.msra.mxu0 0.0
    %529 = vmatpush.msra.mxu0 0.0
    %530 = vmatpush.msra.mxu0 0.0
    %531 = vmatpush.msra.mxu0 0.0
    %532 = vmatpush.msra.mxu0 0.0
    %533 = vmatpush.msra.mxu0 0.0
    %534 = vmatpush.msra.mxu0 0.0
    %535 = vmatpush.msra.mxu0 0.0
    %536 = vmatpush.msra.mxu0 0.0
    %537 = vmatpush.msra.mxu0 0.0
    %538 = vmatpush.msra.mxu0 %v515
    %539 = vmatpush.msra.mxu0 %v514
    %540 = vmatpush.msra.mxu0 %v513
    %541 = vmatpush.msra.mxu0 %v512
    %542 = vmatmul.f32.gmra.mxu0 %v521
    %v543 = vpop.f32.mrf.mxu0
    %v544 = vadd.f32 %v518, %v543
    %545 = vmatmul.f32.gmra.mxu0 %v524
    %v546 = vpop.f32.mrf.mxu0
    %v547 = vadd.f32 %v518, %v546
    %548 = vdwg.mxu0
    %550 = vrot.lane.b32.xlu0 %v544, 96
    %v551 = vpop.permute.xlu0 %550
    %vm552 = vcmask 130048
    %v553 = vsel %vm552, %v544, 0
    %v555 = vsel %vm552, %v551, 0
    %557 = vmatpush.xpose.msra.mxu0 0.0
    %558 = vmatpush.xpose.msra.mxu0 0.0
    %559 = vmatpush.xpose.msra.mxu0 0.0
    %560 = vmatpush.xpose.msra.mxu0 0.0
    %561 = vmatpush.xpose.msra.mxu0 0.0
    %562 = vmatpush.xpose.msra.mxu0 0.0
    %563 = vmatpush.xpose.msra.mxu0 0.0
    %564 = vmatpush.xpose.msra.mxu0 0.0
    %565 = vmatpush.xpose.msra.mxu0 0.0
    %566 = vmatpush.xpose.msra.mxu0 0.0
    %567 = vmatpush.xpose.msra.mxu0 0.0
    %568 = vmatpush.xpose.msra.mxu0 0.0
    %569 = vmatpush.xpose.msra.mxu0 0.0
    %570 = vmatpush.xpose.msra.mxu0 0.0
    %571 = vmatpush.xpose.msra.mxu0 0.0
    %572 = vmatpush.xpose.msra.mxu0 %v555
    %573 = vmatmul.f32.gmra.mxu0 %v553
    %v574 = vpop.f32.mrf.mxu0
    %v575 = vadd.f32 0.0, %v574
    %576 = vdwg.mxu0
    %v577 = vmul.f32 %v575, 0.25
    %v578 = vperm.slane %v511, 0
    %v579 = vadd.f32 %v577, %v578
    %vm580 = vcmask 64512
    %v581 = vsel %vm580, %v579, -inf
    %582 = vmax.xlane.f32.xlu0 %v581
    %v583 = vpop.xlane.xlu0 %582
    %v584 = vsub.f32 %v579, %v583
    %v585 = vmul.f32 %v584, 1.442695
    %v586 = vpow.pop %v585
    %v587 = vsel %vm580, %v586, 0.0
    %588 = vadd.xlane.f32.xlu0 %v587
    %v589 = vpop.xlane.xlu0 %588
    %v590 = vrcp.pop %v589
    %v591 = vmul.f32 %v589, %v590
    %v592 = vsub.f32 1.0, %v591
    %v593 = vmul.f32 %v590, %v592
    %v594 = vadd.f32 %v590, %v593
    %vm595 = vweird.f32 %v589
    %vm596 = vweird.f32 %v590
    %vm597 = vmor %vm595, %vm596
    %v598 = vsel %vm597, %v590, %v594
    %v599 = vand.u32 2147483647, %v589
    %vm600 = vcmp.eq.f32.partialorder %v599, 8.507059e+37
    %v601 = vand.u32 %v589, 2147483648
    %v602 = vor.u32 1.1754944e-38, %v601
    %v603 = vsel %vm600, %v602, %v598
    %v604 = vmul.f32 %v586, %v603
    %605 = vrot.lane.b32.xlu0 %v544, 64
    %v606 = vpop.permute.xlu0 %605
    %v609 = vsel %vm580, %v604, 0
    %611 = vmatpush.msra.mxu0 0.0
    %612 = vmatpush.msra.mxu0 0.0
    %613 = vmatpush.msra.mxu0 0.0
    %614 = vmatpush.msra.mxu0 0.0
    %615 = vmatpush.msra.mxu0 0.0
    %616 = vmatpush.msra.mxu0 0.0
    %617 = vmatpush.msra.mxu0 0.0
    %618 = vmatpush.msra.mxu0 0.0
    %619 = vmatpush.msra.mxu0 0.0
    %620 = vmatpush.msra.mxu0 0.0
    %621 = vmatpush.msra.mxu0 0.0
    %622 = vmatpush.msra.mxu0 0.0
    %623 = vmatpush.msra.mxu0 0.0
    %624 = vmatpush.msra.mxu0 0.0
    %625 = vmatpush.msra.mxu0 0.0
    %626 = vmatpush.msra.mxu0 %v606
    %627 = vmatmul.f32.gmra.mxu0 %v609
    %v628 = vpop.f32.mrf.mxu0
    %v629 = vadd.f32 0.0, %v628
    %630 = vdwg.mxu0
    %631 = vrot.lane.b32.xlu0 %v544, 112
    %v632 = vpop.permute.xlu0 %631
    %633 = vrot.lane.b32.xlu0 %v544, 80
    %v634 = vpop.permute.xlu0 %633
    %v635 = vsel %vm552, %v632, 0
    %v637 = vsel %vm552, %v634, 0
    %639 = vmatpush.xpose.msra.mxu0 0.0
    %640 = vmatpush.xpose.msra.mxu0 0.0
    %641 = vmatpush.xpose.msra.mxu0 0.0
    %642 = vmatpush.xpose.msra.mxu0 0.0
    %643 = vmatpush.xpose.msra.mxu0 0.0
    %644 = vmatpush.xpose.msra.mxu0 0.0
    %645 = vmatpush.xpose.msra.mxu0 0.0
    %646 = vmatpush.xpose.msra.mxu0 0.0
    %647 = vmatpush.xpose.msra.mxu0 0.0
    %648 = vmatpush.xpose.msra.mxu0 0.0
    %649 = vmatpush.xpose.msra.mxu0 0.0
    %650 = vmatpush.xpose.msra.mxu0 0.0
    %651 = vmatpush.xpose.msra.mxu0 0.0
    %652 = vmatpush.xpose.msra.mxu0 0.0
    %653 = vmatpush.xpose.msra.mxu0 0.0
    %654 = vmatpush.xpose.msra.mxu0 %v637
    %655 = vmatmul.f32.gmra.mxu0 %v635
    %v656 = vpop.f32.mrf.mxu0
    %v657 = vadd.f32 0.0, %v656
    %658 = vdwg.mxu0
    %v659 = vmul.f32 %v657, 0.25
    %v660 = vadd.f32 %v659, %v578
    %v661 = vsel %vm580, %v660, -inf
    %662 = vmax.xlane.f32.xlu0 %v661
    %v663 = vpop.xlane.xlu0 %662
    %v664 = vsub.f32 %v660, %v663
    %v665 = vmul.f32 %v664, 1.442695
    %v666 = vpow.pop %v665
    %v667 = vsel %vm580, %v666, 0.0
    %668 = vadd.xlane.f32.xlu0 %v667
    %v669 = vpop.xlane.xlu0 %668
    %v670 = vrcp.pop %v669
    %v671 = vmul.f32 %v669, %v670
    %v672 = vsub.f32 1.0, %v671
    %v673 = vmul.f32 %v670, %v672
    %v674 = vadd.f32 %v670, %v673
    %vm675 = vweird.f32 %v669
    %vm676 = vweird.f32 %v670
    %vm677 = vmor %vm675, %vm676
    %v678 = vsel %vm677, %v670, %v674
    %v679 = vand.u32 2147483647, %v669
    %vm680 = vcmp.eq.f32.partialorder %v679, 8.507059e+37
    %v681 = vand.u32 %v669, 2147483648
    %v682 = vor.u32 1.1754944e-38, %v681
    %v683 = vsel %vm680, %v682, %v678
    %v684 = vmul.f32 %v666, %v683
    %685 = vrot.lane.b32.xlu0 %v544, 48
    %v686 = vpop.permute.xlu0 %685
    %v689 = vsel %vm580, %v684, 0
    %691 = vmatpush.msra.mxu0 0.0
    %692 = vmatpush.msra.mxu0 0.0
    %693 = vmatpush.msra.mxu0 0.0
    %694 = vmatpush.msra.mxu0 0.0
    %695 = vmatpush.msra.mxu0 0.0
    %696 = vmatpush.msra.mxu0 0.0
    %697 = vmatpush.msra.mxu0 0.0
    %698 = vmatpush.msra.mxu0 0.0
    %699 = vmatpush.msra.mxu0 0.0
    %700 = vmatpush.msra.mxu0 0.0
    %701 = vmatpush.msra.mxu0 0.0
    %702 = vmatpush.msra.mxu0 0.0
    %703 = vmatpush.msra.mxu0 0.0
    %704 = vmatpush.msra.mxu0 0.0
    %705 = vmatpush.msra.mxu0 0.0
    %706 = vmatpush.msra.mxu0 %v686
    %707 = vmatmul.f32.gmra.mxu0 %v689
    %v708 = vpop.f32.mrf.mxu0
    %v709 = vadd.f32 0.0, %v708
    %710 = vdwg.mxu0
    %712 = vrot.lane.b32.xlu0 %v709, 16
    %v713 = vpop.permute.xlu0 %712
    %v715 = vsel %vm552, %v629, %v713
    %717 = vrot.lane.b32.xlu0 %v547, 96
    %v718 = vpop.permute.xlu0 %717
    %v719 = vsel %vm552, %v547, 0
    %v721 = vsel %vm552, %v718, 0
    %723 = vmatpush.xpose.msra.mxu0 0.0
    %724 = vmatpush.xpose.msra.mxu0 0.0
    %725 = vmatpush.xpose.msra.mxu0 0.0
    %726 = vmatpush.xpose.msra.mxu0 0.0
    %727 = vmatpush.xpose.msra.mxu0 0.0
    %728 = vmatpush.xpose.msra.mxu0 0.0
    %729 = vmatpush.xpose.msra.mxu0 0.0
    %730 = vmatpush.xpose.msra.mxu0 0.0
    %731 = vmatpush.xpose.msra.mxu0 0.0
    %732 = vmatpush.xpose.msra.mxu0 0.0
    %733 = vmatpush.xpose.msra.mxu0 0.0
    %734 = vmatpush.xpose.msra.mxu0 0.0
    %735 = vmatpush.xpose.msra.mxu0 0.0
    %736 = vmatpush.xpose.msra.mxu0 0.0
    %737 = vmatpush.xpose.msra.mxu0 0.0
    %738 = vmatpush.xpose.msra.mxu0 %v721
    %739 = vmatmul.f32.gmra.mxu0 %v719
    %v740 = vpop.f32.mrf.mxu0
    %v741 = vadd.f32 0.0, %v740
    %742 = vdwg.mxu0
    %v743 = vmul.f32 %v741, 0.25
    %v744 = vperm.slane %v511, 1
    %v745 = vadd.f32 %v743, %v744
    %v746 = vsel %vm580, %v745, -inf
    %747 = vmax.xlane.f32.xlu0 %v746
    %v748 = vpop.xlane.xlu0 %747
    %v749 = vsub.f32 %v745, %v748
    %v750 = vmul.f32 %v749, 1.442695
    %v751 = vpow.pop %v750
    %v752 = vsel %vm580, %v751, 0.0
    %753 = vadd.xlane.f32.xlu0 %v752
    %v754 = vpop.xlane.xlu0 %753
    %v755 = vrcp.pop %v754
    %v756 = vmul.f32 %v754, %v755
    %v757 = vsub.f32 1.0, %v756
    %v758 = vmul.f32 %v755, %v757
    %v759 = vadd.f32 %v755, %v758
    %vm760 = vweird.f32 %v754
    %vm761 = vweird.f32 %v755
    %vm762 = vmor %vm760, %vm761
    %v763 = vsel %vm762, %v755, %v759
    %v764 = vand.u32 2147483647, %v754
    %vm765 = vcmp.eq.f32.partialorder %v764, 8.507059e+37
    %v766 = vand.u32 %v754, 2147483648
    %v767 = vor.u32 1.1754944e-38, %v766
    %v768 = vsel %vm765, %v767, %v763
    %v769 = vmul.f32 %v751, %v768
    %770 = vrot.lane.b32.xlu0 %v547, 64
    %v771 = vpop.permute.xlu0 %770
    %v774 = vsel %vm580, %v769, 0
    %776 = vmatpush.msra.mxu0 0.0
    %777 = vmatpush.msra.mxu0 0.0
    %778 = vmatpush.msra.mxu0 0.0
    %779 = vmatpush.msra.mxu0 0.0
    %780 = vmatpush.msra.mxu0 0.0
    %781 = vmatpush.msra.mxu0 0.0
    %782 = vmatpush.msra.mxu0 0.0
    %783 = vmatpush.msra.mxu0 0.0
    %784 = vmatpush.msra.mxu0 0.0
    %785 = vmatpush.msra.mxu0 0.0
    %786 = vmatpush.msra.mxu0 0.0
    %787 = vmatpush.msra.mxu0 0.0
    %788 = vmatpush.msra.mxu0 0.0
    %789 = vmatpush.msra.mxu0 0.0
    %790 = vmatpush.msra.mxu0 0.0
    %791 = vmatpush.msra.mxu0 %v771
    %792 = vmatmul.f32.gmra.mxu0 %v774
    %v793 = vpop.f32.mrf.mxu0
    %v794 = vadd.f32 0.0, %v793
    %795 = vdwg.mxu0
    %796 = vrot.lane.b32.xlu0 %v547, 112
    %v797 = vpop.permute.xlu0 %796
    %798 = vrot.lane.b32.xlu0 %v547, 80
    %v799 = vpop.permute.xlu0 %798
    %v800 = vsel %vm552, %v797, 0
    %v802 = vsel %vm552, %v799, 0
    %804 = vmatpush.xpose.msra.mxu0 0.0
    %805 = vmatpush.xpose.msra.mxu0 0.0
    %806 = vmatpush.xpose.msra.mxu0 0.0
    %807 = vmatpush.xpose.msra.mxu0 0.0
    %808 = vmatpush.xpose.msra.mxu0 0.0
    %809 = vmatpush.xpose.msra.mxu0 0.0
    %810 = vmatpush.xpose.msra.mxu0 0.0
    %811 = vmatpush.xpose.msra.mxu0 0.0
    %812 = vmatpush.xpose.msra.mxu0 0.0
    %813 = vmatpush.xpose.msra.mxu0 0.0
    %814 = vmatpush.xpose.msra.mxu0 0.0
    %815 = vmatpush.xpose.msra.mxu0 0.0
    %816 = vmatpush.xpose.msra.mxu0 0.0
    %817 = vmatpush.xpose.msra.mxu0 0.0
    %818 = vmatpush.xpose.msra.mxu0 0.0
    %819 = vmatpush.xpose.msra.mxu0 %v802
    %820 = vmatmul.f32.gmra.mxu0 %v800
    %v821 = vpop.f32.mrf.mxu0
    %v822 = vadd.f32 0.0, %v821
    %823 = vdwg.mxu0
    %v824 = vmul.f32 %v822, 0.25
    %v825 = vadd.f32 %v824, %v744
    %v826 = vsel %vm580, %v825, -inf
    %827 = vmax.xlane.f32.xlu0 %v826
    %v828 = vpop.xlane.xlu0 %827
    %v829 = vsub.f32 %v825, %v828
    %v830 = vmul.f32 %v829, 1.442695
    %v831 = vpow.pop %v830
    %v832 = vsel %vm580, %v831, 0.0
    %833 = vadd.xlane.f32.xlu0 %v832
    %v834 = vpop.xlane.xlu0 %833
    %v835 = vrcp.pop %v834
    %v836 = vmul.f32 %v834, %v835
    %v837 = vsub.f32 1.0, %v836
    %v838 = vmul.f32 %v835, %v837
    %v839 = vadd.f32 %v835, %v838
    %vm840 = vweird.f32 %v834
    %vm841 = vweird.f32 %v835
    %vm842 = vmor %vm840, %vm841
    %v843 = vsel %vm842, %v835, %v839
    %v844 = vand.u32 2147483647, %v834
    %vm845 = vcmp.eq.f32.partialorder %v844, 8.507059e+37
    %v846 = vand.u32 %v834, 2147483648
    %v847 = vor.u32 1.1754944e-38, %v846
    %v848 = vsel %vm845, %v847, %v843
    %v849 = vmul.f32 %v831, %v848
    %850 = vrot.lane.b32.xlu0 %v547, 48
    %v851 = vpop.permute.xlu0 %850
    %v854 = vsel %vm580, %v849, 0
    %856 = vmatpush.msra.mxu0 0.0
    %857 = vmatpush.msra.mxu0 0.0
    %858 = vmatpush.msra.mxu0 0.0
    %859 = vmatpush.msra.mxu0 0.0
    %860 = vmatpush.msra.mxu0 0.0
    %861 = vmatpush.msra.mxu0 0.0
    %862 = vmatpush.msra.mxu0 0.0
    %863 = vmatpush.msra.mxu0 0.0
    %864 = vmatpush.msra.mxu0 0.0
    %865 = vmatpush.msra.mxu0 0.0
    %866 = vmatpush.msra.mxu0 0.0
    %867 = vmatpush.msra.mxu0 0.0
    %868 = vmatpush.msra.mxu0 0.0
    %869 = vmatpush.msra.mxu0 0.0
    %870 = vmatpush.msra.mxu0 0.0
    %871 = vmatpush.msra.mxu0 %v851
    %872 = vmatmul.f32.gmra.mxu0 %v854
    %v873 = vpop.f32.mrf.mxu0
    %v874 = vadd.f32 0.0, %v873
    %875 = vdwg.mxu0
    %877 = vrot.lane.b32.xlu0 %v874, 16
    %v878 = vpop.permute.xlu0 %877
    %v880 = vsel %vm552, %v794, %v878
    %v881 = vld [vmem:[%s25] sm:$0xff]
    %v882 = vld [vmem:[%s25 + $0x8] sm:$0xff]
    %v883 = vld [vmem:[%s25 + $0x10] sm:$0xff]
    %v884 = vld [vmem:[%s25 + $0x18] sm:$0xff]
    %v885 = vld [vmem:[%s27] sm:$0x1]
    %v887 = vperm.slane %v885, 0
    %v890 = vsel %vm447, %v715, 0
    %v893 = vsel %vm447, %v880, 0
    %895 = vmatpush.msra.mxu0 0.0
    %896 = vmatpush.msra.mxu0 0.0
    %897 = vmatpush.msra.mxu0 0.0
    %898 = vmatpush.msra.mxu0 0.0
    %899 = vmatpush.msra.mxu0 0.0
    %900 = vmatpush.msra.mxu0 0.0
    %901 = vmatpush.msra.mxu0 0.0
    %902 = vmatpush.msra.mxu0 0.0
    %903 = vmatpush.msra.mxu0 0.0
    %904 = vmatpush.msra.mxu0 0.0
    %905 = vmatpush.msra.mxu0 0.0
    %906 = vmatpush.msra.mxu0 0.0
    %907 = vmatpush.msra.mxu0 %v884
    %908 = vmatpush.msra.mxu0 %v883
    %909 = vmatpush.msra.mxu0 %v882
    %910 = vmatpush.msra.mxu0 %v881
    %911 = vmatmul.f32.gmra.mxu0 %v890
    %v912 = vpop.f32.mrf.mxu0
    %v913 = vadd.f32 %v887, %v912
    %914 = vmatmul.f32.gmra.mxu0 %v893
    %v915 = vpop.f32.mrf.mxu0
    %v916 = vadd.f32 %v887, %v915
    %917 = vdwg.mxu0
    %v918 = vadd.f32 %v507, %v913
    %v919 = vadd.f32 %v508, %v916
    %v920 = vld [vmem:[%s29] sm:$0x1]
    %v921 = vld [vmem:[%s31] sm:$0x1]
    %v922 = vsel %vm447, %v918, 0.0
    %923 = vadd.xlane.f32.xlu0 %v922
    %v924 = vpop.xlane.xlu0 %923
    %v925 = vsel %vm447, %v919, 0.0
    %926 = vadd.xlane.f32.xlu0 %v925
    %v927 = vpop.xlane.xlu0 %926
    %v928 = vmul.f32 %v924, %v460
    %v929 = vmul.f32 %v927, %v460
    %v930 = vsub.f32 %v918, %v928
    %v931 = vsub.f32 %v919, %v929
    %v932 = vmul.f32 %v930, %v930
    %v933 = vmul.f32 %v931, %v931
    %v934 = vsel %vm447, %v932, 0.0
    %935 = vadd.xlane.f32.xlu0 %v934
    %v936 = vpop.xlane.xlu0 %935
    %v937 = vsel %vm447, %v933, 0.0
    %938 = vadd.xlane.f32.xlu0 %v937
    %v939 = vpop.xlane.xlu0 %938
    %v940 = vmul.f32 %v936, %v460
    %v941 = vmul.f32 %v939, %v460
    %v942 = vadd.f32 %v940, 1e-05
    %v943 = vadd.f32 %v941, 1e-05
    %v944 = vrsqrt.pop %v942
    %v945 = vmul.f32 %v944, %v942
    %v946 = vmul.f32 %v945, %v944
    %v947 = vmul.f32 0.5, %v946
    %v948 = vsub.f32 1.5, %v947
    %v949 = vmul.f32 %v944, %v948
    %vm950 = vweird.f32 %v942
    %vm951 = vweird.f32 %v944
    %vm952 = vmor %vm950, %vm951
    %v953 = vsel %vm952, %v944, %v949
    %v954 = vrsqrt.pop %v943
    %v955 = vmul.f32 %v954, %v943
    %v956 = vmul.f32 %v955, %v954
    %v957 = vmul.f32 0.5, %v956
    %v958 = vsub.f32 1.5, %v957
    %v959 = vmul.f32 %v954, %v958
    %vm960 = vweird.f32 %v943
    %vm961 = vweird.f32 %v954
    %vm962 = vmor %vm960, %vm961
    %v963 = vsel %vm962, %v954, %v959
    %v964 = vmul.f32 %v930, %v953
    %v965 = vmul.f32 %v931, %v963
    %v967 = vperm.slane %v920, 0
    %v969 = vmul.f32 %v964, %v967
    %v970 = vmul.f32 %v965, %v967
    %v972 = vperm.slane %v921, 0
    %v974 = vadd.f32 %v969, %v972
    %v975 = vadd.f32 %v970, %v972
    %v976 = vld [vmem:[%s33] sm:$0xff]
    %v977 = vld [vmem:[%s33 + $0x8] sm:$0xff]
    %v978 = vld [vmem:[%s33 + $0x10] sm:$0xff]
    %v979 = vld [vmem:[%s33 + $0x18] sm:$0xff]
    %v980 = vld [vmem:[%s35] sm:$0x1]
    %v982 = vperm.slane %v980, 0
    %v985 = vsel %vm447, %v974, 0
    %v988 = vsel %vm447, %v975, 0
    %990 = vmatpush.msra.mxu0 0.0
    %991 = vmatpush.msra.mxu0 0.0
    %992 = vmatpush.msra.mxu0 0.0
    %993 = vmatpush.msra.mxu0 0.0
    %994 = vmatpush.msra.mxu0 0.0
    %995 = vmatpush.msra.mxu0 0.0
    %996 = vmatpush.msra.mxu0 0.0
    %997 = vmatpush.msra.mxu0 0.0
    %998 = vmatpush.msra.mxu0 0.0
    %999 = vmatpush.msra.mxu0 0.0
    %1000 = vmatpush.msra.mxu0 0.0
    %1001 = vmatpush.msra.mxu0 0.0
    %1002 = vmatpush.msra.mxu0 %v979
    %1003 = vmatpush.msra.mxu0 %v978
    %1004 = vmatpush.msra.mxu0 %v977
    %1005 = vmatpush.msra.mxu0 %v976
    %1006 = vmatmul.f32.gmra.mxu0 %v985
    %v1007 = vpop.f32.mrf.mxu0
    %v1008 = vadd.f32 %v982, %v1007
    %1009 = vmatmul.f32.gmra.mxu0 %v988
    %v1010 = vpop.f32.mrf.mxu0
    %v1011 = vadd.f32 %v982, %v1010
    %1012 = vdwg.mxu0
    %v1013 = vmul.f32 %v1008, 0.5
    %v1014 = vmul.f32 %v1011, 0.5
    %v1015 = vmul.f32 %v1008, 0.70710677
    %v1016 = vmul.f32 %v1011, 0.70710677
    %v1017 = vand.u32 2147483647, %v1015
    %v1018 = vand.u32 2147483647, %v1016
    %v1019 = vmul.f32 %v1017, 0.3275911
    %v1020 = vmul.f32 %v1018, 0.3275911
    %v1021 = vadd.f32 %v1019, 1.0
    %v1022 = vadd.f32 %v1020, 1.0
    %v1023 = vrcp.pop %v1021
    %v1024 = vmul.f32 %v1021, %v1023
    %v1025 = vsub.f32 1.0, %v1024
    %v1026 = vmul.f32 %v1023, %v1025
    %v1027 = vadd.f32 %v1023, %v1026
    %vm1028 = vweird.f32 %v1021
    %vm1029 = vweird.f32 %v1023
    %vm1030 = vmor %vm1028, %vm1029
    %v1031 = vsel %vm1030, %v1023, %v1027
    %v1032 = vand.u32 2147483647, %v1021
    %vm1033 = vcmp.eq.f32.partialorder %v1032, 8.507059e+37
    %v1034 = vand.u32 %v1021, 2147483648
    %v1035 = vor.u32 1.1754944e-38, %v1034
    %v1036 = vsel %vm1033, %v1035, %v1031
    %v1037 = vmul.f32 1.0, %v1036
    %v1038 = vrcp.pop %v1022
    %v1039 = vmul.f32 %v1022, %v1038
    %v1040 = vsub.f32 1.0, %v1039
    %v1041 = vmul.f32 %v1038, %v1040
    %v1042 = vadd.f32 %v1038, %v1041
    %vm1043 = vweird.f32 %v1022
    %vm1044 = vweird.f32 %v1038
    %vm1045 = vmor %vm1043, %vm1044
    %v1046 = vsel %vm1045, %v1038, %v1042
    %v1047 = vand.u32 2147483647, %v1022
    %vm1048 = vcmp.eq.f32.partialorder %v1047, 8.507059e+37
    %v1049 = vand.u32 %v1022, 2147483648
    %v1050 = vor.u32 1.1754944e-38, %v1049
    %v1051 = vsel %vm1048, %v1050, %v1046
    %v1052 = vmul.f32 1.0, %v1051
    %v1053 = vmul.f32 %v1037, 1.0614054
    %v1054 = vmul.f32 %v1052, 1.0614054
    %v1055 = vsub.f32 %v1053, 1.4531521
    %v1056 = vsub.f32 %v1054, 1.4531521
    %v1057 = vmul.f32 %v1055, %v1037
    %v1058 = vmul.f32 %v1056, %v1052
    %v1059 = vadd.f32 %v1057, 1.4214138
    %v1060 = vadd.f32 %v1058, 1.4214138
    %v1061 = vmul.f32 %v1059, %v1037
    %v1062 = vmul.f32 %v1060, %v1052
    %v1063 = vsub.f32 %v1061, 0.28449672
    %v1064 = vsub.f32 %v1062, 0.28449672
    %v1065 = vmul.f32 %v1063, %v1037
    %v1066 = vmul.f32 %v1064, %v1052
    %v1067 = vadd.f32 %v1065, 0.2548296
    %v1068 = vadd.f32 %v1066, 0.2548296
    %v1069 = vmul.f32 %v1067, %v1037
    %v1070 = vmul.f32 %v1068, %v1052
    %v1071 = vmul.f32 %v1017, %v1017
    %v1072 = vmul.f32 %v1018, %v1018
    %v1073 = vsub.f32 0.0, %v1071
    %v1074 = vsub.f32 0.0, %v1072
    %v1075 = vmul.f32 %v1073, 1.442695
    %v1076 = vpow.pop %v1075
    %v1077 = vmul.f32 %v1074, 1.442695
    %v1078 = vpow.pop %v1077
    %v1079 = vmul.f32 %v1069, %v1076
    %v1080 = vmul.f32 %v1070, %v1078
    %v1081 = vsub.f32 1.0, %v1079
    %v1082 = vsub.f32 1.0, %v1080
    %vm1083 = vcmp.ge.f32.partialorder %v1015, 0.0
    %vm1084 = vcmp.ge.f32.partialorder %v1016, 0.0
    %v1085 = vsub.f32 0.0, %v1081
    %v1086 = vsub.f32 0.0, %v1082
    %v1087 = vsel %vm1083, %v1081, %v1085
    %v1088 = vsel %vm1084, %v1082, %v1086
    %v1089 = vadd.f32 %v1087, 1.0
    %v1090 = vadd.f32 %v1088, 1.0
    %v1091 = vmul.f32 %v1013, %v1089
    %v1092 = vmul.f32 %v1014, %v1090
    %v1093 = vld [vmem:[%s37] sm:$0xff]
    %v1094 = vld [vmem:[%s37 + $0x8] sm:$0xff]
    %v1095 = vld [vmem:[%s37 + $0x10] sm:$0xff]
    %v1096 = vld [vmem:[%s37 + $0x18] sm:$0xff]
    %v1097 = vld [vmem:[%s37 + $0x20] sm:$0xff]
    %v1098 = vld [vmem:[%s37 + $0x28] sm:$0xff]
    %v1099 = vld [vmem:[%s37 + $0x30] sm:$0xff]
    %v1100 = vld [vmem:[%s37 + $0x38] sm:$0xff]
    %v1101 = vld [vmem:[%s39] sm:$0x1]
    %v1103 = vperm.slane %v1101, 0
    %vm1105 = vcmask 523264
    %v1107 = vsel %vm1105, %v1091, 0
    %v1110 = vsel %vm1105, %v1092, 0
    %1112 = vmatpush.msra.mxu0 0.0
    %1113 = vmatpush.msra.mxu0 0.0
    %1114 = vmatpush.msra.mxu0 0.0
    %1115 = vmatpush.msra.mxu0 0.0
    %1116 = vmatpush.msra.mxu0 0.0
    %1117 = vmatpush.msra.mxu0 0.0
    %1118 = vmatpush.msra.mxu0 0.0
    %1119 = vmatpush.msra.mxu0 0.0
    %1120 = vmatpush.msra.mxu0 %v1100
    %1121 = vmatpush.msra.mxu0 %v1099
    %1122 = vmatpush.msra.mxu0 %v1098
    %1123 = vmatpush.msra.mxu0 %v1097
    %1124 = vmatpush.msra.mxu0 %v1096
    %1125 = vmatpush.msra.mxu0 %v1095
    %1126 = vmatpush.msra.mxu0 %v1094
    %1127 = vmatpush.msra.mxu0 %v1093
    %1128 = vmatmul.f32.gmra.mxu0 %v1107
    %v1129 = vpop.f32.mrf.mxu0
    %v1130 = vadd.f32 %v1103, %v1129
    %1131 = vmatmul.f32.gmra.mxu0 %v1110
    %v1132 = vpop.f32.mrf.mxu0
    %v1133 = vadd.f32 %v1103, %v1132
    %1134 = vdwg.mxu0
    %v1135 = vadd.f32 %v974, %v1130
    %v1136 = vadd.f32 %v975, %v1133
    %v1137 = vld [vmem:[%s41] sm:$0x1]
    %v1138 = vld [vmem:[%s43] sm:$0x1]
    %v1139 = vsel %vm447, %v1135, 0.0
    %1140 = vadd.xlane.f32.xlu0 %v1139
    %v1141 = vpop.xlane.xlu0 %1140
    %v1142 = vsel %vm447, %v1136, 0.0
    %1143 = vadd.xlane.f32.xlu0 %v1142
    %v1144 = vpop.xlane.xlu0 %1143
    %v1145 = vmul.f32 %v1141, %v460
    %v1146 = vmul.f32 %v1144, %v460
    %v1147 = vsub.f32 %v1135, %v1145
    %v1148 = vsub.f32 %v1136, %v1146
    %v1149 = vmul.f32 %v1147, %v1147
    %v1150 = vmul.f32 %v1148, %v1148
    %v1151 = vsel %vm447, %v1149, 0.0
    %1152 = vadd.xlane.f32.xlu0 %v1151
    %v1153 = vpop.xlane.xlu0 %1152
    %v1154 = vsel %vm447, %v1150, 0.0
    %1155 = vadd.xlane.f32.xlu0 %v1154
    %v1156 = vpop.xlane.xlu0 %1155
    %v1157 = vmul.f32 %v1153, %v460
    %v1158 = vmul.f32 %v1156, %v460
    %v1159 = vadd.f32 %v1157, 1e-05
    %v1160 = vadd.f32 %v1158, 1e-05
    %v1161 = vrsqrt.pop %v1159
    %v1162 = vmul.f32 %v1161, %v1159
    %v1163 = vmul.f32 %v1162, %v1161
    %v1164 = vmul.f32 0.5, %v1163
    %v1165 = vsub.f32 1.5, %v1164
    %v1166 = vmul.f32 %v1161, %v1165
    %vm1167 = vweird.f32 %v1159
    %vm1168 = vweird.f32 %v1161
    %vm1169 = vmor %vm1167, %vm1168
    %v1170 = vsel %vm1169, %v1161, %v1166
    %v1171 = vrsqrt.pop %v1160
    %v1172 = vmul.f32 %v1171, %v1160
    %v1173 = vmul.f32 %v1172, %v1171
    %v1174 = vmul.f32 0.5, %v1173
    %v1175 = vsub.f32 1.5, %v1174
    %v1176 = vmul.f32 %v1171, %v1175
    %vm1177 = vweird.f32 %v1160
    %vm1178 = vweird.f32 %v1171
    %vm1179 = vmor %vm1177, %vm1178
    %v1180 = vsel %vm1179, %v1171, %v1176
    %v1181 = vmul.f32 %v1147, %v1170
    %v1182 = vmul.f32 %v1148, %v1180
    %v1184 = vperm.slane %v1137, 0
    %v1186 = vmul.f32 %v1181, %v1184
    %v1187 = vmul.f32 %v1182, %v1184
    %v1189 = vperm.slane %v1138, 0
    %v1191 = vadd.f32 %v1186, %v1189
    %v1192 = vadd.f32 %v1187, %v1189
    %s1193 = scalar_lea.vmem %s21, 32
    %v1194 = vld [vmem:[%s1193] sm:$0xff]
    %v1195 = vld [vmem:[%s1193 + $0x8] sm:$0xff]
    %v1196 = vld [vmem:[%s1193 + $0x10] sm:$0xff]
    %v1197 = vld [vmem:[%s1193 + $0x18] sm:$0xff]
    %s1198 = scalar_lea.vmem %s23, 1
    %v1199 = vld [vmem:[%s1198] sm:$0x1]
    %v1201 = vperm.slane %v1199, 0
    %v1204 = vsel %vm447, %v1191, 0
    %v1207 = vsel %vm447, %v1192, 0
    %1209 = vmatpush.msra.mxu0 0.0
    %1210 = vmatpush.msra.mxu0 0.0
    %1211 = vmatpush.msra.mxu0 0.0
    %1212 = vmatpush.msra.mxu0 0.0
    %1213 = vmatpush.msra.mxu0 0.0
    %1214 = vmatpush.msra.mxu0 0.0
    %1215 = vmatpush.msra.mxu0 0.0
    %1216 = vmatpush.msra.mxu0 0.0
    %1217 = vmatpush.msra.mxu0 0.0
    %1218 = vmatpush.msra.mxu0 0.0
    %1219 = vmatpush.msra.mxu0 0.0
    %1220 = vmatpush.msra.mxu0 0.0
    %1221 = vmatpush.msra.mxu0 %v1197
    %1222 = vmatpush.msra.mxu0 %v1196
    %1223 = vmatpush.msra.mxu0 %v1195
    %1224 = vmatpush.msra.mxu0 %v1194
    %1225 = vmatmul.f32.gmra.mxu0 %v1204
    %v1226 = vpop.f32.mrf.mxu0
    %v1227 = vadd.f32 %v1201, %v1226
    %1228 = vmatmul.f32.gmra.mxu0 %v1207
    %v1229 = vpop.f32.mrf.mxu0
    %v1230 = vadd.f32 %v1201, %v1229
    %1231 = vdwg.mxu0
    %1233 = vrot.lane.b32.xlu0 %v1227, 96
    %v1234 = vpop.permute.xlu0 %1233
    %v1235 = vsel %vm552, %v1227, 0
    %v1237 = vsel %vm552, %v1234, 0
    %1239 = vmatpush.xpose.msra.mxu0 0.0
    %1240 = vmatpush.xpose.msra.mxu0 0.0
    %1241 = vmatpush.xpose.msra.mxu0 0.0
    %1242 = vmatpush.xpose.msra.mxu0 0.0
    %1243 = vmatpush.xpose.msra.mxu0 0.0
    %1244 = vmatpush.xpose.msra.mxu0 0.0
    %1245 = vmatpush.xpose.msra.mxu0 0.0
    %1246 = vmatpush.xpose.msra.mxu0 0.0
    %1247 = vmatpush.xpose.msra.mxu0 0.0
    %1248 = vmatpush.xpose.msra.mxu0 0.0
    %1249 = vmatpush.xpose.msra.mxu0 0.0
    %1250 = vmatpush.xpose.msra.mxu0 0.0
    %1251 = vmatpush.xpose.msra.mxu0 0.0
    %1252 = vmatpush.xpose.msra.mxu0 0.0
    %1253 = vmatpush.xpose.msra.mxu0 0.0
    %1254 = vmatpush.xpose.msra.mxu0 %v1237
    %1255 = vmatmul.f32.gmra.mxu0 %v1235
    %v1256 = vpop.f32.mrf.mxu0
    %v1257 = vadd.f32 0.0, %v1256
    %1258 = vdwg.mxu0
    %v1259 = vmul.f32 %v1257, 0.25
    %v1260 = vadd.f32 %v1259, %v578
    %v1261 = vsel %vm580, %v1260, -inf
    %1262 = vmax.xlane.f32.xlu0 %v1261
    %v1263 = vpop.xlane.xlu0 %1262
    %v1264 = vsub.f32 %v1260, %v1263
    %v1265 = vmul.f32 %v1264, 1.442695
    %v1266 = vpow.pop %v1265
    %v1267 = vsel %vm580, %v1266, 0.0
    %1268 = vadd.xlane.f32.xlu0 %v1267
    %v1269 = vpop.xlane.xlu0 %1268
    %v1270 = vrcp.pop %v1269
    %v1271 = vmul.f32 %v1269, %v1270
    %v1272 = vsub.f32 1.0, %v1271
    %v1273 = vmul.f32 %v1270, %v1272
    %v1274 = vadd.f32 %v1270, %v1273
    %vm1275 = vweird.f32 %v1269
    %vm1276 = vweird.f32 %v1270
    %vm1277 = vmor %vm1275, %vm1276
    %v1278 = vsel %vm1277, %v1270, %v1274
    %v1279 = vand.u32 2147483647, %v1269
    %vm1280 = vcmp.eq.f32.partialorder %v1279, 8.507059e+37
    %v1281 = vand.u32 %v1269, 2147483648
    %v1282 = vor.u32 1.1754944e-38, %v1281
    %v1283 = vsel %vm1280, %v1282, %v1278
    %v1284 = vmul.f32 %v1266, %v1283
    %1285 = vrot.lane.b32.xlu0 %v1227, 64
    %v1286 = vpop.permute.xlu0 %1285
    %v1289 = vsel %vm580, %v1284, 0
    %1291 = vmatpush.msra.mxu0 0.0
    %1292 = vmatpush.msra.mxu0 0.0
    %1293 = vmatpush.msra.mxu0 0.0
    %1294 = vmatpush.msra.mxu0 0.0
    %1295 = vmatpush.msra.mxu0 0.0
    %1296 = vmatpush.msra.mxu0 0.0
    %1297 = vmatpush.msra.mxu0 0.0
    %1298 = vmatpush.msra.mxu0 0.0
    %1299 = vmatpush.msra.mxu0 0.0
    %1300 = vmatpush.msra.mxu0 0.0
    %1301 = vmatpush.msra.mxu0 0.0
    %1302 = vmatpush.msra.mxu0 0.0
    %1303 = vmatpush.msra.mxu0 0.0
    %1304 = vmatpush.msra.mxu0 0.0
    %1305 = vmatpush.msra.mxu0 0.0
    %1306 = vmatpush.msra.mxu0 %v1286
    %1307 = vmatmul.f32.gmra.mxu0 %v1289
    %v1308 = vpop.f32.mrf.mxu0
    %v1309 = vadd.f32 0.0, %v1308
    %1310 = vdwg.mxu0
    %1311 = vrot.lane.b32.xlu0 %v1227, 112
    %v1312 = vpop.permute.xlu0 %1311
    %1313 = vrot.lane.b32.xlu0 %v1227, 80
    %v1314 = vpop.permute.xlu0 %1313
    %v1315 = vsel %vm552, %v1312, 0
    %v1317 = vsel %vm552, %v1314, 0
    %1319 = vmatpush.xpose.msra.mxu0 0.0
    %1320 = vmatpush.xpose.msra.mxu0 0.0
    %1321 = vmatpush.xpose.msra.mxu0 0.0
    %1322 = vmatpush.xpose.msra.mxu0 0.0
    %1323 = vmatpush.xpose.msra.mxu0 0.0
    %1324 = vmatpush.xpose.msra.mxu0 0.0
    %1325 = vmatpush.xpose.msra.mxu0 0.0
    %1326 = vmatpush.xpose.msra.mxu0 0.0
    %1327 = vmatpush.xpose.msra.mxu0 0.0
    %1328 = vmatpush.xpose.msra.mxu0 0.0
    %1329 = vmatpush.xpose.msra.mxu0 0.0
    %1330 = vmatpush.xpose.msra.mxu0 0.0
    %1331 = vmatpush.xpose.msra.mxu0 0.0
    %1332 = vmatpush.xpose.msra.mxu0 0.0
    %1333 = vmatpush.xpose.msra.mxu0 0.0
    %1334 = vmatpush.xpose.msra.mxu0 %v1317
    %1335 = vmatmul.f32.gmra.mxu0 %v1315
    %v1336 = vpop.f32.mrf.mxu0
    %v1337 = vadd.f32 0.0, %v1336
    %1338 = vdwg.mxu0
    %v1339 = vmul.f32 %v1337, 0.25
    %v1340 = vadd.f32 %v1339, %v578
    %v1341 = vsel %vm580, %v1340, -inf
    %1342 = vmax.xlane.f32.xlu0 %v1341
    %v1343 = vpop.xlane.xlu0 %1342
    %v1344 = vsub.f32 %v1340, %v1343
    %v1345 = vmul.f32 %v1344, 1.442695
    %v1346 = vpow.pop %v1345
    %v1347 = vsel %vm580, %v1346, 0.0
    %1348 = vadd.xlane.f32.xlu0 %v1347
    %v1349 = vpop.xlane.xlu0 %1348
    %v1350 = vrcp.pop %v1349
    %v1351 = vmul.f32 %v1349, %v1350
    %v1352 = vsub.f32 1.0, %v1351
    %v1353 = vmul.f32 %v1350, %v1352
    %v1354 = vadd.f32 %v1350, %v1353
    %vm1355 = vweird.f32 %v1349
    %vm1356 = vweird.f32 %v1350
    %vm1357 = vmor %vm1355, %vm1356
    %v1358 = vsel %vm1357, %v1350, %v1354
    %v1359 = vand.u32 2147483647, %v1349
    %vm1360 = vcmp.eq.f32.partialorder %v1359, 8.507059e+37
    %v1361 = vand.u32 %v1349, 2147483648
    %v1362 = vor.u32 1.1754944e-38, %v1361
    %v1363 = vsel %vm1360, %v1362, %v1358
    %v1364 = vmul.f32 %v1346, %v1363
    %1365 = vrot.lane.b32.xlu0 %v1227, 48
    %v1366 = vpop.permute.xlu0 %1365
    %v1369 = vsel %vm580, %v1364, 0
    %1371 = vmatpush.msra.mxu0 0.0
    %1372 = vmatpush.msra.mxu0 0.0
    %1373 = vmatpush.msra.mxu0 0.0
    %1374 = vmatpush.msra.mxu0 0.0
    %1375 = vmatpush.msra.mxu0 0.0
    %1376 = vmatpush.msra.mxu0 0.0
    %1377 = vmatpush.msra.mxu0 0.0
    %1378 = vmatpush.msra.mxu0 0.0
    %1379 = vmatpush.msra.mxu0 0.0
    %1380 = vmatpush.msra.mxu0 0.0
    %1381 = vmatpush.msra.mxu0 0.0
    %1382 = vmatpush.msra.mxu0 0.0
    %1383 = vmatpush.msra.mxu0 0.0
    %1384 = vmatpush.msra.mxu0 0.0
    %1385 = vmatpush.msra.mxu0 0.0
    %1386 = vmatpush.msra.mxu0 %v1366
    %1387 = vmatmul.f32.gmra.mxu0 %v1369
    %v1388 = vpop.f32.mrf.mxu0
    %v1389 = vadd.f32 0.0, %v1388
    %1390 = vdwg.mxu0
    %1392 = vrot.lane.b32.xlu0 %v1389, 16
    %v1393 = vpop.permute.xlu0 %1392
    %v1395 = vsel %vm552, %v1309, %v1393
    %1397 = vrot.lane.b32.xlu0 %v1230, 96
    %v1398 = vpop.permute.xlu0 %1397
    %v1399 = vsel %vm552, %v1230, 0
    %v1401 = vsel %vm552, %v1398, 0
    %1403 = vmatpush.xpose.msra.mxu0 0.0
    %1404 = vmatpush.xpose.msra.mxu0 0.0
    %1405 = vmatpush.xpose.msra.mxu0 0.0
    %1406 = vmatpush.xpose.msra.mxu0 0.0
    %1407 = vmatpush.xpose.msra.mxu0 0.0
    %1408 = vmatpush.xpose.msra.mxu0 0.0
    %1409 = vmatpush.xpose.msra.mxu0 0.0
    %1410 = vmatpush.xpose.msra.mxu0 0.0
    %1411 = vmatpush.xpose.msra.mxu0 0.0
    %1412 = vmatpush.xpose.msra.mxu0 0.0
    %1413 = vmatpush.xpose.msra.mxu0 0.0
    %1414 = vmatpush.xpose.msra.mxu0 0.0
    %1415 = vmatpush.xpose.msra.mxu0 0.0
    %1416 = vmatpush.xpose.msra.mxu0 0.0
    %1417 = vmatpush.xpose.msra.mxu0 0.0
    %1418 = vmatpush.xpose.msra.mxu0 %v1401
    %1419 = vmatmul.f32.gmra.mxu0 %v1399
    %v1420 = vpop.f32.mrf.mxu0
    %v1421 = vadd.f32 0.0, %v1420
    %1422 = vdwg.mxu0
    %v1423 = vmul.f32 %v1421, 0.25
    %v1424 = vadd.f32 %v1423, %v744
    %v1425 = vsel %vm580, %v1424, -inf
    %1426 = vmax.xlane.f32.xlu0 %v1425
    %v1427 = vpop.xlane.xlu0 %1426
    %v1428 = vsub.f32 %v1424, %v1427
    %v1429 = vmul.f32 %v1428, 1.442695
    %v1430 = vpow.pop %v1429
    %v1431 = vsel %vm580, %v1430, 0.0
    %1432 = vadd.xlane.f32.xlu0 %v1431
    %v1433 = vpop.xlane.xlu0 %1432
    %v1434 = vrcp.pop %v1433
    %v1435 = vmul.f32 %v1433, %v1434
    %v1436 = vsub.f32 1.0, %v1435
    %v1437 = vmul.f32 %v1434, %v1436
    %v1438 = vadd.f32 %v1434, %v1437
    %vm1439 = vweird.f32 %v1433
    %vm1440 = vweird.f32 %v1434
    %vm1441 = vmor %vm1439, %vm1440
    %v1442 = vsel %vm1441, %v1434, %v1438
    %v1443 = vand.u32 2147483647, %v1433
    %vm1444 = vcmp.eq.f32.partialorder %v1443, 8.507059e+37
    %v1445 = vand.u32 %v1433, 2147483648
    %v1446 = vor.u32 1.1754944e-38, %v1445
    %v1447 = vsel %vm1444, %v1446, %v1442
    %v1448 = vmul.f32 %v1430, %v1447
    %1449 = vrot.lane.b32.xlu0 %v1230, 64
    %v1450 = vpop.permute.xlu0 %1449
    %v1453 = vsel %vm580, %v1448, 0
    %1455 = vmatpush.msra.mxu0 0.0
    %1456 = vmatpush.msra.mxu0 0.0
    %1457 = vmatpush.msra.mxu0 0.0
    %1458 = vmatpush.msra.mxu0 0.0
    %1459 = vmatpush.msra.mxu0 0.0
    %1460 = vmatpush.msra.mxu0 0.0
    %1461 = vmatpush.msra.mxu0 0.0
    %1462 = vmatpush.msra.mxu0 0.0
    %1463 = vmatpush.msra.mxu0 0.0
    %1464 = vmatpush.msra.mxu0 0.0
    %1465 = vmatpush.msra.mxu0 0.0
    %1466 = vmatpush.msra.mxu0 0.0
    %1467 = vmatpush.msra.mxu0 0.0
    %1468 = vmatpush.msra.mxu0 0.0
    %1469 = vmatpush.msra.mxu0 0.0
    %1470 = vmatpush.msra.mxu0 %v1450
    %1471 = vmatmul.f32.gmra.mxu0 %v1453
    %v1472 = vpop.f32.mrf.mxu0
    %v1473 = vadd.f32 0.0, %v1472
    %1474 = vdwg.mxu0
    %1475 = vrot.lane.b32.xlu0 %v1230, 112
    %v1476 = vpop.permute.xlu0 %1475
    %1477 = vrot.lane.b32.xlu0 %v1230, 80
    %v1478 = vpop.permute.xlu0 %1477
    %v1479 = vsel %vm552, %v1476, 0
    %v1481 = vsel %vm552, %v1478, 0
    %1483 = vmatpush.xpose.msra.mxu0 0.0
    %1484 = vmatpush.xpose.msra.mxu0 0.0
    %1485 = vmatpush.xpose.msra.mxu0 0.0
    %1486 = vmatpush.xpose.msra.mxu0 0.0
    %1487 = vmatpush.xpose.msra.mxu0 0.0
    %1488 = vmatpush.xpose.msra.mxu0 0.0
    %1489 = vmatpush.xpose.msra.mxu0 0.0
    %1490 = vmatpush.xpose.msra.mxu0 0.0
    %1491 = vmatpush.xpose.msra.mxu0 0.0
    %1492 = vmatpush.xpose.msra.mxu0 0.0
    %1493 = vmatpush.xpose.msra.mxu0 0.0
    %1494 = vmatpush.xpose.msra.mxu0 0.0
    %1495 = vmatpush.xpose.msra.mxu0 0.0
    %1496 = vmatpush.xpose.msra.mxu0 0.0
    %1497 = vmatpush.xpose.msra.mxu0 0.0
    %1498 = vmatpush.xpose.msra.mxu0 %v1481
    %1499 = vmatmul.f32.gmra.mxu0 %v1479
    %v1500 = vpop.f32.mrf.mxu0
    %v1501 = vadd.f32 0.0, %v1500
    %1502 = vdwg.mxu0
    %v1503 = vmul.f32 %v1501, 0.25
    %v1504 = vadd.f32 %v1503, %v744
    %v1505 = vsel %vm580, %v1504, -inf
    %1506 = vmax.xlane.f32.xlu0 %v1505
    %v1507 = vpop.xlane.xlu0 %1506
    %v1508 = vsub.f32 %v1504, %v1507
    %v1509 = vmul.f32 %v1508, 1.442695
    %v1510 = vpow.pop %v1509
    %v1511 = vsel %vm580, %v1510, 0.0
    %1512 = vadd.xlane.f32.xlu0 %v1511
    %v1513 = vpop.xlane.xlu0 %1512
    %v1514 = vrcp.pop %v1513
    %v1515 = vmul.f32 %v1513, %v1514
    %v1516 = vsub.f32 1.0, %v1515
    %v1517 = vmul.f32 %v1514, %v1516
    %v1518 = vadd.f32 %v1514, %v1517
    %vm1519 = vweird.f32 %v1513
    %vm1520 = vweird.f32 %v1514
    %vm1521 = vmor %vm1519, %vm1520
    %v1522 = vsel %vm1521, %v1514, %v1518
    %v1523 = vand.u32 2147483647, %v1513
    %vm1524 = vcmp.eq.f32.partialorder %v1523, 8.507059e+37
    %v1525 = vand.u32 %v1513, 2147483648
    %v1526 = vor.u32 1.1754944e-38, %v1525
    %v1527 = vsel %vm1524, %v1526, %v1522
    %v1528 = vmul.f32 %v1510, %v1527
    %1529 = vrot.lane.b32.xlu0 %v1230, 48
    %v1530 = vpop.permute.xlu0 %1529
    %v1533 = vsel %vm580, %v1528, 0
    %1535 = vmatpush.msra.mxu0 0.0
    %1536 = vmatpush.msra.mxu0 0.0
    %1537 = vmatpush.msra.mxu0 0.0
    %1538 = vmatpush.msra.mxu0 0.0
    %1539 = vmatpush.msra.mxu0 0.0
    %1540 = vmatpush.msra.mxu0 0.0
    %1541 = vmatpush.msra.mxu0 0.0
    %1542 = vmatpush.msra.mxu0 0.0
    %1543 = vmatpush.msra.mxu0 0.0
    %1544 = vmatpush.msra.mxu0 0.0
    %1545 = vmatpush.msra.mxu0 0.0
    %1546 = vmatpush.msra.mxu0 0.0
    %1547 = vmatpush.msra.mxu0 0.0
    %1548 = vmatpush.msra.mxu0 0.0
    %1549 = vmatpush.msra.mxu0 0.0
    %1550 = vmatpush.msra.mxu0 %v1530
    %1551 = vmatmul.f32.gmra.mxu0 %v1533
    %v1552 = vpop.f32.mrf.mxu0
    %v1553 = vadd.f32 0.0, %v1552
    %1554 = vdwg.mxu0
    %1556 = vrot.lane.b32.xlu0 %v1553, 16
    %v1557 = vpop.permute.xlu0 %1556
    %v1559 = vsel %vm552, %v1473, %v1557
    %s1560 = scalar_lea.vmem %s25, 32
    %v1561 = vld [vmem:[%s1560] sm:$0xff]
    %v1562 = vld [vmem:[%s1560 + $0x8] sm:$0xff]
    %v1563 = vld [vmem:[%s1560 + $0x10] sm:$0xff]
    %v1564 = vld [vmem:[%s1560 + $0x18] sm:$0xff]
    %s1565 = scalar_lea.vmem %s27, 1
    %v1566 = vld [vmem:[%s1565] sm:$0x1]
    %v1568 = vperm.slane %v1566, 0
    %v1571 = vsel %vm447, %v1395, 0
    %v1574 = vsel %vm447, %v1559, 0
    %1576 = vmatpush.msra.mxu0 0.0
    %1577 = vmatpush.msra.mxu0 0.0
    %1578 = vmatpush.msra.mxu0 0.0
    %1579 = vmatpush.msra.mxu0 0.0
    %1580 = vmatpush.msra.mxu0 0.0
    %1581 = vmatpush.msra.mxu0 0.0
    %1582 = vmatpush.msra.mxu0 0.0
    %1583 = vmatpush.msra.mxu0 0.0
    %1584 = vmatpush.msra.mxu0 0.0
    %1585 = vmatpush.msra.mxu0 0.0
    %1586 = vmatpush.msra.mxu0 0.0
    %1587 = vmatpush.msra.mxu0 0.0
    %1588 = vmatpush.msra.mxu0 %v1564
    %1589 = vmatpush.msra.mxu0 %v1563
    %1590 = vmatpush.msra.mxu0 %v1562
    %1591 = vmatpush.msra.mxu0 %v1561
    %1592 = vmatmul.f32.gmra.mxu0 %v1571
    %v1593 = vpop.f32.mrf.mxu0
    %v1594 = vadd.f32 %v1568, %v1593
    %1595 = vmatmul.f32.gmra.mxu0 %v1574
    %v1596 = vpop.f32.mrf.mxu0
    %v1597 = vadd.f32 %v1568, %v1596
    %1598 = vdwg.mxu0
    %v1599 = vadd.f32 %v1191, %v1594
    %v1600 = vadd.f32 %v1192, %v1597
    %s1601 = scalar_lea.vmem %s29, 1
    %v1602 = vld [vmem:[%s1601] sm:$0x1]
    %s1603 = scalar_lea.vmem %s31, 1
    %v1604 = vld [vmem:[%s1603] sm:$0x1]
    %v1605 = vsel %vm447, %v1599, 0.0
    %1606 = vadd.xlane.f32.xlu0 %v1605
    %v1607 = vpop.xlane.xlu0 %1606
    %v1608 = vsel %vm447, %v1600, 0.0
    %1609 = vadd.xlane.f32.xlu0 %v1608
    %v1610 = vpop.xlane.xlu0 %1609
    %v1611 = vmul.f32 %v1607, %v460
    %v1612 = vmul.f32 %v1610, %v460
    %v1613 = vsub.f32 %v1599, %v1611
    %v1614 = vsub.f32 %v1600, %v1612
    %v1615 = vmul.f32 %v1613, %v1613
    %v1616 = vmul.f32 %v1614, %v1614
    %v1617 = vsel %vm447, %v1615, 0.0
    %1618 = vadd.xlane.f32.xlu0 %v1617
    %v1619 = vpop.xlane.xlu0 %1618
    %v1620 = vsel %vm447, %v1616, 0.0
    %1621 = vadd.xlane.f32.xlu0 %v1620
    %v1622 = vpop.xlane.xlu0 %1621
    %v1623 = vmul.f32 %v1619, %v460
    %v1624 = vmul.f32 %v1622, %v460
    %v1625 = vadd.f32 %v1623, 1e-05
    %v1626 = vadd.f32 %v1624, 1e-05
    %v1627 = vrsqrt.pop %v1625
    %v1628 = vmul.f32 %v1627, %v1625
    %v1629 = vmul.f32 %v1628, %v1627
    %v1630 = vmul.f32 0.5, %v1629
    %v1631 = vsub.f32 1.5, %v1630
    %v1632 = vmul.f32 %v1627, %v1631
    %vm1633 = vweird.f32 %v1625
    %vm1634 = vweird.f32 %v1627
    %vm1635 = vmor %vm1633, %vm1634
    %v1636 = vsel %vm1635, %v1627, %v1632
    %v1637 = vrsqrt.pop %v1626
    %v1638 = vmul.f32 %v1637, %v1626
    %v1639 = vmul.f32 %v1638, %v1637
    %v1640 = vmul.f32 0.5, %v1639
    %v1641 = vsub.f32 1.5, %v1640
    %v1642 = vmul.f32 %v1637, %v1641
    %vm1643 = vweird.f32 %v1626
    %vm1644 = vweird.f32 %v1637
    %vm1645 = vmor %vm1643, %vm1644
    %v1646 = vsel %vm1645, %v1637, %v1642
    %v1647 = vmul.f32 %v1613, %v1636
    %v1648 = vmul.f32 %v1614, %v1646
    %v1650 = vperm.slane %v1602, 0
    %v1652 = vmul.f32 %v1647, %v1650
    %v1653 = vmul.f32 %v1648, %v1650
    %v1655 = vperm.slane %v1604, 0
    %v1657 = vadd.f32 %v1652, %v1655
    %v1658 = vadd.f32 %v1653, %v1655
    %s1659 = scalar_lea.vmem %s33, 32
    %v1660 = vld [vmem:[%s1659] sm:$0xff]
    %v1661 = vld [vmem:[%s1659 + $0x8] sm:$0xff]
    %v1662 = vld [vmem:[%s1659 + $0x10] sm:$0xff]
    %v1663 = vld [vmem:[%s1659 + $0x18] sm:$0xff]
    %s1664 = scalar_lea.vmem %s35, 1
    %v1665 = vld [vmem:[%s1664] sm:$0x1]
    %v1667 = vperm.slane %v1665, 0
    %v1670 = vsel %vm447, %v1657, 0
    %v1673 = vsel %vm447, %v1658, 0
    %1675 = vmatpush.msra.mxu0 0.0
    %1676 = vmatpush.msra.mxu0 0.0
    %1677 = vmatpush.msra.mxu0 0.0
    %1678 = vmatpush.msra.mxu0 0.0
    %1679 = vmatpush.msra.mxu0 0.0
    %1680 = vmatpush.msra.mxu0 0.0
    %1681 = vmatpush.msra.mxu0 0.0
    %1682 = vmatpush.msra.mxu0 0.0
    %1683 = vmatpush.msra.mxu0 0.0
    %1684 = vmatpush.msra.mxu0 0.0
    %1685 = vmatpush.msra.mxu0 0.0
    %1686 = vmatpush.msra.mxu0 0.0
    %1687 = vmatpush.msra.mxu0 %v1663
    %1688 = vmatpush.msra.mxu0 %v1662
    %1689 = vmatpush.msra.mxu0 %v1661
    %1690 = vmatpush.msra.mxu0 %v1660
    %1691 = vmatmul.f32.gmra.mxu0 %v1670
    %v1692 = vpop.f32.mrf.mxu0
    %v1693 = vadd.f32 %v1667, %v1692
    %1694 = vmatmul.f32.gmra.mxu0 %v1673
    %v1695 = vpop.f32.mrf.mxu0
    %v1696 = vadd.f32 %v1667, %v1695
    %1697 = vdwg.mxu0
    %v1698 = vmul.f32 %v1693, 0.5
    %v1699 = vmul.f32 %v1696, 0.5
    %v1700 = vmul.f32 %v1693, 0.70710677
    %v1701 = vmul.f32 %v1696, 0.70710677
    %v1702 = vand.u32 2147483647, %v1700
    %v1703 = vand.u32 2147483647, %v1701
    %v1704 = vmul.f32 %v1702, 0.3275911
    %v1705 = vmul.f32 %v1703, 0.3275911
    %v1706 = vadd.f32 %v1704, 1.0
    %v1707 = vadd.f32 %v1705, 1.0
    %v1708 = vrcp.pop %v1706
    %v1709 = vmul.f32 %v1706, %v1708
    %v1710 = vsub.f32 1.0, %v1709
    %v1711 = vmul.f32 %v1708, %v1710
    %v1712 = vadd.f32 %v1708, %v1711
    %vm1713 = vweird.f32 %v1706
    %vm1714 = vweird.f32 %v1708
    %vm1715 = vmor %vm1713, %vm1714
    %v1716 = vsel %vm1715, %v1708, %v1712
    %v1717 = vand.u32 2147483647, %v1706
    %vm1718 = vcmp.eq.f32.partialorder %v1717, 8.507059e+37
    %v1719 = vand.u32 %v1706, 2147483648
    %v1720 = vor.u32 1.1754944e-38, %v1719
    %v1721 = vsel %vm1718, %v1720, %v1716
    %v1722 = vmul.f32 1.0, %v1721
    %v1723 = vrcp.pop %v1707
    %v1724 = vmul.f32 %v1707, %v1723
    %v1725 = vsub.f32 1.0, %v1724
    %v1726 = vmul.f32 %v1723, %v1725
    %v1727 = vadd.f32 %v1723, %v1726
    %vm1728 = vweird.f32 %v1707
    %vm1729 = vweird.f32 %v1723
    %vm1730 = vmor %vm1728, %vm1729
    %v1731 = vsel %vm1730, %v1723, %v1727
    %v1732 = vand.u32 2147483647, %v1707
    %vm1733 = vcmp.eq.f32.partialorder %v1732, 8.507059e+37
    %v1734 = vand.u32 %v1707, 2147483648
    %v1735 = vor.u32 1.1754944e-38, %v1734
    %v1736 = vsel %vm1733, %v1735, %v1731
    %v1737 = vmul.f32 1.0, %v1736
    %v1738 = vmul.f32 %v1722, 1.0614054
    %v1739 = vmul.f32 %v1737, 1.0614054
    %v1740 = vsub.f32 %v1738, 1.4531521
    %v1741 = vsub.f32 %v1739, 1.4531521
    %v1742 = vmul.f32 %v1740, %v1722
    %v1743 = vmul.f32 %v1741, %v1737
    %v1744 = vadd.f32 %v1742, 1.4214138
    %v1745 = vadd.f32 %v1743, 1.4214138
    %v1746 = vmul.f32 %v1744, %v1722
    %v1747 = vmul.f32 %v1745, %v1737
    %v1748 = vsub.f32 %v1746, 0.28449672
    %v1749 = vsub.f32 %v1747, 0.28449672
    %v1750 = vmul.f32 %v1748, %v1722
    %v1751 = vmul.f32 %v1749, %v1737
    %v1752 = vadd.f32 %v1750, 0.2548296
    %v1753 = vadd.f32 %v1751, 0.2548296
    %v1754 = vmul.f32 %v1752, %v1722
    %v1755 = vmul.f32 %v1753, %v1737
    %v1756 = vmul.f32 %v1702, %v1702
    %v1757 = vmul.f32 %v1703, %v1703
    %v1758 = vsub.f32 0.0, %v1756
    %v1759 = vsub.f32 0.0, %v1757
    %v1760 = vmul.f32 %v1758, 1.442695
    %v1761 = vpow.pop %v1760
    %v1762 = vmul.f32 %v1759, 1.442695
    %v1763 = vpow.pop %v1762
    %v1764 = vmul.f32 %v1754, %v1761
    %v1765 = vmul.f32 %v1755, %v1763
    %v1766 = vsub.f32 1.0, %v1764
    %v1767 = vsub.f32 1.0, %v1765
    %vm1768 = vcmp.ge.f32.partialorder %v1700, 0.0
    %vm1769 = vcmp.ge.f32.partialorder %v1701, 0.0
    %v1770 = vsub.f32 0.0, %v1766
    %v1771 = vsub.f32 0.0, %v1767
    %v1772 = vsel %vm1768, %v1766, %v1770
    %v1773 = vsel %vm1769, %v1767, %v1771
    %v1774 = vadd.f32 %v1772, 1.0
    %v1775 = vadd.f32 %v1773, 1.0
    %v1776 = vmul.f32 %v1698, %v1774
    %v1777 = vmul.f32 %v1699, %v1775
    %s1778 = scalar_lea.vmem %s37, 64
    %v1779 = vld [vmem:[%s1778] sm:$0xff]
    %v1780 = vld [vmem:[%s1778 + $0x8] sm:$0xff]
    %v1781 = vld [vmem:[%s1778 + $0x10] sm:$0xff]
    %v1782 = vld [vmem:[%s1778 + $0x18] sm:$0xff]
    %v1783 = vld [vmem:[%s1778 + $0x20] sm:$0xff]
    %v1784 = vld [vmem:[%s1778 + $0x28] sm:$0xff]
    %v1785 = vld [vmem:[%s1778 + $0x30] sm:$0xff]
    %v1786 = vld [vmem:[%s1778 + $0x38] sm:$0xff]
    %s1787 = scalar_lea.vmem %s39, 1
    %v1788 = vld [vmem:[%s1787] sm:$0x1]
    %v1790 = vperm.slane %v1788, 0
    %v1793 = vsel %vm1105, %v1776, 0
    %v1796 = vsel %vm1105, %v1777, 0
    %1798 = vmatpush.msra.mxu0 0.0
    %1799 = vmatpush.msra.mxu0 0.0
    %1800 = vmatpush.msra.mxu0 0.0
    %1801 = vmatpush.msra.mxu0 0.0
    %1802 = vmatpush.msra.mxu0 0.0
    %1803 = vmatpush.msra.mxu0 0.0
    %1804 = vmatpush.msra.mxu0 0.0
    %1805 = vmatpush.msra.mxu0 0.0
    %1806 = vmatpush.msra.mxu0 %v1786
    %1807 = vmatpush.msra.mxu0 %v1785
    %1808 = vmatpush.msra.mxu0 %v1784
    %1809 = vmatpush.msra.mxu0 %v1783
    %1810 = vmatpush.msra.mxu0 %v1782
    %1811 = vmatpush.msra.mxu0 %v1781
    %1812 = vmatpush.msra.mxu0 %v1780
    %1813 = vmatpush.msra.mxu0 %v1779
    %1814 = vmatmul.f32.gmra.mxu0 %v1793
    %v1815 = vpop.f32.mrf.mxu0
    %v1816 = vadd.f32 %v1790, %v1815
    %1817 = vmatmul.f32.gmra.mxu0 %v1796
    %v1818 = vpop.f32.mrf.mxu0
    %v1819 = vadd.f32 %v1790, %v1818
    %1820 = vdwg.mxu0
    %v1821 = vadd.f32 %v1657, %v1816
    %v1822 = vadd.f32 %v1658, %v1819
    %s1823 = scalar_lea.vmem %s41, 1
    %v1824 = vld [vmem:[%s1823] sm:$0x1]
    %s1825 = scalar_lea.vmem %s43, 1
    %v1826 = vld [vmem:[%s1825] sm:$0x1]
    %v1827 = vsel %vm447, %v1821, 0.0
    %1828 = vadd.xlane.f32.xlu0 %v1827
    %v1829 = vpop.xlane.xlu0 %1828
    %v1830 = vsel %vm447, %v1822, 0.0
    %1831 = vadd.xlane.f32.xlu0 %v1830
    %v1832 = vpop.xlane.xlu0 %1831
    %v1833 = vmul.f32 %v1829, %v460
    %v1834 = vmul.f32 %v1832, %v460
    %v1835 = vsub.f32 %v1821, %v1833
    %v1836 = vsub.f32 %v1822, %v1834
    %v1837 = vmul.f32 %v1835, %v1835
    %v1838 = vmul.f32 %v1836, %v1836
    %v1839 = vsel %vm447, %v1837, 0.0
    %1840 = vadd.xlane.f32.xlu0 %v1839
    %v1841 = vpop.xlane.xlu0 %1840
    %v1842 = vsel %vm447, %v1838, 0.0
    %1843 = vadd.xlane.f32.xlu0 %v1842
    %v1844 = vpop.xlane.xlu0 %1843
    %v1845 = vmul.f32 %v1841, %v460
    %v1846 = vmul.f32 %v1844, %v460
    %v1847 = vadd.f32 %v1845, 1e-05
    %v1848 = vadd.f32 %v1846, 1e-05
    %v1849 = vrsqrt.pop %v1847
    %v1850 = vmul.f32 %v1849, %v1847
    %v1851 = vmul.f32 %v1850, %v1849
    %v1852 = vmul.f32 0.5, %v1851
    %v1853 = vsub.f32 1.5, %v1852
    %v1854 = vmul.f32 %v1849, %v1853
    %vm1855 = vweird.f32 %v1847
    %vm1856 = vweird.f32 %v1849
    %vm1857 = vmor %vm1855, %vm1856
    %v1858 = vsel %vm1857, %v1849, %v1854
    %v1859 = vrsqrt.pop %v1848
    %v1860 = vmul.f32 %v1859, %v1848
    %v1861 = vmul.f32 %v1860, %v1859
    %v1862 = vmul.f32 0.5, %v1861
    %v1863 = vsub.f32 1.5, %v1862
    %v1864 = vmul.f32 %v1859, %v1863
    %vm1865 = vweird.f32 %v1848
    %vm1866 = vweird.f32 %v1859
    %vm1867 = vmor %vm1865, %vm1866
    %v1868 = vsel %vm1867, %v1859, %v1864
    %v1869 = vmul.f32 %v1835, %v1858
    %v1870 = vmul.f32 %v1836, %v1868
    %v1872 = vperm.slane %v1824, 0
    %v1874 = vmul.f32 %v1869, %v1872
    %v1875 = vmul.f32 %v1870, %v1872
    %v1877 = vperm.slane %v1826, 0
    %v1879 = vadd.f32 %v1874, %v1877
    %v1880 = vadd.f32 %v1875, %v1877
    %v1881 = vld [vmem:[%s5] sm:$0xff]
    %v1882 = vld [vmem:[%s5 + $0x8] sm:$0xff]
    %v1883 = vld [vmem:[%s15] sm:$0xff]
    %1884 = vset.pattern.permute.xlu0 0
    %1885 = vperm.xlu0 %1884, %v1881
    %v1886 = vpop.permute.xlu0 %1885
    %1887 = vset.pattern.permute.xlu0 0
    %1888 = vperm.xlu0 %1887, %v1882
    %v1889 = vpop.permute.xlu0 %1888
    %vm1890 = vcmp.eq.s32.totalorder %v409, %v1886
    %vm1891 = vcmp.eq.s32.totalorder %v409, %v1889
    %v1892 = vsel %vm1890, 1, 0
    %v1893 = vsel %vm1891, 1, 0
    %v1894 = vcvt.s32.f32 %v1892
    %v1895 = vcvt.s32.f32 %v1893
    %1896 = vmatpush.msra.mxu0 %v406
    %1897 = vmatpush.msra.mxu0 %v405
    %1898 = vmatpush.msra.mxu0 %v404
    %1899 = vmatpush.msra.mxu0 %v403
    %1900 = vmatpush.msra.mxu0 %v402
    %1901 = vmatpush.msra.mxu0 %v401
    %1902 = vmatpush.msra.mxu0 %v400
    %1903 = vmatpush.msra.mxu0 %v399
    %1904 = vmatpush.msra.mxu0 %v398
    %1905 = vmatpush.msra.mxu0 %v397
    %1906 = vmatpush.msra.mxu0 %v396
    %1907 = vmatpush.msra.mxu0 %v395
    %1908 = vmatpush.msra.mxu0 %v394
    %1909 = vmatpush.msra.mxu0 %v393
    %1910 = vmatpush.msra.mxu0 %v392
    %1911 = vmatpush.msra.mxu0 %v391
    %1912 = vmatmul.f32.gmra.mxu0 %v1894
    %v1913 = vpop.f32.mrf.mxu0
    %v1914 = vadd.f32 %v1883, %v1913
    %1915 = vmatmul.f32.gmra.mxu0 %v1895
    %v1916 = vpop.f32.mrf.mxu0
    %v1917 = vadd.f32 %v1883, %v1916
    %1918 = vdwg.mxu0
    %v1919 = vld [vmem:[#allocation2] sm:$0x1]
    %v1920 = vld [vmem:[#allocation5] sm:$0x1]
    %v1921 = vsel %vm447, %v1914, 0.0
    %1922 = vadd.xlane.f32.xlu0 %v1921
    %v1923 = vpop.xlane.xlu0 %1922
    %v1924 = vsel %vm447, %v1917, 0.0
    %1925 = vadd.xlane.f32.xlu0 %v1924
    %v1926 = vpop.xlane.xlu0 %1925
    %v1927 = vmul.f32 %v1923, %v460
    %v1928 = vmul.f32 %v1926, %v460
    %v1929 = vsub.f32 %v1914, %v1927
    %v1930 = vsub.f32 %v1917, %v1928
    %v1931 = vmul.f32 %v1929, %v1929
    %v1932 = vmul.f32 %v1930, %v1930
    %v1933 = vsel %vm447, %v1931, 0.0
    %1934 = vadd.xlane.f32.xlu0 %v1933
    %v1935 = vpop.xlane.xlu0 %1934
    %v1936 = vsel %vm447, %v1932, 0.0
    %1937 = vadd.xlane.f32.xlu0 %v1936
    %v1938 = vpop.xlane.xlu0 %1937
    %v1939 = vmul.f32 %v1935, %v460
    %v1940 = vmul.f32 %v1938, %v460
    %v1941 = vadd.f32 %v1939, 1e-05
    %v1942 = vadd.f32 %v1940, 1e-05
    %v1943 = vrsqrt.pop %v1941
    %v1944 = vmul.f32 %v1943, %v1941
    %v1945 = vmul.f32 %v1944, %v1943
    %v1946 = vmul.f32 0.5, %v1945
    %v1947 = vsub.f32 1.5, %v1946
    %v1948 = vmul.f32 %v1943, %v1947
    %vm1949 = vweird.f32 %v1941
    %vm1950 = vweird.f32 %v1943
    %vm1951 = vmor %vm1949, %vm1950
    %v1952 = vsel %vm1951, %v1943, %v1948
    %v1953 = vrsqrt.pop %v1942
    %v1954 = vmul.f32 %v1953, %v1942
    %v1955 = vmul.f32 %v1954, %v1953
    %v1956 = vmul.f32 0.5, %v1955
    %v1957 = vsub.f32 1.5, %v1956
    %v1958 = vmul.f32 %v1953, %v1957
    %vm1959 = vweird.f32 %v1942
    %vm1960 = vweird.f32 %v1953
    %vm1961 = vmor %vm1959, %vm1960
    %v1962 = vsel %vm1961, %v1953, %v1958
    %v1963 = vmul.f32 %v1929, %v1952
    %v1964 = vmul.f32 %v1930, %v1962
    %v1966 = vperm.slane %v1919, 0
    %v1968 = vmul.f32 %v1963, %v1966
    %v1969 = vmul.f32 %v1964, %v1966
    %v1971 = vperm.slane %v1920, 0
    %v1973 = vadd.f32 %v1968, %v1971
    %v1974 = vadd.f32 %v1969, %v1971
    %v1975 = vlaneseq
    %v1976 = vshrl.u32 %v1975, 7
    %vm1977 = vcmp.ge.s32.totalorder %v1976, %v409
    %v1978 = vsel %vm1977, 0.0, -1e+09
    %v1979 = vld [vmem:[%s9] sm:$0x3]
    %v1980 = vsub.f32 1.0, %v1979
    %v1981 = vmul.f32 %v1980, -1e+09
    %v1982 = vld [vmem:[%s49] sm:$0xff]
    %v1983 = vld [vmem:[%s49 + $0x8] sm:$0xff]
    %v1984 = vld [vmem:[%s49 + $0x10] sm:$0xff]
    %v1985 = vld [vmem:[%s49 + $0x18] sm:$0xff]
    %v1986 = vld [vmem:[%s51] sm:$0x1]
    %v1988 = vperm.slane %v1986, 0
    %v1991 = vsel %vm447, %v1973, 0
    %v1994 = vsel %vm447, %v1974, 0
    %1996 = vmatpush.msra.mxu0 0.0
    %1997 = vmatpush.msra.mxu0 0.0
    %1998 = vmatpush.msra.mxu0 0.0
    %1999 = vmatpush.msra.mxu0 0.0
    %2000 = vmatpush.msra.mxu0 0.0
    %2001 = vmatpush.msra.mxu0 0.0
    %2002 = vmatpush.msra.mxu0 0.0
    %2003 = vmatpush.msra.mxu0 0.0
    %2004 = vmatpush.msra.mxu0 0.0
    %2005 = vmatpush.msra.mxu0 0.0
    %2006 = vmatpush.msra.mxu0 0.0
    %2007 = vmatpush.msra.mxu0 0.0
    %2008 = vmatpush.msra.mxu0 %v1985
    %2009 = vmatpush.msra.mxu0 %v1984
    %2010 = vmatpush.msra.mxu0 %v1983
    %2011 = vmatpush.msra.mxu0 %v1982
    %2012 = vmatmul.f32.gmra.mxu0 %v1991
    %v2013 = vpop.f32.mrf.mxu0
    %v2014 = vadd.f32 %v1988, %v2013
    %2015 = vmatmul.f32.gmra.mxu0 %v1994
    %v2016 = vpop.f32.mrf.mxu0
    %v2017 = vadd.f32 %v1988, %v2016
    %2018 = vdwg.mxu0
    %2020 = vrot.lane.b32.xlu0 %v2014, 96
    %v2021 = vpop.permute.xlu0 %2020
    %v2022 = vsel %vm552, %v2014, 0
    %v2024 = vsel %vm552, %v2021, 0
    %2026 = vmatpush.xpose.msra.mxu0 0.0
    %2027 = vmatpush.xpose.msra.mxu0 0.0
    %2028 = vmatpush.xpose.msra.mxu0 0.0
    %2029 = vmatpush.xpose.msra.mxu0 0.0
    %2030 = vmatpush.xpose.msra.mxu0 0.0
    %2031 = vmatpush.xpose.msra.mxu0 0.0
    %2032 = vmatpush.xpose.msra.mxu0 0.0
    %2033 = vmatpush.xpose.msra.mxu0 0.0
    %2034 = vmatpush.xpose.msra.mxu0 0.0
    %2035 = vmatpush.xpose.msra.mxu0 0.0
    %2036 = vmatpush.xpose.msra.mxu0 0.0
    %2037 = vmatpush.xpose.msra.mxu0 0.0
    %2038 = vmatpush.xpose.msra.mxu0 0.0
    %2039 = vmatpush.xpose.msra.mxu0 0.0
    %2040 = vmatpush.xpose.msra.mxu0 0.0
    %2041 = vmatpush.xpose.msra.mxu0 %v2024
    %2042 = vmatmul.f32.gmra.mxu0 %v2022
    %v2043 = vpop.f32.mrf.mxu0
    %v2044 = vadd.f32 0.0, %v2043
    %2045 = vdwg.mxu0
    %v2046 = vmul.f32 %v2044, 0.25
    %v2047 = vadd.f32 %v2046, %v1978
    %v2048 = vsel %vm580, %v2047, -inf
    %2049 = vmax.xlane.f32.xlu0 %v2048
    %v2050 = vpop.xlane.xlu0 %2049
    %v2051 = vsub.f32 %v2047, %v2050
    %v2052 = vmul.f32 %v2051, 1.442695
    %v2053 = vpow.pop %v2052
    %v2054 = vsel %vm580, %v2053, 0.0
    %2055 = vadd.xlane.f32.xlu0 %v2054
    %v2056 = vpop.xlane.xlu0 %2055
    %v2057 = vrcp.pop %v2056
    %v2058 = vmul.f32 %v2056, %v2057
    %v2059 = vsub.f32 1.0, %v2058
    %v2060 = vmul.f32 %v2057, %v2059
    %v2061 = vadd.f32 %v2057, %v2060
    %vm2062 = vweird.f32 %v2056
    %vm2063 = vweird.f32 %v2057
    %vm2064 = vmor %vm2062, %vm2063
    %v2065 = vsel %vm2064, %v2057, %v2061
    %v2066 = vand.u32 2147483647, %v2056
    %vm2067 = vcmp.eq.f32.partialorder %v2066, 8.507059e+37
    %v2068 = vand.u32 %v2056, 2147483648
    %v2069 = vor.u32 1.1754944e-38, %v2068
    %v2070 = vsel %vm2067, %v2069, %v2065
    %v2071 = vmul.f32 %v2053, %v2070
    %2072 = vrot.lane.b32.xlu0 %v2014, 64
    %v2073 = vpop.permute.xlu0 %2072
    %v2076 = vsel %vm580, %v2071, 0
    %2078 = vmatpush.msra.mxu0 0.0
    %2079 = vmatpush.msra.mxu0 0.0
    %2080 = vmatpush.msra.mxu0 0.0
    %2081 = vmatpush.msra.mxu0 0.0
    %2082 = vmatpush.msra.mxu0 0.0
    %2083 = vmatpush.msra.mxu0 0.0
    %2084 = vmatpush.msra.mxu0 0.0
    %2085 = vmatpush.msra.mxu0 0.0
    %2086 = vmatpush.msra.mxu0 0.0
    %2087 = vmatpush.msra.mxu0 0.0
    %2088 = vmatpush.msra.mxu0 0.0
    %2089 = vmatpush.msra.mxu0 0.0
    %2090 = vmatpush.msra.mxu0 0.0
    %2091 = vmatpush.msra.mxu0 0.0
    %2092 = vmatpush.msra.mxu0 0.0
    %2093 = vmatpush.msra.mxu0 %v2073
    %2094 = vmatmul.f32.gmra.mxu0 %v2076
    %v2095 = vpop.f32.mrf.mxu0
    %v2096 = vadd.f32 0.0, %v2095
    %2097 = vdwg.mxu0
    %2098 = vrot.lane.b32.xlu0 %v2014, 112
    %v2099 = vpop.permute.xlu0 %2098
    %2100 = vrot.lane.b32.xlu0 %v2014, 80
    %v2101 = vpop.permute.xlu0 %2100
    %v2102 = vsel %vm552, %v2099, 0
    %v2104 = vsel %vm552, %v2101, 0
    %2106 = vmatpush.xpose.msra.mxu0 0.0
    %2107 = vmatpush.xpose.msra.mxu0 0.0
    %2108 = vmatpush.xpose.msra.mxu0 0.0
    %2109 = vmatpush.xpose.msra.mxu0 0.0
    %2110 = vmatpush.xpose.msra.mxu0 0.0
    %2111 = vmatpush.xpose.msra.mxu0 0.0
    %2112 = vmatpush.xpose.msra.mxu0 0.0
    %2113 = vmatpush.xpose.msra.mxu0 0.0
    %2114 = vmatpush.xpose.msra.mxu0 0.0
    %2115 = vmatpush.xpose.msra.mxu0 0.0
    %2116 = vmatpush.xpose.msra.mxu0 0.0
    %2117 = vmatpush.xpose.msra.mxu0 0.0
    %2118 = vmatpush.xpose.msra.mxu0 0.0
    %2119 = vmatpush.xpose.msra.mxu0 0.0
    %2120 = vmatpush.xpose.msra.mxu0 0.0
    %2121 = vmatpush.xpose.msra.mxu0 %v2104
    %2122 = vmatmul.f32.gmra.mxu0 %v2102
    %v2123 = vpop.f32.mrf.mxu0
    %v2124 = vadd.f32 0.0, %v2123
    %2125 = vdwg.mxu0
    %v2126 = vmul.f32 %v2124, 0.25
    %v2127 = vadd.f32 %v2126, %v1978
    %v2128 = vsel %vm580, %v2127, -inf
    %2129 = vmax.xlane.f32.xlu0 %v2128
    %v2130 = vpop.xlane.xlu0 %2129
    %v2131 = vsub.f32 %v2127, %v2130
    %v2132 = vmul.f32 %v2131, 1.442695
    %v2133 = vpow.pop %v2132
    %v2134 = vsel %vm580, %v2133, 0.0
    %2135 = vadd.xlane.f32.xlu0 %v2134
    %v2136 = vpop.xlane.xlu0 %2135
    %v2137 = vrcp.pop %v2136
    %v2138 = vmul.f32 %v2136, %v2137
    %v2139 = vsub.f32 1.0, %v2138
    %v2140 = vmul.f32 %v2137, %v2139
    %v2141 = vadd.f32 %v2137, %v2140
    %vm2142 = vweird.f32 %v2136
    %vm2143 = vweird.f32 %v2137
    %vm2144 = vmor %vm2142, %vm2143
    %v2145 = vsel %vm2144, %v2137, %v2141
    %v2146 = vand.u32 2147483647, %v2136
    %vm2147 = vcmp.eq.f32.partialorder %v2146, 8.507059e+37
    %v2148 = vand.u32 %v2136, 2147483648
    %v2149 = vor.u32 1.1754944e-38, %v2148
    %v2150 = vsel %vm2147, %v2149, %v2145
    %v2151 = vmul.f32 %v2133, %v2150
    %2152 = vrot.lane.b32.xlu0 %v2014, 48
    %v2153 = vpop.permute.xlu0 %2152
    %v2156 = vsel %vm580, %v2151, 0
    %2158 = vmatpush.msra.mxu0 0.0
    %2159 = vmatpush.msra.mxu0 0.0
    %2160 = vmatpush.msra.mxu0 0.0
    %2161 = vmatpush.msra.mxu0 0.0
    %2162 = vmatpush.msra.mxu0 0.0
    %2163 = vmatpush.msra.mxu0 0.0
    %2164 = vmatpush.msra.mxu0 0.0
    %2165 = vmatpush.msra.mxu0 0.0
    %2166 = vmatpush.msra.mxu0 0.0
    %2167 = vmatpush.msra.mxu0 0.0
    %2168 = vmatpush.msra.mxu0 0.0
    %2169 = vmatpush.msra.mxu0 0.0
    %2170 = vmatpush.msra.mxu0 0.0
    %2171 = vmatpush.msra.mxu0 0.0
    %2172 = vmatpush.msra.mxu0 0.0
    %2173 = vmatpush.msra.mxu0 %v2153
    %2174 = vmatmul.f32.gmra.mxu0 %v2156
    %v2175 = vpop.f32.mrf.mxu0
    %v2176 = vadd.f32 0.0, %v2175
    %2177 = vdwg.mxu0
    %2179 = vrot.lane.b32.xlu0 %v2176, 16
    %v2180 = vpop.permute.xlu0 %2179
    %v2182 = vsel %vm552, %v2096, %v2180
    %2184 = vrot.lane.b32.xlu0 %v2017, 96
    %v2185 = vpop.permute.xlu0 %2184
    %v2186 = vsel %vm552, %v2017, 0
    %v2188 = vsel %vm552, %v2185, 0
    %2190 = vmatpush.xpose.msra.mxu0 0.0
    %2191 = vmatpush.xpose.msra.mxu0 0.0
    %2192 = vmatpush.xpose.msra.mxu0 0.0
    %2193 = vmatpush.xpose.msra.mxu0 0.0
    %2194 = vmatpush.xpose.msra.mxu0 0.0
    %2195 = vmatpush.xpose.msra.mxu0 0.0
    %2196 = vmatpush.xpose.msra.mxu0 0.0
    %2197 = vmatpush.xpose.msra.mxu0 0.0
    %2198 = vmatpush.xpose.msra.mxu0 0.0
    %2199 = vmatpush.xpose.msra.mxu0 0.0
    %2200 = vmatpush.xpose.msra.mxu0 0.0
    %2201 = vmatpush.xpose.msra.mxu0 0.0
    %2202 = vmatpush.xpose.msra.mxu0 0.0
    %2203 = vmatpush.xpose.msra.mxu0 0.0
    %2204 = vmatpush.xpose.msra.mxu0 0.0
    %2205 = vmatpush.xpose.msra.mxu0 %v2188
    %2206 = vmatmul.f32.gmra.mxu0 %v2186
    %v2207 = vpop.f32.mrf.mxu0
    %v2208 = vadd.f32 0.0, %v2207
    %2209 = vdwg.mxu0
    %v2210 = vmul.f32 %v2208, 0.25
    %v2211 = vadd.f32 %v2210, %v1978
    %v2212 = vsel %vm580, %v2211, -inf
    %2213 = vmax.xlane.f32.xlu0 %v2212
    %v2214 = vpop.xlane.xlu0 %2213
    %v2215 = vsub.f32 %v2211, %v2214
    %v2216 = vmul.f32 %v2215, 1.442695
    %v2217 = vpow.pop %v2216
    %v2218 = vsel %vm580, %v2217, 0.0
    %2219 = vadd.xlane.f32.xlu0 %v2218
    %v2220 = vpop.xlane.xlu0 %2219
    %v2221 = vrcp.pop %v2220
    %v2222 = vmul.f32 %v2220, %v2221
    %v2223 = vsub.f32 1.0, %v2222
    %v2224 = vmul.f32 %v2221, %v2223
    %v2225 = vadd.f32 %v2221, %v2224
    %vm2226 = vweird.f32 %v2220
    %vm2227 = vweird.f32 %v2221
    %vm2228 = vmor %vm2226, %vm2227
    %v2229 = vsel %vm2228, %v2221, %v2225
    %v2230 = vand.u32 2147483647, %v2220
    %vm2231 = vcmp.eq.f32.partialorder %v2230, 8.507059e+37
    %v2232 = vand.u32 %v2220, 2147483648
    %v2233 = vor.u32 1.1754944e-38, %v2232
    %v2234 = vsel %vm2231, %v2233, %v2229
    %v2235 = vmul.f32 %v2217, %v2234
    %2236 = vrot.lane.b32.xlu0 %v2017, 64
    %v2237 = vpop.permute.xlu0 %2236
    %v2240 = vsel %vm580, %v2235, 0
    %2242 = vmatpush.msra.mxu0 0.0
    %2243 = vmatpush.msra.mxu0 0.0
    %2244 = vmatpush.msra.mxu0 0.0
    %2245 = vmatpush.msra.mxu0 0.0
    %2246 = vmatpush.msra.mxu0 0.0
    %2247 = vmatpush.msra.mxu0 0.0
    %2248 = vmatpush.msra.mxu0 0.0
    %2249 = vmatpush.msra.mxu0 0.0
    %2250 = vmatpush.msra.mxu0 0.0
    %2251 = vmatpush.msra.mxu0 0.0
    %2252 = vmatpush.msra.mxu0 0.0
    %2253 = vmatpush.msra.mxu0 0.0
    %2254 = vmatpush.msra.mxu0 0.0
    %2255 = vmatpush.msra.mxu0 0.0
    %2256 = vmatpush.msra.mxu0 0.0
    %2257 = vmatpush.msra.mxu0 %v2237
    %2258 = vmatmul.f32.gmra.mxu0 %v2240
    %v2259 = vpop.f32.mrf.mxu0
    %v2260 = vadd.f32 0.0, %v2259
    %2261 = vdwg.mxu0
    %2262 = vrot.lane.b32.xlu0 %v2017, 112
    %v2263 = vpop.permute.xlu0 %2262
    %2264 = vrot.lane.b32.xlu0 %v2017, 80
    %v2265 = vpop.permute.xlu0 %2264
    %v2266 = vsel %vm552, %v2263, 0
    %v2268 = vsel %vm552, %v2265, 0
    %2270 = vmatpush.xpose.msra.mxu0 0.0
    %2271 = vmatpush.xpose.msra.mxu0 0.0
    %2272 = vmatpush.xpose.msra.mxu0 0.0
    %2273 = vmatpush.xpose.msra.mxu0 0.0
    %2274 = vmatpush.xpose.msra.mxu0 0.0
    %2275 = vmatpush.xpose.msra.mxu0 0.0
    %2276 = vmatpush.xpose.msra.mxu0 0.0
    %2277 = vmatpush.xpose.msra.mxu0 0.0
    %2278 = vmatpush.xpose.msra.mxu0 0.0
    %2279 = vmatpush.xpose.msra.mxu0 0.0
    %2280 = vmatpush.xpose.msra.mxu0 0.0
    %2281 = vmatpush.xpose.msra.mxu0 0.0
    %2282 = vmatpush.xpose.msra.mxu0 0.0
    %2283 = vmatpush.xpose.msra.mxu0 0.0
    %2284 = vmatpush.xpose.msra.mxu0 0.0
    %2285 = vmatpush.xpose.msra.mxu0 %v2268
    %2286 = vmatmul.f32.gmra.mxu0 %v2266
    %v2287 = vpop.f32.mrf.mxu0
    %v2288 = vadd.f32 0.0, %v2287
    %2289 = vdwg.mxu0
    %v2290 = vmul.f32 %v2288, 0.25
    %v2291 = vadd.f32 %v2290, %v1978
    %v2292 = vsel %vm580, %v2291, -inf
    %2293 = vmax.xlane.f32.xlu0 %v2292
    %v2294 = vpop.xlane.xlu0 %2293
    %v2295 = vsub.f32 %v2291, %v2294
    %v2296 = vmul.f32 %v2295, 1.442695
    %v2297 = vpow.pop %v2296
    %v2298 = vsel %vm580, %v2297, 0.0
    %2299 = vadd.xlane.f32.xlu0 %v2298
    %v2300 = vpop.xlane.xlu0 %2299
    %v2301 = vrcp.pop %v2300
    %v2302 = vmul.f32 %v2300, %v2301
    %v2303 = vsub.f32 1.0, %v2302
    %v2304 = vmul.f32 %v2301, %v2303
    %v2305 = vadd.f32 %v2301, %v2304
    %vm2306 = vweird.f32 %v2300
    %vm2307 = vweird.f32 %v2301
    %vm2308 = vmor %vm2306, %vm2307
    %v2309 = vsel %vm2308, %v2301, %v2305
    %v2310 = vand.u32 2147483647, %v2300
    %vm2311 = vcmp.eq.f32.partialorder %v2310, 8.507059e+37
    %v2312 = vand.u32 %v2300, 2147483648
    %v2313 = vor.u32 1.1754944e-38, %v2312
    %v2314 = vsel %vm2311, %v2313, %v2309
    %v2315 = vmul.f32 %v2297, %v2314
    %2316 = vrot.lane.b32.xlu0 %v2017, 48
    %v2317 = vpop.permute.xlu0 %2316
    %v2320 = vsel %vm580, %v2315, 0
    %2322 = vmatpush.msra.mxu0 0.0
    %2323 = vmatpush.msra.mxu0 0.0
    %2324 = vmatpush.msra.mxu0 0.0
    %2325 = vmatpush.msra.mxu0 0.0
    %2326 = vmatpush.msra.mxu0 0.0
    %2327 = vmatpush.msra.mxu0 0.0
    %2328 = vmatpush.msra.mxu0 0.0
    %2329 = vmatpush.msra.mxu0 0.0
    %2330 = vmatpush.msra.mxu0 0.0
    %2331 = vmatpush.msra.mxu0 0.0
    %2332 = vmatpush.msra.mxu0 0.0
    %2333 = vmatpush.msra.mxu0 0.0
    %2334 = vmatpush.msra.mxu0 0.0
    %2335 = vmatpush.msra.mxu0 0.0
    %2336 = vmatpush.msra.mxu0 0.0
    %2337 = vmatpush.msra.mxu0 %v2317
    %2338 = vmatmul.f32.gmra.mxu0 %v2320
    %v2339 = vpop.f32.mrf.mxu0
    %v2340 = vadd.f32 0.0, %v2339
    %2341 = vdwg.mxu0
    %2343 = vrot.lane.b32.xlu0 %v2340, 16
    %v2344 = vpop.permute.xlu0 %2343
    %v2346 = vsel %vm552, %v2260, %v2344
    %v2347 = vld [vmem:[%s53] sm:$0xff]
    %v2348 = vld [vmem:[%s53 + $0x8] sm:$0xff]
    %v2349 = vld [vmem:[%s53 + $0x10] sm:$0xff]
    %v2350 = vld [vmem:[%s53 + $0x18] sm:$0xff]
    %v2351 = vld [vmem:[%s55] sm:$0x1]
    %v2353 = vperm.slane %v2351, 0
    %v2356 = vsel %vm447, %v2182, 0
    %v2359 = vsel %vm447, %v2346, 0
    %2361 = vmatpush.msra.mxu0 0.0
    %2362 = vmatpush.msra.mxu0 0.0
    %2363 = vmatpush.msra.mxu0 0.0
    %2364 = vmatpush.msra.mxu0 0.0
    %2365 = vmatpush.msra.mxu0 0.0
    %2366 = vmatpush.msra.mxu0 0.0
    %2367 = vmatpush.msra.mxu0 0.0
    %2368 = vmatpush.msra.mxu0 0.0
    %2369 = vmatpush.msra.mxu0 0.0
    %2370 = vmatpush.msra.mxu0 0.0
    %2371 = vmatpush.msra.mxu0 0.0
    %2372 = vmatpush.msra.mxu0 0.0
    %2373 = vmatpush.msra.mxu0 %v2350
    %2374 = vmatpush.msra.mxu0 %v2349
    %2375 = vmatpush.msra.mxu0 %v2348
    %2376 = vmatpush.msra.mxu0 %v2347
    %2377 = vmatmul.f32.gmra.mxu0 %v2356
    %v2378 = vpop.f32.mrf.mxu0
    %v2379 = vadd.f32 %v2353, %v2378
    %2380 = vmatmul.f32.gmra.mxu0 %v2359
    %v2381 = vpop.f32.mrf.mxu0
    %v2382 = vadd.f32 %v2353, %v2381
    %2383 = vdwg.mxu0
    %v2384 = vadd.f32 %v1973, %v2379
    %v2385 = vadd.f32 %v1974, %v2382
    %v2386 = vld [vmem:[#allocation7] sm:$0x1]
    %v2387 = vld [vmem:[#allocation8] sm:$0x1]
    %v2388 = vsel %vm447, %v2384, 0.0
    %2389 = vadd.xlane.f32.xlu0 %v2388
    %v2390 = vpop.xlane.xlu0 %2389
    %v2391 = vsel %vm447, %v2385, 0.0
    %2392 = vadd.xlane.f32.xlu0 %v2391
    %v2393 = vpop.xlane.xlu0 %2392
    %v2394 = vmul.f32 %v2390, %v460
    %v2395 = vmul.f32 %v2393, %v460
    %v2396 = vsub.f32 %v2384, %v2394
    %v2397 = vsub.f32 %v2385, %v2395
    %v2398 = vmul.f32 %v2396, %v2396
    %v2399 = vmul.f32 %v2397, %v2397
    %v2400 = vsel %vm447, %v2398, 0.0
    %2401 = vadd.xlane.f32.xlu0 %v2400
    %v2402 = vpop.xlane.xlu0 %2401
    %v2403 = vsel %vm447, %v2399, 0.0
    %2404 = vadd.xlane.f32.xlu0 %v2403
    %v2405 = vpop.xlane.xlu0 %2404
    %v2406 = vmul.f32 %v2402, %v460
    %v2407 = vmul.f32 %v2405, %v460
    %v2408 = vadd.f32 %v2406, 1e-05
    %v2409 = vadd.f32 %v2407, 1e-05
    %v2410 = vrsqrt.pop %v2408
    %v2411 = vmul.f32 %v2410, %v2408
    %v2412 = vmul.f32 %v2411, %v2410
    %v2413 = vmul.f32 0.5, %v2412
    %v2414 = vsub.f32 1.5, %v2413
    %v2415 = vmul.f32 %v2410, %v2414
    %vm2416 = vweird.f32 %v2408
    %vm2417 = vweird.f32 %v2410
    %vm2418 = vmor %vm2416, %vm2417
    %v2419 = vsel %vm2418, %v2410, %v2415
    %v2420 = vrsqrt.pop %v2409
    %v2421 = vmul.f32 %v2420, %v2409
    %v2422 = vmul.f32 %v2421, %v2420
    %v2423 = vmul.f32 0.5, %v2422
    %v2424 = vsub.f32 1.5, %v2423
    %v2425 = vmul.f32 %v2420, %v2424
    %vm2426 = vweird.f32 %v2409
    %vm2427 = vweird.f32 %v2420
    %vm2428 = vmor %vm2426, %vm2427
    %v2429 = vsel %vm2428, %v2420, %v2425
    %v2430 = vmul.f32 %v2396, %v2419
    %v2431 = vmul.f32 %v2397, %v2429
    %v2433 = vperm.slane %v2386, 0
    %v2435 = vmul.f32 %v2430, %v2433
    %v2436 = vmul.f32 %v2431, %v2433
    %v2438 = vperm.slane %v2387, 0
    %v2440 = vadd.f32 %v2435, %v2438
    %v2441 = vadd.f32 %v2436, %v2438
    %v2442 = vld [vmem:[%s61] sm:$0xff]
    %v2443 = vld [vmem:[%s61 + $0x8] sm:$0xff]
    %v2444 = vld [vmem:[%s61 + $0x10] sm:$0xff]
    %v2445 = vld [vmem:[%s61 + $0x18] sm:$0xff]
    %v2446 = vld [vmem:[#allocation10] sm:$0x1]
    %v2448 = vperm.slane %v2446, 0
    %v2451 = vsel %vm447, %v2440, 0
    %v2454 = vsel %vm447, %v2441, 0
    %2456 = vmatpush.msra.mxu0 0.0
    %2457 = vmatpush.msra.mxu0 0.0
    %2458 = vmatpush.msra.mxu0 0.0
    %2459 = vmatpush.msra.mxu0 0.0
    %2460 = vmatpush.msra.mxu0 0.0
    %2461 = vmatpush.msra.mxu0 0.0
    %2462 = vmatpush.msra.mxu0 0.0
    %2463 = vmatpush.msra.mxu0 0.0
    %2464 = vmatpush.msra.mxu0 0.0
    %2465 = vmatpush.msra.mxu0 0.0
    %2466 = vmatpush.msra.mxu0 0.0
    %2467 = vmatpush.msra.mxu0 0.0
    %2468 = vmatpush.msra.mxu0 %v2445
    %2469 = vmatpush.msra.mxu0 %v2444
    %2470 = vmatpush.msra.mxu0 %v2443
    %2471 = vmatpush.msra.mxu0 %v2442
    %2472 = vmatmul.f32.gmra.mxu0 %v2451
    %v2473 = vpop.f32.mrf.mxu0
    %v2474 = vadd.f32 %v2448, %v2473
    %2475 = vmatmul.f32.gmra.mxu0 %v2454
    %v2476 = vpop.f32.mrf.mxu0
    %v2477 = vadd.f32 %v2448, %v2476
    %2478 = vdwg.mxu0
    %v2479 = vld [vmem:[%s65] sm:$0xff]
    %v2480 = vld [vmem:[%s65 + $0x8] sm:$0xff]
    %v2481 = vld [vmem:[%s65 + $0x10] sm:$0xff]
    %v2482 = vld [vmem:[%s65 + $0x18] sm:$0xff]
    %v2483 = vld [vmem:[#allocation11] sm:$0x1]
    %v2485 = vperm.slane %v2483, 0
    %v2488 = vsel %vm447, %v1879, 0
    %v2491 = vsel %vm447, %v1880, 0
    %2493 = vmatpush.msra.mxu0 0.0
    %2494 = vmatpush.msra.mxu0 0.0
    %2495 = vmatpush.msra.mxu0 0.0
    %2496 = vmatpush.msra.mxu0 0.0
    %2497 = vmatpush.msra.mxu0 0.0
    %2498 = vmatpush.msra.mxu0 0.0
    %2499 = vmatpush.msra.mxu0 0.0
    %2500 = vmatpush.msra.mxu0 0.0
    %2501 = vmatpush.msra.mxu0 0.0
    %2502 = vmatpush.msra.mxu0 0.0
    %2503 = vmatpush.msra.mxu0 0.0
    %2504 = vmatpush.msra.mxu0 0.0
    %2505 = vmatpush.msra.mxu0 %v2482
    %2506 = vmatpush.msra.mxu0 %v2481
    %2507 = vmatpush.msra.mxu0 %v2480
    %2508 = vmatpush.msra.mxu0 %v2479
    %2509 = vmatmul.f32.gmra.mxu0 %v2488
    %v2510 = vpop.f32.mrf.mxu0
    %v2511 = vadd.f32 %v2485, %v2510
    %2512 = vmatmul.f32.gmra.mxu0 %v2491
    %v2513 = vpop.f32.mrf.mxu0
    %v2514 = vadd.f32 %v2485, %v2513
    %2515 = vdwg.mxu0
    %v2517 = vsel %vm552, %v2474, 0
    %v2520 = vsel %vm552, %v2511, 0
    %2522 = vmatpush.xpose.msra.mxu0 0.0
    %2523 = vmatpush.xpose.msra.mxu0 0.0
    %2524 = vmatpush.xpose.msra.mxu0 0.0
    %2525 = vmatpush.xpose.msra.mxu0 0.0
    %2526 = vmatpush.xpose.msra.mxu0 0.0
    %2527 = vmatpush.xpose.msra.mxu0 0.0
    %2528 = vmatpush.xpose.msra.mxu0 0.0
    %2529 = vmatpush.xpose.msra.mxu0 0.0
    %2530 = vmatpush.xpose.msra.mxu0 0.0
    %2531 = vmatpush.xpose.msra.mxu0 0.0
    %2532 = vmatpush.xpose.msra.mxu0 0.0
    %2533 = vmatpush.xpose.msra.mxu0 0.0
    %2534 = vmatpush.xpose.msra.mxu0 0.0
    %2535 = vmatpush.xpose.msra.mxu0 0.0
    %2536 = vmatpush.xpose.msra.mxu0 0.0
    %2537 = vmatpush.xpose.msra.mxu0 %v2520
    %2538 = vmatmul.f32.gmra.mxu0 %v2517
    %v2539 = vpop.f32.mrf.mxu0
    %v2540 = vadd.f32 0.0, %v2539
    %2541 = vdwg.mxu0
    %v2542 = vmul.f32 %v2540, 0.25
    %v2543 = vperm.slane %v1981, 0
    %v2544 = vadd.f32 %v2542, %v2543
    %v2545 = vsel %vm580, %v2544, -inf
    %2546 = vmax.xlane.f32.xlu0 %v2545
    %v2547 = vpop.xlane.xlu0 %2546
    %v2548 = vsub.f32 %v2544, %v2547
    %v2549 = vmul.f32 %v2548, 1.442695
    %v2550 = vpow.pop %v2549
    %v2551 = vsel %vm580, %v2550, 0.0
    %2552 = vadd.xlane.f32.xlu0 %v2551
    %v2553 = vpop.xlane.xlu0 %2552
    %v2554 = vrcp.pop %v2553
    %v2555 = vmul.f32 %v2553, %v2554
    %v2556 = vsub.f32 1.0, %v2555
    %v2557 = vmul.f32 %v2554, %v2556
    %v2558 = vadd.f32 %v2554, %v2557
    %vm2559 = vweird.f32 %v2553
    %vm2560 = vweird.f32 %v2554
    %vm2561 = vmor %vm2559, %vm2560
    %v2562 = vsel %vm2561, %v2554, %v2558
    %v2563 = vand.u32 2147483647, %v2553
    %vm2564 = vcmp.eq.f32.partialorder %v2563, 8.507059e+37
    %v2565 = vand.u32 %v2553, 2147483648
    %v2566 = vor.u32 1.1754944e-38, %v2565
    %v2567 = vsel %vm2564, %v2566, %v2562
    %v2568 = vmul.f32 %v2550, %v2567
    %2569 = vrot.lane.b32.xlu0 %v2511, 96
    %v2570 = vpop.permute.xlu0 %2569
    %v2573 = vsel %vm580, %v2568, 0
    %2575 = vmatpush.msra.mxu0 0.0
    %2576 = vmatpush.msra.mxu0 0.0
    %2577 = vmatpush.msra.mxu0 0.0
    %2578 = vmatpush.msra.mxu0 0.0
    %2579 = vmatpush.msra.mxu0 0.0
    %2580 = vmatpush.msra.mxu0 0.0
    %2581 = vmatpush.msra.mxu0 0.0
    %2582 = vmatpush.msra.mxu0 0.0
    %2583 = vmatpush.msra.mxu0 0.0
    %2584 = vmatpush.msra.mxu0 0.0
    %2585 = vmatpush.msra.mxu0 0.0
    %2586 = vmatpush.msra.mxu0 0.0
    %2587 = vmatpush.msra.mxu0 0.0
    %2588 = vmatpush.msra.mxu0 0.0
    %2589 = vmatpush.msra.mxu0 0.0
    %2590 = vmatpush.msra.mxu0 %v2570
    %2591 = vmatmul.f32.gmra.mxu0 %v2573
    %v2592 = vpop.f32.mrf.mxu0
    %v2593 = vadd.f32 0.0, %v2592
    %2594 = vdwg.mxu0
    %2595 = vrot.lane.b32.xlu0 %v2474, 112
    %v2596 = vpop.permute.xlu0 %2595
    %2597 = vrot.lane.b32.xlu0 %v2511, 112
    %v2598 = vpop.permute.xlu0 %2597
    %v2599 = vsel %vm552, %v2596, 0
    %v2601 = vsel %vm552, %v2598, 0
    %2603 = vmatpush.xpose.msra.mxu0 0.0
    %2604 = vmatpush.xpose.msra.mxu0 0.0
    %2605 = vmatpush.xpose.msra.mxu0 0.0
    %2606 = vmatpush.xpose.msra.mxu0 0.0
    %2607 = vmatpush.xpose.msra.mxu0 0.0
    %2608 = vmatpush.xpose.msra.mxu0 0.0
    %2609 = vmatpush.xpose.msra.mxu0 0.0
    %2610 = vmatpush.xpose.msra.mxu0 0.0
    %2611 = vmatpush.xpose.msra.mxu0 0.0
    %2612 = vmatpush.xpose.msra.mxu0 0.0
    %2613 = vmatpush.xpose.msra.mxu0 0.0
    %2614 = vmatpush.xpose.msra.mxu0 0.0
    %2615 = vmatpush.xpose.msra.mxu0 0.0
    %2616 = vmatpush.xpose.msra.mxu0 0.0
    %2617 = vmatpush.xpose.msra.mxu0 0.0
    %2618 = vmatpush.xpose.msra.mxu0 %v2601
    %2619 = vmatmul.f32.gmra.mxu0 %v2599
    %v2620 = vpop.f32.mrf.mxu0
    %v2621 = vadd.f32 0.0, %v2620
    %2622 = vdwg.mxu0
    %v2623 = vmul.f32 %v2621, 0.25
    %v2624 = vadd.f32 %v2623, %v2543
    %v2625 = vsel %vm580, %v2624, -inf
    %2626 = vmax.xlane.f32.xlu0 %v2625
    %v2627 = vpop.xlane.xlu0 %2626
    %v2628 = vsub.f32 %v2624, %v2627
    %v2629 = vmul.f32 %v2628, 1.442695
    %v2630 = vpow.pop %v2629
    %v2631 = vsel %vm580, %v2630, 0.0
    %2632 = vadd.xlane.f32.xlu0 %v2631
    %v2633 = vpop.xlane.xlu0 %2632
    %v2634 = vrcp.pop %v2633
    %v2635 = vmul.f32 %v2633, %v2634
    %v2636 = vsub.f32 1.0, %v2635
    %v2637 = vmul.f32 %v2634, %v2636
    %v2638 = vadd.f32 %v2634, %v2637
    %vm2639 = vweird.f32 %v2633
    %vm2640 = vweird.f32 %v2634
    %vm2641 = vmor %vm2639, %vm2640
    %v2642 = vsel %vm2641, %v2634, %v2638
    %v2643 = vand.u32 2147483647, %v2633
    %vm2644 = vcmp.eq.f32.partialorder %v2643, 8.507059e+37
    %v2645 = vand.u32 %v2633, 2147483648
    %v2646 = vor.u32 1.1754944e-38, %v2645
    %v2647 = vsel %vm2644, %v2646, %v2642
    %v2648 = vmul.f32 %v2630, %v2647
    %2649 = vrot.lane.b32.xlu0 %v2511, 80
    %v2650 = vpop.permute.xlu0 %2649
    %v2653 = vsel %vm580, %v2648, 0
    %2655 = vmatpush.msra.mxu0 0.0
    %2656 = vmatpush.msra.mxu0 0.0
    %2657 = vmatpush.msra.mxu0 0.0
    %2658 = vmatpush.msra.mxu0 0.0
    %2659 = vmatpush.msra.mxu0 0.0
    %2660 = vmatpush.msra.mxu0 0.0
    %2661 = vmatpush.msra.mxu0 0.0
    %2662 = vmatpush.msra.mxu0 0.0
    %2663 = vmatpush.msra.mxu0 0.0
    %2664 = vmatpush.msra.mxu0 0.0
    %2665 = vmatpush.msra.mxu0 0.0
    %2666 = vmatpush.msra.mxu0 0.0
    %2667 = vmatpush.msra.mxu0 0.0
    %2668 = vmatpush.msra.mxu0 0.0
    %2669 = vmatpush.msra.mxu0 0.0
    %2670 = vmatpush.msra.mxu0 %v2650
    %2671 = vmatmul.f32.gmra.mxu0 %v2653
    %v2672 = vpop.f32.mrf.mxu0
    %v2673 = vadd.f32 0.0, %v2672
    %2674 = vdwg.mxu0
    %2676 = vrot.lane.b32.xlu0 %v2673, 16
    %v2677 = vpop.permute.xlu0 %2676
    %v2679 = vsel %vm552, %v2593, %v2677
    %v2681 = vsel %vm552, %v2477, 0
    %v2684 = vsel %vm552, %v2514, 0
    %2686 = vmatpush.xpose.msra.mxu0 0.0
    %2687 = vmatpush.xpose.msra.mxu0 0.0
    %2688 = vmatpush.xpose.msra.mxu0 0.0
    %2689 = vmatpush.xpose.msra.mxu0 0.0
    %2690 = vmatpush.xpose.msra.mxu0 0.0
    %2691 = vmatpush.xpose.msra.mxu0 0.0
    %2692 = vmatpush.xpose.msra.mxu0 0.0
    %2693 = vmatpush.xpose.msra.mxu0 0.0
    %2694 = vmatpush.xpose.msra.mxu0 0.0
    %2695 = vmatpush.xpose.msra.mxu0 0.0
    %2696 = vmatpush.xpose.msra.mxu0 0.0
    %2697 = vmatpush.xpose.msra.mxu0 0.0
    %2698 = vmatpush.xpose.msra.mxu0 0.0
    %2699 = vmatpush.xpose.msra.mxu0 0.0
    %2700 = vmatpush.xpose.msra.mxu0 0.0
    %2701 = vmatpush.xpose.msra.mxu0 %v2684
    %2702 = vmatmul.f32.gmra.mxu0 %v2681
    %v2703 = vpop.f32.mrf.mxu0
    %v2704 = vadd.f32 0.0, %v2703
    %2705 = vdwg.mxu0
    %v2706 = vmul.f32 %v2704, 0.25
    %v2707 = vperm.slane %v1981, 1
    %v2708 = vadd.f32 %v2706, %v2707
    %v2709 = vsel %vm580, %v2708, -inf
    %2710 = vmax.xlane.f32.xlu0 %v2709
    %v2711 = vpop.xlane.xlu0 %2710
    %v2712 = vsub.f32 %v2708, %v2711
    %v2713 = vmul.f32 %v2712, 1.442695
    %v2714 = vpow.pop %v2713
    %v2715 = vsel %vm580, %v2714, 0.0
    %2716 = vadd.xlane.f32.xlu0 %v2715
    %v2717 = vpop.xlane.xlu0 %2716
    %v2718 = vrcp.pop %v2717
    %v2719 = vmul.f32 %v2717, %v2718
    %v2720 = vsub.f32 1.0, %v2719
    %v2721 = vmul.f32 %v2718, %v2720
    %v2722 = vadd.f32 %v2718, %v2721
    %vm2723 = vweird.f32 %v2717
    %vm2724 = vweird.f32 %v2718
    %vm2725 = vmor %vm2723, %vm2724
    %v2726 = vsel %vm2725, %v2718, %v2722
    %v2727 = vand.u32 2147483647, %v2717
    %vm2728 = vcmp.eq.f32.partialorder %v2727, 8.507059e+37
    %v2729 = vand.u32 %v2717, 2147483648
    %v2730 = vor.u32 1.1754944e-38, %v2729
    %v2731 = vsel %vm2728, %v2730, %v2726
    %v2732 = vmul.f32 %v2714, %v2731
    %2733 = vrot.lane.b32.xlu0 %v2514, 96
    %v2734 = vpop.permute.xlu0 %2733
    %v2737 = vsel %vm580, %v2732, 0
    %2739 = vmatpush.msra.mxu0 0.0
    %2740 = vmatpush.msra.mxu0 0.0
    %2741 = vmatpush.msra.mxu0 0.0
    %2742 = vmatpush.msra.mxu0 0.0
    %2743 = vmatpush.msra.mxu0 0.0
    %2744 = vmatpush.msra.mxu0 0.0
    %2745 = vmatpush.msra.mxu0 0.0
    %2746 = vmatpush.msra.mxu0 0.0
    %2747 = vmatpush.msra.mxu0 0.0
    %2748 = vmatpush.msra.mxu0 0.0
    %2749 = vmatpush.msra.mxu0 0.0
    %2750 = vmatpush.msra.mxu0 0.0
    %2751 = vmatpush.msra.mxu0 0.0
    %2752 = vmatpush.msra.mxu0 0.0
    %2753 = vmatpush.msra.mxu0 0.0
    %2754 = vmatpush.msra.mxu0 %v2734
    %2755 = vmatmul.f32.gmra.mxu0 %v2737
    %v2756 = vpop.f32.mrf.mxu0
    %v2757 = vadd.f32 0.0, %v2756
    %2758 = vdwg.mxu0
    %2759 = vrot.lane.b32.xlu0 %v2477, 112
    %v2760 = vpop.permute.xlu0 %2759
    %2761 = vrot.lane.b32.xlu0 %v2514, 112
    %v2762 = vpop.permute.xlu0 %2761
    %v2763 = vsel %vm552, %v2760, 0
    %v2765 = vsel %vm552, %v2762, 0
    %2767 = vmatpush.xpose.msra.mxu0 0.0
    %2768 = vmatpush.xpose.msra.mxu0 0.0
    %2769 = vmatpush.xpose.msra.mxu0 0.0
    %2770 = vmatpush.xpose.msra.mxu0 0.0
    %2771 = vmatpush.xpose.msra.mxu0 0.0
    %2772 = vmatpush.xpose.msra.mxu0 0.0
    %2773 = vmatpush.xpose.msra.mxu0 0.0
    %2774 = vmatpush.xpose.msra.mxu0 0.0
    %2775 = vmatpush.xpose.msra.mxu0 0.0
    %2776 = vmatpush.xpose.msra.mxu0 0.0
    %2777 = vmatpush.xpose.msra.mxu0 0.0
    %2778 = vmatpush.xpose.msra.mxu0 0.0
    %2779 = vmatpush.xpose.msra.mxu0 0.0
    %2780 = vmatpush.xpose.msra.mxu0 0.0
    %2781 = vmatpush.xpose.msra.mxu0 0.0
    %2782 = vmatpush.xpose.msra.mxu0 %v2765
    %2783 = vmatmul.f32.gmra.mxu0 %v2763
    %v2784 = vpop.f32.mrf.mxu0
    %v2785 = vadd.f32 0.0, %v2784
    %2786 = vdwg.mxu0
    %v2787 = vmul.f32 %v2785, 0.25
    %v2788 = vadd.f32 %v2787, %v2707
    %v2789 = vsel %vm580, %v2788, -inf
    %2790 = vmax.xlane.f32.xlu0 %v2789
    %v2791 = vpop.xlane.xlu0 %2790
    %v2792 = vsub.f32 %v2788, %v2791
    %v2793 = vmul.f32 %v2792, 1.442695
    %v2794 = vpow.pop %v2793
    %v2795 = vsel %vm580, %v2794, 0.0
    %2796 = vadd.xlane.f32.xlu0 %v2795
    %v2797 = vpop.xlane.xlu0 %2796
    %v2798 = vrcp.pop %v2797
    %v2799 = vmul.f32 %v2797, %v2798
    %v2800 = vsub.f32 1.0, %v2799
    %v2801 = vmul.f32 %v2798, %v2800
    %v2802 = vadd.f32 %v2798, %v2801
    %vm2803 = vweird.f32 %v2797
    %vm2804 = vweird.f32 %v2798
    %vm2805 = vmor %vm2803, %vm2804
    %v2806 = vsel %vm2805, %v2798, %v2802
    %v2807 = vand.u32 2147483647, %v2797
    %vm2808 = vcmp.eq.f32.partialorder %v2807, 8.507059e+37
    %v2809 = vand.u32 %v2797, 2147483648
    %v2810 = vor.u32 1.1754944e-38, %v2809
    %v2811 = vsel %vm2808, %v2810, %v2806
    %v2812 = vmul.f32 %v2794, %v2811
    %2813 = vrot.lane.b32.xlu0 %v2514, 80
    %v2814 = vpop.permute.xlu0 %2813
    %v2817 = vsel %vm580, %v2812, 0
    %2819 = vmatpush.msra.mxu0 0.0
    %2820 = vmatpush.msra.mxu0 0.0
    %2821 = vmatpush.msra.mxu0 0.0
    %2822 = vmatpush.msra.mxu0 0.0
    %2823 = vmatpush.msra.mxu0 0.0
    %2824 = vmatpush.msra.mxu0 0.0
    %2825 = vmatpush.msra.mxu0 0.0
    %2826 = vmatpush.msra.mxu0 0.0
    %2827 = vmatpush.msra.mxu0 0.0
    %2828 = vmatpush.msra.mxu0 0.0
    %2829 = vmatpush.msra.mxu0 0.0
    %2830 = vmatpush.msra.mxu0 0.0
    %2831 = vmatpush.msra.mxu0 0.0
    %2832 = vmatpush.msra.mxu0 0.0
    %2833 = vmatpush.msra.mxu0 0.0
    %2834 = vmatpush.msra.mxu0 %v2814
    %2835 = vmatmul.f32.gmra.mxu0 %v2817
    %v2836 = vpop.f32.mrf.mxu0
    %v2837 = vadd.f32 0.0, %v2836
    %2838 = vdwg.mxu0
    %2840 = vrot.lane.b32.xlu0 %v2837, 16
    %v2841 = vpop.permute.xlu0 %2840
    %v2843 = vsel %vm552, %v2757, %v2841
    %v2844 = vld [vmem:[%s69] sm:$0xff]
    %v2845 = vld [vmem:[%s69 + $0x8] sm:$0xff]
    %v2846 = vld [vmem:[%s69 + $0x10] sm:$0xff]
    %v2847 = vld [vmem:[%s69 + $0x18] sm:$0xff]
    %v2848 = vld [vmem:[#allocation13] sm:$0x1]
    %v2850 = vperm.slane %v2848, 0
    %v2853 = vsel %vm447, %v2679, 0
    %v2856 = vsel %vm447, %v2843, 0
    %2858 = vmatpush.msra.mxu0 0.0
    %2859 = vmatpush.msra.mxu0 0.0
    %2860 = vmatpush.msra.mxu0 0.0
    %2861 = vmatpush.msra.mxu0 0.0
    %2862 = vmatpush.msra.mxu0 0.0
    %2863 = vmatpush.msra.mxu0 0.0
    %2864 = vmatpush.msra.mxu0 0.0
    %2865 = vmatpush.msra.mxu0 0.0
    %2866 = vmatpush.msra.mxu0 0.0
    %2867 = vmatpush.msra.mxu0 0.0
    %2868 = vmatpush.msra.mxu0 0.0
    %2869 = vmatpush.msra.mxu0 0.0
    %2870 = vmatpush.msra.mxu0 %v2847
    %2871 = vmatpush.msra.mxu0 %v2846
    %2872 = vmatpush.msra.mxu0 %v2845
    %2873 = vmatpush.msra.mxu0 %v2844
    %2874 = vmatmul.f32.gmra.mxu0 %v2853
    %v2875 = vpop.f32.mrf.mxu0
    %v2876 = vadd.f32 %v2850, %v2875
    %2877 = vmatmul.f32.gmra.mxu0 %v2856
    %v2878 = vpop.f32.mrf.mxu0
    %v2879 = vadd.f32 %v2850, %v2878
    %2880 = vdwg.mxu0
    %v2881 = vadd.f32 %v2440, %v2876
    %v2882 = vadd.f32 %v2441, %v2879
    %v2883 = vld [vmem:[#allocation14] sm:$0x1]
    %v2884 = vld [vmem:[#allocation16] sm:$0x1]
    %v2885 = vsel %vm447, %v2881, 0.0
    %2886 = vadd.xlane.f32.xlu0 %v2885
    %v2887 = vpop.xlane.xlu0 %2886
    %v2888 = vsel %vm447, %v2882, 0.0
    %2889 = vadd.xlane.f32.xlu0 %v2888
    %v2890 = vpop.xlane.xlu0 %2889
    %v2891 = vmul.f32 %v2887, %v460
    %v2892 = vmul.f32 %v2890, %v460
    %v2893 = vsub.f32 %v2881, %v2891
    %v2894 = vsub.f32 %v2882, %v2892
    %v2895 = vmul.f32 %v2893, %v2893
    %v2896 = vmul.f32 %v2894, %v2894
    %v2897 = vsel %vm447, %v2895, 0.0
    %2898 = vadd.xlane.f32.xlu0 %v2897
    %v2899 = vpop.xlane.xlu0 %2898
    %v2900 = vsel %vm447, %v2896, 0.0
    %2901 = vadd.xlane.f32.xlu0 %v2900
    %v2902 = vpop.xlane.xlu0 %2901
    %v2903 = vmul.f32 %v2899, %v460
    %v2904 = vmul.f32 %v2902, %v460
    %v2905 = vadd.f32 %v2903, 1e-05
    %v2906 = vadd.f32 %v2904, 1e-05
    %v2907 = vrsqrt.pop %v2905
    %v2908 = vmul.f32 %v2907, %v2905
    %v2909 = vmul.f32 %v2908, %v2907
    %v2910 = vmul.f32 0.5, %v2909
    %v2911 = vsub.f32 1.5, %v2910
    %v2912 = vmul.f32 %v2907, %v2911
    %vm2913 = vweird.f32 %v2905
    %vm2914 = vweird.f32 %v2907
    %vm2915 = vmor %vm2913, %vm2914
    %v2916 = vsel %vm2915, %v2907, %v2912
    %v2917 = vrsqrt.pop %v2906
    %v2918 = vmul.f32 %v2917, %v2906
    %v2919 = vmul.f32 %v2918, %v2917
    %v2920 = vmul.f32 0.5, %v2919
    %v2921 = vsub.f32 1.5, %v2920
    %v2922 = vmul.f32 %v2917, %v2921
    %vm2923 = vweird.f32 %v2906
    %vm2924 = vweird.f32 %v2917
    %vm2925 = vmor %vm2923, %vm2924
    %v2926 = vsel %vm2925, %v2917, %v2922
    %v2927 = vmul.f32 %v2893, %v2916
    %v2928 = vmul.f32 %v2894, %v2926
    %v2930 = vperm.slane %v2883, 0
    %v2932 = vmul.f32 %v2927, %v2930
    %v2933 = vmul.f32 %v2928, %v2930
    %v2935 = vperm.slane %v2884, 0
    %v2937 = vadd.f32 %v2932, %v2935
    %v2938 = vadd.f32 %v2933, %v2935
    %v2939 = vld [vmem:[%s77] sm:$0xff]
    %v2940 = vld [vmem:[%s77 + $0x8] sm:$0xff]
    %v2941 = vld [vmem:[%s77 + $0x10] sm:$0xff]
    %v2942 = vld [vmem:[%s77 + $0x18] sm:$0xff]
    %v2943 = vld [vmem:[#allocation17] sm:$0x1]
    %v2945 = vperm.slane %v2943, 0
    %v2948 = vsel %vm447, %v2937, 0
    %v2951 = vsel %vm447, %v2938, 0
    %2953 = vmatpush.msra.mxu0 0.0
    %2954 = vmatpush.msra.mxu0 0.0
    %2955 = vmatpush.msra.mxu0 0.0
    %2956 = vmatpush.msra.mxu0 0.0
    %2957 = vmatpush.msra.mxu0 0.0
    %2958 = vmatpush.msra.mxu0 0.0
    %2959 = vmatpush.msra.mxu0 0.0
    %2960 = vmatpush.msra.mxu0 0.0
    %2961 = vmatpush.msra.mxu0 0.0
    %2962 = vmatpush.msra.mxu0 0.0
    %2963 = vmatpush.msra.mxu0 0.0
    %2964 = vmatpush.msra.mxu0 0.0
    %2965 = vmatpush.msra.mxu0 %v2942
    %2966 = vmatpush.msra.mxu0 %v2941
    %2967 = vmatpush.msra.mxu0 %v2940
    %2968 = vmatpush.msra.mxu0 %v2939
    %2969 = vmatmul.f32.gmra.mxu0 %v2948
    %v2970 = vpop.f32.mrf.mxu0
    %v2971 = vadd.f32 %v2945, %v2970
    %2972 = vmatmul.f32.gmra.mxu0 %v2951
    %v2973 = vpop.f32.mrf.mxu0
    %v2974 = vadd.f32 %v2945, %v2973
    %2975 = vdwg.mxu0
    %v2976 = vmul.f32 %v2971, 0.5
    %v2977 = vmul.f32 %v2974, 0.5
    %v2978 = vmul.f32 %v2971, 0.70710677
    %v2979 = vmul.f32 %v2974, 0.70710677
    %v2980 = vand.u32 2147483647, %v2978
    %v2981 = vand.u32 2147483647, %v2979
    %v2982 = vmul.f32 %v2980, 0.3275911
    %v2983 = vmul.f32 %v2981, 0.3275911
    %v2984 = vadd.f32 %v2982, 1.0
    %v2985 = vadd.f32 %v2983, 1.0
    %v2986 = vrcp.pop %v2984
    %v2987 = vmul.f32 %v2984, %v2986
    %v2988 = vsub.f32 1.0, %v2987
    %v2989 = vmul.f32 %v2986, %v2988
    %v2990 = vadd.f32 %v2986, %v2989
    %vm2991 = vweird.f32 %v2984
    %vm2992 = vweird.f32 %v2986
    %vm2993 = vmor %vm2991, %vm2992
    %v2994 = vsel %vm2993, %v2986, %v2990
    %v2995 = vand.u32 2147483647, %v2984
    %vm2996 = vcmp.eq.f32.partialorder %v2995, 8.507059e+37
    %v2997 = vand.u32 %v2984, 2147483648
    %v2998 = vor.u32 1.1754944e-38, %v2997
    %v2999 = vsel %vm2996, %v2998, %v2994
    %v3000 = vmul.f32 1.0, %v2999
    %v3001 = vrcp.pop %v2985
    %v3002 = vmul.f32 %v2985, %v3001
    %v3003 = vsub.f32 1.0, %v3002
    %v3004 = vmul.f32 %v3001, %v3003
    %v3005 = vadd.f32 %v3001, %v3004
    %vm3006 = vweird.f32 %v2985
    %vm3007 = vweird.f32 %v3001
    %vm3008 = vmor %vm3006, %vm3007
    %v3009 = vsel %vm3008, %v3001, %v3005
    %v3010 = vand.u32 2147483647, %v2985
    %vm3011 = vcmp.eq.f32.partialorder %v3010, 8.507059e+37
    %v3012 = vand.u32 %v2985, 2147483648
    %v3013 = vor.u32 1.1754944e-38, %v3012
    %v3014 = vsel %vm3011, %v3013, %v3009
    %v3015 = vmul.f32 1.0, %v3014
    %v3016 = vmul.f32 %v3000, 1.0614054
    %v3017 = vmul.f32 %v3015, 1.0614054
    %v3018 = vsub.f32 %v3016, 1.4531521
    %v3019 = vsub.f32 %v3017, 1.4531521
    %v3020 = vmul.f32 %v3018, %v3000
    %v3021 = vmul.f32 %v3019, %v3015
    %v3022 = vadd.f32 %v3020, 1.4214138
    %v3023 = vadd.f32 %v3021, 1.4214138
    %v3024 = vmul.f32 %v3022, %v3000
    %v3025 = vmul.f32 %v3023, %v3015
    %v3026 = vsub.f32 %v3024, 0.28449672
    %v3027 = vsub.f32 %v3025, 0.28449672
    %v3028 = vmul.f32 %v3026, %v3000
    %v3029 = vmul.f32 %v3027, %v3015
    %v3030 = vadd.f32 %v3028, 0.2548296
    %v3031 = vadd.f32 %v3029, 0.2548296
    %v3032 = vmul.f32 %v3030, %v3000
    %v3033 = vmul.f32 %v3031, %v3015
    %v3034 = vmul.f32 %v2980, %v2980
    %v3035 = vmul.f32 %v2981, %v2981
    %v3036 = vsub.f32 0.0, %v3034
    %v3037 = vsub.f32 0.0, %v3035
    %v3038 = vmul.f32 %v3036, 1.442695
    %v3039 = vpow.pop %v3038
    %v3040 = vmul.f32 %v3037, 1.442695
    %v3041 = vpow.pop %v3040
    %v3042 = vmul.f32 %v3032, %v3039
    %v3043 = vmul.f32 %v3033, %v3041
    %v3044 = vsub.f32 1.0, %v3042
    %v3045 = vsub.f32 1.0, %v3043
    %vm3046 = vcmp.ge.f32.partialorder %v2978, 0.0
    %vm3047 = vcmp.ge.f32.partialorder %v2979, 0.0
    %v3048 = vsub.f32 0.0, %v3044
    %v3049 = vsub.f32 0.0, %v3045
    %v3050 = vsel %vm3046, %v3044, %v3048
    %v3051 = vsel %vm3047, %v3045, %v3049
    %v3052 = vadd.f32 %v3050, 1.0
    %v3053 = vadd.f32 %v3051, 1.0
    %v3054 = vmul.f32 %v2976, %v3052
    %v3055 = vmul.f32 %v2977, %v3053
    %v3056 = vld [vmem:[%s81] sm:$0xff]
    %v3057 = vld [vmem:[%s81 + $0x8] sm:$0xff]
    %v3058 = vld [vmem:[%s81 + $0x10] sm:$0xff]
    %v3059 = vld [vmem:[%s81 + $0x18] sm:$0xff]
    %v3060 = vld [vmem:[%s81 + $0x20] sm:$0xff]
    %v3061 = vld [vmem:[%s81 + $0x28] sm:$0xff]
    %v3062 = vld [vmem:[%s81 + $0x30] sm:$0xff]
    %v3063 = vld [vmem:[%s81 + $0x38] sm:$0xff]
    %v3064 = vld [vmem:[#allocation19] sm:$0x1]
    %v3066 = vperm.slane %v3064, 0
    %v3069 = vsel %vm1105, %v3054, 0
    %v3072 = vsel %vm1105, %v3055, 0
    %3074 = vmatpush.msra.mxu0 0.0
    %3075 = vmatpush.msra.mxu0 0.0
    %3076 = vmatpush.msra.mxu0 0.0
    %3077 = vmatpush.msra.mxu0 0.0
    %3078 = vmatpush.msra.mxu0 0.0
    %3079 = vmatpush.msra.mxu0 0.0
    %3080 = vmatpush.msra.mxu0 0.0
    %3081 = vmatpush.msra.mxu0 0.0
    %3082 = vmatpush.msra.mxu0 %v3063
    %3083 = vmatpush.msra.mxu0 %v3062
    %3084 = vmatpush.msra.mxu0 %v3061
    %3085 = vmatpush.msra.mxu0 %v3060
    %3086 = vmatpush.msra.mxu0 %v3059
    %3087 = vmatpush.msra.mxu0 %v3058
    %3088 = vmatpush.msra.mxu0 %v3057
    %3089 = vmatpush.msra.mxu0 %v3056
    %3090 = vmatmul.f32.gmra.mxu0 %v3069
    %v3091 = vpop.f32.mrf.mxu0
    %v3092 = vadd.f32 %v3066, %v3091
    %3093 = vmatmul.f32.gmra.mxu0 %v3072
    %v3094 = vpop.f32.mrf.mxu0
    %v3095 = vadd.f32 %v3066, %v3094
    %3096 = vdwg.mxu0
    %v3097 = vadd.f32 %v2937, %v3092
    %v3098 = vadd.f32 %v2938, %v3095
    %v3099 = vld [vmem:[#allocation20] sm:$0x1]
    %v3100 = vld [vmem:[#allocation22] sm:$0x1]
    %v3101 = vsel %vm447, %v3097, 0.0
    %3102 = vadd.xlane.f32.xlu0 %v3101
    %v3103 = vpop.xlane.xlu0 %3102
    %v3104 = vsel %vm447, %v3098, 0.0
    %3105 = vadd.xlane.f32.xlu0 %v3104
    %v3106 = vpop.xlane.xlu0 %3105
    %v3107 = vmul.f32 %v3103, %v460
    %v3108 = vmul.f32 %v3106, %v460
    %v3109 = vsub.f32 %v3097, %v3107
    %v3110 = vsub.f32 %v3098, %v3108
    %v3111 = vmul.f32 %v3109, %v3109
    %v3112 = vmul.f32 %v3110, %v3110
    %v3113 = vsel %vm447, %v3111, 0.0
    %3114 = vadd.xlane.f32.xlu0 %v3113
    %v3115 = vpop.xlane.xlu0 %3114
    %v3116 = vsel %vm447, %v3112, 0.0
    %3117 = vadd.xlane.f32.xlu0 %v3116
    %v3118 = vpop.xlane.xlu0 %3117
    %v3119 = vmul.f32 %v3115, %v460
    %v3120 = vmul.f32 %v3118, %v460
    %v3121 = vadd.f32 %v3119, 1e-05
    %v3122 = vadd.f32 %v3120, 1e-05
    %v3123 = vrsqrt.pop %v3121
    %v3124 = vmul.f32 %v3123, %v3121
    %v3125 = vmul.f32 %v3124, %v3123
    %v3126 = vmul.f32 0.5, %v3125
    %v3127 = vsub.f32 1.5, %v3126
    %v3128 = vmul.f32 %v3123, %v3127
    %vm3129 = vweird.f32 %v3121
    %vm3130 = vweird.f32 %v3123
    %vm3131 = vmor %vm3129, %vm3130
    %v3132 = vsel %vm3131, %v3123, %v3128
    %v3133 = vrsqrt.pop %v3122
    %v3134 = vmul.f32 %v3133, %v3122
    %v3135 = vmul.f32 %v3134, %v3133
    %v3136 = vmul.f32 0.5, %v3135
    %v3137 = vsub.f32 1.5, %v3136
    %v3138 = vmul.f32 %v3133, %v3137
    %vm3139 = vweird.f32 %v3122
    %vm3140 = vweird.f32 %v3133
    %vm3141 = vmor %vm3139, %vm3140
    %v3142 = vsel %vm3141, %v3133, %v3138
    %v3143 = vmul.f32 %v3109, %v3132
    %v3144 = vmul.f32 %v3110, %v3142
    %v3146 = vperm.slane %v3099, 0
    %v3148 = vmul.f32 %v3143, %v3146
    %v3149 = vmul.f32 %v3144, %v3146
    %v3151 = vperm.slane %v3100, 0
    %v3153 = vadd.f32 %v3148, %v3151
    %v3154 = vadd.f32 %v3149, %v3151
    %s3155 = scalar_lea.vmem %s49, 32
    %v3156 = vld [vmem:[%s3155] sm:$0xff]
    %v3157 = vld [vmem:[%s3155 + $0x8] sm:$0xff]
    %v3158 = vld [vmem:[%s3155 + $0x10] sm:$0xff]
    %v3159 = vld [vmem:[%s3155 + $0x18] sm:$0xff]
    %s3160 = scalar_lea.vmem %s51, 1
    %v3161 = vld [vmem:[%s3160] sm:$0x1]
    %v3163 = vperm.slane %v3161, 0
    %v3166 = vsel %vm447, %v3153, 0
    %v3169 = vsel %vm447, %v3154, 0
    %3171 = vmatpush.msra.mxu0 0.0
    %3172 = vmatpush.msra.mxu0 0.0
    %3173 = vmatpush.msra.mxu0 0.0
    %3174 = vmatpush.msra.mxu0 0.0
    %3175 = vmatpush.msra.mxu0 0.0
    %3176 = vmatpush.msra.mxu0 0.0
    %3177 = vmatpush.msra.mxu0 0.0
    %3178 = vmatpush.msra.mxu0 0.0
    %3179 = vmatpush.msra.mxu0 0.0
    %3180 = vmatpush.msra.mxu0 0.0
    %3181 = vmatpush.msra.mxu0 0.0
    %3182 = vmatpush.msra.mxu0 0.0
    %3183 = vmatpush.msra.mxu0 %v3159
    %3184 = vmatpush.msra.mxu0 %v3158
    %3185 = vmatpush.msra.mxu0 %v3157
    %3186 = vmatpush.msra.mxu0 %v3156
    %3187 = vmatmul.f32.gmra.mxu0 %v3166
    %v3188 = vpop.f32.mrf.mxu0
    %v3189 = vadd.f32 %v3163, %v3188
    %3190 = vmatmul.f32.gmra.mxu0 %v3169
    %v3191 = vpop.f32.mrf.mxu0
    %v3192 = vadd.f32 %v3163, %v3191
    %3193 = vdwg.mxu0
    %3195 = vrot.lane.b32.xlu0 %v3189, 96
    %v3196 = vpop.permute.xlu0 %3195
    %v3197 = vsel %vm552, %v3189, 0
    %v3199 = vsel %vm552, %v3196, 0
    %3201 = vmatpush.xpose.msra.mxu0 0.0
    %3202 = vmatpush.xpose.msra.mxu0 0.0
    %3203 = vmatpush.xpose.msra.mxu0 0.0
    %3204 = vmatpush.xpose.msra.mxu0 0.0
    %3205 = vmatpush.xpose.msra.mxu0 0.0
    %3206 = vmatpush.xpose.msra.mxu0 0.0
    %3207 = vmatpush.xpose.msra.mxu0 0.0
    %3208 = vmatpush.xpose.msra.mxu0 0.0
    %3209 = vmatpush.xpose.msra.mxu0 0.0
    %3210 = vmatpush.xpose.msra.mxu0 0.0
    %3211 = vmatpush.xpose.msra.mxu0 0.0
    %3212 = vmatpush.xpose.msra.mxu0 0.0
    %3213 = vmatpush.xpose.msra.mxu0 0.0
    %3214 = vmatpush.xpose.msra.mxu0 0.0
    %3215 = vmatpush.xpose.msra.mxu0 0.0
    %3216 = vmatpush.xpose.msra.mxu0 %v3199
    %3217 = vmatmul.f32.gmra.mxu0 %v3197
    %v3218 = vpop.f32.mrf.mxu0
    %v3219 = vadd.f32 0.0, %v3218
    %3220 = vdwg.mxu0
    %v3221 = vmul.f32 %v3219, 0.25
    %v3222 = vadd.f32 %v3221, %v1978
    %v3223 = vsel %vm580, %v3222, -inf
    %3224 = vmax.xlane.f32.xlu0 %v3223
    %v3225 = vpop.xlane.xlu0 %3224
    %v3226 = vsub.f32 %v3222, %v3225
    %v3227 = vmul.f32 %v3226, 1.442695
    %v3228 = vpow.pop %v3227
    %v3229 = vsel %vm580, %v3228, 0.0
    %3230 = vadd.xlane.f32.xlu0 %v3229
    %v3231 = vpop.xlane.xlu0 %3230
    %v3232 = vrcp.pop %v3231
    %v3233 = vmul.f32 %v3231, %v3232
    %v3234 = vsub.f32 1.0, %v3233
    %v3235 = vmul.f32 %v3232, %v3234
    %v3236 = vadd.f32 %v3232, %v3235
    %vm3237 = vweird.f32 %v3231
    %vm3238 = vweird.f32 %v3232
    %vm3239 = vmor %vm3237, %vm3238
    %v3240 = vsel %vm3239, %v3232, %v3236
    %v3241 = vand.u32 2147483647, %v3231
    %vm3242 = vcmp.eq.f32.partialorder %v3241, 8.507059e+37
    %v3243 = vand.u32 %v3231, 2147483648
    %v3244 = vor.u32 1.1754944e-38, %v3243
    %v3245 = vsel %vm3242, %v3244, %v3240
    %v3246 = vmul.f32 %v3228, %v3245
    %3247 = vrot.lane.b32.xlu0 %v3189, 64
    %v3248 = vpop.permute.xlu0 %3247
    %v3251 = vsel %vm580, %v3246, 0
    %3253 = vmatpush.msra.mxu0 0.0
    %3254 = vmatpush.msra.mxu0 0.0
    %3255 = vmatpush.msra.mxu0 0.0
    %3256 = vmatpush.msra.mxu0 0.0
    %3257 = vmatpush.msra.mxu0 0.0
    %3258 = vmatpush.msra.mxu0 0.0
    %3259 = vmatpush.msra.mxu0 0.0
    %3260 = vmatpush.msra.mxu0 0.0
    %3261 = vmatpush.msra.mxu0 0.0
    %3262 = vmatpush.msra.mxu0 0.0
    %3263 = vmatpush.msra.mxu0 0.0
    %3264 = vmatpush.msra.mxu0 0.0
    %3265 = vmatpush.msra.mxu0 0.0
    %3266 = vmatpush.msra.mxu0 0.0
    %3267 = vmatpush.msra.mxu0 0.0
    %3268 = vmatpush.msra.mxu0 %v3248
    %3269 = vmatmul.f32.gmra.mxu0 %v3251
    %v3270 = vpop.f32.mrf.mxu0
    %v3271 = vadd.f32 0.0, %v3270
    %3272 = vdwg.mxu0
    %3273 = vrot.lane.b32.xlu0 %v3189, 112
    %v3274 = vpop.permute.xlu0 %3273
    %3275 = vrot.lane.b32.xlu0 %v3189, 80
    %v3276 = vpop.permute.xlu0 %3275
    %v3277 = vsel %vm552, %v3274, 0
    %v3279 = vsel %vm552, %v3276, 0
    %3281 = vmatpush.xpose.msra.mxu0 0.0
    %3282 = vmatpush.xpose.msra.mxu0 0.0
    %3283 = vmatpush.xpose.msra.mxu0 0.0
    %3284 = vmatpush.xpose.msra.mxu0 0.0
    %3285 = vmatpush.xpose.msra.mxu0 0.0
    %3286 = vmatpush.xpose.msra.mxu0 0.0
    %3287 = vmatpush.xpose.msra.mxu0 0.0
    %3288 = vmatpush.xpose.msra.mxu0 0.0
    %3289 = vmatpush.xpose.msra.mxu0 0.0
    %3290 = vmatpush.xpose.msra.mxu0 0.0
    %3291 = vmatpush.xpose.msra.mxu0 0.0
    %3292 = vmatpush.xpose.msra.mxu0 0.0
    %3293 = vmatpush.xpose.msra.mxu0 0.0
    %3294 = vmatpush.xpose.msra.mxu0 0.0
    %3295 = vmatpush.xpose.msra.mxu0 0.0
    %3296 = vmatpush.xpose.msra.mxu0 %v3279
    %3297 = vmatmul.f32.gmra.mxu0 %v3277
    %v3298 = vpop.f32.mrf.mxu0
    %v3299 = vadd.f32 0.0, %v3298
    %3300 = vdwg.mxu0
    %v3301 = vmul.f32 %v3299, 0.25
    %v3302 = vadd.f32 %v3301, %v1978
    %v3303 = vsel %vm580, %v3302, -inf
    %3304 = vmax.xlane.f32.xlu0 %v3303
    %v3305 = vpop.xlane.xlu0 %3304
    %v3306 = vsub.f32 %v3302, %v3305
    %v3307 = vmul.f32 %v3306, 1.442695
    %v3308 = vpow.pop %v3307
    %v3309 = vsel %vm580, %v3308, 0.0
    %3310 = vadd.xlane.f32.xlu0 %v3309
    %v3311 = vpop.xlane.xlu0 %3310
    %v3312 = vrcp.pop %v3311
    %v3313 = vmul.f32 %v3311, %v3312
    %v3314 = vsub.f32 1.0, %v3313
    %v3315 = vmul.f32 %v3312, %v3314
    %v3316 = vadd.f32 %v3312, %v3315
    %vm3317 = vweird.f32 %v3311
    %vm3318 = vweird.f32 %v3312
    %vm3319 = vmor %vm3317, %vm3318
    %v3320 = vsel %vm3319, %v3312, %v3316
    %v3321 = vand.u32 2147483647, %v3311
    %vm3322 = vcmp.eq.f32.partialorder %v3321, 8.507059e+37
    %v3323 = vand.u32 %v3311, 2147483648
    %v3324 = vor.u32 1.1754944e-38, %v3323
    %v3325 = vsel %vm3322, %v3324, %v3320
    %v3326 = vmul.f32 %v3308, %v3325
    %3327 = vrot.lane.b32.xlu0 %v3189, 48
    %v3328 = vpop.permute.xlu0 %3327
    %v3331 = vsel %vm580, %v3326, 0
    %3333 = vmatpush.msra.mxu0 0.0
    %3334 = vmatpush.msra.mxu0 0.0
    %3335 = vmatpush.msra.mxu0 0.0
    %3336 = vmatpush.msra.mxu0 0.0
    %3337 = vmatpush.msra.mxu0 0.0
    %3338 = vmatpush.msra.mxu0 0.0
    %3339 = vmatpush.msra.mxu0 0.0
    %3340 = vmatpush.msra.mxu0 0.0
    %3341 = vmatpush.msra.mxu0 0.0
    %3342 = vmatpush.msra.mxu0 0.0
    %3343 = vmatpush.msra.mxu0 0.0
    %3344 = vmatpush.msra.mxu0 0.0
    %3345 = vmatpush.msra.mxu0 0.0
    %3346 = vmatpush.msra.mxu0 0.0
    %3347 = vmatpush.msra.mxu0 0.0
    %3348 = vmatpush.msra.mxu0 %v3328
    %3349 = vmatmul.f32.gmra.mxu0 %v3331
    %v3350 = vpop.f32.mrf.mxu0
    %v3351 = vadd.f32 0.0, %v3350
    %3352 = vdwg.mxu0
    %3354 = vrot.lane.b32.xlu0 %v3351, 16
    %v3355 = vpop.permute.xlu0 %3354
    %v3357 = vsel %vm552, %v3271, %v3355
    %3359 = vrot.lane.b32.xlu0 %v3192, 96
    %v3360 = vpop.permute.xlu0 %3359
    %v3361 = vsel %vm552, %v3192, 0
    %v3363 = vsel %vm552, %v3360, 0
    %3365 = vmatpush.xpose.msra.mxu0 0.0
    %3366 = vmatpush.xpose.msra.mxu0 0.0
    %3367 = vmatpush.xpose.msra.mxu0 0.0
    %3368 = vmatpush.xpose.msra.mxu0 0.0
    %3369 = vmatpush.xpose.msra.mxu0 0.0
    %3370 = vmatpush.xpose.msra.mxu0 0.0
    %3371 = vmatpush.xpose.msra.mxu0 0.0
    %3372 = vmatpush.xpose.msra.mxu0 0.0
    %3373 = vmatpush.xpose.msra.mxu0 0.0
    %3374 = vmatpush.xpose.msra.mxu0 0.0
    %3375 = vmatpush.xpose.msra.mxu0 0.0
    %3376 = vmatpush.xpose.msra.mxu0 0.0
    %3377 = vmatpush.xpose.msra.mxu0 0.0
    %3378 = vmatpush.xpose.msra.mxu0 0.0
    %3379 = vmatpush.xpose.msra.mxu0 0.0
    %3380 = vmatpush.xpose.msra.mxu0 %v3363
    %3381 = vmatmul.f32.gmra.mxu0 %v3361
    %v3382 = vpop.f32.mrf.mxu0
    %v3383 = vadd.f32 0.0, %v3382
    %3384 = vdwg.mxu0
    %v3385 = vmul.f32 %v3383, 0.25
    %v3386 = vadd.f32 %v3385, %v1978
    %v3387 = vsel %vm580, %v3386, -inf
    %3388 = vmax.xlane.f32.xlu0 %v3387
    %v3389 = vpop.xlane.xlu0 %3388
    %v3390 = vsub.f32 %v3386, %v3389
    %v3391 = vmul.f32 %v3390, 1.442695
    %v3392 = vpow.pop %v3391
    %v3393 = vsel %vm580, %v3392, 0.0
    %3394 = vadd.xlane.f32.xlu0 %v3393
    %v3395 = vpop.xlane.xlu0 %3394
    %v3396 = vrcp.pop %v3395
    %v3397 = vmul.f32 %v3395, %v3396
    %v3398 = vsub.f32 1.0, %v3397
    %v3399 = vmul.f32 %v3396, %v3398
    %v3400 = vadd.f32 %v3396, %v3399
    %vm3401 = vweird.f32 %v3395
    %vm3402 = vweird.f32 %v3396
    %vm3403 = vmor %vm3401, %vm3402
    %v3404 = vsel %vm3403, %v3396, %v3400
    %v3405 = vand.u32 2147483647, %v3395
    %vm3406 = vcmp.eq.f32.partialorder %v3405, 8.507059e+37
    %v3407 = vand.u32 %v3395, 2147483648
    %v3408 = vor.u32 1.1754944e-38, %v3407
    %v3409 = vsel %vm3406, %v3408, %v3404
    %v3410 = vmul.f32 %v3392, %v3409
    %3411 = vrot.lane.b32.xlu0 %v3192, 64
    %v3412 = vpop.permute.xlu0 %3411
    %v3415 = vsel %vm580, %v3410, 0
    %3417 = vmatpush.msra.mxu0 0.0
    %3418 = vmatpush.msra.mxu0 0.0
    %3419 = vmatpush.msra.mxu0 0.0
    %3420 = vmatpush.msra.mxu0 0.0
    %3421 = vmatpush.msra.mxu0 0.0
    %3422 = vmatpush.msra.mxu0 0.0
    %3423 = vmatpush.msra.mxu0 0.0
    %3424 = vmatpush.msra.mxu0 0.0
    %3425 = vmatpush.msra.mxu0 0.0
    %3426 = vmatpush.msra.mxu0 0.0
    %3427 = vmatpush.msra.mxu0 0.0
    %3428 = vmatpush.msra.mxu0 0.0
    %3429 = vmatpush.msra.mxu0 0.0
    %3430 = vmatpush.msra.mxu0 0.0
    %3431 = vmatpush.msra.mxu0 0.0
    %3432 = vmatpush.msra.mxu0 %v3412
    %3433 = vmatmul.f32.gmra.mxu0 %v3415
    %v3434 = vpop.f32.mrf.mxu0
    %v3435 = vadd.f32 0.0, %v3434
    %3436 = vdwg.mxu0
    %3437 = vrot.lane.b32.xlu0 %v3192, 112
    %v3438 = vpop.permute.xlu0 %3437
    %3439 = vrot.lane.b32.xlu0 %v3192, 80
    %v3440 = vpop.permute.xlu0 %3439
    %v3441 = vsel %vm552, %v3438, 0
    %v3443 = vsel %vm552, %v3440, 0
    %3445 = vmatpush.xpose.msra.mxu0 0.0
    %3446 = vmatpush.xpose.msra.mxu0 0.0
    %3447 = vmatpush.xpose.msra.mxu0 0.0
    %3448 = vmatpush.xpose.msra.mxu0 0.0
    %3449 = vmatpush.xpose.msra.mxu0 0.0
    %3450 = vmatpush.xpose.msra.mxu0 0.0
    %3451 = vmatpush.xpose.msra.mxu0 0.0
    %3452 = vmatpush.xpose.msra.mxu0 0.0
    %3453 = vmatpush.xpose.msra.mxu0 0.0
    %3454 = vmatpush.xpose.msra.mxu0 0.0
    %3455 = vmatpush.xpose.msra.mxu0 0.0
    %3456 = vmatpush.xpose.msra.mxu0 0.0
    %3457 = vmatpush.xpose.msra.mxu0 0.0
    %3458 = vmatpush.xpose.msra.mxu0 0.0
    %3459 = vmatpush.xpose.msra.mxu0 0.0
    %3460 = vmatpush.xpose.msra.mxu0 %v3443
    %3461 = vmatmul.f32.gmra.mxu0 %v3441
    %v3462 = vpop.f32.mrf.mxu0
    %v3463 = vadd.f32 0.0, %v3462
    %3464 = vdwg.mxu0
    %v3465 = vmul.f32 %v3463, 0.25
    %v3466 = vadd.f32 %v3465, %v1978
    %v3467 = vsel %vm580, %v3466, -inf
    %3468 = vmax.xlane.f32.xlu0 %v3467
    %v3469 = vpop.xlane.xlu0 %3468
    %v3470 = vsub.f32 %v3466, %v3469
    %v3471 = vmul.f32 %v3470, 1.442695
    %v3472 = vpow.pop %v3471
    %v3473 = vsel %vm580, %v3472, 0.0
    %3474 = vadd.xlane.f32.xlu0 %v3473
    %v3475 = vpop.xlane.xlu0 %3474
    %v3476 = vrcp.pop %v3475
    %v3477 = vmul.f32 %v3475, %v3476
    %v3478 = vsub.f32 1.0, %v3477
    %v3479 = vmul.f32 %v3476, %v3478
    %v3480 = vadd.f32 %v3476, %v3479
    %vm3481 = vweird.f32 %v3475
    %vm3482 = vweird.f32 %v3476
    %vm3483 = vmor %vm3481, %vm3482
    %v3484 = vsel %vm3483, %v3476, %v3480
    %v3485 = vand.u32 2147483647, %v3475
    %vm3486 = vcmp.eq.f32.partialorder %v3485, 8.507059e+37
    %v3487 = vand.u32 %v3475, 2147483648
    %v3488 = vor.u32 1.1754944e-38, %v3487
    %v3489 = vsel %vm3486, %v3488, %v3484
    %v3490 = vmul.f32 %v3472, %v3489
    %3491 = vrot.lane.b32.xlu0 %v3192, 48
    %v3492 = vpop.permute.xlu0 %3491
    %v3495 = vsel %vm580, %v3490, 0
    %3497 = vmatpush.msra.mxu0 0.0
    %3498 = vmatpush.msra.mxu0 0.0
    %3499 = vmatpush.msra.mxu0 0.0
    %3500 = vmatpush.msra.mxu0 0.0
    %3501 = vmatpush.msra.mxu0 0.0
    %3502 = vmatpush.msra.mxu0 0.0
    %3503 = vmatpush.msra.mxu0 0.0
    %3504 = vmatpush.msra.mxu0 0.0
    %3505 = vmatpush.msra.mxu0 0.0
    %3506 = vmatpush.msra.mxu0 0.0
    %3507 = vmatpush.msra.mxu0 0.0
    %3508 = vmatpush.msra.mxu0 0.0
    %3509 = vmatpush.msra.mxu0 0.0
    %3510 = vmatpush.msra.mxu0 0.0
    %3511 = vmatpush.msra.mxu0 0.0
    %3512 = vmatpush.msra.mxu0 %v3492
    %3513 = vmatmul.f32.gmra.mxu0 %v3495
    %v3514 = vpop.f32.mrf.mxu0
    %v3515 = vadd.f32 0.0, %v3514
    %3516 = vdwg.mxu0
    %3518 = vrot.lane.b32.xlu0 %v3515, 16
    %v3519 = vpop.permute.xlu0 %3518
    %v3521 = vsel %vm552, %v3435, %v3519
    %s3522 = scalar_lea.vmem %s53, 32
    %v3523 = vld [vmem:[%s3522] sm:$0xff]
    %v3524 = vld [vmem:[%s3522 + $0x8] sm:$0xff]
    %v3525 = vld [vmem:[%s3522 + $0x10] sm:$0xff]
    %v3526 = vld [vmem:[%s3522 + $0x18] sm:$0xff]
    %s3527 = scalar_lea.vmem %s55, 1
    %v3528 = vld [vmem:[%s3527] sm:$0x1]
    %v3530 = vperm.slane %v3528, 0
    %v3533 = vsel %vm447, %v3357, 0
    %v3536 = vsel %vm447, %v3521, 0
    %3538 = vmatpush.msra.mxu0 0.0
    %3539 = vmatpush.msra.mxu0 0.0
    %3540 = vmatpush.msra.mxu0 0.0
    %3541 = vmatpush.msra.mxu0 0.0
    %3542 = vmatpush.msra.mxu0 0.0
    %3543 = vmatpush.msra.mxu0 0.0
    %3544 = vmatpush.msra.mxu0 0.0
    %3545 = vmatpush.msra.mxu0 0.0
    %3546 = vmatpush.msra.mxu0 0.0
    %3547 = vmatpush.msra.mxu0 0.0
    %3548 = vmatpush.msra.mxu0 0.0
    %3549 = vmatpush.msra.mxu0 0.0
    %3550 = vmatpush.msra.mxu0 %v3526
    %3551 = vmatpush.msra.mxu0 %v3525
    %3552 = vmatpush.msra.mxu0 %v3524
    %3553 = vmatpush.msra.mxu0 %v3523
    %3554 = vmatmul.f32.gmra.mxu0 %v3533
    %v3555 = vpop.f32.mrf.mxu0
    %v3556 = vadd.f32 %v3530, %v3555
    %3557 = vmatmul.f32.gmra.mxu0 %v3536
    %v3558 = vpop.f32.mrf.mxu0
    %v3559 = vadd.f32 %v3530, %v3558
    %3560 = vdwg.mxu0
    %v3561 = vadd.f32 %v3153, %v3556
    %v3562 = vadd.f32 %v3154, %v3559
    %s3563 = scalar_lea.vmem [#allocation7], 1
    %v3564 = vld [vmem:[%s3563] sm:$0x1]
    %s3565 = scalar_lea.vmem [#allocation8], 1
    %v3566 = vld [vmem:[%s3565] sm:$0x1]
    %v3567 = vsel %vm447, %v3561, 0.0
    %3568 = vadd.xlane.f32.xlu0 %v3567
    %v3569 = vpop.xlane.xlu0 %3568
    %v3570 = vsel %vm447, %v3562, 0.0
    %3571 = vadd.xlane.f32.xlu0 %v3570
    %v3572 = vpop.xlane.xlu0 %3571
    %v3573 = vmul.f32 %v3569, %v460
    %v3574 = vmul.f32 %v3572, %v460
    %v3575 = vsub.f32 %v3561, %v3573
    %v3576 = vsub.f32 %v3562, %v3574
    %v3577 = vmul.f32 %v3575, %v3575
    %v3578 = vmul.f32 %v3576, %v3576
    %v3579 = vsel %vm447, %v3577, 0.0
    %3580 = vadd.xlane.f32.xlu0 %v3579
    %v3581 = vpop.xlane.xlu0 %3580
    %v3582 = vsel %vm447, %v3578, 0.0
    %3583 = vadd.xlane.f32.xlu0 %v3582
    %v3584 = vpop.xlane.xlu0 %3583
    %v3585 = vmul.f32 %v3581, %v460
    %v3586 = vmul.f32 %v3584, %v460
    %v3587 = vadd.f32 %v3585, 1e-05
    %v3588 = vadd.f32 %v3586, 1e-05
    %v3589 = vrsqrt.pop %v3587
    %v3590 = vmul.f32 %v3589, %v3587
    %v3591 = vmul.f32 %v3590, %v3589
    %v3592 = vmul.f32 0.5, %v3591
    %v3593 = vsub.f32 1.5, %v3592
    %v3594 = vmul.f32 %v3589, %v3593
    %vm3595 = vweird.f32 %v3587
    %vm3596 = vweird.f32 %v3589
    %vm3597 = vmor %vm3595, %vm3596
    %v3598 = vsel %vm3597, %v3589, %v3594
    %v3599 = vrsqrt.pop %v3588
    %v3600 = vmul.f32 %v3599, %v3588
    %v3601 = vmul.f32 %v3600, %v3599
    %v3602 = vmul.f32 0.5, %v3601
    %v3603 = vsub.f32 1.5, %v3602
    %v3604 = vmul.f32 %v3599, %v3603
    %vm3605 = vweird.f32 %v3588
    %vm3606 = vweird.f32 %v3599
    %vm3607 = vmor %vm3605, %vm3606
    %v3608 = vsel %vm3607, %v3599, %v3604
    %v3609 = vmul.f32 %v3575, %v3598
    %v3610 = vmul.f32 %v3576, %v3608
    %v3612 = vperm.slane %v3564, 0
    %v3614 = vmul.f32 %v3609, %v3612
    %v3615 = vmul.f32 %v3610, %v3612
    %v3617 = vperm.slane %v3566, 0
    %v3619 = vadd.f32 %v3614, %v3617
    %v3620 = vadd.f32 %v3615, %v3617
    %s3621 = scalar_lea.vmem %s61, 32
    %v3622 = vld [vmem:[%s3621] sm:$0xff]
    %v3623 = vld [vmem:[%s3621 + $0x8] sm:$0xff]
    %v3624 = vld [vmem:[%s3621 + $0x10] sm:$0xff]
    %v3625 = vld [vmem:[%s3621 + $0x18] sm:$0xff]
    %s3626 = scalar_lea.vmem [#allocation10], 1
    %v3627 = vld [vmem:[%s3626] sm:$0x1]
    %v3629 = vperm.slane %v3627, 0
    %v3632 = vsel %vm447, %v3619, 0
    %v3635 = vsel %vm447, %v3620, 0
    %3637 = vmatpush.msra.mxu0 0.0
    %3638 = vmatpush.msra.mxu0 0.0
    %3639 = vmatpush.msra.mxu0 0.0
    %3640 = vmatpush.msra.mxu0 0.0
    %3641 = vmatpush.msra.mxu0 0.0
    %3642 = vmatpush.msra.mxu0 0.0
    %3643 = vmatpush.msra.mxu0 0.0
    %3644 = vmatpush.msra.mxu0 0.0
    %3645 = vmatpush.msra.mxu0 0.0
    %3646 = vmatpush.msra.mxu0 0.0
    %3647 = vmatpush.msra.mxu0 0.0
    %3648 = vmatpush.msra.mxu0 0.0
    %3649 = vmatpush.msra.mxu0 %v3625
    %3650 = vmatpush.msra.mxu0 %v3624
    %3651 = vmatpush.msra.mxu0 %v3623
    %3652 = vmatpush.msra.mxu0 %v3622
    %3653 = vmatmul.f32.gmra.mxu0 %v3632
    %v3654 = vpop.f32.mrf.mxu0
    %v3655 = vadd.f32 %v3629, %v3654
    %3656 = vmatmul.f32.gmra.mxu0 %v3635
    %v3657 = vpop.f32.mrf.mxu0
    %v3658 = vadd.f32 %v3629, %v3657
    %3659 = vdwg.mxu0
    %s3660 = scalar_lea.vmem %s65, 32
    %v3661 = vld [vmem:[%s3660] sm:$0xff]
    %v3662 = vld [vmem:[%s3660 + $0x8] sm:$0xff]
    %v3663 = vld [vmem:[%s3660 + $0x10] sm:$0xff]
    %v3664 = vld [vmem:[%s3660 + $0x18] sm:$0xff]
    %s3665 = scalar_lea.vmem [#allocation11], 1
    %v3666 = vld [vmem:[%s3665] sm:$0x1]
    %v3668 = vperm.slane %v3666, 0
    %3670 = vmatpush.msra.mxu0 0.0
    %3671 = vmatpush.msra.mxu0 0.0
    %3672 = vmatpush.msra.mxu0 0.0
    %3673 = vmatpush.msra.mxu0 0.0
    %3674 = vmatpush.msra.mxu0 0.0
    %3675 = vmatpush.msra.mxu0 0.0
    %3676 = vmatpush.msra.mxu0 0.0
    %3677 = vmatpush.msra.mxu0 0.0
    %3678 = vmatpush.msra.mxu0 0.0
    %3679 = vmatpush.msra.mxu0 0.0
    %3680 = vmatpush.msra.mxu0 0.0
    %3681 = vmatpush.msra.mxu0 0.0
    %3682 = vmatpush.msra.mxu0 %v3664
    %3683 = vmatpush.msra.mxu0 %v3663
    %3684 = vmatpush.msra.mxu0 %v3662
    %3685 = vmatpush.msra.mxu0 %v3661
    %3686 = vmatmul.f32.gmra.mxu0 %v2488
    %v3687 = vpop.f32.mrf.mxu0
    %v3688 = vadd.f32 %v3668, %v3687
    %3689 = vmatmul.f32.gmra.mxu0 %v2491
    %v3690 = vpop.f32.mrf.mxu0
    %v3691 = vadd.f32 %v3668, %v3690
    %3692 = vdwg.mxu0
    %v3694 = vsel %vm552, %v3655, 0
    %v3697 = vsel %vm552, %v3688, 0
    %3699 = vmatpush.xpose.msra.mxu0 0.0
    %3700 = vmatpush.xpose.msra.mxu0 0.0
    %3701 = vmatpush.xpose.msra.mxu0 0.0
    %3702 = vmatpush.xpose.msra.mxu0 0.0
    %3703 = vmatpush.xpose.msra.mxu0 0.0
    %3704 = vmatpush.xpose.msra.mxu0 0.0
    %3705 = vmatpush.xpose.msra.mxu0 0.0
    %3706 = vmatpush.xpose.msra.mxu0 0.0
    %3707 = vmatpush.xpose.msra.mxu0 0.0
    %3708 = vmatpush.xpose.msra.mxu0 0.0
    %3709 = vmatpush.xpose.msra.mxu0 0.0
    %3710 = vmatpush.xpose.msra.mxu0 0.0
    %3711 = vmatpush.xpose.msra.mxu0 0.0
    %3712 = vmatpush.xpose.msra.mxu0 0.0
    %3713 = vmatpush.xpose.msra.mxu0 0.0
    %3714 = vmatpush.xpose.msra.mxu0 %v3697
    %3715 = vmatmul.f32.gmra.mxu0 %v3694
    %v3716 = vpop.f32.mrf.mxu0
    %v3717 = vadd.f32 0.0, %v3716
    %3718 = vdwg.mxu0
    %v3719 = vmul.f32 %v3717, 0.25
    %v3720 = vadd.f32 %v3719, %v2543
    %v3721 = vsel %vm580, %v3720, -inf
    %3722 = vmax.xlane.f32.xlu0 %v3721
    %v3723 = vpop.xlane.xlu0 %3722
    %v3724 = vsub.f32 %v3720, %v3723
    %v3725 = vmul.f32 %v3724, 1.442695
    %v3726 = vpow.pop %v3725
    %v3727 = vsel %vm580, %v3726, 0.0
    %3728 = vadd.xlane.f32.xlu0 %v3727
    %v3729 = vpop.xlane.xlu0 %3728
    %v3730 = vrcp.pop %v3729
    %v3731 = vmul.f32 %v3729, %v3730
    %v3732 = vsub.f32 1.0, %v3731
    %v3733 = vmul.f32 %v3730, %v3732
    %v3734 = vadd.f32 %v3730, %v3733
    %vm3735 = vweird.f32 %v3729
    %vm3736 = vweird.f32 %v3730
    %vm3737 = vmor %vm3735, %vm3736
    %v3738 = vsel %vm3737, %v3730, %v3734
    %v3739 = vand.u32 2147483647, %v3729
    %vm3740 = vcmp.eq.f32.partialorder %v3739, 8.507059e+37
    %v3741 = vand.u32 %v3729, 2147483648
    %v3742 = vor.u32 1.1754944e-38, %v3741
    %v3743 = vsel %vm3740, %v3742, %v3738
    %v3744 = vmul.f32 %v3726, %v3743
    %3745 = vrot.lane.b32.xlu0 %v3688, 96
    %v3746 = vpop.permute.xlu0 %3745
    %v3749 = vsel %vm580, %v3744, 0
    %3751 = vmatpush.msra.mxu0 0.0
    %3752 = vmatpush.msra.mxu0 0.0
    %3753 = vmatpush.msra.mxu0 0.0
    %3754 = vmatpush.msra.mxu0 0.0
    %3755 = vmatpush.msra.mxu0 0.0
    %3756 = vmatpush.msra.mxu0 0.0
    %3757 = vmatpush.msra.mxu0 0.0
    %3758 = vmatpush.msra.mxu0 0.0
    %3759 = vmatpush.msra.mxu0 0.0
    %3760 = vmatpush.msra.mxu0 0.0
    %3761 = vmatpush.msra.mxu0 0.0
    %3762 = vmatpush.msra.mxu0 0.0
    %3763 = vmatpush.msra.mxu0 0.0
    %3764 = vmatpush.msra.mxu0 0.0
    %3765 = vmatpush.msra.mxu0 0.0
    %3766 = vmatpush.msra.mxu0 %v3746
    %3767 = vmatmul.f32.gmra.mxu0 %v3749
    %v3768 = vpop.f32.mrf.mxu0
    %v3769 = vadd.f32 0.0, %v3768
    %3770 = vdwg.mxu0
    %3771 = vrot.lane.b32.xlu0 %v3655, 112
    %v3772 = vpop.permute.xlu0 %3771
    %3773 = vrot.lane.b32.xlu0 %v3688, 112
    %v3774 = vpop.permute.xlu0 %3773
    %v3775 = vsel %vm552, %v3772, 0
    %v3777 = vsel %vm552, %v3774, 0
    %3779 = vmatpush.xpose.msra.mxu0 0.0
    %3780 = vmatpush.xpose.msra.mxu0 0.0
    %3781 = vmatpush.xpose.msra.mxu0 0.0
    %3782 = vmatpush.xpose.msra.mxu0 0.0
    %3783 = vmatpush.xpose.msra.mxu0 0.0
    %3784 = vmatpush.xpose.msra.mxu0 0.0
    %3785 = vmatpush.xpose.msra.mxu0 0.0
    %3786 = vmatpush.xpose.msra.mxu0 0.0
    %3787 = vmatpush.xpose.msra.mxu0 0.0
    %3788 = vmatpush.xpose.msra.mxu0 0.0
    %3789 = vmatpush.xpose.msra.mxu0 0.0
    %3790 = vmatpush.xpose.msra.mxu0 0.0
    %3791 = vmatpush.xpose.msra.mxu0 0.0
    %3792 = vmatpush.xpose.msra.mxu0 0.0
    %3793 = vmatpush.xpose.msra.mxu0 0.0
    %3794 = vmatpush.xpose.msra.mxu0 %v3777
    %3795 = vmatmul.f32.gmra.mxu0 %v3775
    %v3796 = vpop.f32.mrf.mxu0
    %v3797 = vadd.f32 0.0, %v3796
    %3798 = vdwg.mxu0
    %v3799 = vmul.f32 %v3797, 0.25
    %v3800 = vadd.f32 %v3799, %v2543
    %v3801 = vsel %vm580, %v3800, -inf
    %3802 = vmax.xlane.f32.xlu0 %v3801
    %v3803 = vpop.xlane.xlu0 %3802
    %v3804 = vsub.f32 %v3800, %v3803
    %v3805 = vmul.f32 %v3804, 1.442695
    %v3806 = vpow.pop %v3805
    %v3807 = vsel %vm580, %v3806, 0.0
    %3808 = vadd.xlane.f32.xlu0 %v3807
    %v3809 = vpop.xlane.xlu0 %3808
    %v3810 = vrcp.pop %v3809
    %v3811 = vmul.f32 %v3809, %v3810
    %v3812 = vsub.f32 1.0, %v3811
    %v3813 = vmul.f32 %v3810, %v3812
    %v3814 = vadd.f32 %v3810, %v3813
    %vm3815 = vweird.f32 %v3809
    %vm3816 = vweird.f32 %v3810
    %vm3817 = vmor %vm3815, %vm3816
    %v3818 = vsel %vm3817, %v3810, %v3814
    %v3819 = vand.u32 2147483647, %v3809
    %vm3820 = vcmp.eq.f32.partialorder %v3819, 8.507059e+37
    %v3821 = vand.u32 %v3809, 2147483648
    %v3822 = vor.u32 1.1754944e-38, %v3821
    %v3823 = vsel %vm3820, %v3822, %v3818
    %v3824 = vmul.f32 %v3806, %v3823
    %3825 = vrot.lane.b32.xlu0 %v3688, 80
    %v3826 = vpop.permute.xlu0 %3825
    %v3829 = vsel %vm580, %v3824, 0
    %3831 = vmatpush.msra.mxu0 0.0
    %3832 = vmatpush.msra.mxu0 0.0
    %3833 = vmatpush.msra.mxu0 0.0
    %3834 = vmatpush.msra.mxu0 0.0
    %3835 = vmatpush.msra.mxu0 0.0
    %3836 = vmatpush.msra.mxu0 0.0
    %3837 = vmatpush.msra.mxu0 0.0
    %3838 = vmatpush.msra.mxu0 0.0
    %3839 = vmatpush.msra.mxu0 0.0
    %3840 = vmatpush.msra.mxu0 0.0
    %3841 = vmatpush.msra.mxu0 0.0
    %3842 = vmatpush.msra.mxu0 0.0
    %3843 = vmatpush.msra.mxu0 0.0
    %3844 = vmatpush.msra.mxu0 0.0
    %3845 = vmatpush.msra.mxu0 0.0
    %3846 = vmatpush.msra.mxu0 %v3826
    %3847 = vmatmul.f32.gmra.mxu0 %v3829
    %v3848 = vpop.f32.mrf.mxu0
    %v3849 = vadd.f32 0.0, %v3848
    %3850 = vdwg.mxu0
    %3852 = vrot.lane.b32.xlu0 %v3849, 16
    %v3853 = vpop.permute.xlu0 %3852
    %v3855 = vsel %vm552, %v3769, %v3853
    %v3857 = vsel %vm552, %v3658, 0
    %v3860 = vsel %vm552, %v3691, 0
    %3862 = vmatpush.xpose.msra.mxu0 0.0
    %3863 = vmatpush.xpose.msra.mxu0 0.0
    %3864 = vmatpush.xpose.msra.mxu0 0.0
    %3865 = vmatpush.xpose.msra.mxu0 0.0
    %3866 = vmatpush.xpose.msra.mxu0 0.0
    %3867 = vmatpush.xpose.msra.mxu0 0.0
    %3868 = vmatpush.xpose.msra.mxu0 0.0
    %3869 = vmatpush.xpose.msra.mxu0 0.0
    %3870 = vmatpush.xpose.msra.mxu0 0.0
    %3871 = vmatpush.xpose.msra.mxu0 0.0
    %3872 = vmatpush.xpose.msra.mxu0 0.0
    %3873 = vmatpush.xpose.msra.mxu0 0.0
    %3874 = vmatpush.xpose.msra.mxu0 0.0
    %3875 = vmatpush.xpose.msra.mxu0 0.0
    %3876 = vmatpush.xpose.msra.mxu0 0.0
    %3877 = vmatpush.xpose.msra.mxu0 %v3860
    %3878 = vmatmul.f32.gmra.mxu0 %v3857
    %v3879 = vpop.f32.mrf.mxu0
    %v3880 = vadd.f32 0.0, %v3879
    %3881 = vdwg.mxu0
    %v3882 = vmul.f32 %v3880, 0.25
    %v3883 = vadd.f32 %v3882, %v2707
    %v3884 = vsel %vm580, %v3883, -inf
    %3885 = vmax.xlane.f32.xlu0 %v3884
    %v3886 = vpop.xlane.xlu0 %3885
    %v3887 = vsub.f32 %v3883, %v3886
    %v3888 = vmul.f32 %v3887, 1.442695
    %v3889 = vpow.pop %v3888
    %v3890 = vsel %vm580, %v3889, 0.0
    %3891 = vadd.xlane.f32.xlu0 %v3890
    %v3892 = vpop.xlane.xlu0 %3891
    %v3893 = vrcp.pop %v3892
    %v3894 = vmul.f32 %v3892, %v3893
    %v3895 = vsub.f32 1.0, %v3894
    %v3896 = vmul.f32 %v3893, %v3895
    %v3897 = vadd.f32 %v3893, %v3896
    %vm3898 = vweird.f32 %v3892
    %vm3899 = vweird.f32 %v3893
    %vm3900 = vmor %vm3898, %vm3899
    %v3901 = vsel %vm3900, %v3893, %v3897
    %v3902 = vand.u32 2147483647, %v3892
    %vm3903 = vcmp.eq.f32.partialorder %v3902, 8.507059e+37
    %v3904 = vand.u32 %v3892, 2147483648
    %v3905 = vor.u32 1.1754944e-38, %v3904
    %v3906 = vsel %vm3903, %v3905, %v3901
    %v3907 = vmul.f32 %v3889, %v3906
    %3908 = vrot.lane.b32.xlu0 %v3691, 96
    %v3909 = vpop.permute.xlu0 %3908
    %v3912 = vsel %vm580, %v3907, 0
    %3914 = vmatpush.msra.mxu0 0.0
    %3915 = vmatpush.msra.mxu0 0.0
    %3916 = vmatpush.msra.mxu0 0.0
    %3917 = vmatpush.msra.mxu0 0.0
    %3918 = vmatpush.msra.mxu0 0.0
    %3919 = vmatpush.msra.mxu0 0.0
    %3920 = vmatpush.msra.mxu0 0.0
    %3921 = vmatpush.msra.mxu0 0.0
    %3922 = vmatpush.msra.mxu0 0.0
    %3923 = vmatpush.msra.mxu0 0.0
    %3924 = vmatpush.msra.mxu0 0.0
    %3925 = vmatpush.msra.mxu0 0.0
    %3926 = vmatpush.msra.mxu0 0.0
    %3927 = vmatpush.msra.mxu0 0.0
    %3928 = vmatpush.msra.mxu0 0.0
    %3929 = vmatpush.msra.mxu0 %v3909
    %3930 = vmatmul.f32.gmra.mxu0 %v3912
    %v3931 = vpop.f32.mrf.mxu0
    %v3932 = vadd.f32 0.0, %v3931
    %3933 = vdwg.mxu0
    %3934 = vrot.lane.b32.xlu0 %v3658, 112
    %v3935 = vpop.permute.xlu0 %3934
    %3936 = vrot.lane.b32.xlu0 %v3691, 112
    %v3937 = vpop.permute.xlu0 %3936
    %v3938 = vsel %vm552, %v3935, 0
    %v3940 = vsel %vm552, %v3937, 0
    %3942 = vmatpush.xpose.msra.mxu0 0.0
    %3943 = vmatpush.xpose.msra.mxu0 0.0
    %3944 = vmatpush.xpose.msra.mxu0 0.0
    %3945 = vmatpush.xpose.msra.mxu0 0.0
    %3946 = vmatpush.xpose.msra.mxu0 0.0
    %3947 = vmatpush.xpose.msra.mxu0 0.0
    %3948 = vmatpush.xpose.msra.mxu0 0.0
    %3949 = vmatpush.xpose.msra.mxu0 0.0
    %3950 = vmatpush.xpose.msra.mxu0 0.0
    %3951 = vmatpush.xpose.msra.mxu0 0.0
    %3952 = vmatpush.xpose.msra.mxu0 0.0
    %3953 = vmatpush.xpose.msra.mxu0 0.0
    %3954 = vmatpush.xpose.msra.mxu0 0.0
    %3955 = vmatpush.xpose.msra.mxu0 0.0
    %3956 = vmatpush.xpose.msra.mxu0 0.0
    %3957 = vmatpush.xpose.msra.mxu0 %v3940
    %3958 = vmatmul.f32.gmra.mxu0 %v3938
    %v3959 = vpop.f32.mrf.mxu0
    %v3960 = vadd.f32 0.0, %v3959
    %3961 = vdwg.mxu0
    %v3962 = vmul.f32 %v3960, 0.25
    %v3963 = vadd.f32 %v3962, %v2707
    %v3964 = vsel %vm580, %v3963, -inf
    %3965 = vmax.xlane.f32.xlu0 %v3964
    %v3966 = vpop.xlane.xlu0 %3965
    %v3967 = vsub.f32 %v3963, %v3966
    %v3968 = vmul.f32 %v3967, 1.442695
    %v3969 = vpow.pop %v3968
    %v3970 = vsel %vm580, %v3969, 0.0
    %3971 = vadd.xlane.f32.xlu0 %v3970
    %v3972 = vpop.xlane.xlu0 %3971
    %v3973 = vrcp.pop %v3972
    %v3974 = vmul.f32 %v3972, %v3973
    %v3975 = vsub.f32 1.0, %v3974
    %v3976 = vmul.f32 %v3973, %v3975
    %v3977 = vadd.f32 %v3973, %v3976
    %vm3978 = vweird.f32 %v3972
    %vm3979 = vweird.f32 %v3973
    %vm3980 = vmor %vm3978, %vm3979
    %v3981 = vsel %vm3980, %v3973, %v3977
    %v3982 = vand.u32 2147483647, %v3972
    %vm3983 = vcmp.eq.f32.partialorder %v3982, 8.507059e+37
    %v3984 = vand.u32 %v3972, 2147483648
    %v3985 = vor.u32 1.1754944e-38, %v3984
    %v3986 = vsel %vm3983, %v3985, %v3981
    %v3987 = vmul.f32 %v3969, %v3986
    %3988 = vrot.lane.b32.xlu0 %v3691, 80
    %v3989 = vpop.permute.xlu0 %3988
    %v3992 = vsel %vm580, %v3987, 0
    %3994 = vmatpush.msra.mxu0 0.0
    %3995 = vmatpush.msra.mxu0 0.0
    %3996 = vmatpush.msra.mxu0 0.0
    %3997 = vmatpush.msra.mxu0 0.0
    %3998 = vmatpush.msra.mxu0 0.0
    %3999 = vmatpush.msra.mxu0 0.0
    %4000 = vmatpush.msra.mxu0 0.0
    %4001 = vmatpush.msra.mxu0 0.0
    %4002 = vmatpush.msra.mxu0 0.0
    %4003 = vmatpush.msra.mxu0 0.0
    %4004 = vmatpush.msra.mxu0 0.0
    %4005 = vmatpush.msra.mxu0 0.0
    %4006 = vmatpush.msra.mxu0 0.0
    %4007 = vmatpush.msra.mxu0 0.0
    %4008 = vmatpush.msra.mxu0 0.0
    %4009 = vmatpush.msra.mxu0 %v3989
    %4010 = vmatmul.f32.gmra.mxu0 %v3992
    %v4011 = vpop.f32.mrf.mxu0
    %v4012 = vadd.f32 0.0, %v4011
    %4013 = vdwg.mxu0
    %4015 = vrot.lane.b32.xlu0 %v4012, 16
    %v4016 = vpop.permute.xlu0 %4015
    %v4018 = vsel %vm552, %v3932, %v4016
    %s4019 = scalar_lea.vmem %s69, 32
    %v4020 = vld [vmem:[%s4019] sm:$0xff]
    %v4021 = vld [vmem:[%s4019 + $0x8] sm:$0xff]
    %v4022 = vld [vmem:[%s4019 + $0x10] sm:$0xff]
    %v4023 = vld [vmem:[%s4019 + $0x18] sm:$0xff]
    %s4024 = scalar_lea.vmem [#allocation13], 1
    %v4025 = vld [vmem:[%s4024] sm:$0x1]
    %v4027 = vperm.slane %v4025, 0
    %v4030 = vsel %vm447, %v3855, 0
    %v4033 = vsel %vm447, %v4018, 0
    %4035 = vmatpush.msra.mxu0 0.0
    %4036 = vmatpush.msra.mxu0 0.0
    %4037 = vmatpush.msra.mxu0 0.0
    %4038 = vmatpush.msra.mxu0 0.0
    %4039 = vmatpush.msra.mxu0 0.0
    %4040 = vmatpush.msra.mxu0 0.0
    %4041 = vmatpush.msra.mxu0 0.0
    %4042 = vmatpush.msra.mxu0 0.0
    %4043 = vmatpush.msra.mxu0 0.0
    %4044 = vmatpush.msra.mxu0 0.0
    %4045 = vmatpush.msra.mxu0 0.0
    %4046 = vmatpush.msra.mxu0 0.0
    %4047 = vmatpush.msra.mxu0 %v4023
    %4048 = vmatpush.msra.mxu0 %v4022
    %4049 = vmatpush.msra.mxu0 %v4021
    %4050 = vmatpush.msra.mxu0 %v4020
    %4051 = vmatmul.f32.gmra.mxu0 %v4030
    %v4052 = vpop.f32.mrf.mxu0
    %v4053 = vadd.f32 %v4027, %v4052
    %4054 = vmatmul.f32.gmra.mxu0 %v4033
    %v4055 = vpop.f32.mrf.mxu0
    %v4056 = vadd.f32 %v4027, %v4055
    %4057 = vdwg.mxu0
    %v4058 = vadd.f32 %v3619, %v4053
    %v4059 = vadd.f32 %v3620, %v4056
    %s4060 = scalar_lea.vmem [#allocation14], 1
    %v4061 = vld [vmem:[%s4060] sm:$0x1]
    %s4062 = scalar_lea.vmem [#allocation16], 1
    %v4063 = vld [vmem:[%s4062] sm:$0x1]
    %v4064 = vsel %vm447, %v4058, 0.0
    %4065 = vadd.xlane.f32.xlu0 %v4064
    %v4066 = vpop.xlane.xlu0 %4065
    %v4067 = vsel %vm447, %v4059, 0.0
    %4068 = vadd.xlane.f32.xlu0 %v4067
    %v4069 = vpop.xlane.xlu0 %4068
    %v4070 = vmul.f32 %v4066, %v460
    %v4071 = vmul.f32 %v4069, %v460
    %v4072 = vsub.f32 %v4058, %v4070
    %v4073 = vsub.f32 %v4059, %v4071
    %v4074 = vmul.f32 %v4072, %v4072
    %v4075 = vmul.f32 %v4073, %v4073
    %v4076 = vsel %vm447, %v4074, 0.0
    %4077 = vadd.xlane.f32.xlu0 %v4076
    %v4078 = vpop.xlane.xlu0 %4077
    %v4079 = vsel %vm447, %v4075, 0.0
    %4080 = vadd.xlane.f32.xlu0 %v4079
    %v4081 = vpop.xlane.xlu0 %4080
    %v4082 = vmul.f32 %v4078, %v460
    %v4083 = vmul.f32 %v4081, %v460
    %v4084 = vadd.f32 %v4082, 1e-05
    %v4085 = vadd.f32 %v4083, 1e-05
    %v4086 = vrsqrt.pop %v4084
    %v4087 = vmul.f32 %v4086, %v4084
    %v4088 = vmul.f32 %v4087, %v4086
    %v4089 = vmul.f32 0.5, %v4088
    %v4090 = vsub.f32 1.5, %v4089
    %v4091 = vmul.f32 %v4086, %v4090
    %vm4092 = vweird.f32 %v4084
    %vm4093 = vweird.f32 %v4086
    %vm4094 = vmor %vm4092, %vm4093
    %v4095 = vsel %vm4094, %v4086, %v4091
    %v4096 = vrsqrt.pop %v4085
    %v4097 = vmul.f32 %v4096, %v4085
    %v4098 = vmul.f32 %v4097, %v4096
    %v4099 = vmul.f32 0.5, %v4098
    %v4100 = vsub.f32 1.5, %v4099
    %v4101 = vmul.f32 %v4096, %v4100
    %vm4102 = vweird.f32 %v4085
    %vm4103 = vweird.f32 %v4096
    %vm4104 = vmor %vm4102, %vm4103
    %v4105 = vsel %vm4104, %v4096, %v4101
    %v4106 = vmul.f32 %v4072, %v4095
    %v4107 = vmul.f32 %v4073, %v4105
    %v4109 = vperm.slane %v4061, 0
    %v4111 = vmul.f32 %v4106, %v4109
    %v4112 = vmul.f32 %v4107, %v4109
    %v4114 = vperm.slane %v4063, 0
    %v4116 = vadd.f32 %v4111, %v4114
    %v4117 = vadd.f32 %v4112, %v4114
    %s4118 = scalar_lea.vmem %s77, 32
    %v4119 = vld [vmem:[%s4118] sm:$0xff]
    %v4120 = vld [vmem:[%s4118 + $0x8] sm:$0xff]
    %v4121 = vld [vmem:[%s4118 + $0x10] sm:$0xff]
    %v4122 = vld [vmem:[%s4118 + $0x18] sm:$0xff]
    %s4123 = scalar_lea.vmem [#allocation17], 1
    %v4124 = vld [vmem:[%s4123] sm:$0x1]
    %v4126 = vperm.slane %v4124, 0
    %v4129 = vsel %vm447, %v4116, 0
    %v4132 = vsel %vm447, %v4117, 0
    %4134 = vmatpush.msra.mxu0 0.0
    %4135 = vmatpush.msra.mxu0 0.0
    %4136 = vmatpush.msra.mxu0 0.0
    %4137 = vmatpush.msra.mxu0 0.0
    %4138 = vmatpush.msra.mxu0 0.0
    %4139 = vmatpush.msra.mxu0 0.0
    %4140 = vmatpush.msra.mxu0 0.0
    %4141 = vmatpush.msra.mxu0 0.0
    %4142 = vmatpush.msra.mxu0 0.0
    %4143 = vmatpush.msra.mxu0 0.0
    %4144 = vmatpush.msra.mxu0 0.0
    %4145 = vmatpush.msra.mxu0 0.0
    %4146 = vmatpush.msra.mxu0 %v4122
    %4147 = vmatpush.msra.mxu0 %v4121
    %4148 = vmatpush.msra.mxu0 %v4120
    %4149 = vmatpush.msra.mxu0 %v4119
    %4150 = vmatmul.f32.gmra.mxu0 %v4129
    %v4151 = vpop.f32.mrf.mxu0
    %v4152 = vadd.f32 %v4126, %v4151
    %4153 = vmatmul.f32.gmra.mxu0 %v4132
    %v4154 = vpop.f32.mrf.mxu0
    %v4155 = vadd.f32 %v4126, %v4154
    %4156 = vdwg.mxu0
    %v4157 = vmul.f32 %v4152, 0.5
    %v4158 = vmul.f32 %v4155, 0.5
    %v4159 = vmul.f32 %v4152, 0.70710677
    %v4160 = vmul.f32 %v4155, 0.70710677
    %v4161 = vand.u32 2147483647, %v4159
    %v4162 = vand.u32 2147483647, %v4160
    %v4163 = vmul.f32 %v4161, 0.3275911
    %v4164 = vmul.f32 %v4162, 0.3275911
    %v4165 = vadd.f32 %v4163, 1.0
    %v4166 = vadd.f32 %v4164, 1.0
    %v4167 = vrcp.pop %v4165
    %v4168 = vmul.f32 %v4165, %v4167
    %v4169 = vsub.f32 1.0, %v4168
    %v4170 = vmul.f32 %v4167, %v4169
    %v4171 = vadd.f32 %v4167, %v4170
    %vm4172 = vweird.f32 %v4165
    %vm4173 = vweird.f32 %v4167
    %vm4174 = vmor %vm4172, %vm4173
    %v4175 = vsel %vm4174, %v4167, %v4171
    %v4176 = vand.u32 2147483647, %v4165
    %vm4177 = vcmp.eq.f32.partialorder %v4176, 8.507059e+37
    %v4178 = vand.u32 %v4165, 2147483648
    %v4179 = vor.u32 1.1754944e-38, %v4178
    %v4180 = vsel %vm4177, %v4179, %v4175
    %v4181 = vmul.f32 1.0, %v4180
    %v4182 = vrcp.pop %v4166
    %v4183 = vmul.f32 %v4166, %v4182
    %v4184 = vsub.f32 1.0, %v4183
    %v4185 = vmul.f32 %v4182, %v4184
    %v4186 = vadd.f32 %v4182, %v4185
    %vm4187 = vweird.f32 %v4166
    %vm4188 = vweird.f32 %v4182
    %vm4189 = vmor %vm4187, %vm4188
    %v4190 = vsel %vm4189, %v4182, %v4186
    %v4191 = vand.u32 2147483647, %v4166
    %vm4192 = vcmp.eq.f32.partialorder %v4191, 8.507059e+37
    %v4193 = vand.u32 %v4166, 2147483648
    %v4194 = vor.u32 1.1754944e-38, %v4193
    %v4195 = vsel %vm4192, %v4194, %v4190
    %v4196 = vmul.f32 1.0, %v4195
    %v4197 = vmul.f32 %v4181, 1.0614054
    %v4198 = vmul.f32 %v4196, 1.0614054
    %v4199 = vsub.f32 %v4197, 1.4531521
    %v4200 = vsub.f32 %v4198, 1.4531521
    %v4201 = vmul.f32 %v4199, %v4181
    %v4202 = vmul.f32 %v4200, %v4196
    %v4203 = vadd.f32 %v4201, 1.4214138
    %v4204 = vadd.f32 %v4202, 1.4214138
    %v4205 = vmul.f32 %v4203, %v4181
    %v4206 = vmul.f32 %v4204, %v4196
    %v4207 = vsub.f32 %v4205, 0.28449672
    %v4208 = vsub.f32 %v4206, 0.28449672
    %v4209 = vmul.f32 %v4207, %v4181
    %v4210 = vmul.f32 %v4208, %v4196
    %v4211 = vadd.f32 %v4209, 0.2548296
    %v4212 = vadd.f32 %v4210, 0.2548296
    %v4213 = vmul.f32 %v4211, %v4181
    %v4214 = vmul.f32 %v4212, %v4196
    %v4215 = vmul.f32 %v4161, %v4161
    %v4216 = vmul.f32 %v4162, %v4162
    %v4217 = vsub.f32 0.0, %v4215
    %v4218 = vsub.f32 0.0, %v4216
    %v4219 = vmul.f32 %v4217, 1.442695
    %v4220 = vpow.pop %v4219
    %v4221 = vmul.f32 %v4218, 1.442695
    %v4222 = vpow.pop %v4221
    %v4223 = vmul.f32 %v4213, %v4220
    %v4224 = vmul.f32 %v4214, %v4222
    %v4225 = vsub.f32 1.0, %v4223
    %v4226 = vsub.f32 1.0, %v4224
    %vm4227 = vcmp.ge.f32.partialorder %v4159, 0.0
    %vm4228 = vcmp.ge.f32.partialorder %v4160, 0.0
    %v4229 = vsub.f32 0.0, %v4225
    %v4230 = vsub.f32 0.0, %v4226
    %v4231 = vsel %vm4227, %v4225, %v4229
    %v4232 = vsel %vm4228, %v4226, %v4230
    %v4233 = vadd.f32 %v4231, 1.0
    %v4234 = vadd.f32 %v4232, 1.0
    %v4235 = vmul.f32 %v4157, %v4233
    %v4236 = vmul.f32 %v4158, %v4234
    %s4237 = scalar_lea.vmem %s81, 64
    %v4238 = vld [vmem:[%s4237] sm:$0xff]
    %v4239 = vld [vmem:[%s4237 + $0x8] sm:$0xff]
    %v4240 = vld [vmem:[%s4237 + $0x10] sm:$0xff]
    %v4241 = vld [vmem:[%s4237 + $0x18] sm:$0xff]
    %v4242 = vld [vmem:[%s4237 + $0x20] sm:$0xff]
    %v4243 = vld [vmem:[%s4237 + $0x28] sm:$0xff]
    %v4244 = vld [vmem:[%s4237 + $0x30] sm:$0xff]
    %v4245 = vld [vmem:[%s4237 + $0x38] sm:$0xff]
    %s4246 = scalar_lea.vmem [#allocation19], 1
    %v4247 = vld [vmem:[%s4246] sm:$0x1]
    %v4249 = vperm.slane %v4247, 0
    %v4252 = vsel %vm1105, %v4235, 0
    %v4255 = vsel %vm1105, %v4236, 0
    %4257 = vmatpush.msra.mxu0 0.0
    %4258 = vmatpush.msra.mxu0 0.0
    %4259 = vmatpush.msra.mxu0 0.0
    %4260 = vmatpush.msra.mxu0 0.0
    %4261 = vmatpush.msra.mxu0 0.0
    %4262 = vmatpush.msra.mxu0 0.0
    %4263 = vmatpush.msra.mxu0 0.0
    %4264 = vmatpush.msra.mxu0 0.0
    %4265 = vmatpush.msra.mxu0 %v4245
    %4266 = vmatpush.msra.mxu0 %v4244
    %4267 = vmatpush.msra.mxu0 %v4243
    %4268 = vmatpush.msra.mxu0 %v4242
    %4269 = vmatpush.msra.mxu0 %v4241
    %4270 = vmatpush.msra.mxu0 %v4240
    %4271 = vmatpush.msra.mxu0 %v4239
    %4272 = vmatpush.msra.mxu0 %v4238
    %4273 = vmatmul.f32.gmra.mxu0 %v4252
    %v4274 = vpop.f32.mrf.mxu0
    %v4275 = vadd.f32 %v4249, %v4274
    %4276 = vmatmul.f32.gmra.mxu0 %v4255
    %v4277 = vpop.f32.mrf.mxu0
    %v4278 = vadd.f32 %v4249, %v4277
    %4279 = vdwg.mxu0
    %v4280 = vadd.f32 %v4116, %v4275
    %v4281 = vadd.f32 %v4117, %v4278
    %s4282 = scalar_lea.vmem [#allocation20], 1
    %v4283 = vld [vmem:[%s4282] sm:$0x1]
    %s4284 = scalar_lea.vmem [#allocation22], 1
    %v4285 = vld [vmem:[%s4284] sm:$0x1]
    %v4286 = vsel %vm447, %v4280, 0.0
    %4287 = vadd.xlane.f32.xlu0 %v4286
    %v4288 = vpop.xlane.xlu0 %4287
    %v4289 = vsel %vm447, %v4281, 0.0
    %4290 = vadd.xlane.f32.xlu0 %v4289
    %v4291 = vpop.xlane.xlu0 %4290
    %v4292 = vmul.f32 %v4288, %v460
    %v4293 = vmul.f32 %v4291, %v460
    %v4294 = vsub.f32 %v4280, %v4292
    %v4295 = vsub.f32 %v4281, %v4293
    %v4296 = vmul.f32 %v4294, %v4294
    %v4297 = vmul.f32 %v4295, %v4295
    %v4298 = vsel %vm447, %v4296, 0.0
    %4299 = vadd.xlane.f32.xlu0 %v4298
    %v4300 = vpop.xlane.xlu0 %4299
    %v4301 = vsel %vm447, %v4297, 0.0
    %4302 = vadd.xlane.f32.xlu0 %v4301
    %v4303 = vpop.xlane.xlu0 %4302
    %v4304 = vmul.f32 %v4300, %v460
    %v4305 = vmul.f32 %v4303, %v460
    %v4306 = vadd.f32 %v4304, 1e-05
    %v4307 = vadd.f32 %v4305, 1e-05
    %v4308 = vrsqrt.pop %v4306
    %v4309 = vmul.f32 %v4308, %v4306
    %v4310 = vmul.f32 %v4309, %v4308
    %v4311 = vmul.f32 0.5, %v4310
    %v4312 = vsub.f32 1.5, %v4311
    %v4313 = vmul.f32 %v4308, %v4312
    %vm4314 = vweird.f32 %v4306
    %vm4315 = vweird.f32 %v4308
    %vm4316 = vmor %vm4314, %vm4315
    %v4317 = vsel %vm4316, %v4308, %v4313
    %v4318 = vrsqrt.pop %v4307
    %v4319 = vmul.f32 %v4318, %v4307
    %v4320 = vmul.f32 %v4319, %v4318
    %v4321 = vmul.f32 0.5, %v4320
    %v4322 = vsub.f32 1.5, %v4321
    %v4323 = vmul.f32 %v4318, %v4322
    %vm4324 = vweird.f32 %v4307
    %vm4325 = vweird.f32 %v4318
    %vm4326 = vmor %vm4324, %vm4325
    %v4327 = vsel %vm4326, %v4318, %v4323
    %v4328 = vmul.f32 %v4294, %v4317
    %v4329 = vmul.f32 %v4295, %v4327
    %v4331 = vperm.slane %v4283, 0
    %v4333 = vmul.f32 %v4328, %v4331
    %v4334 = vmul.f32 %v4329, %v4331
    %v4336 = vperm.slane %v4285, 0
    %v4338 = vadd.f32 %v4333, %v4336
    %v4339 = vadd.f32 %v4334, %v4336
    %v4340 = vld [vmem:[%s89] sm:$0x1]
    %v4342 = vperm.slane %v4340, 0
    %v4345 = vsel %vm447, %v4338, 0
    %v4348 = vsel %vm447, %v4339, 0
    %v4351 = vsel %vm447, %v391, 0
    %v4354 = vsel %vm447, %v392, 0
    %v4357 = vsel %vm447, %v393, 0
    %v4360 = vsel %vm447, %v394, 0
    %v4363 = vsel %vm447, %v395, 0
    %v4366 = vsel %vm447, %v396, 0
    %v4369 = vsel %vm447, %v397, 0
    %v4372 = vsel %vm447, %v398, 0
    %v4375 = vsel %vm447, %v399, 0
    %v4378 = vsel %vm447, %v400, 0
    %v4381 = vsel %vm447, %v401, 0
    %v4384 = vsel %vm447, %v402, 0
    %v4387 = vsel %vm447, %v403, 0
    %v4390 = vsel %vm447, %v404, 0
    %v4393 = vsel %vm447, %v405, 0
    %v4396 = vsel %vm447, %v406, 0
    %4398 = vmatpush.xpose.msra.mxu0 %v4396
    %4399 = vmatpush.xpose.msra.mxu0 %v4393
    %4400 = vmatpush.xpose.msra.mxu0 %v4390
    %4401 = vmatpush.xpose.msra.mxu0 %v4387
    %4402 = vmatpush.xpose.msra.mxu0 %v4384
    %4403 = vmatpush.xpose.msra.mxu0 %v4381
    %4404 = vmatpush.xpose.msra.mxu0 %v4378
    %4405 = vmatpush.xpose.msra.mxu0 %v4375
    %4406 = vmatpush.xpose.msra.mxu0 %v4372
    %4407 = vmatpush.xpose.msra.mxu0 %v4369
    %4408 = vmatpush.xpose.msra.mxu0 %v4366
    %4409 = vmatpush.xpose.msra.mxu0 %v4363
    %4410 = vmatpush.xpose.msra.mxu0 %v4360
    %4411 = vmatpush.xpose.msra.mxu0 %v4357
    %4412 = vmatpush.xpose.msra.mxu0 %v4354
    %4413 = vmatpush.xpose.msra.mxu0 %v4351
    %4414 = vmatmul.f32.gmra.mxu0 %v4345
    %v4415 = vpop.f32.mrf.mxu0
    %v4416 = vadd.f32 %v4342, %v4415
    %4417 = vmatmul.f32.gmra.mxu0 %v4348
    %v4418 = vpop.f32.mrf.mxu0
    %v4419 = vadd.f32 %v4342, %v4418
    %4420 = vdwg.mxu0
    %4421 = vst [vmem:[#allocation23] sm:$0xff] %v4416
    %4422 = vst [vmem:[#allocation23 + $0x8] sm:$0xff] %v4419
    %v4423 = vld [vmem:[%s7] sm:$0xff]
    %v4424 = vld [vmem:[%s7 + $0x8] sm:$0xff]
    %4425 = vmax.xlane.f32.xlu0 %v4416
    %v4426 = vpop.xlane.xlu0 %4425
    %4427 = vmax.xlane.f32.xlu0 %v4419
    %v4428 = vpop.xlane.xlu0 %4427
    %v4429 = vsub.f32 %v4416, %v4426
    %v4430 = vsub.f32 %v4419, %v4428
    %v4431 = vmul.f32 %v4429, 1.442695
    %v4432 = vpow.pop %v4431
    %v4433 = vmul.f32 %v4430, 1.442695
    %v4434 = vpow.pop %v4433
    %4435 = vadd.xlane.f32.xlu0 %v4432
    %v4436 = vpop.xlane.xlu0 %4435
    %4437 = vadd.xlane.f32.xlu0 %v4434
    %v4438 = vpop.xlane.xlu0 %4437
    %v4439 = vlog2.pop %v4436
    %v4440 = vmul.f32 %v4439, 0.6931472
    %v4441 = vlog2.pop %v4438
    %v4442 = vmul.f32 %v4441, 0.6931472
    %v4443 = vadd.f32 %v4440, %v4426
    %v4444 = vadd.f32 %v4442, %v4428
    %4445 = vset.pattern.permute.xlu0 0
    %4446 = vperm.xlu0 %4445, %v4423
    %v4447 = vpop.permute.xlu0 %4446
    %4448 = vset.pattern.permute.xlu0 0
    %4449 = vperm.xlu0 %4448, %v4424
    %v4450 = vpop.permute.xlu0 %4449
    %vm4451 = vcmp.eq.s32.totalorder %v409, %v4447
    %vm4452 = vcmp.eq.s32.totalorder %v409, %v4450
    %v4453 = vsel %vm4451, 1, 0
    %v4454 = vsel %vm4452, 1, 0
    %v4455 = vcvt.s32.f32 %v4453
    %v4456 = vcvt.s32.f32 %v4454
    %v4457 = vmul.f32 %v4416, %v4455
    %v4458 = vmul.f32 %v4419, %v4456
    %4459 = vadd.xlane.f32.xlu0 %v4457
    %v4460 = vpop.xlane.xlu0 %4459
    %4461 = vadd.xlane.f32.xlu0 %v4458
    %v4462 = vpop.xlane.xlu0 %4461
    %vm4463 = vcmp.ne.s32.totalorder %v4423, 4294967196
    %vm4464 = vcmp.ne.s32.totalorder %v4424, 4294967196
    %v4465 = vsel %vm4463, 1, 0
    %v4466 = vsel %vm4464, 1, 0
    %v4467 = vcvt.s32.f32 %v4465
    %v4468 = vcvt.s32.f32 %v4466
    %v4469 = vsub.f32 %v4443, %v4460
    %v4470 = vsub.f32 %v4444, %v4462
    %v4471 = vmul.f32 %v4469, %v4467
    %v4472 = vmul.f32 %v4470, %v4468
    %vm4473 = vcmask 7168
    %v4474 = vsel %vm4473, %v4471, 0.0
    %v4475 = vsel %vm4473, %v4472, 0.0
    %v4476 = vadd.f32 %v4474, %v4475
    %4477 = vadd.xlane.f32.xlu0 %v4476
    %v4478 = vpop.xlane.xlu0 %4477
    %v4479 = vrot.slane %v4478, 4
    %v4480 = vadd.f32 %v4478, %v4479
    %v4481 = vrot.slane %v4480, 2
    %v4482 = vadd.f32 %v4480, %v4481
    %v4483 = vrot.slane %v4482, 1
    %v4484 = vadd.f32 %v4482, %v4483
    %s4485 = vtos %v4484
    %v4486 = vstv %s4485
    %v4487 = vsel %vm4473, %v4467, 0.0
    %v4488 = vsel %vm4473, %v4468, 0.0
    %v4489 = vadd.f32 %v4487, %v4488
    %4490 = vadd.xlane.f32.xlu0 %v4489
    %v4491 = vpop.xlane.xlu0 %4490
    %v4492 = vrot.slane %v4491, 4
    %v4493 = vadd.f32 %v4491, %v4492
    %v4494 = vrot.slane %v4493, 2
    %v4495 = vadd.f32 %v4493, %v4494
    %v4496 = vrot.slane %v4495, 1
    %v4497 = vadd.f32 %v4495, %v4496
    %s4498 = vtos %v4497
    %v4499 = vstv %s4498
    %v4500 = vrcp.pop %v4499
    %v4501 = vmul.f32 %v4499, %v4500
    %v4502 = vsub.f32 1.0, %v4501
    %v4503 = vmul.f32 %v4500, %v4502
    %v4504 = vadd.f32 %v4500, %v4503
    %vm4505 = vweird.f32 %v4499
    %vm4506 = vweird.f32 %v4500
    %vm4507 = vmor %vm4505, %vm4506
    %v4508 = vsel %vm4507, %v4500, %v4504
    %v4509 = vand.u32 2147483647, %v4499
    %vm4510 = vcmp.eq.f32.partialorder %v4509, 8.507059e+37
    %v4511 = vand.u32 %v4499, 2147483648
    %v4512 = vor.u32 1.1754944e-38, %v4511
    %v4513 = vsel %vm4510, %v4512, %v4508
    %v4514 = vmul.f32 %v4486, %v4513
    %vm4515 = vcmask 0
    %4516 = vst.msk [vmem:[#allocation24] sm:$0x1] %vm4515, %v4514
    // Predicated region
    $region234: #{bart_embedder_forward.1} parent=1 // pred_check
      _
    $region235: #{bart_embedder_forward.1} parent=1 // pred_check_branch
      %4518 = sbr.rel (0) target = $region237
    $region236: #{bart_embedder_forward.1} parent=1 // pred_region
      %4520 = vsyncadd [#allocation4], 0
      %s4521 = sshll.u32 [#allocation23], 4
      %s4522 = int_to_ptr.vmem [resolvable:$true] %s4521
      %s4523 = sshll.u32 %s91, 4
      %s4524 = int_to_ptr.hbm [resolvable:$true] %s4523
      %4529 = dma.vmem_to_hbm [thread:$0]  %s4522, 256, %s4524, [#allocation4], 128, 128, 8
    $region237: #{bart_embedder_forward.1} parent=1 // pred_fallthru
      _
    // Predicated region
    $region238: #{bart_embedder_forward.1} parent=1 // pred_check
      _
    $region239: #{bart_embedder_forward.1} parent=1 // pred_check_branch
      %4531 = sbr.rel (0) target = $region241
    $region240: #{bart_embedder_forward.1} parent=1 // pred_region
      %4533 = vsyncadd [#allocation25], 0
      %s4535 = sshll.u32 [#allocation24], 4
      %s4536 = int_to_ptr.vmem [resolvable:$true] %s4535
      %s4537 = sshll.u32 %s93, 4
      %s4538 = int_to_ptr.hbm [resolvable:$true] %s4537
      %4540 = dma.vmem_to_hbm [thread:$0]  %s4536, 16, %s4538, [#allocation25]
    $region241: #{bart_embedder_forward.1} parent=1 // pred_fallthru
      _
    // Predicated region
    $region242: #{bart_embedder_forward.1} parent=1 // pred_check
      _
    $region243: #{bart_embedder_forward.1} parent=1 // pred_check_branch
      %4542 = sbr.rel (0) target = $region245
    $region244: #{bart_embedder_forward.1} parent=1 // pred_region
      %4544 = dma.done [#allocation4], 256
    $region245: #{bart_embedder_forward.1} parent=1 // pred_fallthru
      _
    // Predicated region
    $region246: #{bart_embedder_forward.1} parent=1 // pred_check
      _
    $region247: #{bart_embedder_forward.1} parent=1 // pred_check_branch
      %4546 = sbr.rel (0) target = $region249
    $region248: #{bart_embedder_forward.1} parent=1 // pred_region
      %4548 = dma.done [#allocation25], 16
    $region249: #{bart_embedder_forward.1} parent=1 // pred_fallthru
      _
    %4549 = vsyncpa [#allocation3], 1
    %4550 = vsyncpa [#allocation6], 1
    %4551 = vsyncpa [#allocation9], 1
    %4552 = vsyncpa [#allocation12], 1
    %4553 = vsyncpa [#allocation15], 1
    %4554 = vsyncpa [#allocation18], 1
    %4555 = vsyncpa [#allocation21], 1
    %4556 = vsyncpa [#allocation4], 1
    %4557 = vsyncpa [#allocation25], 1

</llo_original>
